<compile_context>
chip_gen: v7x
topology: tpu7x:2x2x1
jax: 0.10.0
libtpu: 0.0.40
codegen_flags: <defaults>
</compile_context>

<pallas_src>
import functools
import math

import jax
import jax.numpy as jnp
from jax.experimental import pallas as pl
from jax.experimental.pallas import tpu as pltpu


# ---------------------------------------------------------------------------
# Fused Pallas kernel: LN + (shift, fc, dwconv+GELU) x 3 stages + residual
# ---------------------------------------------------------------------------

def _fused_block_kernel(x_ref, didx_ref, hidx_ref, widx_ref,
                        ln_g_ref, ln_b_ref,
                        fc1_w_ref, fc1_b_ref, dw1_w_ref, dw1_b_ref,
                        fc2_w_ref, fc2_b_ref, dw2_w_ref, dw2_b_ref,
                        fc3_w_ref, fc3_b_ref,
                        o_ref, *, D, H, W, shift_size, pad):
    f32 = jnp.float32
    C, N = o_ref.shape                      # channels-first (C, N = D*H*W)
    HW = H * W
    g_size = C // shift_size
    inv_sqrt2 = 1.0 / math.sqrt(2.0)

    x = x_ref[...].astype(f32)              # (C, N) original input (for residual)
    d_idx = didx_ref[...]                   # (1, N) int32 spatial coordinates
    h_idx = hidx_ref[...]
    w_idx = widx_ref[...]

    # ---- LayerNorm over channels (sublane axis) ----
    mean = jnp.mean(x, axis=0, keepdims=True)
    xc = x - mean
    var = jnp.mean(xc * xc, axis=0, keepdims=True)
    h = xc * jax.lax.rsqrt(var + 1e-5)
    h = h * ln_g_ref[...].astype(f32) + ln_b_ref[...].astype(f32)

    # ---- precomputed masks (shared across stages) ----
    # channel-group masks for the per-group axial shift (groups of C//5 channels)
    c_iota = jax.lax.broadcasted_iota(jnp.int32, (C, N), 0)
    ch_masks = [((c_iota >= g * g_size) & (c_iota < (g + 1) * g_size)).astype(f32)
                for g in range(shift_size)]

    # per-offset validity masks for the 3x3x3 depthwise conv taps
    off3 = (-1, 0, 1)
    d_ok = [((d_idx + o >= 0) & (d_idx + o < D)).astype(f32) for o in off3]
    h_ok = [((h_idx + o >= 0) & (h_idx + o < H)).astype(f32) for o in off3]
    w_ok = [((w_idx + o >= 0) & (w_idx + o < W)).astype(f32) for o in off3]
    tap_masks, tap_shifts = [], []
    for kd in range(3):
        for kh in range(3):
            for kw in range(3):
                off = (kd - 1) * HW + (kh - 1) * W + (kw - 1)
                tap_shifts.append((-off) % N)                  # out[n] needs v[n + off]
                tap_masks.append(d_ok[kd] * h_ok[kh] * w_ok[kw])

    # ---- building blocks (all on lane-dense (C, N) slabs) ----
    def axial_shift(v, coord_idx, size, stride):
        # channel group g gets shift s = g - pad along the chosen spatial axis,
        # with zero fill at the edges (== PyTorch pad / roll / narrow).
        out = jnp.zeros_like(v)
        for g in range(shift_size):
            s = g - pad
            rolled = v if s == 0 else pltpu.roll(v, (s * stride) % N, axis=1)
            sp = ((coord_idx - s >= 0) & (coord_idx - s < size)).astype(f32)   # (1, N)
            out = out + ch_masks[g] * (sp * rolled)
        return out

    def fc(v, w_ref, b_ref):
        # (C_out, C_in) x (C_in, N) -> lane-dense (C_out, N), f32 accumulation.
        y = jnp.dot(w_ref[...].astype(f32), v, preferred_element_type=f32)
        return y + b_ref[...].astype(f32)

    def dwconv_gelu(v, w_ref, b_ref):
        # depthwise 3x3x3, zero padding, via 27 lane-rolls + edge masks.
        wts = w_ref[...].astype(f32)                     # (C, 27)
        acc = jnp.zeros_like(v)
        for k in range(27):
            sh = tap_shifts[k]
            tap = v if sh == 0 else pltpu.roll(v, sh, axis=1)
            acc = acc + (wts[:, k:k + 1] * tap_masks[k]) * tap
        acc = acc + b_ref[...].astype(f32)
        # exact GELU (matches nn.GELU default)
        return 0.5 * acc * (1.0 + jax.lax.erf(acc * inv_sqrt2))

    # ---- shiftmlp3d: three stages ----
    h = axial_shift(h, d_idx, D, HW)                     # shift along D
    h = fc(h, fc1_w_ref, fc1_b_ref)
    h = dwconv_gelu(h, dw1_w_ref, dw1_b_ref)

    h = axial_shift(h, h_idx, H, W)                      # shift along H
    h = fc(h, fc2_w_ref, fc2_b_ref)
    h = dwconv_gelu(h, dw2_w_ref, dw2_b_ref)

    h = axial_shift(h, w_idx, W, 1)                      # shift along W
    h = fc(h, fc3_w_ref, fc3_b_ref)

    # fused residual add (drop / drop_path are identity at p = 0)
    o_ref[...] = (x + h).astype(o_ref.dtype)


def shifted_block3d_forward(x, p, D, H, W, shift_size=5):
    """x: (B, N=D*H*W, C) -> (B, N, C). Single fused pallas_call, grid=(B,)."""
    B, N, C = x.shape
    assert N == D * H * W
    assert C % shift_size == 0
    pad = shift_size // 2

    # ---- layout plumbing (channels-first, lane-dense token axis) ----
    x_cf = jnp.transpose(x, (0, 2, 1))                              # (B, C, N)
    n = jnp.arange(N, dtype=jnp.int32)
    d_idx = (n // (H * W)).reshape(1, N)
    h_idx = ((n // W) % H).reshape(1, N)
    w_idx = (n % W).reshape(1, N)

    col = lambda v: v.reshape(C, 1)
    args = (
        x_cf, d_idx, h_idx, w_idx,
        col(p["ln_g"]), col(p["ln_b"]),
        p["fc1_w"].T, col(p["fc1_b"]),                               # (out,in), (C,1)
        p["dw1_w"].reshape(27, C).T, col(p["dw1_b"]),                # (C,27),   (C,1)
        p["fc2_w"].T, col(p["fc2_b"]),
        p["dw2_w"].reshape(27, C).T, col(p["dw2_b"]),
        p["fc3_w"].T, col(p["fc3_b"]),
    )

    def full(shp):
        return pl.BlockSpec(shp, lambda b, _shp=shp: (0,) * len(_shp))

    in_specs = [
        pl.BlockSpec((None, C, N), lambda b: (b, 0, 0)),             # x
        full((1, N)), full((1, N)), full((1, N)),                    # d/h/w idx
        full((C, 1)), full((C, 1)),                                  # ln
        full((C, C)), full((C, 1)),                                  # fc1
        full((C, 27)), full((C, 1)),                                 # dw1
        full((C, C)), full((C, 1)),                                  # fc2
        full((C, 27)), full((C, 1)),                                 # dw2
        full((C, C)), full((C, 1)),                                  # fc3
    ]

    kern = functools.partial(_fused_block_kernel, D=D, H=H, W=W,
                             shift_size=shift_size, pad=pad)
    out_cf = pl.pallas_call(
        kern,
        out_shape=jax.ShapeDtypeStruct((B, C, N), x.dtype),
        grid=(B,),
        in_specs=in_specs,
        out_specs=pl.BlockSpec((None, C, N), lambda b: (b, 0, 0)),
        compiler_params=pltpu.CompilerParams(
            dimension_semantics=("parallel",)),
    )(*args)
    return jnp.transpose(out_cf, (0, 2, 1))                          # back to (B, N, C)


# ---------------------------------------------------------------------------
# Pure-JAX reference (faithful pad/roll/narrow port of the PyTorch forward)
# ---------------------------------------------------------------------------

def _axial_shift_ref(x_bnc, D, H, W, axis, shift_size=5, pad=2):
    B, N, C = x_bnc.shape
    xn = jnp.transpose(x_bnc, (0, 2, 1)).reshape(B, C, D, H, W)
    xn = jnp.pad(xn, ((0, 0), (0, 0), (pad, pad), (pad, pad), (pad, pad)))
    xs = jnp.split(xn, shift_size, axis=1)
    shifted = [jnp.roll(xc, s, axis=axis)
               for xc, s in zip(xs, range(-pad, pad + 1))]
    xcat = jnp.concatenate(shifted, axis=1)
    xcat = xcat[:, :, pad:pad + D, pad:pad + H, pad:pad + W]
    return jnp.transpose(xcat.reshape(B, C, D * H * W), (0, 2, 1))


def reference_forward(x, p, D, H, W):
    B, N, C = x.shape
    hi = jax.lax.Precision.HIGHEST
    mean = jnp.mean(x, axis=-1, keepdims=True)
    var = jnp.mean((x - mean) ** 2, axis=-1, keepdims=True)
    xn = (x - mean) / jnp.sqrt(var + 1e-5) * p["ln_g"] + p["ln_b"]

    def dw(h, w, b):
        lhs = h.reshape(B, D, H, W, C)
        rhs = w[..., None, :]                                # (3,3,3,1,C)
        out = jax.lax.conv_general_dilated(
            lhs, rhs, window_strides=(1, 1, 1), padding=[(1, 1)] * 3,
            dimension_numbers=("NDHWC", "DHWIO", "NDHWC"),
            feature_group_count=C, precision=hi)
        return (out + b).reshape(B, N, C)

    h = _axial_shift_ref(xn, D, H, W, axis=2)
    h = jnp.dot(h, p["fc1_w"], precision=hi) + p["fc1_b"]
    h = jax.nn.gelu(dw(h, p["dw1_w"], p["dw1_b"]), approximate=False)
    h = _axial_shift_ref(h, D, H, W, axis=3)
    h = jnp.dot(h, p["fc2_w"], precision=hi) + p["fc2_b"]
    h = jax.nn.gelu(dw(h, p["dw2_w"], p["dw2_b"]), approximate=False)
    h = _axial_shift_ref(h, D, H, W, axis=4)
    h = jnp.dot(h, p["fc3_w"], precision=hi) + p["fc3_b"]
    return x + h


# ---------------------------------------------------------------------------

if __name__ == "__main__":
    B, D, H, W = 2, 8, 8, 8
    C = 20                      # dim; divisible by shift_size=5
    N = D * H * W               # 512

    key = jax.random.PRNGKey(0)
    ks = jax.random.split(key, 16)

    # TODO(synk): PyTorch init is trunc_normal_(std=0.02)/normal(0,0.01) with zero bias;
    # larger synthetic scales are used here so the MLP branch is numerically significant
    # and the kernel-vs-reference comparison is meaningful.
    def nrm(k, shape, s):
        return s * jax.random.normal(k, shape, jnp.float32)

    params = {
        "ln_g": 1.0 + nrm(ks[0], (C,), 0.1),
        "ln_b": nrm(ks[1], (C,), 0.1),
        "fc1_w": nrm(ks[2], (C, C), 0.15), "fc1_b": nrm(ks[3], (C,), 0.1),
        "dw1_w": nrm(ks[4], (3, 3, 3, C), 0.15), "dw1_b": nrm(ks[5], (C,), 0.1),
        "fc2_w": nrm(ks[6], (C, C), 0.15), "fc2_b": nrm(ks[7], (C,), 0.1),
        "dw2_w": nrm(ks[8], (3, 3, 3, C), 0.15), "dw2_b": nrm(ks[9], (C,), 0.1),
        "fc3_w": nrm(ks[10], (C, C), 0.15), "fc3_b": nrm(ks[11], (C,), 0.1),
    }

    x = jax.random.normal(ks[12], (B, N, C), jnp.float32)

    fwd = jax.jit(lambda x, p: shifted_block3d_forward(x, p, D, H, W))
    out = fwd(x, params)
    jax.block_until_ready(out)

    ref = reference_forward(x, params, D, H, W)
    assert out.shape == (B, N, C) and out.dtype == jnp.float32
    max_err = float(jnp.max(jnp.abs(out - ref)))
    assert jnp.allclose(out, ref, atol=5e-3, rtol=5e-3), max_err

    print("KERNEL_OK")
</pallas_src>

<mosaic_0001>
module attributes {stable_mosaic.version = 11 : i64} {
  func.func @_fused_block_kernel(%arg0: i32, %arg1: memref<1x20x512xf32, #tpu.memory_space<vmem>>, %arg2: memref<1x512xi32, #tpu.memory_space<vmem>>, %arg3: memref<1x512xi32, #tpu.memory_space<vmem>>, %arg4: memref<1x512xi32, #tpu.memory_space<vmem>>, %arg5: memref<20x1xf32, #tpu.memory_space<vmem>>, %arg6: memref<20x1xf32, #tpu.memory_space<vmem>>, %arg7: memref<20x20xf32, #tpu.memory_space<vmem>>, %arg8: memref<20x1xf32, #tpu.memory_space<vmem>>, %arg9: memref<20x27xf32, #tpu.memory_space<vmem>>, %arg10: memref<20x1xf32, #tpu.memory_space<vmem>>, %arg11: memref<20x20xf32, #tpu.memory_space<vmem>>, %arg12: memref<20x1xf32, #tpu.memory_space<vmem>>, %arg13: memref<20x27xf32, #tpu.memory_space<vmem>>, %arg14: memref<20x1xf32, #tpu.memory_space<vmem>>, %arg15: memref<20x20xf32, #tpu.memory_space<vmem>>, %arg16: memref<20x1xf32, #tpu.memory_space<vmem>>, %arg17: memref<1x20x512xf32, #tpu.memory_space<vmem>>) attributes {dimension_semantics = [#tpu.dimension_semantics<parallel>], iteration_bounds = array<i64: 2>, scalar_prefetch = 0 : i64, scratch_operands = 0 : i64, tpu.core_type = #tpu.core_type<tc>, window_params = [{transform_indices = @transform_0, window_bounds = array<i64: 1, 20, 512>}, {pipeline_mode = #tpu.pipeline_mode<synchronous>, transform_indices = @transform_1, window_bounds = array<i64: 1, 512>}, {pipeline_mode = #tpu.pipeline_mode<synchronous>, transform_indices = @transform_2, window_bounds = array<i64: 1, 512>}, {pipeline_mode = #tpu.pipeline_mode<synchronous>, transform_indices = @transform_3, window_bounds = array<i64: 1, 512>}, {pipeline_mode = #tpu.pipeline_mode<synchronous>, transform_indices = @transform_4, window_bounds = array<i64: 20, 1>}, {pipeline_mode = #tpu.pipeline_mode<synchronous>, transform_indices = @transform_5, window_bounds = array<i64: 20, 1>}, {pipeline_mode = #tpu.pipeline_mode<synchronous>, transform_indices = @transform_6, window_bounds = array<i64: 20, 20>}, {pipeline_mode = #tpu.pipeline_mode<synchronous>, transform_indices = @transform_7, window_bounds = array<i64: 20, 1>}, {pipeline_mode = #tpu.pipeline_mode<synchronous>, transform_indices = @transform_8, window_bounds = array<i64: 20, 27>}, {pipeline_mode = #tpu.pipeline_mode<synchronous>, transform_indices = @transform_9, window_bounds = array<i64: 20, 1>}, {pipeline_mode = #tpu.pipeline_mode<synchronous>, transform_indices = @transform_10, window_bounds = array<i64: 20, 20>}, {pipeline_mode = #tpu.pipeline_mode<synchronous>, transform_indices = @transform_11, window_bounds = array<i64: 20, 1>}, {pipeline_mode = #tpu.pipeline_mode<synchronous>, transform_indices = @transform_12, window_bounds = array<i64: 20, 27>}, {pipeline_mode = #tpu.pipeline_mode<synchronous>, transform_indices = @transform_13, window_bounds = array<i64: 20, 1>}, {pipeline_mode = #tpu.pipeline_mode<synchronous>, transform_indices = @transform_14, window_bounds = array<i64: 20, 20>}, {pipeline_mode = #tpu.pipeline_mode<synchronous>, transform_indices = @transform_15, window_bounds = array<i64: 20, 1>}, {transform_indices = @transform_16, window_bounds = array<i64: 1, 20, 512>}]} {
    %c0 = arith.constant 0 : index
    %c0_0 = arith.constant 0 : index
    %c0_1 = arith.constant 0 : index
    %0 = vector.load %arg1[%c0, %c0_0, %c0_1] : memref<1x20x512xf32, #tpu.memory_space<vmem>>, vector<1x20x512xf32>
    %1 = vector.shape_cast %0 : vector<1x20x512xf32> to vector<20x512xf32>
    %c0_2 = arith.constant 0 : index
    %c0_3 = arith.constant 0 : index
    %2 = vector.load %arg2[%c0_2, %c0_3] : memref<1x512xi32, #tpu.memory_space<vmem>>, vector<1x512xi32>
    %c0_4 = arith.constant 0 : index
    %c0_5 = arith.constant 0 : index
    %3 = vector.load %arg3[%c0_4, %c0_5] : memref<1x512xi32, #tpu.memory_space<vmem>>, vector<1x512xi32>
    %c0_6 = arith.constant 0 : index
    %c0_7 = arith.constant 0 : index
    %4 = vector.load %arg4[%c0_6, %c0_7] : memref<1x512xi32, #tpu.memory_space<vmem>>, vector<1x512xi32>
    %cst = arith.constant dense<0.000000e+00> : vector<512xf32>
    %5 = vector.multi_reduction <add>, %1, %cst [0] : vector<20x512xf32> to vector<512xf32>
    %6 = vector.shape_cast %5 : vector<512xf32> to vector<1x512xf32>
    %cst_8 = arith.constant 2.000000e+01 : f32
    %7 = vector.broadcast %cst_8 : f32 to vector<1x512xf32>
    %8 = arith.divf %6, %7 : vector<1x512xf32>
    %9 = vector.broadcast %8 : vector<1x512xf32> to vector<20x512xf32>
    %10 = arith.subf %1, %9 : vector<20x512xf32>
    %11 = arith.mulf %10, %10 : vector<20x512xf32>
    %cst_9 = arith.constant dense<0.000000e+00> : vector<512xf32>
    %12 = vector.multi_reduction <add>, %11, %cst_9 [0] : vector<20x512xf32> to vector<512xf32>
    %13 = vector.shape_cast %12 : vector<512xf32> to vector<1x512xf32>
    %cst_10 = arith.constant 2.000000e+01 : f32
    %14 = vector.broadcast %cst_10 : f32 to vector<1x512xf32>
    %15 = arith.divf %13, %14 : vector<1x512xf32>
    %cst_11 = arith.constant 9.99999974E-6 : f32
    %16 = vector.broadcast %cst_11 : f32 to vector<1x512xf32>
    %17 = arith.addf %15, %16 : vector<1x512xf32>
    %18 = math.rsqrt %17 : vector<1x512xf32>
    %19 = vector.broadcast %18 : vector<1x512xf32> to vector<20x512xf32>
    %20 = arith.mulf %10, %19 : vector<20x512xf32>
    %c0_12 = arith.constant 0 : index
    %c0_13 = arith.constant 0 : index
    %21 = vector.load %arg5[%c0_12, %c0_13] : memref<20x1xf32, #tpu.memory_space<vmem>>, vector<20x1xf32>
    %22 = vector.broadcast %21 : vector<20x1xf32> to vector<20x512xf32>
    %23 = arith.mulf %20, %22 : vector<20x512xf32>
    %c0_14 = arith.constant 0 : index
    %c0_15 = arith.constant 0 : index
    %24 = vector.load %arg6[%c0_14, %c0_15] : memref<20x1xf32, #tpu.memory_space<vmem>>, vector<20x1xf32>
    %25 = vector.broadcast %24 : vector<20x1xf32> to vector<20x512xf32>
    %26 = arith.addf %23, %25 : vector<20x512xf32>
    %27 = tpu.iota {dimensions = array<i32: 0>} : vector<20x512xi32>
    %c0_i32 = arith.constant 0 : i32
    %28 = vector.broadcast %c0_i32 : i32 to vector<20x512xi32>
    %29 = arith.cmpi sge, %27, %28 : vector<20x512xi32>
    %c4_i32 = arith.constant 4 : i32
    %30 = vector.broadcast %c4_i32 : i32 to vector<20x512xi32>
    %31 = arith.cmpi slt, %27, %30 : vector<20x512xi32>
    %32 = arith.andi %29, %31 : vector<20x512xi1>
    %33 = arith.extui %32 : vector<20x512xi1> to vector<20x512xi32>
    %34 = arith.sitofp %33 : vector<20x512xi32> to vector<20x512xf32>
    %c4_i32_16 = arith.constant 4 : i32
    %35 = vector.broadcast %c4_i32_16 : i32 to vector<20x512xi32>
    %36 = arith.cmpi sge, %27, %35 : vector<20x512xi32>
    %c8_i32 = arith.constant 8 : i32
    %37 = vector.broadcast %c8_i32 : i32 to vector<20x512xi32>
    %38 = arith.cmpi slt, %27, %37 : vector<20x512xi32>
    %39 = arith.andi %36, %38 : vector<20x512xi1>
    %40 = arith.extui %39 : vector<20x512xi1> to vector<20x512xi32>
    %41 = arith.sitofp %40 : vector<20x512xi32> to vector<20x512xf32>
    %c8_i32_17 = arith.constant 8 : i32
    %42 = vector.broadcast %c8_i32_17 : i32 to vector<20x512xi32>
    %43 = arith.cmpi sge, %27, %42 : vector<20x512xi32>
    %c12_i32 = arith.constant 12 : i32
    %44 = vector.broadcast %c12_i32 : i32 to vector<20x512xi32>
    %45 = arith.cmpi slt, %27, %44 : vector<20x512xi32>
    %46 = arith.andi %43, %45 : vector<20x512xi1>
    %47 = arith.extui %46 : vector<20x512xi1> to vector<20x512xi32>
    %48 = arith.sitofp %47 : vector<20x512xi32> to vector<20x512xf32>
    %c12_i32_18 = arith.constant 12 : i32
    %49 = vector.broadcast %c12_i32_18 : i32 to vector<20x512xi32>
    %50 = arith.cmpi sge, %27, %49 : vector<20x512xi32>
    %c16_i32 = arith.constant 16 : i32
    %51 = vector.broadcast %c16_i32 : i32 to vector<20x512xi32>
    %52 = arith.cmpi slt, %27, %51 : vector<20x512xi32>
    %53 = arith.andi %50, %52 : vector<20x512xi1>
    %54 = arith.extui %53 : vector<20x512xi1> to vector<20x512xi32>
    %55 = arith.sitofp %54 : vector<20x512xi32> to vector<20x512xf32>
    %c16_i32_19 = arith.constant 16 : i32
    %56 = vector.broadcast %c16_i32_19 : i32 to vector<20x512xi32>
    %57 = arith.cmpi sge, %27, %56 : vector<20x512xi32>
    %c20_i32 = arith.constant 20 : i32
    %58 = vector.broadcast %c20_i32 : i32 to vector<20x512xi32>
    %59 = arith.cmpi slt, %27, %58 : vector<20x512xi32>
    %60 = arith.andi %57, %59 : vector<20x512xi1>
    %61 = arith.extui %60 : vector<20x512xi1> to vector<20x512xi32>
    %62 = arith.sitofp %61 : vector<20x512xi32> to vector<20x512xf32>
    %c-1_i32 = arith.constant -1 : i32
    %63 = vector.broadcast %c-1_i32 : i32 to vector<1x512xi32>
    %64 = arith.addi %2, %63 : vector<1x512xi32>
    %c0_i32_20 = arith.constant 0 : i32
    %65 = vector.broadcast %c0_i32_20 : i32 to vector<1x512xi32>
    %66 = arith.cmpi sge, %64, %65 : vector<1x512xi32>
    %c-1_i32_21 = arith.constant -1 : i32
    %67 = vector.broadcast %c-1_i32_21 : i32 to vector<1x512xi32>
    %68 = arith.addi %2, %67 : vector<1x512xi32>
    %c8_i32_22 = arith.constant 8 : i32
    %69 = vector.broadcast %c8_i32_22 : i32 to vector<1x512xi32>
    %70 = arith.cmpi slt, %68, %69 : vector<1x512xi32>
    %71 = arith.andi %66, %70 : vector<1x512xi1>
    %72 = arith.extui %71 : vector<1x512xi1> to vector<1x512xi32>
    %73 = arith.sitofp %72 : vector<1x512xi32> to vector<1x512xf32>
    %c0_i32_23 = arith.constant 0 : i32
    %74 = vector.broadcast %c0_i32_23 : i32 to vector<1x512xi32>
    %75 = arith.addi %2, %74 : vector<1x512xi32>
    %c0_i32_24 = arith.constant 0 : i32
    %76 = vector.broadcast %c0_i32_24 : i32 to vector<1x512xi32>
    %77 = arith.cmpi sge, %75, %76 : vector<1x512xi32>
    %c0_i32_25 = arith.constant 0 : i32
    %78 = vector.broadcast %c0_i32_25 : i32 to vector<1x512xi32>
    %79 = arith.addi %2, %78 : vector<1x512xi32>
    %c8_i32_26 = arith.constant 8 : i32
    %80 = vector.broadcast %c8_i32_26 : i32 to vector<1x512xi32>
    %81 = arith.cmpi slt, %79, %80 : vector<1x512xi32>
    %82 = arith.andi %77, %81 : vector<1x512xi1>
    %83 = arith.extui %82 : vector<1x512xi1> to vector<1x512xi32>
    %84 = arith.sitofp %83 : vector<1x512xi32> to vector<1x512xf32>
    %c1_i32 = arith.constant 1 : i32
    %85 = vector.broadcast %c1_i32 : i32 to vector<1x512xi32>
    %86 = arith.addi %2, %85 : vector<1x512xi32>
    %c0_i32_27 = arith.constant 0 : i32
    %87 = vector.broadcast %c0_i32_27 : i32 to vector<1x512xi32>
    %88 = arith.cmpi sge, %86, %87 : vector<1x512xi32>
    %c1_i32_28 = arith.constant 1 : i32
    %89 = vector.broadcast %c1_i32_28 : i32 to vector<1x512xi32>
    %90 = arith.addi %2, %89 : vector<1x512xi32>
    %c8_i32_29 = arith.constant 8 : i32
    %91 = vector.broadcast %c8_i32_29 : i32 to vector<1x512xi32>
    %92 = arith.cmpi slt, %90, %91 : vector<1x512xi32>
    %93 = arith.andi %88, %92 : vector<1x512xi1>
    %94 = arith.extui %93 : vector<1x512xi1> to vector<1x512xi32>
    %95 = arith.sitofp %94 : vector<1x512xi32> to vector<1x512xf32>
    %c-1_i32_30 = arith.constant -1 : i32
    %96 = vector.broadcast %c-1_i32_30 : i32 to vector<1x512xi32>
    %97 = arith.addi %3, %96 : vector<1x512xi32>
    %c0_i32_31 = arith.constant 0 : i32
    %98 = vector.broadcast %c0_i32_31 : i32 to vector<1x512xi32>
    %99 = arith.cmpi sge, %97, %98 : vector<1x512xi32>
    %c-1_i32_32 = arith.constant -1 : i32
    %100 = vector.broadcast %c-1_i32_32 : i32 to vector<1x512xi32>
    %101 = arith.addi %3, %100 : vector<1x512xi32>
    %c8_i32_33 = arith.constant 8 : i32
    %102 = vector.broadcast %c8_i32_33 : i32 to vector<1x512xi32>
    %103 = arith.cmpi slt, %101, %102 : vector<1x512xi32>
    %104 = arith.andi %99, %103 : vector<1x512xi1>
    %105 = arith.extui %104 : vector<1x512xi1> to vector<1x512xi32>
    %106 = arith.sitofp %105 : vector<1x512xi32> to vector<1x512xf32>
    %c0_i32_34 = arith.constant 0 : i32
    %107 = vector.broadcast %c0_i32_34 : i32 to vector<1x512xi32>
    %108 = arith.addi %3, %107 : vector<1x512xi32>
    %c0_i32_35 = arith.constant 0 : i32
    %109 = vector.broadcast %c0_i32_35 : i32 to vector<1x512xi32>
    %110 = arith.cmpi sge, %108, %109 : vector<1x512xi32>
    %c0_i32_36 = arith.constant 0 : i32
    %111 = vector.broadcast %c0_i32_36 : i32 to vector<1x512xi32>
    %112 = arith.addi %3, %111 : vector<1x512xi32>
    %c8_i32_37 = arith.constant 8 : i32
    %113 = vector.broadcast %c8_i32_37 : i32 to vector<1x512xi32>
    %114 = arith.cmpi slt, %112, %113 : vector<1x512xi32>
    %115 = arith.andi %110, %114 : vector<1x512xi1>
    %116 = arith.extui %115 : vector<1x512xi1> to vector<1x512xi32>
    %117 = arith.sitofp %116 : vector<1x512xi32> to vector<1x512xf32>
    %c1_i32_38 = arith.constant 1 : i32
    %118 = vector.broadcast %c1_i32_38 : i32 to vector<1x512xi32>
    %119 = arith.addi %3, %118 : vector<1x512xi32>
    %c0_i32_39 = arith.constant 0 : i32
    %120 = vector.broadcast %c0_i32_39 : i32 to vector<1x512xi32>
    %121 = arith.cmpi sge, %119, %120 : vector<1x512xi32>
    %c1_i32_40 = arith.constant 1 : i32
    %122 = vector.broadcast %c1_i32_40 : i32 to vector<1x512xi32>
    %123 = arith.addi %3, %122 : vector<1x512xi32>
    %c8_i32_41 = arith.constant 8 : i32
    %124 = vector.broadcast %c8_i32_41 : i32 to vector<1x512xi32>
    %125 = arith.cmpi slt, %123, %124 : vector<1x512xi32>
    %126 = arith.andi %121, %125 : vector<1x512xi1>
    %127 = arith.extui %126 : vector<1x512xi1> to vector<1x512xi32>
    %128 = arith.sitofp %127 : vector<1x512xi32> to vector<1x512xf32>
    %c-1_i32_42 = arith.constant -1 : i32
    %129 = vector.broadcast %c-1_i32_42 : i32 to vector<1x512xi32>
    %130 = arith.addi %4, %129 : vector<1x512xi32>
    %c0_i32_43 = arith.constant 0 : i32
    %131 = vector.broadcast %c0_i32_43 : i32 to vector<1x512xi32>
    %132 = arith.cmpi sge, %130, %131 : vector<1x512xi32>
    %c-1_i32_44 = arith.constant -1 : i32
    %133 = vector.broadcast %c-1_i32_44 : i32 to vector<1x512xi32>
    %134 = arith.addi %4, %133 : vector<1x512xi32>
    %c8_i32_45 = arith.constant 8 : i32
    %135 = vector.broadcast %c8_i32_45 : i32 to vector<1x512xi32>
    %136 = arith.cmpi slt, %134, %135 : vector<1x512xi32>
    %137 = arith.andi %132, %136 : vector<1x512xi1>
    %138 = arith.extui %137 : vector<1x512xi1> to vector<1x512xi32>
    %139 = arith.sitofp %138 : vector<1x512xi32> to vector<1x512xf32>
    %c0_i32_46 = arith.constant 0 : i32
    %140 = vector.broadcast %c0_i32_46 : i32 to vector<1x512xi32>
    %141 = arith.addi %4, %140 : vector<1x512xi32>
    %c0_i32_47 = arith.constant 0 : i32
    %142 = vector.broadcast %c0_i32_47 : i32 to vector<1x512xi32>
    %143 = arith.cmpi sge, %141, %142 : vector<1x512xi32>
    %c0_i32_48 = arith.constant 0 : i32
    %144 = vector.broadcast %c0_i32_48 : i32 to vector<1x512xi32>
    %145 = arith.addi %4, %144 : vector<1x512xi32>
    %c8_i32_49 = arith.constant 8 : i32
    %146 = vector.broadcast %c8_i32_49 : i32 to vector<1x512xi32>
    %147 = arith.cmpi slt, %145, %146 : vector<1x512xi32>
    %148 = arith.andi %143, %147 : vector<1x512xi1>
    %149 = arith.extui %148 : vector<1x512xi1> to vector<1x512xi32>
    %150 = arith.sitofp %149 : vector<1x512xi32> to vector<1x512xf32>
    %c1_i32_50 = arith.constant 1 : i32
    %151 = vector.broadcast %c1_i32_50 : i32 to vector<1x512xi32>
    %152 = arith.addi %4, %151 : vector<1x512xi32>
    %c0_i32_51 = arith.constant 0 : i32
    %153 = vector.broadcast %c0_i32_51 : i32 to vector<1x512xi32>
    %154 = arith.cmpi sge, %152, %153 : vector<1x512xi32>
    %c1_i32_52 = arith.constant 1 : i32
    %155 = vector.broadcast %c1_i32_52 : i32 to vector<1x512xi32>
    %156 = arith.addi %4, %155 : vector<1x512xi32>
    %c8_i32_53 = arith.constant 8 : i32
    %157 = vector.broadcast %c8_i32_53 : i32 to vector<1x512xi32>
    %158 = arith.cmpi slt, %156, %157 : vector<1x512xi32>
    %159 = arith.andi %154, %158 : vector<1x512xi1>
    %160 = arith.extui %159 : vector<1x512xi1> to vector<1x512xi32>
    %161 = arith.sitofp %160 : vector<1x512xi32> to vector<1x512xf32>
    %162 = arith.mulf %73, %106 : vector<1x512xf32>
    %163 = arith.mulf %162, %139 : vector<1x512xf32>
    %164 = arith.mulf %73, %106 : vector<1x512xf32>
    %165 = arith.mulf %164, %150 : vector<1x512xf32>
    %166 = arith.mulf %73, %106 : vector<1x512xf32>
    %167 = arith.mulf %166, %161 : vector<1x512xf32>
    %168 = arith.mulf %73, %117 : vector<1x512xf32>
    %169 = arith.mulf %168, %139 : vector<1x512xf32>
    %170 = arith.mulf %73, %117 : vector<1x512xf32>
    %171 = arith.mulf %170, %150 : vector<1x512xf32>
    %172 = arith.mulf %73, %117 : vector<1x512xf32>
    %173 = arith.mulf %172, %161 : vector<1x512xf32>
    %174 = arith.mulf %73, %128 : vector<1x512xf32>
    %175 = arith.mulf %174, %139 : vector<1x512xf32>
    %176 = arith.mulf %73, %128 : vector<1x512xf32>
    %177 = arith.mulf %176, %150 : vector<1x512xf32>
    %178 = arith.mulf %73, %128 : vector<1x512xf32>
    %179 = arith.mulf %178, %161 : vector<1x512xf32>
    %180 = arith.mulf %84, %106 : vector<1x512xf32>
    %181 = arith.mulf %180, %139 : vector<1x512xf32>
    %182 = arith.mulf %84, %106 : vector<1x512xf32>
    %183 = arith.mulf %182, %150 : vector<1x512xf32>
    %184 = arith.mulf %84, %106 : vector<1x512xf32>
    %185 = arith.mulf %184, %161 : vector<1x512xf32>
    %186 = arith.mulf %84, %117 : vector<1x512xf32>
    %187 = arith.mulf %186, %139 : vector<1x512xf32>
    %188 = arith.mulf %84, %117 : vector<1x512xf32>
    %189 = arith.mulf %188, %150 : vector<1x512xf32>
    %190 = arith.mulf %84, %117 : vector<1x512xf32>
    %191 = arith.mulf %190, %161 : vector<1x512xf32>
    %192 = arith.mulf %84, %128 : vector<1x512xf32>
    %193 = arith.mulf %192, %139 : vector<1x512xf32>
    %194 = arith.mulf %84, %128 : vector<1x512xf32>
    %195 = arith.mulf %194, %150 : vector<1x512xf32>
    %196 = arith.mulf %84, %128 : vector<1x512xf32>
    %197 = arith.mulf %196, %161 : vector<1x512xf32>
    %198 = arith.mulf %95, %106 : vector<1x512xf32>
    %199 = arith.mulf %198, %139 : vector<1x512xf32>
    %200 = arith.mulf %95, %106 : vector<1x512xf32>
    %201 = arith.mulf %200, %150 : vector<1x512xf32>
    %202 = arith.mulf %95, %106 : vector<1x512xf32>
    %203 = arith.mulf %202, %161 : vector<1x512xf32>
    %204 = arith.mulf %95, %117 : vector<1x512xf32>
    %205 = arith.mulf %204, %139 : vector<1x512xf32>
    %206 = arith.mulf %95, %117 : vector<1x512xf32>
    %207 = arith.mulf %206, %150 : vector<1x512xf32>
    %208 = arith.mulf %95, %117 : vector<1x512xf32>
    %209 = arith.mulf %208, %161 : vector<1x512xf32>
    %210 = arith.mulf %95, %128 : vector<1x512xf32>
    %211 = arith.mulf %210, %139 : vector<1x512xf32>
    %212 = arith.mulf %95, %128 : vector<1x512xf32>
    %213 = arith.mulf %212, %150 : vector<1x512xf32>
    %214 = arith.mulf %95, %128 : vector<1x512xf32>
    %215 = arith.mulf %214, %161 : vector<1x512xf32>
    %cst_54 = arith.constant 0.000000e+00 : f32
    %216 = vector.broadcast %cst_54 : f32 to vector<20x512xf32>
    %c384_i32 = arith.constant 384 : i32
    %217 = tpu.dynamic_rotate %26 by %c384_i32 dim 1 : vector<20x512xf32>, i32 -> vector<20x512xf32>
    %c-2_i32 = arith.constant -2 : i32
    %218 = vector.broadcast %c-2_i32 : i32 to vector<1x512xi32>
    %219 = arith.subi %2, %218 : vector<1x512xi32>
    %c0_i32_55 = arith.constant 0 : i32
    %220 = vector.broadcast %c0_i32_55 : i32 to vector<1x512xi32>
    %221 = arith.cmpi sge, %219, %220 : vector<1x512xi32>
    %c-2_i32_56 = arith.constant -2 : i32
    %222 = vector.broadcast %c-2_i32_56 : i32 to vector<1x512xi32>
    %223 = arith.subi %2, %222 : vector<1x512xi32>
    %c8_i32_57 = arith.constant 8 : i32
    %224 = vector.broadcast %c8_i32_57 : i32 to vector<1x512xi32>
    %225 = arith.cmpi slt, %223, %224 : vector<1x512xi32>
    %226 = arith.andi %221, %225 : vector<1x512xi1>
    %227 = arith.extui %226 : vector<1x512xi1> to vector<1x512xi32>
    %228 = arith.sitofp %227 : vector<1x512xi32> to vector<1x512xf32>
    %229 = vector.broadcast %228 : vector<1x512xf32> to vector<20x512xf32>
    %230 = arith.mulf %229, %217 : vector<20x512xf32>
    %231 = arith.mulf %34, %230 : vector<20x512xf32>
    %232 = arith.addf %216, %231 : vector<20x512xf32>
    %c448_i32 = arith.constant 448 : i32
    %233 = tpu.dynamic_rotate %26 by %c448_i32 dim 1 : vector<20x512xf32>, i32 -> vector<20x512xf32>
    %c-1_i32_58 = arith.constant -1 : i32
    %234 = vector.broadcast %c-1_i32_58 : i32 to vector<1x512xi32>
    %235 = arith.subi %2, %234 : vector<1x512xi32>
    %c0_i32_59 = arith.constant 0 : i32
    %236 = vector.broadcast %c0_i32_59 : i32 to vector<1x512xi32>
    %237 = arith.cmpi sge, %235, %236 : vector<1x512xi32>
    %c-1_i32_60 = arith.constant -1 : i32
    %238 = vector.broadcast %c-1_i32_60 : i32 to vector<1x512xi32>
    %239 = arith.subi %2, %238 : vector<1x512xi32>
    %c8_i32_61 = arith.constant 8 : i32
    %240 = vector.broadcast %c8_i32_61 : i32 to vector<1x512xi32>
    %241 = arith.cmpi slt, %239, %240 : vector<1x512xi32>
    %242 = arith.andi %237, %241 : vector<1x512xi1>
    %243 = arith.extui %242 : vector<1x512xi1> to vector<1x512xi32>
    %244 = arith.sitofp %243 : vector<1x512xi32> to vector<1x512xf32>
    %245 = vector.broadcast %244 : vector<1x512xf32> to vector<20x512xf32>
    %246 = arith.mulf %245, %233 : vector<20x512xf32>
    %247 = arith.mulf %41, %246 : vector<20x512xf32>
    %248 = arith.addf %232, %247 : vector<20x512xf32>
    %c0_i32_62 = arith.constant 0 : i32
    %249 = vector.broadcast %c0_i32_62 : i32 to vector<1x512xi32>
    %250 = arith.subi %2, %249 : vector<1x512xi32>
    %c0_i32_63 = arith.constant 0 : i32
    %251 = vector.broadcast %c0_i32_63 : i32 to vector<1x512xi32>
    %252 = arith.cmpi sge, %250, %251 : vector<1x512xi32>
    %c0_i32_64 = arith.constant 0 : i32
    %253 = vector.broadcast %c0_i32_64 : i32 to vector<1x512xi32>
    %254 = arith.subi %2, %253 : vector<1x512xi32>
    %c8_i32_65 = arith.constant 8 : i32
    %255 = vector.broadcast %c8_i32_65 : i32 to vector<1x512xi32>
    %256 = arith.cmpi slt, %254, %255 : vector<1x512xi32>
    %257 = arith.andi %252, %256 : vector<1x512xi1>
    %258 = arith.extui %257 : vector<1x512xi1> to vector<1x512xi32>
    %259 = arith.sitofp %258 : vector<1x512xi32> to vector<1x512xf32>
    %260 = vector.broadcast %259 : vector<1x512xf32> to vector<20x512xf32>
    %261 = arith.mulf %260, %26 : vector<20x512xf32>
    %262 = arith.mulf %48, %261 : vector<20x512xf32>
    %263 = arith.addf %248, %262 : vector<20x512xf32>
    %c64_i32 = arith.constant 64 : i32
    %264 = tpu.dynamic_rotate %26 by %c64_i32 dim 1 : vector<20x512xf32>, i32 -> vector<20x512xf32>
    %c1_i32_66 = arith.constant 1 : i32
    %265 = vector.broadcast %c1_i32_66 : i32 to vector<1x512xi32>
    %266 = arith.subi %2, %265 : vector<1x512xi32>
    %c0_i32_67 = arith.constant 0 : i32
    %267 = vector.broadcast %c0_i32_67 : i32 to vector<1x512xi32>
    %268 = arith.cmpi sge, %266, %267 : vector<1x512xi32>
    %c1_i32_68 = arith.constant 1 : i32
    %269 = vector.broadcast %c1_i32_68 : i32 to vector<1x512xi32>
    %270 = arith.subi %2, %269 : vector<1x512xi32>
    %c8_i32_69 = arith.constant 8 : i32
    %271 = vector.broadcast %c8_i32_69 : i32 to vector<1x512xi32>
    %272 = arith.cmpi slt, %270, %271 : vector<1x512xi32>
    %273 = arith.andi %268, %272 : vector<1x512xi1>
    %274 = arith.extui %273 : vector<1x512xi1> to vector<1x512xi32>
    %275 = arith.sitofp %274 : vector<1x512xi32> to vector<1x512xf32>
    %276 = vector.broadcast %275 : vector<1x512xf32> to vector<20x512xf32>
    %277 = arith.mulf %276, %264 : vector<20x512xf32>
    %278 = arith.mulf %55, %277 : vector<20x512xf32>
    %279 = arith.addf %263, %278 : vector<20x512xf32>
    %c128_i32 = arith.constant 128 : i32
    %280 = tpu.dynamic_rotate %26 by %c128_i32 dim 1 : vector<20x512xf32>, i32 -> vector<20x512xf32>
    %c2_i32 = arith.constant 2 : i32
    %281 = vector.broadcast %c2_i32 : i32 to vector<1x512xi32>
    %282 = arith.subi %2, %281 : vector<1x512xi32>
    %c0_i32_70 = arith.constant 0 : i32
    %283 = vector.broadcast %c0_i32_70 : i32 to vector<1x512xi32>
    %284 = arith.cmpi sge, %282, %283 : vector<1x512xi32>
    %c2_i32_71 = arith.constant 2 : i32
    %285 = vector.broadcast %c2_i32_71 : i32 to vector<1x512xi32>
    %286 = arith.subi %2, %285 : vector<1x512xi32>
    %c8_i32_72 = arith.constant 8 : i32
    %287 = vector.broadcast %c8_i32_72 : i32 to vector<1x512xi32>
    %288 = arith.cmpi slt, %286, %287 : vector<1x512xi32>
    %289 = arith.andi %284, %288 : vector<1x512xi1>
    %290 = arith.extui %289 : vector<1x512xi1> to vector<1x512xi32>
    %291 = arith.sitofp %290 : vector<1x512xi32> to vector<1x512xf32>
    %292 = vector.broadcast %291 : vector<1x512xf32> to vector<20x512xf32>
    %293 = arith.mulf %292, %280 : vector<20x512xf32>
    %294 = arith.mulf %62, %293 : vector<20x512xf32>
    %295 = arith.addf %279, %294 : vector<20x512xf32>
    %c0_73 = arith.constant 0 : index
    %c0_74 = arith.constant 0 : index
    %296 = vector.load %arg7[%c0_73, %c0_74] : memref<20x20xf32, #tpu.memory_space<vmem>>, vector<20x20xf32>
    %cst_75 = arith.constant dense<0.000000e+00> : vector<20x512xf32>
    %297 = tpu.matmul %296, %295, %cst_75 {dimension_numbers = #tpu.dot_dimension_numbers<[1], [0], [0], [1], [0, 0, 1, 1], [], []>} : vector<20x20xf32>, vector<20x512xf32>, vector<20x512xf32> -> vector<20x512xf32>
    %c0_76 = arith.constant 0 : index
    %c0_77 = arith.constant 0 : index
    %298 = vector.load %arg8[%c0_76, %c0_77] : memref<20x1xf32, #tpu.memory_space<vmem>>, vector<20x1xf32>
    %299 = vector.broadcast %298 : vector<20x1xf32> to vector<20x512xf32>
    %300 = arith.addf %297, %299 : vector<20x512xf32>
    %c0_78 = arith.constant 0 : index
    %c0_79 = arith.constant 0 : index
    %301 = vector.load %arg9[%c0_78, %c0_79] : memref<20x27xf32, #tpu.memory_space<vmem>>, vector<20x27xf32>
    %cst_80 = arith.constant 0.000000e+00 : f32
    %302 = vector.broadcast %cst_80 : f32 to vector<20x512xf32>
    %c73_i32 = arith.constant 73 : i32
    %303 = tpu.dynamic_rotate %300 by %c73_i32 dim 1 : vector<20x512xf32>, i32 -> vector<20x512xf32>
    %304 = vector.extract_strided_slice %301 {offsets = [0, 0], sizes = [20, 1], strides = [1, 1]} : vector<20x27xf32> to vector<20x1xf32>
    %305 = vector.broadcast %304 : vector<20x1xf32> to vector<20x512xf32>
    %306 = vector.broadcast %163 : vector<1x512xf32> to vector<20x512xf32>
    %307 = arith.mulf %305, %306 : vector<20x512xf32>
    %308 = arith.mulf %307, %303 : vector<20x512xf32>
    %309 = arith.addf %302, %308 : vector<20x512xf32>
    %c72_i32 = arith.constant 72 : i32
    %310 = tpu.dynamic_rotate %300 by %c72_i32 dim 1 : vector<20x512xf32>, i32 -> vector<20x512xf32>
    %311 = vector.extract_strided_slice %301 {offsets = [0, 1], sizes = [20, 1], strides = [1, 1]} : vector<20x27xf32> to vector<20x1xf32>
    %312 = vector.broadcast %311 : vector<20x1xf32> to vector<20x512xf32>
    %313 = vector.broadcast %165 : vector<1x512xf32> to vector<20x512xf32>
    %314 = arith.mulf %312, %313 : vector<20x512xf32>
    %315 = arith.mulf %314, %310 : vector<20x512xf32>
    %316 = arith.addf %309, %315 : vector<20x512xf32>
    %c71_i32 = arith.constant 71 : i32
    %317 = tpu.dynamic_rotate %300 by %c71_i32 dim 1 : vector<20x512xf32>, i32 -> vector<20x512xf32>
    %318 = vector.extract_strided_slice %301 {offsets = [0, 2], sizes = [20, 1], strides = [1, 1]} : vector<20x27xf32> to vector<20x1xf32>
    %319 = vector.broadcast %318 : vector<20x1xf32> to vector<20x512xf32>
    %320 = vector.broadcast %167 : vector<1x512xf32> to vector<20x512xf32>
    %321 = arith.mulf %319, %320 : vector<20x512xf32>
    %322 = arith.mulf %321, %317 : vector<20x512xf32>
    %323 = arith.addf %316, %322 : vector<20x512xf32>
    %c65_i32 = arith.constant 65 : i32
    %324 = tpu.dynamic_rotate %300 by %c65_i32 dim 1 : vector<20x512xf32>, i32 -> vector<20x512xf32>
    %325 = vector.extract_strided_slice %301 {offsets = [0, 3], sizes = [20, 1], strides = [1, 1]} : vector<20x27xf32> to vector<20x1xf32>
    %326 = vector.broadcast %325 : vector<20x1xf32> to vector<20x512xf32>
    %327 = vector.broadcast %169 : vector<1x512xf32> to vector<20x512xf32>
    %328 = arith.mulf %326, %327 : vector<20x512xf32>
    %329 = arith.mulf %328, %324 : vector<20x512xf32>
    %330 = arith.addf %323, %329 : vector<20x512xf32>
    %c64_i32_81 = arith.constant 64 : i32
    %331 = tpu.dynamic_rotate %300 by %c64_i32_81 dim 1 : vector<20x512xf32>, i32 -> vector<20x512xf32>
    %332 = vector.extract_strided_slice %301 {offsets = [0, 4], sizes = [20, 1], strides = [1, 1]} : vector<20x27xf32> to vector<20x1xf32>
    %333 = vector.broadcast %332 : vector<20x1xf32> to vector<20x512xf32>
    %334 = vector.broadcast %171 : vector<1x512xf32> to vector<20x512xf32>
    %335 = arith.mulf %333, %334 : vector<20x512xf32>
    %336 = arith.mulf %335, %331 : vector<20x512xf32>
    %337 = arith.addf %330, %336 : vector<20x512xf32>
    %c63_i32 = arith.constant 63 : i32
    %338 = tpu.dynamic_rotate %300 by %c63_i32 dim 1 : vector<20x512xf32>, i32 -> vector<20x512xf32>
    %339 = vector.extract_strided_slice %301 {offsets = [0, 5], sizes = [20, 1], strides = [1, 1]} : vector<20x27xf32> to vector<20x1xf32>
    %340 = vector.broadcast %339 : vector<20x1xf32> to vector<20x512xf32>
    %341 = vector.broadcast %173 : vector<1x512xf32> to vector<20x512xf32>
    %342 = arith.mulf %340, %341 : vector<20x512xf32>
    %343 = arith.mulf %342, %338 : vector<20x512xf32>
    %344 = arith.addf %337, %343 : vector<20x512xf32>
    %c57_i32 = arith.constant 57 : i32
    %345 = tpu.dynamic_rotate %300 by %c57_i32 dim 1 : vector<20x512xf32>, i32 -> vector<20x512xf32>
    %346 = vector.extract_strided_slice %301 {offsets = [0, 6], sizes = [20, 1], strides = [1, 1]} : vector<20x27xf32> to vector<20x1xf32>
    %347 = vector.broadcast %346 : vector<20x1xf32> to vector<20x512xf32>
    %348 = vector.broadcast %175 : vector<1x512xf32> to vector<20x512xf32>
    %349 = arith.mulf %347, %348 : vector<20x512xf32>
    %350 = arith.mulf %349, %345 : vector<20x512xf32>
    %351 = arith.addf %344, %350 : vector<20x512xf32>
    %c56_i32 = arith.constant 56 : i32
    %352 = tpu.dynamic_rotate %300 by %c56_i32 dim 1 : vector<20x512xf32>, i32 -> vector<20x512xf32>
    %353 = vector.extract_strided_slice %301 {offsets = [0, 7], sizes = [20, 1], strides = [1, 1]} : vector<20x27xf32> to vector<20x1xf32>
    %354 = vector.broadcast %353 : vector<20x1xf32> to vector<20x512xf32>
    %355 = vector.broadcast %177 : vector<1x512xf32> to vector<20x512xf32>
    %356 = arith.mulf %354, %355 : vector<20x512xf32>
    %357 = arith.mulf %356, %352 : vector<20x512xf32>
    %358 = arith.addf %351, %357 : vector<20x512xf32>
    %c55_i32 = arith.constant 55 : i32
    %359 = tpu.dynamic_rotate %300 by %c55_i32 dim 1 : vector<20x512xf32>, i32 -> vector<20x512xf32>
    %360 = vector.extract_strided_slice %301 {offsets = [0, 8], sizes = [20, 1], strides = [1, 1]} : vector<20x27xf32> to vector<20x1xf32>
    %361 = vector.broadcast %360 : vector<20x1xf32> to vector<20x512xf32>
    %362 = vector.broadcast %179 : vector<1x512xf32> to vector<20x512xf32>
    %363 = arith.mulf %361, %362 : vector<20x512xf32>
    %364 = arith.mulf %363, %359 : vector<20x512xf32>
    %365 = arith.addf %358, %364 : vector<20x512xf32>
    %c9_i32 = arith.constant 9 : i32
    %366 = tpu.dynamic_rotate %300 by %c9_i32 dim 1 : vector<20x512xf32>, i32 -> vector<20x512xf32>
    %367 = vector.extract_strided_slice %301 {offsets = [0, 9], sizes = [20, 1], strides = [1, 1]} : vector<20x27xf32> to vector<20x1xf32>
    %368 = vector.broadcast %367 : vector<20x1xf32> to vector<20x512xf32>
    %369 = vector.broadcast %181 : vector<1x512xf32> to vector<20x512xf32>
    %370 = arith.mulf %368, %369 : vector<20x512xf32>
    %371 = arith.mulf %370, %366 : vector<20x512xf32>
    %372 = arith.addf %365, %371 : vector<20x512xf32>
    %c8_i32_82 = arith.constant 8 : i32
    %373 = tpu.dynamic_rotate %300 by %c8_i32_82 dim 1 : vector<20x512xf32>, i32 -> vector<20x512xf32>
    %374 = vector.extract_strided_slice %301 {offsets = [0, 10], sizes = [20, 1], strides = [1, 1]} : vector<20x27xf32> to vector<20x1xf32>
    %375 = vector.broadcast %374 : vector<20x1xf32> to vector<20x512xf32>
    %376 = vector.broadcast %183 : vector<1x512xf32> to vector<20x512xf32>
    %377 = arith.mulf %375, %376 : vector<20x512xf32>
    %378 = arith.mulf %377, %373 : vector<20x512xf32>
    %379 = arith.addf %372, %378 : vector<20x512xf32>
    %c7_i32 = arith.constant 7 : i32
    %380 = tpu.dynamic_rotate %300 by %c7_i32 dim 1 : vector<20x512xf32>, i32 -> vector<20x512xf32>
    %381 = vector.extract_strided_slice %301 {offsets = [0, 11], sizes = [20, 1], strides = [1, 1]} : vector<20x27xf32> to vector<20x1xf32>
    %382 = vector.broadcast %381 : vector<20x1xf32> to vector<20x512xf32>
    %383 = vector.broadcast %185 : vector<1x512xf32> to vector<20x512xf32>
    %384 = arith.mulf %382, %383 : vector<20x512xf32>
    %385 = arith.mulf %384, %380 : vector<20x512xf32>
    %386 = arith.addf %379, %385 : vector<20x512xf32>
    %c1_i32_83 = arith.constant 1 : i32
    %387 = tpu.dynamic_rotate %300 by %c1_i32_83 dim 1 : vector<20x512xf32>, i32 -> vector<20x512xf32>
    %388 = vector.extract_strided_slice %301 {offsets = [0, 12], sizes = [20, 1], strides = [1, 1]} : vector<20x27xf32> to vector<20x1xf32>
    %389 = vector.broadcast %388 : vector<20x1xf32> to vector<20x512xf32>
    %390 = vector.broadcast %187 : vector<1x512xf32> to vector<20x512xf32>
    %391 = arith.mulf %389, %390 : vector<20x512xf32>
    %392 = arith.mulf %391, %387 : vector<20x512xf32>
    %393 = arith.addf %386, %392 : vector<20x512xf32>
    %394 = vector.extract_strided_slice %301 {offsets = [0, 13], sizes = [20, 1], strides = [1, 1]} : vector<20x27xf32> to vector<20x1xf32>
    %395 = vector.broadcast %394 : vector<20x1xf32> to vector<20x512xf32>
    %396 = vector.broadcast %189 : vector<1x512xf32> to vector<20x512xf32>
    %397 = arith.mulf %395, %396 : vector<20x512xf32>
    %398 = arith.mulf %397, %300 : vector<20x512xf32>
    %399 = arith.addf %393, %398 : vector<20x512xf32>
    %c511_i32 = arith.constant 511 : i32
    %400 = tpu.dynamic_rotate %300 by %c511_i32 dim 1 : vector<20x512xf32>, i32 -> vector<20x512xf32>
    %401 = vector.extract_strided_slice %301 {offsets = [0, 14], sizes = [20, 1], strides = [1, 1]} : vector<20x27xf32> to vector<20x1xf32>
    %402 = vector.broadcast %401 : vector<20x1xf32> to vector<20x512xf32>
    %403 = vector.broadcast %191 : vector<1x512xf32> to vector<20x512xf32>
    %404 = arith.mulf %402, %403 : vector<20x512xf32>
    %405 = arith.mulf %404, %400 : vector<20x512xf32>
    %406 = arith.addf %399, %405 : vector<20x512xf32>
    %c505_i32 = arith.constant 505 : i32
    %407 = tpu.dynamic_rotate %300 by %c505_i32 dim 1 : vector<20x512xf32>, i32 -> vector<20x512xf32>
    %408 = vector.extract_strided_slice %301 {offsets = [0, 15], sizes = [20, 1], strides = [1, 1]} : vector<20x27xf32> to vector<20x1xf32>
    %409 = vector.broadcast %408 : vector<20x1xf32> to vector<20x512xf32>
    %410 = vector.broadcast %193 : vector<1x512xf32> to vector<20x512xf32>
    %411 = arith.mulf %409, %410 : vector<20x512xf32>
    %412 = arith.mulf %411, %407 : vector<20x512xf32>
    %413 = arith.addf %406, %412 : vector<20x512xf32>
    %c504_i32 = arith.constant 504 : i32
    %414 = tpu.dynamic_rotate %300 by %c504_i32 dim 1 : vector<20x512xf32>, i32 -> vector<20x512xf32>
    %415 = vector.extract_strided_slice %301 {offsets = [0, 16], sizes = [20, 1], strides = [1, 1]} : vector<20x27xf32> to vector<20x1xf32>
    %416 = vector.broadcast %415 : vector<20x1xf32> to vector<20x512xf32>
    %417 = vector.broadcast %195 : vector<1x512xf32> to vector<20x512xf32>
    %418 = arith.mulf %416, %417 : vector<20x512xf32>
    %419 = arith.mulf %418, %414 : vector<20x512xf32>
    %420 = arith.addf %413, %419 : vector<20x512xf32>
    %c503_i32 = arith.constant 503 : i32
    %421 = tpu.dynamic_rotate %300 by %c503_i32 dim 1 : vector<20x512xf32>, i32 -> vector<20x512xf32>
    %422 = vector.extract_strided_slice %301 {offsets = [0, 17], sizes = [20, 1], strides = [1, 1]} : vector<20x27xf32> to vector<20x1xf32>
    %423 = vector.broadcast %422 : vector<20x1xf32> to vector<20x512xf32>
    %424 = vector.broadcast %197 : vector<1x512xf32> to vector<20x512xf32>
    %425 = arith.mulf %423, %424 : vector<20x512xf32>
    %426 = arith.mulf %425, %421 : vector<20x512xf32>
    %427 = arith.addf %420, %426 : vector<20x512xf32>
    %c457_i32 = arith.constant 457 : i32
    %428 = tpu.dynamic_rotate %300 by %c457_i32 dim 1 : vector<20x512xf32>, i32 -> vector<20x512xf32>
    %429 = vector.extract_strided_slice %301 {offsets = [0, 18], sizes = [20, 1], strides = [1, 1]} : vector<20x27xf32> to vector<20x1xf32>
    %430 = vector.broadcast %429 : vector<20x1xf32> to vector<20x512xf32>
    %431 = vector.broadcast %199 : vector<1x512xf32> to vector<20x512xf32>
    %432 = arith.mulf %430, %431 : vector<20x512xf32>
    %433 = arith.mulf %432, %428 : vector<20x512xf32>
    %434 = arith.addf %427, %433 : vector<20x512xf32>
    %c456_i32 = arith.constant 456 : i32
    %435 = tpu.dynamic_rotate %300 by %c456_i32 dim 1 : vector<20x512xf32>, i32 -> vector<20x512xf32>
    %436 = vector.extract_strided_slice %301 {offsets = [0, 19], sizes = [20, 1], strides = [1, 1]} : vector<20x27xf32> to vector<20x1xf32>
    %437 = vector.broadcast %436 : vector<20x1xf32> to vector<20x512xf32>
    %438 = vector.broadcast %201 : vector<1x512xf32> to vector<20x512xf32>
    %439 = arith.mulf %437, %438 : vector<20x512xf32>
    %440 = arith.mulf %439, %435 : vector<20x512xf32>
    %441 = arith.addf %434, %440 : vector<20x512xf32>
    %c455_i32 = arith.constant 455 : i32
    %442 = tpu.dynamic_rotate %300 by %c455_i32 dim 1 : vector<20x512xf32>, i32 -> vector<20x512xf32>
    %443 = vector.extract_strided_slice %301 {offsets = [0, 20], sizes = [20, 1], strides = [1, 1]} : vector<20x27xf32> to vector<20x1xf32>
    %444 = vector.broadcast %443 : vector<20x1xf32> to vector<20x512xf32>
    %445 = vector.broadcast %203 : vector<1x512xf32> to vector<20x512xf32>
    %446 = arith.mulf %444, %445 : vector<20x512xf32>
    %447 = arith.mulf %446, %442 : vector<20x512xf32>
    %448 = arith.addf %441, %447 : vector<20x512xf32>
    %c449_i32 = arith.constant 449 : i32
    %449 = tpu.dynamic_rotate %300 by %c449_i32 dim 1 : vector<20x512xf32>, i32 -> vector<20x512xf32>
    %450 = vector.extract_strided_slice %301 {offsets = [0, 21], sizes = [20, 1], strides = [1, 1]} : vector<20x27xf32> to vector<20x1xf32>
    %451 = vector.broadcast %450 : vector<20x1xf32> to vector<20x512xf32>
    %452 = vector.broadcast %205 : vector<1x512xf32> to vector<20x512xf32>
    %453 = arith.mulf %451, %452 : vector<20x512xf32>
    %454 = arith.mulf %453, %449 : vector<20x512xf32>
    %455 = arith.addf %448, %454 : vector<20x512xf32>
    %c448_i32_84 = arith.constant 448 : i32
    %456 = tpu.dynamic_rotate %300 by %c448_i32_84 dim 1 : vector<20x512xf32>, i32 -> vector<20x512xf32>
    %457 = vector.extract_strided_slice %301 {offsets = [0, 22], sizes = [20, 1], strides = [1, 1]} : vector<20x27xf32> to vector<20x1xf32>
    %458 = vector.broadcast %457 : vector<20x1xf32> to vector<20x512xf32>
    %459 = vector.broadcast %207 : vector<1x512xf32> to vector<20x512xf32>
    %460 = arith.mulf %458, %459 : vector<20x512xf32>
    %461 = arith.mulf %460, %456 : vector<20x512xf32>
    %462 = arith.addf %455, %461 : vector<20x512xf32>
    %c447_i32 = arith.constant 447 : i32
    %463 = tpu.dynamic_rotate %300 by %c447_i32 dim 1 : vector<20x512xf32>, i32 -> vector<20x512xf32>
    %464 = vector.extract_strided_slice %301 {offsets = [0, 23], sizes = [20, 1], strides = [1, 1]} : vector<20x27xf32> to vector<20x1xf32>
    %465 = vector.broadcast %464 : vector<20x1xf32> to vector<20x512xf32>
    %466 = vector.broadcast %209 : vector<1x512xf32> to vector<20x512xf32>
    %467 = arith.mulf %465, %466 : vector<20x512xf32>
    %468 = arith.mulf %467, %463 : vector<20x512xf32>
    %469 = arith.addf %462, %468 : vector<20x512xf32>
    %c441_i32 = arith.constant 441 : i32
    %470 = tpu.dynamic_rotate %300 by %c441_i32 dim 1 : vector<20x512xf32>, i32 -> vector<20x512xf32>
    %471 = vector.extract_strided_slice %301 {offsets = [0, 24], sizes = [20, 1], strides = [1, 1]} : vector<20x27xf32> to vector<20x1xf32>
    %472 = vector.broadcast %471 : vector<20x1xf32> to vector<20x512xf32>
    %473 = vector.broadcast %211 : vector<1x512xf32> to vector<20x512xf32>
    %474 = arith.mulf %472, %473 : vector<20x512xf32>
    %475 = arith.mulf %474, %470 : vector<20x512xf32>
    %476 = arith.addf %469, %475 : vector<20x512xf32>
    %c440_i32 = arith.constant 440 : i32
    %477 = tpu.dynamic_rotate %300 by %c440_i32 dim 1 : vector<20x512xf32>, i32 -> vector<20x512xf32>
    %478 = vector.extract_strided_slice %301 {offsets = [0, 25], sizes = [20, 1], strides = [1, 1]} : vector<20x27xf32> to vector<20x1xf32>
    %479 = vector.broadcast %478 : vector<20x1xf32> to vector<20x512xf32>
    %480 = vector.broadcast %213 : vector<1x512xf32> to vector<20x512xf32>
    %481 = arith.mulf %479, %480 : vector<20x512xf32>
    %482 = arith.mulf %481, %477 : vector<20x512xf32>
    %483 = arith.addf %476, %482 : vector<20x512xf32>
    %c439_i32 = arith.constant 439 : i32
    %484 = tpu.dynamic_rotate %300 by %c439_i32 dim 1 : vector<20x512xf32>, i32 -> vector<20x512xf32>
    %485 = vector.extract_strided_slice %301 {offsets = [0, 26], sizes = [20, 1], strides = [1, 1]} : vector<20x27xf32> to vector<20x1xf32>
    %486 = vector.broadcast %485 : vector<20x1xf32> to vector<20x512xf32>
    %487 = vector.broadcast %215 : vector<1x512xf32> to vector<20x512xf32>
    %488 = arith.mulf %486, %487 : vector<20x512xf32>
    %489 = arith.mulf %488, %484 : vector<20x512xf32>
    %490 = arith.addf %483, %489 : vector<20x512xf32>
    %c0_85 = arith.constant 0 : index
    %c0_86 = arith.constant 0 : index
    %491 = vector.load %arg10[%c0_85, %c0_86] : memref<20x1xf32, #tpu.memory_space<vmem>>, vector<20x1xf32>
    %492 = vector.broadcast %491 : vector<20x1xf32> to vector<20x512xf32>
    %493 = arith.addf %490, %492 : vector<20x512xf32>
    %cst_87 = arith.constant 5.000000e-01 : f32
    %494 = vector.broadcast %cst_87 : f32 to vector<20x512xf32>
    %495 = arith.mulf %494, %493 : vector<20x512xf32>
    %cst_88 = arith.constant 0.707106769 : f32
    %496 = vector.broadcast %cst_88 : f32 to vector<20x512xf32>
    %497 = arith.mulf %493, %496 : vector<20x512xf32>
    %498 = math.erf %497 : vector<20x512xf32>
    %cst_89 = arith.constant 1.000000e+00 : f32
    %499 = vector.broadcast %cst_89 : f32 to vector<20x512xf32>
    %500 = arith.addf %499, %498 : vector<20x512xf32>
    %501 = arith.mulf %495, %500 : vector<20x512xf32>
    %cst_90 = arith.constant 0.000000e+00 : f32
    %502 = vector.broadcast %cst_90 : f32 to vector<20x512xf32>
    %c496_i32 = arith.constant 496 : i32
    %503 = tpu.dynamic_rotate %501 by %c496_i32 dim 1 : vector<20x512xf32>, i32 -> vector<20x512xf32>
    %c-2_i32_91 = arith.constant -2 : i32
    %504 = vector.broadcast %c-2_i32_91 : i32 to vector<1x512xi32>
    %505 = arith.subi %3, %504 : vector<1x512xi32>
    %c0_i32_92 = arith.constant 0 : i32
    %506 = vector.broadcast %c0_i32_92 : i32 to vector<1x512xi32>
    %507 = arith.cmpi sge, %505, %506 : vector<1x512xi32>
    %c-2_i32_93 = arith.constant -2 : i32
    %508 = vector.broadcast %c-2_i32_93 : i32 to vector<1x512xi32>
    %509 = arith.subi %3, %508 : vector<1x512xi32>
    %c8_i32_94 = arith.constant 8 : i32
    %510 = vector.broadcast %c8_i32_94 : i32 to vector<1x512xi32>
    %511 = arith.cmpi slt, %509, %510 : vector<1x512xi32>
    %512 = arith.andi %507, %511 : vector<1x512xi1>
    %513 = arith.extui %512 : vector<1x512xi1> to vector<1x512xi32>
    %514 = arith.sitofp %513 : vector<1x512xi32> to vector<1x512xf32>
    %515 = vector.broadcast %514 : vector<1x512xf32> to vector<20x512xf32>
    %516 = arith.mulf %515, %503 : vector<20x512xf32>
    %517 = arith.mulf %34, %516 : vector<20x512xf32>
    %518 = arith.addf %502, %517 : vector<20x512xf32>
    %c504_i32_95 = arith.constant 504 : i32
    %519 = tpu.dynamic_rotate %501 by %c504_i32_95 dim 1 : vector<20x512xf32>, i32 -> vector<20x512xf32>
    %c-1_i32_96 = arith.constant -1 : i32
    %520 = vector.broadcast %c-1_i32_96 : i32 to vector<1x512xi32>
    %521 = arith.subi %3, %520 : vector<1x512xi32>
    %c0_i32_97 = arith.constant 0 : i32
    %522 = vector.broadcast %c0_i32_97 : i32 to vector<1x512xi32>
    %523 = arith.cmpi sge, %521, %522 : vector<1x512xi32>
    %c-1_i32_98 = arith.constant -1 : i32
    %524 = vector.broadcast %c-1_i32_98 : i32 to vector<1x512xi32>
    %525 = arith.subi %3, %524 : vector<1x512xi32>
    %c8_i32_99 = arith.constant 8 : i32
    %526 = vector.broadcast %c8_i32_99 : i32 to vector<1x512xi32>
    %527 = arith.cmpi slt, %525, %526 : vector<1x512xi32>
    %528 = arith.andi %523, %527 : vector<1x512xi1>
    %529 = arith.extui %528 : vector<1x512xi1> to vector<1x512xi32>
    %530 = arith.sitofp %529 : vector<1x512xi32> to vector<1x512xf32>
    %531 = vector.broadcast %530 : vector<1x512xf32> to vector<20x512xf32>
    %532 = arith.mulf %531, %519 : vector<20x512xf32>
    %533 = arith.mulf %41, %532 : vector<20x512xf32>
    %534 = arith.addf %518, %533 : vector<20x512xf32>
    %c0_i32_100 = arith.constant 0 : i32
    %535 = vector.broadcast %c0_i32_100 : i32 to vector<1x512xi32>
    %536 = arith.subi %3, %535 : vector<1x512xi32>
    %c0_i32_101 = arith.constant 0 : i32
    %537 = vector.broadcast %c0_i32_101 : i32 to vector<1x512xi32>
    %538 = arith.cmpi sge, %536, %537 : vector<1x512xi32>
    %c0_i32_102 = arith.constant 0 : i32
    %539 = vector.broadcast %c0_i32_102 : i32 to vector<1x512xi32>
    %540 = arith.subi %3, %539 : vector<1x512xi32>
    %c8_i32_103 = arith.constant 8 : i32
    %541 = vector.broadcast %c8_i32_103 : i32 to vector<1x512xi32>
    %542 = arith.cmpi slt, %540, %541 : vector<1x512xi32>
    %543 = arith.andi %538, %542 : vector<1x512xi1>
    %544 = arith.extui %543 : vector<1x512xi1> to vector<1x512xi32>
    %545 = arith.sitofp %544 : vector<1x512xi32> to vector<1x512xf32>
    %546 = vector.broadcast %545 : vector<1x512xf32> to vector<20x512xf32>
    %547 = arith.mulf %546, %501 : vector<20x512xf32>
    %548 = arith.mulf %48, %547 : vector<20x512xf32>
    %549 = arith.addf %534, %548 : vector<20x512xf32>
    %c8_i32_104 = arith.constant 8 : i32
    %550 = tpu.dynamic_rotate %501 by %c8_i32_104 dim 1 : vector<20x512xf32>, i32 -> vector<20x512xf32>
    %c1_i32_105 = arith.constant 1 : i32
    %551 = vector.broadcast %c1_i32_105 : i32 to vector<1x512xi32>
    %552 = arith.subi %3, %551 : vector<1x512xi32>
    %c0_i32_106 = arith.constant 0 : i32
    %553 = vector.broadcast %c0_i32_106 : i32 to vector<1x512xi32>
    %554 = arith.cmpi sge, %552, %553 : vector<1x512xi32>
    %c1_i32_107 = arith.constant 1 : i32
    %555 = vector.broadcast %c1_i32_107 : i32 to vector<1x512xi32>
    %556 = arith.subi %3, %555 : vector<1x512xi32>
    %c8_i32_108 = arith.constant 8 : i32
    %557 = vector.broadcast %c8_i32_108 : i32 to vector<1x512xi32>
    %558 = arith.cmpi slt, %556, %557 : vector<1x512xi32>
    %559 = arith.andi %554, %558 : vector<1x512xi1>
    %560 = arith.extui %559 : vector<1x512xi1> to vector<1x512xi32>
    %561 = arith.sitofp %560 : vector<1x512xi32> to vector<1x512xf32>
    %562 = vector.broadcast %561 : vector<1x512xf32> to vector<20x512xf32>
    %563 = arith.mulf %562, %550 : vector<20x512xf32>
    %564 = arith.mulf %55, %563 : vector<20x512xf32>
    %565 = arith.addf %549, %564 : vector<20x512xf32>
    %c16_i32_109 = arith.constant 16 : i32
    %566 = tpu.dynamic_rotate %501 by %c16_i32_109 dim 1 : vector<20x512xf32>, i32 -> vector<20x512xf32>
    %c2_i32_110 = arith.constant 2 : i32
    %567 = vector.broadcast %c2_i32_110 : i32 to vector<1x512xi32>
    %568 = arith.subi %3, %567 : vector<1x512xi32>
    %c0_i32_111 = arith.constant 0 : i32
    %569 = vector.broadcast %c0_i32_111 : i32 to vector<1x512xi32>
    %570 = arith.cmpi sge, %568, %569 : vector<1x512xi32>
    %c2_i32_112 = arith.constant 2 : i32
    %571 = vector.broadcast %c2_i32_112 : i32 to vector<1x512xi32>
    %572 = arith.subi %3, %571 : vector<1x512xi32>
    %c8_i32_113 = arith.constant 8 : i32
    %573 = vector.broadcast %c8_i32_113 : i32 to vector<1x512xi32>
    %574 = arith.cmpi slt, %572, %573 : vector<1x512xi32>
    %575 = arith.andi %570, %574 : vector<1x512xi1>
    %576 = arith.extui %575 : vector<1x512xi1> to vector<1x512xi32>
    %577 = arith.sitofp %576 : vector<1x512xi32> to vector<1x512xf32>
    %578 = vector.broadcast %577 : vector<1x512xf32> to vector<20x512xf32>
    %579 = arith.mulf %578, %566 : vector<20x512xf32>
    %580 = arith.mulf %62, %579 : vector<20x512xf32>
    %581 = arith.addf %565, %580 : vector<20x512xf32>
    %c0_114 = arith.constant 0 : index
    %c0_115 = arith.constant 0 : index
    %582 = vector.load %arg11[%c0_114, %c0_115] : memref<20x20xf32, #tpu.memory_space<vmem>>, vector<20x20xf32>
    %cst_116 = arith.constant dense<0.000000e+00> : vector<20x512xf32>
    %583 = tpu.matmul %582, %581, %cst_116 {dimension_numbers = #tpu.dot_dimension_numbers<[1], [0], [0], [1], [0, 0, 1, 1], [], []>} : vector<20x20xf32>, vector<20x512xf32>, vector<20x512xf32> -> vector<20x512xf32>
    %c0_117 = arith.constant 0 : index
    %c0_118 = arith.constant 0 : index
    %584 = vector.load %arg12[%c0_117, %c0_118] : memref<20x1xf32, #tpu.memory_space<vmem>>, vector<20x1xf32>
    %585 = vector.broadcast %584 : vector<20x1xf32> to vector<20x512xf32>
    %586 = arith.addf %583, %585 : vector<20x512xf32>
    %c0_119 = arith.constant 0 : index
    %c0_120 = arith.constant 0 : index
    %587 = vector.load %arg13[%c0_119, %c0_120] : memref<20x27xf32, #tpu.memory_space<vmem>>, vector<20x27xf32>
    %cst_121 = arith.constant 0.000000e+00 : f32
    %588 = vector.broadcast %cst_121 : f32 to vector<20x512xf32>
    %c73_i32_122 = arith.constant 73 : i32
    %589 = tpu.dynamic_rotate %586 by %c73_i32_122 dim 1 : vector<20x512xf32>, i32 -> vector<20x512xf32>
    %590 = vector.extract_strided_slice %587 {offsets = [0, 0], sizes = [20, 1], strides = [1, 1]} : vector<20x27xf32> to vector<20x1xf32>
    %591 = vector.broadcast %590 : vector<20x1xf32> to vector<20x512xf32>
    %592 = vector.broadcast %163 : vector<1x512xf32> to vector<20x512xf32>
    %593 = arith.mulf %591, %592 : vector<20x512xf32>
    %594 = arith.mulf %593, %589 : vector<20x512xf32>
    %595 = arith.addf %588, %594 : vector<20x512xf32>
    %c72_i32_123 = arith.constant 72 : i32
    %596 = tpu.dynamic_rotate %586 by %c72_i32_123 dim 1 : vector<20x512xf32>, i32 -> vector<20x512xf32>
    %597 = vector.extract_strided_slice %587 {offsets = [0, 1], sizes = [20, 1], strides = [1, 1]} : vector<20x27xf32> to vector<20x1xf32>
    %598 = vector.broadcast %597 : vector<20x1xf32> to vector<20x512xf32>
    %599 = vector.broadcast %165 : vector<1x512xf32> to vector<20x512xf32>
    %600 = arith.mulf %598, %599 : vector<20x512xf32>
    %601 = arith.mulf %600, %596 : vector<20x512xf32>
    %602 = arith.addf %595, %601 : vector<20x512xf32>
    %c71_i32_124 = arith.constant 71 : i32
    %603 = tpu.dynamic_rotate %586 by %c71_i32_124 dim 1 : vector<20x512xf32>, i32 -> vector<20x512xf32>
    %604 = vector.extract_strided_slice %587 {offsets = [0, 2], sizes = [20, 1], strides = [1, 1]} : vector<20x27xf32> to vector<20x1xf32>
    %605 = vector.broadcast %604 : vector<20x1xf32> to vector<20x512xf32>
    %606 = vector.broadcast %167 : vector<1x512xf32> to vector<20x512xf32>
    %607 = arith.mulf %605, %606 : vector<20x512xf32>
    %608 = arith.mulf %607, %603 : vector<20x512xf32>
    %609 = arith.addf %602, %608 : vector<20x512xf32>
    %c65_i32_125 = arith.constant 65 : i32
    %610 = tpu.dynamic_rotate %586 by %c65_i32_125 dim 1 : vector<20x512xf32>, i32 -> vector<20x512xf32>
    %611 = vector.extract_strided_slice %587 {offsets = [0, 3], sizes = [20, 1], strides = [1, 1]} : vector<20x27xf32> to vector<20x1xf32>
    %612 = vector.broadcast %611 : vector<20x1xf32> to vector<20x512xf32>
    %613 = vector.broadcast %169 : vector<1x512xf32> to vector<20x512xf32>
    %614 = arith.mulf %612, %613 : vector<20x512xf32>
    %615 = arith.mulf %614, %610 : vector<20x512xf32>
    %616 = arith.addf %609, %615 : vector<20x512xf32>
    %c64_i32_126 = arith.constant 64 : i32
    %617 = tpu.dynamic_rotate %586 by %c64_i32_126 dim 1 : vector<20x512xf32>, i32 -> vector<20x512xf32>
    %618 = vector.extract_strided_slice %587 {offsets = [0, 4], sizes = [20, 1], strides = [1, 1]} : vector<20x27xf32> to vector<20x1xf32>
    %619 = vector.broadcast %618 : vector<20x1xf32> to vector<20x512xf32>
    %620 = vector.broadcast %171 : vector<1x512xf32> to vector<20x512xf32>
    %621 = arith.mulf %619, %620 : vector<20x512xf32>
    %622 = arith.mulf %621, %617 : vector<20x512xf32>
    %623 = arith.addf %616, %622 : vector<20x512xf32>
    %c63_i32_127 = arith.constant 63 : i32
    %624 = tpu.dynamic_rotate %586 by %c63_i32_127 dim 1 : vector<20x512xf32>, i32 -> vector<20x512xf32>
    %625 = vector.extract_strided_slice %587 {offsets = [0, 5], sizes = [20, 1], strides = [1, 1]} : vector<20x27xf32> to vector<20x1xf32>
    %626 = vector.broadcast %625 : vector<20x1xf32> to vector<20x512xf32>
    %627 = vector.broadcast %173 : vector<1x512xf32> to vector<20x512xf32>
    %628 = arith.mulf %626, %627 : vector<20x512xf32>
    %629 = arith.mulf %628, %624 : vector<20x512xf32>
    %630 = arith.addf %623, %629 : vector<20x512xf32>
    %c57_i32_128 = arith.constant 57 : i32
    %631 = tpu.dynamic_rotate %586 by %c57_i32_128 dim 1 : vector<20x512xf32>, i32 -> vector<20x512xf32>
    %632 = vector.extract_strided_slice %587 {offsets = [0, 6], sizes = [20, 1], strides = [1, 1]} : vector<20x27xf32> to vector<20x1xf32>
    %633 = vector.broadcast %632 : vector<20x1xf32> to vector<20x512xf32>
    %634 = vector.broadcast %175 : vector<1x512xf32> to vector<20x512xf32>
    %635 = arith.mulf %633, %634 : vector<20x512xf32>
    %636 = arith.mulf %635, %631 : vector<20x512xf32>
    %637 = arith.addf %630, %636 : vector<20x512xf32>
    %c56_i32_129 = arith.constant 56 : i32
    %638 = tpu.dynamic_rotate %586 by %c56_i32_129 dim 1 : vector<20x512xf32>, i32 -> vector<20x512xf32>
    %639 = vector.extract_strided_slice %587 {offsets = [0, 7], sizes = [20, 1], strides = [1, 1]} : vector<20x27xf32> to vector<20x1xf32>
    %640 = vector.broadcast %639 : vector<20x1xf32> to vector<20x512xf32>
    %641 = vector.broadcast %177 : vector<1x512xf32> to vector<20x512xf32>
    %642 = arith.mulf %640, %641 : vector<20x512xf32>
    %643 = arith.mulf %642, %638 : vector<20x512xf32>
    %644 = arith.addf %637, %643 : vector<20x512xf32>
    %c55_i32_130 = arith.constant 55 : i32
    %645 = tpu.dynamic_rotate %586 by %c55_i32_130 dim 1 : vector<20x512xf32>, i32 -> vector<20x512xf32>
    %646 = vector.extract_strided_slice %587 {offsets = [0, 8], sizes = [20, 1], strides = [1, 1]} : vector<20x27xf32> to vector<20x1xf32>
    %647 = vector.broadcast %646 : vector<20x1xf32> to vector<20x512xf32>
    %648 = vector.broadcast %179 : vector<1x512xf32> to vector<20x512xf32>
    %649 = arith.mulf %647, %648 : vector<20x512xf32>
    %650 = arith.mulf %649, %645 : vector<20x512xf32>
    %651 = arith.addf %644, %650 : vector<20x512xf32>
    %c9_i32_131 = arith.constant 9 : i32
    %652 = tpu.dynamic_rotate %586 by %c9_i32_131 dim 1 : vector<20x512xf32>, i32 -> vector<20x512xf32>
    %653 = vector.extract_strided_slice %587 {offsets = [0, 9], sizes = [20, 1], strides = [1, 1]} : vector<20x27xf32> to vector<20x1xf32>
    %654 = vector.broadcast %653 : vector<20x1xf32> to vector<20x512xf32>
    %655 = vector.broadcast %181 : vector<1x512xf32> to vector<20x512xf32>
    %656 = arith.mulf %654, %655 : vector<20x512xf32>
    %657 = arith.mulf %656, %652 : vector<20x512xf32>
    %658 = arith.addf %651, %657 : vector<20x512xf32>
    %c8_i32_132 = arith.constant 8 : i32
    %659 = tpu.dynamic_rotate %586 by %c8_i32_132 dim 1 : vector<20x512xf32>, i32 -> vector<20x512xf32>
    %660 = vector.extract_strided_slice %587 {offsets = [0, 10], sizes = [20, 1], strides = [1, 1]} : vector<20x27xf32> to vector<20x1xf32>
    %661 = vector.broadcast %660 : vector<20x1xf32> to vector<20x512xf32>
    %662 = vector.broadcast %183 : vector<1x512xf32> to vector<20x512xf32>
    %663 = arith.mulf %661, %662 : vector<20x512xf32>
    %664 = arith.mulf %663, %659 : vector<20x512xf32>
    %665 = arith.addf %658, %664 : vector<20x512xf32>
    %c7_i32_133 = arith.constant 7 : i32
    %666 = tpu.dynamic_rotate %586 by %c7_i32_133 dim 1 : vector<20x512xf32>, i32 -> vector<20x512xf32>
    %667 = vector.extract_strided_slice %587 {offsets = [0, 11], sizes = [20, 1], strides = [1, 1]} : vector<20x27xf32> to vector<20x1xf32>
    %668 = vector.broadcast %667 : vector<20x1xf32> to vector<20x512xf32>
    %669 = vector.broadcast %185 : vector<1x512xf32> to vector<20x512xf32>
    %670 = arith.mulf %668, %669 : vector<20x512xf32>
    %671 = arith.mulf %670, %666 : vector<20x512xf32>
    %672 = arith.addf %665, %671 : vector<20x512xf32>
    %c1_i32_134 = arith.constant 1 : i32
    %673 = tpu.dynamic_rotate %586 by %c1_i32_134 dim 1 : vector<20x512xf32>, i32 -> vector<20x512xf32>
    %674 = vector.extract_strided_slice %587 {offsets = [0, 12], sizes = [20, 1], strides = [1, 1]} : vector<20x27xf32> to vector<20x1xf32>
    %675 = vector.broadcast %674 : vector<20x1xf32> to vector<20x512xf32>
    %676 = vector.broadcast %187 : vector<1x512xf32> to vector<20x512xf32>
    %677 = arith.mulf %675, %676 : vector<20x512xf32>
    %678 = arith.mulf %677, %673 : vector<20x512xf32>
    %679 = arith.addf %672, %678 : vector<20x512xf32>
    %680 = vector.extract_strided_slice %587 {offsets = [0, 13], sizes = [20, 1], strides = [1, 1]} : vector<20x27xf32> to vector<20x1xf32>
    %681 = vector.broadcast %680 : vector<20x1xf32> to vector<20x512xf32>
    %682 = vector.broadcast %189 : vector<1x512xf32> to vector<20x512xf32>
    %683 = arith.mulf %681, %682 : vector<20x512xf32>
    %684 = arith.mulf %683, %586 : vector<20x512xf32>
    %685 = arith.addf %679, %684 : vector<20x512xf32>
    %c511_i32_135 = arith.constant 511 : i32
    %686 = tpu.dynamic_rotate %586 by %c511_i32_135 dim 1 : vector<20x512xf32>, i32 -> vector<20x512xf32>
    %687 = vector.extract_strided_slice %587 {offsets = [0, 14], sizes = [20, 1], strides = [1, 1]} : vector<20x27xf32> to vector<20x1xf32>
    %688 = vector.broadcast %687 : vector<20x1xf32> to vector<20x512xf32>
    %689 = vector.broadcast %191 : vector<1x512xf32> to vector<20x512xf32>
    %690 = arith.mulf %688, %689 : vector<20x512xf32>
    %691 = arith.mulf %690, %686 : vector<20x512xf32>
    %692 = arith.addf %685, %691 : vector<20x512xf32>
    %c505_i32_136 = arith.constant 505 : i32
    %693 = tpu.dynamic_rotate %586 by %c505_i32_136 dim 1 : vector<20x512xf32>, i32 -> vector<20x512xf32>
    %694 = vector.extract_strided_slice %587 {offsets = [0, 15], sizes = [20, 1], strides = [1, 1]} : vector<20x27xf32> to vector<20x1xf32>
    %695 = vector.broadcast %694 : vector<20x1xf32> to vector<20x512xf32>
    %696 = vector.broadcast %193 : vector<1x512xf32> to vector<20x512xf32>
    %697 = arith.mulf %695, %696 : vector<20x512xf32>
    %698 = arith.mulf %697, %693 : vector<20x512xf32>
    %699 = arith.addf %692, %698 : vector<20x512xf32>
    %c504_i32_137 = arith.constant 504 : i32
    %700 = tpu.dynamic_rotate %586 by %c504_i32_137 dim 1 : vector<20x512xf32>, i32 -> vector<20x512xf32>
    %701 = vector.extract_strided_slice %587 {offsets = [0, 16], sizes = [20, 1], strides = [1, 1]} : vector<20x27xf32> to vector<20x1xf32>
    %702 = vector.broadcast %701 : vector<20x1xf32> to vector<20x512xf32>
    %703 = vector.broadcast %195 : vector<1x512xf32> to vector<20x512xf32>
    %704 = arith.mulf %702, %703 : vector<20x512xf32>
    %705 = arith.mulf %704, %700 : vector<20x512xf32>
    %706 = arith.addf %699, %705 : vector<20x512xf32>
    %c503_i32_138 = arith.constant 503 : i32
    %707 = tpu.dynamic_rotate %586 by %c503_i32_138 dim 1 : vector<20x512xf32>, i32 -> vector<20x512xf32>
    %708 = vector.extract_strided_slice %587 {offsets = [0, 17], sizes = [20, 1], strides = [1, 1]} : vector<20x27xf32> to vector<20x1xf32>
    %709 = vector.broadcast %708 : vector<20x1xf32> to vector<20x512xf32>
    %710 = vector.broadcast %197 : vector<1x512xf32> to vector<20x512xf32>
    %711 = arith.mulf %709, %710 : vector<20x512xf32>
    %712 = arith.mulf %711, %707 : vector<20x512xf32>
    %713 = arith.addf %706, %712 : vector<20x512xf32>
    %c457_i32_139 = arith.constant 457 : i32
    %714 = tpu.dynamic_rotate %586 by %c457_i32_139 dim 1 : vector<20x512xf32>, i32 -> vector<20x512xf32>
    %715 = vector.extract_strided_slice %587 {offsets = [0, 18], sizes = [20, 1], strides = [1, 1]} : vector<20x27xf32> to vector<20x1xf32>
    %716 = vector.broadcast %715 : vector<20x1xf32> to vector<20x512xf32>
    %717 = vector.broadcast %199 : vector<1x512xf32> to vector<20x512xf32>
    %718 = arith.mulf %716, %717 : vector<20x512xf32>
    %719 = arith.mulf %718, %714 : vector<20x512xf32>
    %720 = arith.addf %713, %719 : vector<20x512xf32>
    %c456_i32_140 = arith.constant 456 : i32
    %721 = tpu.dynamic_rotate %586 by %c456_i32_140 dim 1 : vector<20x512xf32>, i32 -> vector<20x512xf32>
    %722 = vector.extract_strided_slice %587 {offsets = [0, 19], sizes = [20, 1], strides = [1, 1]} : vector<20x27xf32> to vector<20x1xf32>
    %723 = vector.broadcast %722 : vector<20x1xf32> to vector<20x512xf32>
    %724 = vector.broadcast %201 : vector<1x512xf32> to vector<20x512xf32>
    %725 = arith.mulf %723, %724 : vector<20x512xf32>
    %726 = arith.mulf %725, %721 : vector<20x512xf32>
    %727 = arith.addf %720, %726 : vector<20x512xf32>
    %c455_i32_141 = arith.constant 455 : i32
    %728 = tpu.dynamic_rotate %586 by %c455_i32_141 dim 1 : vector<20x512xf32>, i32 -> vector<20x512xf32>
    %729 = vector.extract_strided_slice %587 {offsets = [0, 20], sizes = [20, 1], strides = [1, 1]} : vector<20x27xf32> to vector<20x1xf32>
    %730 = vector.broadcast %729 : vector<20x1xf32> to vector<20x512xf32>
    %731 = vector.broadcast %203 : vector<1x512xf32> to vector<20x512xf32>
    %732 = arith.mulf %730, %731 : vector<20x512xf32>
    %733 = arith.mulf %732, %728 : vector<20x512xf32>
    %734 = arith.addf %727, %733 : vector<20x512xf32>
    %c449_i32_142 = arith.constant 449 : i32
    %735 = tpu.dynamic_rotate %586 by %c449_i32_142 dim 1 : vector<20x512xf32>, i32 -> vector<20x512xf32>
    %736 = vector.extract_strided_slice %587 {offsets = [0, 21], sizes = [20, 1], strides = [1, 1]} : vector<20x27xf32> to vector<20x1xf32>
    %737 = vector.broadcast %736 : vector<20x1xf32> to vector<20x512xf32>
    %738 = vector.broadcast %205 : vector<1x512xf32> to vector<20x512xf32>
    %739 = arith.mulf %737, %738 : vector<20x512xf32>
    %740 = arith.mulf %739, %735 : vector<20x512xf32>
    %741 = arith.addf %734, %740 : vector<20x512xf32>
    %c448_i32_143 = arith.constant 448 : i32
    %742 = tpu.dynamic_rotate %586 by %c448_i32_143 dim 1 : vector<20x512xf32>, i32 -> vector<20x512xf32>
    %743 = vector.extract_strided_slice %587 {offsets = [0, 22], sizes = [20, 1], strides = [1, 1]} : vector<20x27xf32> to vector<20x1xf32>
    %744 = vector.broadcast %743 : vector<20x1xf32> to vector<20x512xf32>
    %745 = vector.broadcast %207 : vector<1x512xf32> to vector<20x512xf32>
    %746 = arith.mulf %744, %745 : vector<20x512xf32>
    %747 = arith.mulf %746, %742 : vector<20x512xf32>
    %748 = arith.addf %741, %747 : vector<20x512xf32>
    %c447_i32_144 = arith.constant 447 : i32
    %749 = tpu.dynamic_rotate %586 by %c447_i32_144 dim 1 : vector<20x512xf32>, i32 -> vector<20x512xf32>
    %750 = vector.extract_strided_slice %587 {offsets = [0, 23], sizes = [20, 1], strides = [1, 1]} : vector<20x27xf32> to vector<20x1xf32>
    %751 = vector.broadcast %750 : vector<20x1xf32> to vector<20x512xf32>
    %752 = vector.broadcast %209 : vector<1x512xf32> to vector<20x512xf32>
    %753 = arith.mulf %751, %752 : vector<20x512xf32>
    %754 = arith.mulf %753, %749 : vector<20x512xf32>
    %755 = arith.addf %748, %754 : vector<20x512xf32>
    %c441_i32_145 = arith.constant 441 : i32
    %756 = tpu.dynamic_rotate %586 by %c441_i32_145 dim 1 : vector<20x512xf32>, i32 -> vector<20x512xf32>
    %757 = vector.extract_strided_slice %587 {offsets = [0, 24], sizes = [20, 1], strides = [1, 1]} : vector<20x27xf32> to vector<20x1xf32>
    %758 = vector.broadcast %757 : vector<20x1xf32> to vector<20x512xf32>
    %759 = vector.broadcast %211 : vector<1x512xf32> to vector<20x512xf32>
    %760 = arith.mulf %758, %759 : vector<20x512xf32>
    %761 = arith.mulf %760, %756 : vector<20x512xf32>
    %762 = arith.addf %755, %761 : vector<20x512xf32>
    %c440_i32_146 = arith.constant 440 : i32
    %763 = tpu.dynamic_rotate %586 by %c440_i32_146 dim 1 : vector<20x512xf32>, i32 -> vector<20x512xf32>
    %764 = vector.extract_strided_slice %587 {offsets = [0, 25], sizes = [20, 1], strides = [1, 1]} : vector<20x27xf32> to vector<20x1xf32>
    %765 = vector.broadcast %764 : vector<20x1xf32> to vector<20x512xf32>
    %766 = vector.broadcast %213 : vector<1x512xf32> to vector<20x512xf32>
    %767 = arith.mulf %765, %766 : vector<20x512xf32>
    %768 = arith.mulf %767, %763 : vector<20x512xf32>
    %769 = arith.addf %762, %768 : vector<20x512xf32>
    %c439_i32_147 = arith.constant 439 : i32
    %770 = tpu.dynamic_rotate %586 by %c439_i32_147 dim 1 : vector<20x512xf32>, i32 -> vector<20x512xf32>
    %771 = vector.extract_strided_slice %587 {offsets = [0, 26], sizes = [20, 1], strides = [1, 1]} : vector<20x27xf32> to vector<20x1xf32>
    %772 = vector.broadcast %771 : vector<20x1xf32> to vector<20x512xf32>
    %773 = vector.broadcast %215 : vector<1x512xf32> to vector<20x512xf32>
    %774 = arith.mulf %772, %773 : vector<20x512xf32>
    %775 = arith.mulf %774, %770 : vector<20x512xf32>
    %776 = arith.addf %769, %775 : vector<20x512xf32>
    %c0_148 = arith.constant 0 : index
    %c0_149 = arith.constant 0 : index
    %777 = vector.load %arg14[%c0_148, %c0_149] : memref<20x1xf32, #tpu.memory_space<vmem>>, vector<20x1xf32>
    %778 = vector.broadcast %777 : vector<20x1xf32> to vector<20x512xf32>
    %779 = arith.addf %776, %778 : vector<20x512xf32>
    %cst_150 = arith.constant 5.000000e-01 : f32
    %780 = vector.broadcast %cst_150 : f32 to vector<20x512xf32>
    %781 = arith.mulf %780, %779 : vector<20x512xf32>
    %cst_151 = arith.constant 0.707106769 : f32
    %782 = vector.broadcast %cst_151 : f32 to vector<20x512xf32>
    %783 = arith.mulf %779, %782 : vector<20x512xf32>
    %784 = math.erf %783 : vector<20x512xf32>
    %cst_152 = arith.constant 1.000000e+00 : f32
    %785 = vector.broadcast %cst_152 : f32 to vector<20x512xf32>
    %786 = arith.addf %785, %784 : vector<20x512xf32>
    %787 = arith.mulf %781, %786 : vector<20x512xf32>
    %cst_153 = arith.constant 0.000000e+00 : f32
    %788 = vector.broadcast %cst_153 : f32 to vector<20x512xf32>
    %c510_i32 = arith.constant 510 : i32
    %789 = tpu.dynamic_rotate %787 by %c510_i32 dim 1 : vector<20x512xf32>, i32 -> vector<20x512xf32>
    %c-2_i32_154 = arith.constant -2 : i32
    %790 = vector.broadcast %c-2_i32_154 : i32 to vector<1x512xi32>
    %791 = arith.subi %4, %790 : vector<1x512xi32>
    %c0_i32_155 = arith.constant 0 : i32
    %792 = vector.broadcast %c0_i32_155 : i32 to vector<1x512xi32>
    %793 = arith.cmpi sge, %791, %792 : vector<1x512xi32>
    %c-2_i32_156 = arith.constant -2 : i32
    %794 = vector.broadcast %c-2_i32_156 : i32 to vector<1x512xi32>
    %795 = arith.subi %4, %794 : vector<1x512xi32>
    %c8_i32_157 = arith.constant 8 : i32
    %796 = vector.broadcast %c8_i32_157 : i32 to vector<1x512xi32>
    %797 = arith.cmpi slt, %795, %796 : vector<1x512xi32>
    %798 = arith.andi %793, %797 : vector<1x512xi1>
    %799 = arith.extui %798 : vector<1x512xi1> to vector<1x512xi32>
    %800 = arith.sitofp %799 : vector<1x512xi32> to vector<1x512xf32>
    %801 = vector.broadcast %800 : vector<1x512xf32> to vector<20x512xf32>
    %802 = arith.mulf %801, %789 : vector<20x512xf32>
    %803 = arith.mulf %34, %802 : vector<20x512xf32>
    %804 = arith.addf %788, %803 : vector<20x512xf32>
    %c511_i32_158 = arith.constant 511 : i32
    %805 = tpu.dynamic_rotate %787 by %c511_i32_158 dim 1 : vector<20x512xf32>, i32 -> vector<20x512xf32>
    %c-1_i32_159 = arith.constant -1 : i32
    %806 = vector.broadcast %c-1_i32_159 : i32 to vector<1x512xi32>
    %807 = arith.subi %4, %806 : vector<1x512xi32>
    %c0_i32_160 = arith.constant 0 : i32
    %808 = vector.broadcast %c0_i32_160 : i32 to vector<1x512xi32>
    %809 = arith.cmpi sge, %807, %808 : vector<1x512xi32>
    %c-1_i32_161 = arith.constant -1 : i32
    %810 = vector.broadcast %c-1_i32_161 : i32 to vector<1x512xi32>
    %811 = arith.subi %4, %810 : vector<1x512xi32>
    %c8_i32_162 = arith.constant 8 : i32
    %812 = vector.broadcast %c8_i32_162 : i32 to vector<1x512xi32>
    %813 = arith.cmpi slt, %811, %812 : vector<1x512xi32>
    %814 = arith.andi %809, %813 : vector<1x512xi1>
    %815 = arith.extui %814 : vector<1x512xi1> to vector<1x512xi32>
    %816 = arith.sitofp %815 : vector<1x512xi32> to vector<1x512xf32>
    %817 = vector.broadcast %816 : vector<1x512xf32> to vector<20x512xf32>
    %818 = arith.mulf %817, %805 : vector<20x512xf32>
    %819 = arith.mulf %41, %818 : vector<20x512xf32>
    %820 = arith.addf %804, %819 : vector<20x512xf32>
    %c0_i32_163 = arith.constant 0 : i32
    %821 = vector.broadcast %c0_i32_163 : i32 to vector<1x512xi32>
    %822 = arith.subi %4, %821 : vector<1x512xi32>
    %c0_i32_164 = arith.constant 0 : i32
    %823 = vector.broadcast %c0_i32_164 : i32 to vector<1x512xi32>
    %824 = arith.cmpi sge, %822, %823 : vector<1x512xi32>
    %c0_i32_165 = arith.constant 0 : i32
    %825 = vector.broadcast %c0_i32_165 : i32 to vector<1x512xi32>
    %826 = arith.subi %4, %825 : vector<1x512xi32>
    %c8_i32_166 = arith.constant 8 : i32
    %827 = vector.broadcast %c8_i32_166 : i32 to vector<1x512xi32>
    %828 = arith.cmpi slt, %826, %827 : vector<1x512xi32>
    %829 = arith.andi %824, %828 : vector<1x512xi1>
    %830 = arith.extui %829 : vector<1x512xi1> to vector<1x512xi32>
    %831 = arith.sitofp %830 : vector<1x512xi32> to vector<1x512xf32>
    %832 = vector.broadcast %831 : vector<1x512xf32> to vector<20x512xf32>
    %833 = arith.mulf %832, %787 : vector<20x512xf32>
    %834 = arith.mulf %48, %833 : vector<20x512xf32>
    %835 = arith.addf %820, %834 : vector<20x512xf32>
    %c1_i32_167 = arith.constant 1 : i32
    %836 = tpu.dynamic_rotate %787 by %c1_i32_167 dim 1 : vector<20x512xf32>, i32 -> vector<20x512xf32>
    %c1_i32_168 = arith.constant 1 : i32
    %837 = vector.broadcast %c1_i32_168 : i32 to vector<1x512xi32>
    %838 = arith.subi %4, %837 : vector<1x512xi32>
    %c0_i32_169 = arith.constant 0 : i32
    %839 = vector.broadcast %c0_i32_169 : i32 to vector<1x512xi32>
    %840 = arith.cmpi sge, %838, %839 : vector<1x512xi32>
    %c1_i32_170 = arith.constant 1 : i32
    %841 = vector.broadcast %c1_i32_170 : i32 to vector<1x512xi32>
    %842 = arith.subi %4, %841 : vector<1x512xi32>
    %c8_i32_171 = arith.constant 8 : i32
    %843 = vector.broadcast %c8_i32_171 : i32 to vector<1x512xi32>
    %844 = arith.cmpi slt, %842, %843 : vector<1x512xi32>
    %845 = arith.andi %840, %844 : vector<1x512xi1>
    %846 = arith.extui %845 : vector<1x512xi1> to vector<1x512xi32>
    %847 = arith.sitofp %846 : vector<1x512xi32> to vector<1x512xf32>
    %848 = vector.broadcast %847 : vector<1x512xf32> to vector<20x512xf32>
    %849 = arith.mulf %848, %836 : vector<20x512xf32>
    %850 = arith.mulf %55, %849 : vector<20x512xf32>
    %851 = arith.addf %835, %850 : vector<20x512xf32>
    %c2_i32_172 = arith.constant 2 : i32
    %852 = tpu.dynamic_rotate %787 by %c2_i32_172 dim 1 : vector<20x512xf32>, i32 -> vector<20x512xf32>
    %c2_i32_173 = arith.constant 2 : i32
    %853 = vector.broadcast %c2_i32_173 : i32 to vector<1x512xi32>
    %854 = arith.subi %4, %853 : vector<1x512xi32>
    %c0_i32_174 = arith.constant 0 : i32
    %855 = vector.broadcast %c0_i32_174 : i32 to vector<1x512xi32>
    %856 = arith.cmpi sge, %854, %855 : vector<1x512xi32>
    %c2_i32_175 = arith.constant 2 : i32
    %857 = vector.broadcast %c2_i32_175 : i32 to vector<1x512xi32>
    %858 = arith.subi %4, %857 : vector<1x512xi32>
    %c8_i32_176 = arith.constant 8 : i32
    %859 = vector.broadcast %c8_i32_176 : i32 to vector<1x512xi32>
    %860 = arith.cmpi slt, %858, %859 : vector<1x512xi32>
    %861 = arith.andi %856, %860 : vector<1x512xi1>
    %862 = arith.extui %861 : vector<1x512xi1> to vector<1x512xi32>
    %863 = arith.sitofp %862 : vector<1x512xi32> to vector<1x512xf32>
    %864 = vector.broadcast %863 : vector<1x512xf32> to vector<20x512xf32>
    %865 = arith.mulf %864, %852 : vector<20x512xf32>
    %866 = arith.mulf %62, %865 : vector<20x512xf32>
    %867 = arith.addf %851, %866 : vector<20x512xf32>
    %c0_177 = arith.constant 0 : index
    %c0_178 = arith.constant 0 : index
    %868 = vector.load %arg15[%c0_177, %c0_178] : memref<20x20xf32, #tpu.memory_space<vmem>>, vector<20x20xf32>
    %cst_179 = arith.constant dense<0.000000e+00> : vector<20x512xf32>
    %869 = tpu.matmul %868, %867, %cst_179 {dimension_numbers = #tpu.dot_dimension_numbers<[1], [0], [0], [1], [0, 0, 1, 1], [], []>} : vector<20x20xf32>, vector<20x512xf32>, vector<20x512xf32> -> vector<20x512xf32>
    %c0_180 = arith.constant 0 : index
    %c0_181 = arith.constant 0 : index
    %870 = vector.load %arg16[%c0_180, %c0_181] : memref<20x1xf32, #tpu.memory_space<vmem>>, vector<20x1xf32>
    %871 = vector.broadcast %870 : vector<20x1xf32> to vector<20x512xf32>
    %872 = arith.addf %869, %871 : vector<20x512xf32>
    %873 = arith.addf %1, %872 : vector<20x512xf32>
    %c0_182 = arith.constant 0 : index
    %c0_183 = arith.constant 0 : index
    %c0_184 = arith.constant 0 : index
    %874 = vector.load %arg17[%c0_182, %c0_183, %c0_184] : memref<1x20x512xf32, #tpu.memory_space<vmem>>, vector<1x20x512xf32>
    %875 = vector.shape_cast %874 : vector<1x20x512xf32> to vector<20x512xf32>
    %876 = vector.shape_cast %873 : vector<20x512xf32> to vector<1x20x512xf32>
    tpu.vector_store %arg17[%c0_182, %c0_183, %c0_184], %876 {strides = array<i32>} : memref<1x20x512xf32, #tpu.memory_space<vmem>>, vector<1x20x512xf32>,
    return
  }
  func.func @transform_0(%arg0: i32) -> (i32, i32, i32) {
    %c0_i32 = arith.constant 0 : i32
    %c0_i32_0 = arith.constant 0 : i32
    %c0_i32_1 = arith.constant 0 : i32
    return %arg0, %c0_i32, %c0_i32_0 : i32, i32, i32
  }
  func.func @transform_1(%arg0: i32) -> (i32, i32) {
    %c0_i32 = arith.constant 0 : i32
    %c0_i32_0 = arith.constant 0 : i32
    %c0_i32_1 = arith.constant 0 : i32
    return %c0_i32, %c0_i32_0 : i32, i32
  }
  func.func @transform_2(%arg0: i32) -> (i32, i32) {
    %c0_i32 = arith.constant 0 : i32
    %c0_i32_0 = arith.constant 0 : i32
    %c0_i32_1 = arith.constant 0 : i32
    return %c0_i32, %c0_i32_0 : i32, i32
  }
  func.func @transform_3(%arg0: i32) -> (i32, i32) {
    %c0_i32 = arith.constant 0 : i32
    %c0_i32_0 = arith.constant 0 : i32
    %c0_i32_1 = arith.constant 0 : i32
    return %c0_i32, %c0_i32_0 : i32, i32
  }
  func.func @transform_4(%arg0: i32) -> (i32, i32) {
    %c0_i32 = arith.constant 0 : i32
    %c0_i32_0 = arith.constant 0 : i32
    %c0_i32_1 = arith.constant 0 : i32
    return %c0_i32, %c0_i32_0 : i32, i32
  }
  func.func @transform_5(%arg0: i32) -> (i32, i32) {
    %c0_i32 = arith.constant 0 : i32
    %c0_i32_0 = arith.constant 0 : i32
    %c0_i32_1 = arith.constant 0 : i32
    return %c0_i32, %c0_i32_0 : i32, i32
  }
  func.func @transform_6(%arg0: i32) -> (i32, i32) {
    %c0_i32 = arith.constant 0 : i32
    %c0_i32_0 = arith.constant 0 : i32
    %c0_i32_1 = arith.constant 0 : i32
    return %c0_i32, %c0_i32_0 : i32, i32
  }
  func.func @transform_7(%arg0: i32) -> (i32, i32) {
    %c0_i32 = arith.constant 0 : i32
    %c0_i32_0 = arith.constant 0 : i32
    %c0_i32_1 = arith.constant 0 : i32
    return %c0_i32, %c0_i32_0 : i32, i32
  }
  func.func @transform_8(%arg0: i32) -> (i32, i32) {
    %c0_i32 = arith.constant 0 : i32
    %c0_i32_0 = arith.constant 0 : i32
    %c0_i32_1 = arith.constant 0 : i32
    return %c0_i32, %c0_i32_0 : i32, i32
  }
  func.func @transform_9(%arg0: i32) -> (i32, i32) {
    %c0_i32 = arith.constant 0 : i32
    %c0_i32_0 = arith.constant 0 : i32
    %c0_i32_1 = arith.constant 0 : i32
    return %c0_i32, %c0_i32_0 : i32, i32
  }
  func.func @transform_10(%arg0: i32) -> (i32, i32) {
    %c0_i32 = arith.constant 0 : i32
    %c0_i32_0 = arith.constant 0 : i32
    %c0_i32_1 = arith.constant 0 : i32
    return %c0_i32, %c0_i32_0 : i32, i32
  }
  func.func @transform_11(%arg0: i32) -> (i32, i32) {
    %c0_i32 = arith.constant 0 : i32
    %c0_i32_0 = arith.constant 0 : i32
    %c0_i32_1 = arith.constant 0 : i32
    return %c0_i32, %c0_i32_0 : i32, i32
  }
  func.func @transform_12(%arg0: i32) -> (i32, i32) {
    %c0_i32 = arith.constant 0 : i32
    %c0_i32_0 = arith.constant 0 : i32
    %c0_i32_1 = arith.constant 0 : i32
    return %c0_i32, %c0_i32_0 : i32, i32
  }
  func.func @transform_13(%arg0: i32) -> (i32, i32) {
    %c0_i32 = arith.constant 0 : i32
    %c0_i32_0 = arith.constant 0 : i32
    %c0_i32_1 = arith.constant 0 : i32
    return %c0_i32, %c0_i32_0 : i32, i32
  }
  func.func @transform_14(%arg0: i32) -> (i32, i32) {
    %c0_i32 = arith.constant 0 : i32
    %c0_i32_0 = arith.constant 0 : i32
    %c0_i32_1 = arith.constant 0 : i32
    return %c0_i32, %c0_i32_0 : i32, i32
  }
  func.func @transform_15(%arg0: i32) -> (i32, i32) {
    %c0_i32 = arith.constant 0 : i32
    %c0_i32_0 = arith.constant 0 : i32
    %c0_i32_1 = arith.constant 0 : i32
    return %c0_i32, %c0_i32_0 : i32, i32
  }
  func.func @transform_16(%arg0: i32) -> (i32, i32, i32) {
    %c0_i32 = arith.constant 0 : i32
    %c0_i32_0 = arith.constant 0 : i32
    %c0_i32_1 = arith.constant 0 : i32
    return %arg0, %c0_i32, %c0_i32_0 : i32, i32, i32
  }
}

</mosaic_0001>

<llo_original>
// kernel: _lambda_.1
$region0: #{_lambda_.1}
  #allocation0 [shape = 'u32[]', space=smem, size = 0x4, offset = 0x4, fixed_abs, tag = 'smem constant byte address 0x4 - core index']
  #allocation1 [shape = 'u32[144,128]{1,0:T(1,128)}', space=vmem, size = 0x12000, scoped, tag = 'internal scratch']
  %s0 = inlined_call_operand.vmem [shape: f32[2,20,512], index: 0, kind: input, shape index: {}]
  %s1 = inlined_call_operand.vmem [shape: s32[1,512], index: 1, kind: input, shape index: {}]
  %s2 = inlined_call_operand.vmem [shape: s32[1,512], index: 2, kind: input, shape index: {}]
  %s3 = inlined_call_operand.vmem [shape: s32[1,512], index: 3, kind: input, shape index: {}]
  %s4 = inlined_call_operand.vmem [shape: f32[20,1], index: 4, kind: input, shape index: {}]
  %s5 = inlined_call_operand.vmem [shape: f32[20,1], index: 5, kind: input, shape index: {}]
  %s6 = inlined_call_operand.vmem [shape: f32[20,20], index: 6, kind: input, shape index: {}]
  %s7 = inlined_call_operand.vmem [shape: f32[20,1], index: 7, kind: input, shape index: {}]
  %s8 = inlined_call_operand.vmem [shape: f32[20,27], index: 8, kind: input, shape index: {}]
  %s9 = inlined_call_operand.vmem [shape: f32[20,1], index: 9, kind: input, shape index: {}]
  %s10 = inlined_call_operand.vmem [shape: f32[20,20], index: 10, kind: input, shape index: {}]
  %s11 = inlined_call_operand.vmem [shape: f32[20,1], index: 11, kind: input, shape index: {}]
  %s12 = inlined_call_operand.vmem [shape: f32[20,27], index: 12, kind: input, shape index: {}]
  %s13 = inlined_call_operand.vmem [shape: f32[20,1], index: 13, kind: input, shape index: {}]
  %s14 = inlined_call_operand.vmem [shape: f32[20,20], index: 14, kind: input, shape index: {}]
  %s15 = inlined_call_operand.vmem [shape: f32[20,1], index: 15, kind: input, shape index: {}]
  %s16 = inlined_call_operand.vmem [shape: f32[2,20,512], index: 16, kind: output, shape index: {}]
  %s17 = sld [smem:[#allocation0]]
  $region97: #{_lambda_.1} parent=0
    _
  %s19 = ssub.s32 1, %s17
  %s20 = scalar_select 0, %s19, %s17
  loop: start=0, step=1, limit=4
  $region2: #{_lambda_.1} parent=0 // loop_pre_header
    _
  $region3: #{_lambda_.1} parent=0 // loop_header
    %s22 = sphi 0, %s26
    %p23 = scmp.ge.s32.totalorder %s22, 4
    %s32 = sphi 0, %s34
    %s35 = sphi 0, %s32
    %s36 = sphi 0, %s35
    %s52 = sphi 0, %s36
    %s56 = sphi 0, %s56
    %s58 = sphi 0, %s56
    %s59 = sphi 0, %s58
    %s73 = sphi 0, %s59
    %s77 = sphi 0, %s77
    %s79 = sphi 0, %s77
    %s80 = sphi 0, %s79
    %s94 = sphi 0, %s80
    %s98 = sphi 0, %s98
    %s100 = sphi 0, %s98
    %s101 = sphi 0, %s100
    %s115 = sphi 0, %s101
    %s119 = sphi 0, %s119
    %s121 = sphi 0, %s119
    %s122 = sphi 0, %s121
    %s136 = sphi 0, %s122
    %s140 = sphi 0, %s140
    %s142 = sphi 0, %s140
    %s143 = sphi 0, %s142
    %s157 = sphi 0, %s143
    %s161 = sphi 0, %s161
    %s163 = sphi 0, %s161
    %s164 = sphi 0, %s163
    %s178 = sphi 0, %s164
    %s182 = sphi 0, %s182
    %s184 = sphi 0, %s182
    %s185 = sphi 0, %s184
    %s199 = sphi 0, %s185
    %s203 = sphi 0, %s203
    %s205 = sphi 0, %s203
    %s206 = sphi 0, %s205
    %s220 = sphi 0, %s206
    %s224 = sphi 0, %s224
    %s226 = sphi 0, %s224
    %s227 = sphi 0, %s226
    %s241 = sphi 0, %s227
    %s245 = sphi 0, %s245
    %s247 = sphi 0, %s245
    %s248 = sphi 0, %s247
    %s262 = sphi 0, %s248
    %s266 = sphi 0, %s266
    %s268 = sphi 0, %s266
    %s269 = sphi 0, %s268
    %s283 = sphi 0, %s269
    %s287 = sphi 0, %s287
    %s289 = sphi 0, %s287
    %s290 = sphi 0, %s289
    %s304 = sphi 0, %s290
    %s308 = sphi 0, %s308
    %s310 = sphi 0, %s308
    %s311 = sphi 0, %s310
    %s325 = sphi 0, %s311
    %s329 = sphi 0, %s329
    %s331 = sphi 0, %s329
    %s332 = sphi 0, %s331
    %s346 = sphi 0, %s332
    %s350 = sphi 0, %s350
    %s352 = sphi 0, %s350
    %s353 = sphi 0, %s352
    %s367 = sphi 0, %s353
    %s373 = sphi 0, %s375
    %s376 = sphi 0, %s373
    %s377 = sphi 0, %s376
    %s393 = sphi 0, %s377
  $region4: #{_lambda_.1} parent=0 // loop_header_branch
    %25 = sbr.rel (%p23) target = $region8
  $region5: #{_lambda_.1} parent=0 // loop_body
    %s27 = ssub.s32 %s22, 1
    %s28 = ssub.s32 %s22, 2
    %s29 = sadd.s32 %s22, 1
    %s30 = ssub.s32 %s22, %s29
    %p31 = scmp.eq.s32.totalorder %s30, 0
    %s33 = sadd.s32 %s32, 1
    %s34 = scalar_select %p31, %s32, %s33
    %p37 = pneg %p31
    %p38 = scmp.eq.s32.totalorder %s22, 1
    %p39 = por %p37, %p38
    %p40 = scmp.ne.s32.totalorder %s32, %s35
    %p41 = scmp.eq.s32.totalorder %s22, 0
    %p42 = por %p40, %p41
    %p43 = scmp.ne.s32.totalorder %s32, %s35
    %p44 = scmp.eq.s32.totalorder %s27, 1
    %p45 = por %p43, %p44
    %p46 = scmp.ne.s32.totalorder %s35, %s36
    %p47 = scmp.eq.s32.totalorder %s27, 0
    %p48 = por %p46, %p47
    %p49 = scmp.ne.s32.totalorder %s35, %s36
    %p50 = scmp.eq.s32.totalorder %s28, 1
    %p51 = por %p49, %p50
    %p53 = scmp.ne.s32.totalorder %s36, %s52
    %p54 = scmp.eq.s32.totalorder %s28, 0
    %p55 = por %p53, %p54
    %s57 = sadd.s32 %s56, 1
    %p60 = scmp.eq.s32.totalorder %s22, 1
    %p61 = scmp.ne.s32.totalorder %s56, %s58
    %p62 = scmp.eq.s32.totalorder %s22, 0
    %p63 = por %p61, %p62
    %p64 = scmp.ne.s32.totalorder %s56, %s58
    %p65 = scmp.eq.s32.totalorder %s27, 1
    %p66 = por %p64, %p65
    %p67 = scmp.ne.s32.totalorder %s58, %s59
    %p68 = scmp.eq.s32.totalorder %s27, 0
    %p69 = por %p67, %p68
    %p70 = scmp.ne.s32.totalorder %s58, %s59
    %p71 = scmp.eq.s32.totalorder %s28, 1
    %p72 = por %p70, %p71
    %p74 = scmp.ne.s32.totalorder %s59, %s73
    %p75 = scmp.eq.s32.totalorder %s28, 0
    %p76 = por %p74, %p75
    %s78 = sadd.s32 %s77, 1
    %p81 = scmp.eq.s32.totalorder %s22, 1
    %p82 = scmp.ne.s32.totalorder %s77, %s79
    %p83 = scmp.eq.s32.totalorder %s22, 0
    %p84 = por %p82, %p83
    %p85 = scmp.ne.s32.totalorder %s77, %s79
    %p86 = scmp.eq.s32.totalorder %s27, 1
    %p87 = por %p85, %p86
    %p88 = scmp.ne.s32.totalorder %s79, %s80
    %p89 = scmp.eq.s32.totalorder %s27, 0
    %p90 = por %p88, %p89
    %p91 = scmp.ne.s32.totalorder %s79, %s80
    %p92 = scmp.eq.s32.totalorder %s28, 1
    %p93 = por %p91, %p92
    %p95 = scmp.ne.s32.totalorder %s80, %s94
    %p96 = scmp.eq.s32.totalorder %s28, 0
    %p97 = por %p95, %p96
    %s99 = sadd.s32 %s98, 1
    %p102 = scmp.eq.s32.totalorder %s22, 1
    %p103 = scmp.ne.s32.totalorder %s98, %s100
    %p104 = scmp.eq.s32.totalorder %s22, 0
    %p105 = por %p103, %p104
    %p106 = scmp.ne.s32.totalorder %s98, %s100
    %p107 = scmp.eq.s32.totalorder %s27, 1
    %p108 = por %p106, %p107
    %p109 = scmp.ne.s32.totalorder %s100, %s101
    %p110 = scmp.eq.s32.totalorder %s27, 0
    %p111 = por %p109, %p110
    %p112 = scmp.ne.s32.totalorder %s100, %s101
    %p113 = scmp.eq.s32.totalorder %s28, 1
    %p114 = por %p112, %p113
    %p116 = scmp.ne.s32.totalorder %s101, %s115
    %p117 = scmp.eq.s32.totalorder %s28, 0
    %p118 = por %p116, %p117
    %s120 = sadd.s32 %s119, 1
    %p123 = scmp.eq.s32.totalorder %s22, 1
    %p124 = scmp.ne.s32.totalorder %s119, %s121
    %p125 = scmp.eq.s32.totalorder %s22, 0
    %p126 = por %p124, %p125
    %p127 = scmp.ne.s32.totalorder %s119, %s121
    %p128 = scmp.eq.s32.totalorder %s27, 1
    %p129 = por %p127, %p128
    %p130 = scmp.ne.s32.totalorder %s121, %s122
    %p131 = scmp.eq.s32.totalorder %s27, 0
    %p132 = por %p130, %p131
    %p133 = scmp.ne.s32.totalorder %s121, %s122
    %p134 = scmp.eq.s32.totalorder %s28, 1
    %p135 = por %p133, %p134
    %p137 = scmp.ne.s32.totalorder %s122, %s136
    %p138 = scmp.eq.s32.totalorder %s28, 0
    %p139 = por %p137, %p138
    %s141 = sadd.s32 %s140, 1
    %p144 = scmp.eq.s32.totalorder %s22, 1
    %p145 = scmp.ne.s32.totalorder %s140, %s142
    %p146 = scmp.eq.s32.totalorder %s22, 0
    %p147 = por %p145, %p146
    %p148 = scmp.ne.s32.totalorder %s140, %s142
    %p149 = scmp.eq.s32.totalorder %s27, 1
    %p150 = por %p148, %p149
    %p151 = scmp.ne.s32.totalorder %s142, %s143
    %p152 = scmp.eq.s32.totalorder %s27, 0
    %p153 = por %p151, %p152
    %p154 = scmp.ne.s32.totalorder %s142, %s143
    %p155 = scmp.eq.s32.totalorder %s28, 1
    %p156 = por %p154, %p155
    %p158 = scmp.ne.s32.totalorder %s143, %s157
    %p159 = scmp.eq.s32.totalorder %s28, 0
    %p160 = por %p158, %p159
    %s162 = sadd.s32 %s161, 1
    %p165 = scmp.eq.s32.totalorder %s22, 1
    %p166 = scmp.ne.s32.totalorder %s161, %s163
    %p167 = scmp.eq.s32.totalorder %s22, 0
    %p168 = por %p166, %p167
    %p169 = scmp.ne.s32.totalorder %s161, %s163
    %p170 = scmp.eq.s32.totalorder %s27, 1
    %p171 = por %p169, %p170
    %p172 = scmp.ne.s32.totalorder %s163, %s164
    %p173 = scmp.eq.s32.totalorder %s27, 0
    %p174 = por %p172, %p173
    %p175 = scmp.ne.s32.totalorder %s163, %s164
    %p176 = scmp.eq.s32.totalorder %s28, 1
    %p177 = por %p175, %p176
    %p179 = scmp.ne.s32.totalorder %s164, %s178
    %p180 = scmp.eq.s32.totalorder %s28, 0
    %p181 = por %p179, %p180
    %s183 = sadd.s32 %s182, 1
    %p186 = scmp.eq.s32.totalorder %s22, 1
    %p187 = scmp.ne.s32.totalorder %s182, %s184
    %p188 = scmp.eq.s32.totalorder %s22, 0
    %p189 = por %p187, %p188
    %p190 = scmp.ne.s32.totalorder %s182, %s184
    %p191 = scmp.eq.s32.totalorder %s27, 1
    %p192 = por %p190, %p191
    %p193 = scmp.ne.s32.totalorder %s184, %s185
    %p194 = scmp.eq.s32.totalorder %s27, 0
    %p195 = por %p193, %p194
    %p196 = scmp.ne.s32.totalorder %s184, %s185
    %p197 = scmp.eq.s32.totalorder %s28, 1
    %p198 = por %p196, %p197
    %p200 = scmp.ne.s32.totalorder %s185, %s199
    %p201 = scmp.eq.s32.totalorder %s28, 0
    %p202 = por %p200, %p201
    %s204 = sadd.s32 %s203, 1
    %p207 = scmp.eq.s32.totalorder %s22, 1
    %p208 = scmp.ne.s32.totalorder %s203, %s205
    %p209 = scmp.eq.s32.totalorder %s22, 0
    %p210 = por %p208, %p209
    %p211 = scmp.ne.s32.totalorder %s203, %s205
    %p212 = scmp.eq.s32.totalorder %s27, 1
    %p213 = por %p211, %p212
    %p214 = scmp.ne.s32.totalorder %s205, %s206
    %p215 = scmp.eq.s32.totalorder %s27, 0
    %p216 = por %p214, %p215
    %p217 = scmp.ne.s32.totalorder %s205, %s206
    %p218 = scmp.eq.s32.totalorder %s28, 1
    %p219 = por %p217, %p218
    %p221 = scmp.ne.s32.totalorder %s206, %s220
    %p222 = scmp.eq.s32.totalorder %s28, 0
    %p223 = por %p221, %p222
    %s225 = sadd.s32 %s224, 1
    %p228 = scmp.eq.s32.totalorder %s22, 1
    %p229 = scmp.ne.s32.totalorder %s224, %s226
    %p230 = scmp.eq.s32.totalorder %s22, 0
    %p231 = por %p229, %p230
    %p232 = scmp.ne.s32.totalorder %s224, %s226
    %p233 = scmp.eq.s32.totalorder %s27, 1
    %p234 = por %p232, %p233
    %p235 = scmp.ne.s32.totalorder %s226, %s227
    %p236 = scmp.eq.s32.totalorder %s27, 0
    %p237 = por %p235, %p236
    %p238 = scmp.ne.s32.totalorder %s226, %s227
    %p239 = scmp.eq.s32.totalorder %s28, 1
    %p240 = por %p238, %p239
    %p242 = scmp.ne.s32.totalorder %s227, %s241
    %p243 = scmp.eq.s32.totalorder %s28, 0
    %p244 = por %p242, %p243
    %s246 = sadd.s32 %s245, 1
    %p249 = scmp.eq.s32.totalorder %s22, 1
    %p250 = scmp.ne.s32.totalorder %s245, %s247
    %p251 = scmp.eq.s32.totalorder %s22, 0
    %p252 = por %p250, %p251
    %p253 = scmp.ne.s32.totalorder %s245, %s247
    %p254 = scmp.eq.s32.totalorder %s27, 1
    %p255 = por %p253, %p254
    %p256 = scmp.ne.s32.totalorder %s247, %s248
    %p257 = scmp.eq.s32.totalorder %s27, 0
    %p258 = por %p256, %p257
    %p259 = scmp.ne.s32.totalorder %s247, %s248
    %p260 = scmp.eq.s32.totalorder %s28, 1
    %p261 = por %p259, %p260
    %p263 = scmp.ne.s32.totalorder %s248, %s262
    %p264 = scmp.eq.s32.totalorder %s28, 0
    %p265 = por %p263, %p264
    %s267 = sadd.s32 %s266, 1
    %p270 = scmp.eq.s32.totalorder %s22, 1
    %p271 = scmp.ne.s32.totalorder %s266, %s268
    %p272 = scmp.eq.s32.totalorder %s22, 0
    %p273 = por %p271, %p272
    %p274 = scmp.ne.s32.totalorder %s266, %s268
    %p275 = scmp.eq.s32.totalorder %s27, 1
    %p276 = por %p274, %p275
    %p277 = scmp.ne.s32.totalorder %s268, %s269
    %p278 = scmp.eq.s32.totalorder %s27, 0
    %p279 = por %p277, %p278
    %p280 = scmp.ne.s32.totalorder %s268, %s269
    %p281 = scmp.eq.s32.totalorder %s28, 1
    %p282 = por %p280, %p281
    %p284 = scmp.ne.s32.totalorder %s269, %s283
    %p285 = scmp.eq.s32.totalorder %s28, 0
    %p286 = por %p284, %p285
    %s288 = sadd.s32 %s287, 1
    %p291 = scmp.eq.s32.totalorder %s22, 1
    %p292 = scmp.ne.s32.totalorder %s287, %s289
    %p293 = scmp.eq.s32.totalorder %s22, 0
    %p294 = por %p292, %p293
    %p295 = scmp.ne.s32.totalorder %s287, %s289
    %p296 = scmp.eq.s32.totalorder %s27, 1
    %p297 = por %p295, %p296
    %p298 = scmp.ne.s32.totalorder %s289, %s290
    %p299 = scmp.eq.s32.totalorder %s27, 0
    %p300 = por %p298, %p299
    %p301 = scmp.ne.s32.totalorder %s289, %s290
    %p302 = scmp.eq.s32.totalorder %s28, 1
    %p303 = por %p301, %p302
    %p305 = scmp.ne.s32.totalorder %s290, %s304
    %p306 = scmp.eq.s32.totalorder %s28, 0
    %p307 = por %p305, %p306
    %s309 = sadd.s32 %s308, 1
    %p312 = scmp.eq.s32.totalorder %s22, 1
    %p313 = scmp.ne.s32.totalorder %s308, %s310
    %p314 = scmp.eq.s32.totalorder %s22, 0
    %p315 = por %p313, %p314
    %p316 = scmp.ne.s32.totalorder %s308, %s310
    %p317 = scmp.eq.s32.totalorder %s27, 1
    %p318 = por %p316, %p317
    %p319 = scmp.ne.s32.totalorder %s310, %s311
    %p320 = scmp.eq.s32.totalorder %s27, 0
    %p321 = por %p319, %p320
    %p322 = scmp.ne.s32.totalorder %s310, %s311
    %p323 = scmp.eq.s32.totalorder %s28, 1
    %p324 = por %p322, %p323
    %p326 = scmp.ne.s32.totalorder %s311, %s325
    %p327 = scmp.eq.s32.totalorder %s28, 0
    %p328 = por %p326, %p327
    %s330 = sadd.s32 %s329, 1
    %p333 = scmp.eq.s32.totalorder %s22, 1
    %p334 = scmp.ne.s32.totalorder %s329, %s331
    %p335 = scmp.eq.s32.totalorder %s22, 0
    %p336 = por %p334, %p335
    %p337 = scmp.ne.s32.totalorder %s329, %s331
    %p338 = scmp.eq.s32.totalorder %s27, 1
    %p339 = por %p337, %p338
    %p340 = scmp.ne.s32.totalorder %s331, %s332
    %p341 = scmp.eq.s32.totalorder %s27, 0
    %p342 = por %p340, %p341
    %p343 = scmp.ne.s32.totalorder %s331, %s332
    %p344 = scmp.eq.s32.totalorder %s28, 1
    %p345 = por %p343, %p344
    %p347 = scmp.ne.s32.totalorder %s332, %s346
    %p348 = scmp.eq.s32.totalorder %s28, 0
    %p349 = por %p347, %p348
    %s351 = sadd.s32 %s350, 1
    %p354 = scmp.eq.s32.totalorder %s22, 1
    %p355 = scmp.ne.s32.totalorder %s350, %s352
    %p356 = scmp.eq.s32.totalorder %s22, 0
    %p357 = por %p355, %p356
    %p358 = scmp.ne.s32.totalorder %s350, %s352
    %p359 = scmp.eq.s32.totalorder %s27, 1
    %p360 = por %p358, %p359
    %p361 = scmp.ne.s32.totalorder %s352, %s353
    %p362 = scmp.eq.s32.totalorder %s27, 0
    %p363 = por %p361, %p362
    %p364 = scmp.ne.s32.totalorder %s352, %s353
    %p365 = scmp.eq.s32.totalorder %s28, 1
    %p366 = por %p364, %p365
    %p368 = scmp.ne.s32.totalorder %s353, %s367
    %p369 = scmp.eq.s32.totalorder %s28, 0
    %p370 = por %p368, %p369
    %s371 = ssub.s32 %s22, %s29
    %p372 = scmp.eq.s32.totalorder %s371, 0
    %s374 = sadd.s32 %s373, 1
    %s375 = scalar_select %p372, %s373, %s374
    %p378 = pneg %p372
    %p379 = scmp.eq.s32.totalorder %s22, 1
    %p380 = por %p378, %p379
    %p381 = scmp.ne.s32.totalorder %s373, %s376
    %p382 = scmp.eq.s32.totalorder %s22, 0
    %p383 = por %p381, %p382
    %p384 = scmp.ne.s32.totalorder %s373, %s376
    %p385 = scmp.eq.s32.totalorder %s27, 1
    %p386 = por %p384, %p385
    %p387 = scmp.ne.s32.totalorder %s376, %s377
    %p388 = scmp.eq.s32.totalorder %s27, 0
    %p389 = por %p387, %p388
    %p390 = scmp.ne.s32.totalorder %s376, %s377
    %p391 = scmp.eq.s32.totalorder %s28, 1
    %p392 = por %p390, %p391
    %p394 = scmp.ne.s32.totalorder %s377, %s393
    %p395 = scmp.eq.s32.totalorder %s28, 0
    %p396 = por %p394, %p395
    %p397 = scmp.le.s32.totalorder 1, %s22
    %p398 = scmp.lt.s32.totalorder %s22, 3
    %p399 = pnand %p397, %p398
    %p400 = pneg %p399
    // Predicated region
    $region9: #{_lambda_.1} parent=5 // pred_check
      _
    $region10: #{_lambda_.1} parent=5 // pred_check_branch
      %402 = sbr.rel (%p399) target = $region12
    $region11: #{_lambda_.1} parent=5 // pred_region
      %s403 = ssub.s32 %s22, 1
      // Predicated region
      $region13: #{_lambda_.1} parent=11 // pred_check
        %p404 = pneg %p69
      $region14: #{_lambda_.1} parent=11 // pred_check_branch
        %406 = sbr.rel (%p404) target = $region16
      $region15: #{_lambda_.1} parent=11 // pred_region
        _
      $region16: #{_lambda_.1} parent=11 // pred_fallthru
        _
      // Predicated region
      $region17: #{_lambda_.1} parent=11 // pred_check
        %p407 = pneg %p90
      $region18: #{_lambda_.1} parent=11 // pred_check_branch
        %409 = sbr.rel (%p407) target = $region20
      $region19: #{_lambda_.1} parent=11 // pred_region
        _
      $region20: #{_lambda_.1} parent=11 // pred_fallthru
        _
      // Predicated region
      $region21: #{_lambda_.1} parent=11 // pred_check
        %p410 = pneg %p111
      $region22: #{_lambda_.1} parent=11 // pred_check_branch
        %412 = sbr.rel (%p410) target = $region24
      $region23: #{_lambda_.1} parent=11 // pred_region
        _
      $region24: #{_lambda_.1} parent=11 // pred_fallthru
        _
      // Predicated region
      $region25: #{_lambda_.1} parent=11 // pred_check
        %p413 = pneg %p132
      $region26: #{_lambda_.1} parent=11 // pred_check_branch
        %415 = sbr.rel (%p413) target = $region28
      $region27: #{_lambda_.1} parent=11 // pred_region
        _
      $region28: #{_lambda_.1} parent=11 // pred_fallthru
        _
      // Predicated region
      $region29: #{_lambda_.1} parent=11 // pred_check
        %p416 = pneg %p153
      $region30: #{_lambda_.1} parent=11 // pred_check_branch
        %418 = sbr.rel (%p416) target = $region32
      $region31: #{_lambda_.1} parent=11 // pred_region
        _
      $region32: #{_lambda_.1} parent=11 // pred_fallthru
        _
      // Predicated region
      $region33: #{_lambda_.1} parent=11 // pred_check
        %p419 = pneg %p174
      $region34: #{_lambda_.1} parent=11 // pred_check_branch
        %421 = sbr.rel (%p419) target = $region36
      $region35: #{_lambda_.1} parent=11 // pred_region
        _
      $region36: #{_lambda_.1} parent=11 // pred_fallthru
        _
      // Predicated region
      $region37: #{_lambda_.1} parent=11 // pred_check
        %p422 = pneg %p195
      $region38: #{_lambda_.1} parent=11 // pred_check_branch
        %424 = sbr.rel (%p422) target = $region40
      $region39: #{_lambda_.1} parent=11 // pred_region
        _
      $region40: #{_lambda_.1} parent=11 // pred_fallthru
        _
      // Predicated region
      $region41: #{_lambda_.1} parent=11 // pred_check
        %p425 = pneg %p216
      $region42: #{_lambda_.1} parent=11 // pred_check_branch
        %427 = sbr.rel (%p425) target = $region44
      $region43: #{_lambda_.1} parent=11 // pred_region
        _
      $region44: #{_lambda_.1} parent=11 // pred_fallthru
        _
      // Predicated region
      $region45: #{_lambda_.1} parent=11 // pred_check
        %p428 = pneg %p237
      $region46: #{_lambda_.1} parent=11 // pred_check_branch
        %430 = sbr.rel (%p428) target = $region48
      $region47: #{_lambda_.1} parent=11 // pred_region
        _
      $region48: #{_lambda_.1} parent=11 // pred_fallthru
        _
      // Predicated region
      $region49: #{_lambda_.1} parent=11 // pred_check
        %p431 = pneg %p258
      $region50: #{_lambda_.1} parent=11 // pred_check_branch
        %433 = sbr.rel (%p431) target = $region52
      $region51: #{_lambda_.1} parent=11 // pred_region
        _
      $region52: #{_lambda_.1} parent=11 // pred_fallthru
        _
      // Predicated region
      $region53: #{_lambda_.1} parent=11 // pred_check
        %p434 = pneg %p279
      $region54: #{_lambda_.1} parent=11 // pred_check_branch
        %436 = sbr.rel (%p434) target = $region56
      $region55: #{_lambda_.1} parent=11 // pred_region
        _
      $region56: #{_lambda_.1} parent=11 // pred_fallthru
        _
      // Predicated region
      $region57: #{_lambda_.1} parent=11 // pred_check
        %p437 = pneg %p300
      $region58: #{_lambda_.1} parent=11 // pred_check_branch
        %439 = sbr.rel (%p437) target = $region60
      $region59: #{_lambda_.1} parent=11 // pred_region
        _
      $region60: #{_lambda_.1} parent=11 // pred_fallthru
        _
      // Predicated region
      $region61: #{_lambda_.1} parent=11 // pred_check
        %p440 = pneg %p321
      $region62: #{_lambda_.1} parent=11 // pred_check_branch
        %442 = sbr.rel (%p440) target = $region64
      $region63: #{_lambda_.1} parent=11 // pred_region
        _
      $region64: #{_lambda_.1} parent=11 // pred_fallthru
        _
      // Predicated region
      $region65: #{_lambda_.1} parent=11 // pred_check
        %p443 = pneg %p342
      $region66: #{_lambda_.1} parent=11 // pred_check_branch
        %445 = sbr.rel (%p443) target = $region68
      $region67: #{_lambda_.1} parent=11 // pred_region
        _
      $region68: #{_lambda_.1} parent=11 // pred_fallthru
        _
      // Predicated region
      $region69: #{_lambda_.1} parent=11 // pred_check
        %p446 = pneg %p363
      $region70: #{_lambda_.1} parent=11 // pred_check_branch
        %448 = sbr.rel (%p446) target = $region72
      $region71: #{_lambda_.1} parent=11 // pred_region
        _
      $region72: #{_lambda_.1} parent=11 // pred_fallthru
        _
    $region12: #{_lambda_.1} parent=5 // pred_fallthru
      _
    %p449 = scmp.lt.s32.totalorder %s22, 2
    // Predicated region
    $region73: #{_lambda_.1} parent=5 // pred_check
      %p450 = pneg %p449
    $region74: #{_lambda_.1} parent=5 // pred_check_branch
      %452 = sbr.rel (%p450) target = $region76
    $region75: #{_lambda_.1} parent=5 // pred_region
      // Predicated region
      $region77: #{_lambda_.1} parent=75 // pred_check
        %p453 = pneg %p42
      $region78: #{_lambda_.1} parent=75 // pred_check_branch
        %455 = sbr.rel (%p453) target = $region80
      $region79: #{_lambda_.1} parent=75 // pred_region
        %p456 = scmp.lt.s32.totalorder %s22, 1
        %s457 = scalar_select %p456, %s22, 1
        %s458 = smul.addr %s457, 12
        %s459 = smul.addr %s458, 8
        %s460 = scalar_lea.vmem %s0, %s459
      $region80: #{_lambda_.1} parent=75 // pred_fallthru
        _
    $region76: #{_lambda_.1} parent=5 // pred_fallthru
      _
    %p461 = scmp.le.s32.totalorder 1, %s22
    %p462 = scmp.lt.s32.totalorder %s22, 3
    %p463 = pnand %p461, %p462
    %p464 = pneg %p463
    // Predicated region
    $region81: #{_lambda_.1} parent=5 // pred_check
      _
    $region82: #{_lambda_.1} parent=5 // pred_check_branch
      %466 = sbr.rel (%p463) target = $region84
    $region83: #{_lambda_.1} parent=5 // pred_region
      %s467 = ssub.s32 %s22, 1
      %p468 = scmp.lt.s32.totalorder %s27, 1
      %s469 = scalar_select %p468, %s27, 1
      %s470 = smul.addr %s469, 12
      %s471 = smul.addr %s470, 8
      %s472 = scalar_lea.vmem %s0, %s471
      %p473 = pneg %p48
      %p474 = pneg %p45
      %p475 = pneg %p69
      %p476 = pneg %p66
      %p477 = pneg %p90
      %p478 = pneg %p87
      %p479 = pneg %p111
      %p480 = pneg %p108
      %p481 = pneg %p132
      %p482 = pneg %p129
      %p483 = pneg %p153
      %p484 = pneg %p150
      %p485 = pneg %p174
      %p486 = pneg %p171
      %p487 = pneg %p195
      %p488 = pneg %p192
      %p489 = pneg %p216
      %p490 = pneg %p213
      %p491 = pneg %p237
      %p492 = pneg %p234
      %p493 = pneg %p258
      %p494 = pneg %p255
      %p495 = pneg %p279
      %p496 = pneg %p276
      %p497 = pneg %p300
      %p498 = pneg %p297
      %p499 = pneg %p321
      %p500 = pneg %p318
      %p501 = pneg %p342
      %p502 = pneg %p339
      %p503 = pneg %p363
      %p504 = pneg %p360
      %p505 = pneg %p389
      %p506 = pneg %p386
      %p507 = scmp.lt.s32.totalorder %s27, 1
      %s508 = scalar_select %p507, %s27, 1
      %s509 = smul.addr %s508, 12
      %s510 = smul.addr %s509, 8
      %s511 = scalar_lea.vmem %s16, %s510
      %p512 = scmp.lt.s32.totalorder %s27, 1
      %s513 = scalar_select %p512, %s27, 1
      %s514 = smul.addr %s513, 12
      %s515 = smul.addr %s514, 8
      %s516 = scalar_lea.vmem %s0, %s515
      %p517 = scmp.lt.s32.totalorder %s27, 1
      %s518 = scalar_select %p517, %s27, 1
      %s519 = smul.addr %s518, 12
      %s520 = smul.addr %s519, 8
      %s521 = scalar_lea.vmem %s16, %s520
      %v522 = vld [vmem:[%s516] sm:$0xff]
      %v523 = vld [vmem:[%s516 + $0x8] sm:$0xff]
      %v524 = vld [vmem:[%s516 + $0x10] sm:$0xff]
      %v525 = vld [vmem:[%s516 + $0x18] sm:$0xff]
      %v526 = vld [vmem:[%s516 + $0x20] sm:$0xff]
      %v527 = vld [vmem:[%s516 + $0x28] sm:$0xff]
      %v528 = vld [vmem:[%s516 + $0x30] sm:$0xff]
      %v529 = vld [vmem:[%s516 + $0x38] sm:$0xff]
      %v530 = vld [vmem:[%s516 + $0x40] sm:$0xf]
      %v531 = vld [vmem:[%s516 + $0x48] sm:$0xf]
      %v532 = vld [vmem:[%s516 + $0x50] sm:$0xf]
      %v533 = vld [vmem:[%s516 + $0x58] sm:$0xf]
      %v534 = vld [vmem:[%s1] sm:$0xf]
      %v535 = vld [vmem:[%s2] sm:$0xf]
      %v536 = vld [vmem:[%s3] sm:$0xf]
      %v537 = vadd.f32 %v522, %v526
      %vm538 = vcmask 1043456
      %v539 = vsel %vm538, %v530, 0.0
      %v540 = vadd.f32 %v537, %v539
      %v541 = vrot.slane %v540, 4
      %v542 = vadd.f32 %v540, %v541
      %v543 = vrot.slane %v542, 2
      %v544 = vadd.f32 %v542, %v543
      %v545 = vrot.slane %v544, 1
      %v546 = vadd.f32 %v544, %v545
      %v547 = vadd.f32 %v523, %v527
      %v548 = vsel %vm538, %v531, 0.0
      %v549 = vadd.f32 %v547, %v548
      %v550 = vrot.slane %v549, 4
      %v551 = vadd.f32 %v549, %v550
      %v552 = vrot.slane %v551, 2
      %v553 = vadd.f32 %v551, %v552
      %v554 = vrot.slane %v553, 1
      %v555 = vadd.f32 %v553, %v554
      %v556 = vadd.f32 %v524, %v528
      %v557 = vsel %vm538, %v532, 0.0
      %v558 = vadd.f32 %v556, %v557
      %v559 = vrot.slane %v558, 4
      %v560 = vadd.f32 %v558, %v559
      %v561 = vrot.slane %v560, 2
      %v562 = vadd.f32 %v560, %v561
      %v563 = vrot.slane %v562, 1
      %v564 = vadd.f32 %v562, %v563
      %v565 = vadd.f32 %v525, %v529
      %v566 = vsel %vm538, %v533, 0.0
      %v567 = vadd.f32 %v565, %v566
      %v568 = vrot.slane %v567, 4
      %v569 = vadd.f32 %v567, %v568
      %v570 = vrot.slane %v569, 2
      %v571 = vadd.f32 %v569, %v570
      %v572 = vrot.slane %v571, 1
      %v573 = vadd.f32 %v571, %v572
      %v574 = vrcp.pop 20.0
      %v575 = vmul.f32 %v546, %v574
      %v576 = vmul.f32 %v555, %v574
      %v577 = vmul.f32 %v564, %v574
      %v578 = vmul.f32 %v573, %v574
      %v579 = vsub.f32 %v522, %v575
      %v580 = vsub.f32 %v523, %v576
      %v581 = vsub.f32 %v524, %v577
      %v582 = vsub.f32 %v525, %v578
      %v583 = vsub.f32 %v526, %v575
      %v584 = vsub.f32 %v527, %v576
      %v585 = vsub.f32 %v528, %v577
      %v586 = vsub.f32 %v529, %v578
      %v587 = vsub.f32 %v530, %v575
      %v588 = vsub.f32 %v531, %v576
      %v589 = vsub.f32 %v532, %v577
      %v590 = vsub.f32 %v533, %v578
      %v591 = vmul.f32 %v579, %v579
      %v592 = vmul.f32 %v580, %v580
      %v593 = vmul.f32 %v581, %v581
      %v594 = vmul.f32 %v582, %v582
      %v595 = vmul.f32 %v583, %v583
      %v596 = vmul.f32 %v584, %v584
      %v597 = vmul.f32 %v585, %v585
      %v598 = vmul.f32 %v586, %v586
      %v599 = vmul.f32 %v587, %v587
      %v600 = vmul.f32 %v588, %v588
      %v601 = vmul.f32 %v589, %v589
      %v602 = vmul.f32 %v590, %v590
      %v603 = vadd.f32 %v591, %v595
      %v604 = vsel %vm538, %v599, 0.0
      %v605 = vadd.f32 %v603, %v604
      %v606 = vrot.slane %v605, 4
      %v607 = vadd.f32 %v605, %v606
      %v608 = vrot.slane %v607, 2
      %v609 = vadd.f32 %v607, %v608
      %v610 = vrot.slane %v609, 1
      %v611 = vadd.f32 %v609, %v610
      %v612 = vadd.f32 %v592, %v596
      %v613 = vsel %vm538, %v600, 0.0
      %v614 = vadd.f32 %v612, %v613
      %v615 = vrot.slane %v614, 4
      %v616 = vadd.f32 %v614, %v615
      %v617 = vrot.slane %v616, 2
      %v618 = vadd.f32 %v616, %v617
      %v619 = vrot.slane %v618, 1
      %v620 = vadd.f32 %v618, %v619
      %v621 = vadd.f32 %v593, %v597
      %v622 = vsel %vm538, %v601, 0.0
      %v623 = vadd.f32 %v621, %v622
      %v624 = vrot.slane %v623, 4
      %v625 = vadd.f32 %v623, %v624
      %v626 = vrot.slane %v625, 2
      %v627 = vadd.f32 %v625, %v626
      %v628 = vrot.slane %v627, 1
      %v629 = vadd.f32 %v627, %v628
      %v630 = vadd.f32 %v594, %v598
      %v631 = vsel %vm538, %v602, 0.0
      %v632 = vadd.f32 %v630, %v631
      %v633 = vrot.slane %v632, 4
      %v634 = vadd.f32 %v632, %v633
      %v635 = vrot.slane %v634, 2
      %v636 = vadd.f32 %v634, %v635
      %v637 = vrot.slane %v636, 1
      %v638 = vadd.f32 %v636, %v637
      %v639 = vmul.f32 %v611, %v574
      %v640 = vmul.f32 %v620, %v574
      %v641 = vmul.f32 %v629, %v574
      %v642 = vmul.f32 %v638, %v574
      %v643 = vadd.f32 %v639, 1e-05
      %v644 = vadd.f32 %v640, 1e-05
      %v645 = vadd.f32 %v641, 1e-05
      %v646 = vadd.f32 %v642, 1e-05
      %v647 = vrsqrt.pop %v643
      %v648 = vrsqrt.pop %v644
      %v649 = vrsqrt.pop %v645
      %v650 = vrsqrt.pop %v646
      %v651 = vmul.f32 %v579, %v647
      %v652 = vmul.f32 %v580, %v648
      %v653 = vmul.f32 %v581, %v649
      %v654 = vmul.f32 %v582, %v650
      %v655 = vmul.f32 %v583, %v647
      %v656 = vmul.f32 %v584, %v648
      %v657 = vmul.f32 %v585, %v649
      %v658 = vmul.f32 %v586, %v650
      %v659 = vmul.f32 %v587, %v647
      %v660 = vmul.f32 %v588, %v648
      %v661 = vmul.f32 %v589, %v649
      %v662 = vmul.f32 %v590, %v650
      %v663 = vld [vmem:[%s4] sm:$0xff]
      %v664 = vld [vmem:[%s4 + $0x8] sm:$0xff]
      %v665 = vld [vmem:[%s4 + $0x10] sm:$0xf]
      %667 = vset.pattern.permute.xlu0 0
      %668 = vperm.xlu0 %667, %v663
      %v669 = vpop.permute.xlu0 %668
      %672 = vset.pattern.permute.xlu0 0
      %673 = vperm.xlu0 %672, %v664
      %v674 = vpop.permute.xlu0 %673
      %677 = vset.pattern.permute.xlu0 0
      %678 = vperm.xlu0 %677, %v665
      %v679 = vpop.permute.xlu0 %678
      %v681 = vmul.f32 %v651, %v669
      %v682 = vmul.f32 %v652, %v669
      %v683 = vmul.f32 %v653, %v669
      %v684 = vmul.f32 %v654, %v669
      %v685 = vmul.f32 %v655, %v674
      %v686 = vmul.f32 %v656, %v674
      %v687 = vmul.f32 %v657, %v674
      %v688 = vmul.f32 %v658, %v674
      %v689 = vmul.f32 %v659, %v679
      %v690 = vmul.f32 %v660, %v679
      %v691 = vmul.f32 %v661, %v679
      %v692 = vmul.f32 %v662, %v679
      %v693 = vld [vmem:[%s5] sm:$0xff]
      %v694 = vld [vmem:[%s5 + $0x8] sm:$0xff]
      %v695 = vld [vmem:[%s5 + $0x10] sm:$0xf]
      %697 = vset.pattern.permute.xlu0 0
      %698 = vperm.xlu0 %697, %v693
      %v699 = vpop.permute.xlu0 %698
      %702 = vset.pattern.permute.xlu0 0
      %703 = vperm.xlu0 %702, %v694
      %v704 = vpop.permute.xlu0 %703
      %707 = vset.pattern.permute.xlu0 0
      %708 = vperm.xlu0 %707, %v695
      %v709 = vpop.permute.xlu0 %708
      %v711 = vadd.f32 %v681, %v699
      %v712 = vadd.f32 %v682, %v699
      %v713 = vadd.f32 %v683, %v699
      %v714 = vadd.f32 %v684, %v699
      %v715 = vadd.f32 %v685, %v704
      %v716 = vadd.f32 %v686, %v704
      %v717 = vadd.f32 %v687, %v704
      %v718 = vadd.f32 %v688, %v704
      %v719 = vadd.f32 %v689, %v709
      %v720 = vadd.f32 %v690, %v709
      %v721 = vadd.f32 %v691, %v709
      %v722 = vadd.f32 %v692, %v709
      %v723 = vlaneseq
      %v724 = vshrl.u32 %v723, 7
      %v725 = vadd.s32 %v724, 8
      %v726 = vadd.s32 %v724, 16
      %vm727 = vcmp.ge.s32.totalorder %v724, 0
      %vm728 = vcmp.ge.s32.totalorder %v725, 0
      %vm729 = vcmp.ge.s32.totalorder %v726, 0
      %vm730 = vcmp.lt.s32.totalorder %v724, 4
      %vm731 = vcmp.lt.s32.totalorder %v725, 4
      %vm732 = vcmp.lt.s32.totalorder %v726, 4
      %vm733 = vmand %vm727, %vm730
      %vm734 = vmand %vm728, %vm731
      %vm735 = vmand %vm729, %vm732
      %v736 = vsel %vm733, 1, 0
      %v737 = vsel %vm734, 1, 0
      %v738 = vsel %vm735, 1, 0
      %v739 = vcvt.s32.f32 %v736
      %v740 = vcvt.s32.f32 %v737
      %v741 = vcvt.s32.f32 %v738
      %vm742 = vcmp.ge.s32.totalorder %v724, 4
      %vm743 = vcmp.ge.s32.totalorder %v725, 4
      %vm744 = vcmp.ge.s32.totalorder %v726, 4
      %vm745 = vcmp.lt.s32.totalorder %v724, 8
      %vm746 = vcmp.lt.s32.totalorder %v725, 8
      %vm747 = vcmp.lt.s32.totalorder %v726, 8
      %vm748 = vmand %vm742, %vm745
      %vm749 = vmand %vm743, %vm746
      %vm750 = vmand %vm744, %vm747
      %v751 = vsel %vm748, 1, 0
      %v752 = vsel %vm749, 1, 0
      %v753 = vsel %vm750, 1, 0
      %v754 = vcvt.s32.f32 %v751
      %v755 = vcvt.s32.f32 %v752
      %v756 = vcvt.s32.f32 %v753
      %vm757 = vcmp.ge.s32.totalorder %v724, 8
      %vm758 = vcmp.ge.s32.totalorder %v725, 8
      %vm759 = vcmp.ge.s32.totalorder %v726, 8
      %vm760 = vcmp.lt.s32.totalorder %v724, 12
      %vm761 = vcmp.lt.s32.totalorder %v725, 12
      %vm762 = vcmp.lt.s32.totalorder %v726, 12
      %vm763 = vmand %vm757, %vm760
      %vm764 = vmand %vm758, %vm761
      %vm765 = vmand %vm759, %vm762
      %v766 = vsel %vm763, 1, 0
      %v767 = vsel %vm764, 1, 0
      %v768 = vsel %vm765, 1, 0
      %v769 = vcvt.s32.f32 %v766
      %v770 = vcvt.s32.f32 %v767
      %v771 = vcvt.s32.f32 %v768
      %vm772 = vcmp.ge.s32.totalorder %v724, 12
      %vm773 = vcmp.ge.s32.totalorder %v725, 12
      %vm774 = vcmp.ge.s32.totalorder %v726, 12
      %vm775 = vcmp.lt.s32.totalorder %v724, 16
      %vm776 = vcmp.lt.s32.totalorder %v725, 16
      %vm777 = vcmp.lt.s32.totalorder %v726, 16
      %vm778 = vmand %vm772, %vm775
      %vm779 = vmand %vm773, %vm776
      %vm780 = vmand %vm774, %vm777
      %v781 = vsel %vm778, 1, 0
      %v782 = vsel %vm779, 1, 0
      %v783 = vsel %vm780, 1, 0
      %v784 = vcvt.s32.f32 %v781
      %v785 = vcvt.s32.f32 %v782
      %v786 = vcvt.s32.f32 %v783
      %vm787 = vcmp.ge.s32.totalorder %v724, 16
      %vm788 = vcmp.ge.s32.totalorder %v725, 16
      %vm789 = vcmp.ge.s32.totalorder %v726, 16
      %vm790 = vcmp.lt.s32.totalorder %v724, 20
      %vm791 = vcmp.lt.s32.totalorder %v725, 20
      %vm792 = vcmp.lt.s32.totalorder %v726, 20
      %vm793 = vmand %vm787, %vm790
      %vm794 = vmand %vm788, %vm791
      %vm795 = vmand %vm789, %vm792
      %v796 = vsel %vm793, 1, 0
      %v797 = vsel %vm794, 1, 0
      %v798 = vsel %vm795, 1, 0
      %v799 = vcvt.s32.f32 %v796
      %v800 = vcvt.s32.f32 %v797
      %v801 = vcvt.s32.f32 %v798
      %v802 = vadd.s32 %v534, 4294967295
      %vm803 = vcmp.ge.s32.totalorder %v802, 0
      %vm804 = vcmp.lt.s32.totalorder %v802, 8
      %vm805 = vmand %vm803, %vm804
      %v806 = vsel %vm805, 1, 0
      %v807 = vcvt.s32.f32 %v806
      %vm808 = vcmp.ge.s32.totalorder %v534, 0
      %vm809 = vcmp.lt.s32.totalorder %v534, 8
      %vm810 = vmand %vm808, %vm809
      %v811 = vsel %vm810, 1, 0
      %v812 = vcvt.s32.f32 %v811
      %v813 = vadd.s32 %v534, 1
      %vm814 = vcmp.ge.s32.totalorder %v813, 0
      %vm815 = vcmp.lt.s32.totalorder %v813, 8
      %vm816 = vmand %vm814, %vm815
      %v817 = vsel %vm816, 1, 0
      %v818 = vcvt.s32.f32 %v817
      %v819 = vadd.s32 %v535, 4294967295
      %vm820 = vcmp.ge.s32.totalorder %v819, 0
      %vm821 = vcmp.lt.s32.totalorder %v819, 8
      %vm822 = vmand %vm820, %vm821
      %v823 = vsel %vm822, 1, 0
      %v824 = vcvt.s32.f32 %v823
      %vm825 = vcmp.ge.s32.totalorder %v535, 0
      %vm826 = vcmp.lt.s32.totalorder %v535, 8
      %vm827 = vmand %vm825, %vm826
      %v828 = vsel %vm827, 1, 0
      %v829 = vcvt.s32.f32 %v828
      %v830 = vadd.s32 %v535, 1
      %vm831 = vcmp.ge.s32.totalorder %v830, 0
      %vm832 = vcmp.lt.s32.totalorder %v830, 8
      %vm833 = vmand %vm831, %vm832
      %v834 = vsel %vm833, 1, 0
      %v835 = vcvt.s32.f32 %v834
      %v836 = vadd.s32 %v536, 4294967295
      %vm837 = vcmp.ge.s32.totalorder %v836, 0
      %vm838 = vcmp.lt.s32.totalorder %v836, 8
      %vm839 = vmand %vm837, %vm838
      %v840 = vsel %vm839, 1, 0
      %v841 = vcvt.s32.f32 %v840
      %vm842 = vcmp.ge.s32.totalorder %v536, 0
      %vm843 = vcmp.lt.s32.totalorder %v536, 8
      %vm844 = vmand %vm842, %vm843
      %v845 = vsel %vm844, 1, 0
      %v846 = vcvt.s32.f32 %v845
      %v847 = vadd.s32 %v536, 1
      %vm848 = vcmp.ge.s32.totalorder %v847, 0
      %vm849 = vcmp.lt.s32.totalorder %v847, 8
      %vm850 = vmand %vm848, %vm849
      %v851 = vsel %vm850, 1, 0
      %v852 = vcvt.s32.f32 %v851
      %v853 = vmul.f32 %v807, %v824
      %v854 = vmul.f32 %v853, %v841
      %v855 = vmul.f32 %v853, %v846
      %v856 = vmul.f32 %v853, %v852
      %v857 = vmul.f32 %v807, %v829
      %v858 = vmul.f32 %v857, %v841
      %v859 = vmul.f32 %v857, %v846
      %v860 = vmul.f32 %v857, %v852
      %v861 = vmul.f32 %v807, %v835
      %v862 = vmul.f32 %v861, %v841
      %v863 = vmul.f32 %v861, %v846
      %v864 = vmul.f32 %v861, %v852
      %v865 = vmul.f32 %v812, %v824
      %v866 = vmul.f32 %v865, %v841
      %v867 = vmul.f32 %v865, %v846
      %v868 = vmul.f32 %v865, %v852
      %v869 = vmul.f32 %v812, %v829
      %v870 = vmul.f32 %v869, %v841
      %v871 = vmul.f32 %v869, %v846
      %v872 = vmul.f32 %v869, %v852
      %v873 = vmul.f32 %v812, %v835
      %v874 = vmul.f32 %v873, %v841
      %v875 = vmul.f32 %v873, %v846
      %v876 = vmul.f32 %v873, %v852
      %v877 = vmul.f32 %v818, %v824
      %v878 = vmul.f32 %v877, %v841
      %v879 = vmul.f32 %v877, %v846
      %v880 = vmul.f32 %v877, %v852
      %v881 = vmul.f32 %v818, %v829
      %v882 = vmul.f32 %v881, %v841
      %v883 = vmul.f32 %v881, %v846
      %v884 = vmul.f32 %v881, %v852
      %v885 = vmul.f32 %v818, %v835
      %v886 = vmul.f32 %v885, %v841
      %v887 = vmul.f32 %v885, %v846
      %v888 = vmul.f32 %v885, %v852
      %v889 = vsub.s32 %v534, 4294967294
      %vm890 = vcmp.ge.s32.totalorder %v889, 0
      %vm891 = vcmp.lt.s32.totalorder %v889, 8
      %vm892 = vmand %vm890, %vm891
      %v893 = vsel %vm892, 1, 0
      %v894 = vcvt.s32.f32 %v893
      %v896 = vlaneseq
      %v897 = vshrl.u32 %v896, 7
      %v898 = vsub.s32 0, %v897
      %v899 = vrot.slane %v894, %v898
      %v900 = vlaneseq
      %v901 = vshrl.u32 %v900, 7
      %v902 = vsub.s32 1, %v901
      %v903 = vrot.slane %v894, %v902
      %v904 = vlaneseq
      %v905 = vshrl.u32 %v904, 7
      %v906 = vsub.s32 2, %v905
      %v907 = vrot.slane %v894, %v906
      %v908 = vlaneseq
      %v909 = vshrl.u32 %v908, 7
      %v910 = vsub.s32 3, %v909
      %v911 = vrot.slane %v894, %v910
      %v916 = vmul.f32 %v899, %v712
      %v917 = vmul.f32 %v903, %v713
      %v918 = vmul.f32 %v907, %v714
      %v919 = vmul.f32 %v911, %v711
      %v920 = vmul.f32 %v899, %v716
      %v921 = vmul.f32 %v903, %v717
      %v922 = vmul.f32 %v907, %v718
      %v923 = vmul.f32 %v911, %v715
      %v924 = vmul.f32 %v899, %v720
      %v925 = vmul.f32 %v903, %v721
      %v926 = vmul.f32 %v907, %v722
      %v927 = vmul.f32 %v911, %v719
      %v928 = vmul.f32 %v739, %v916
      %v929 = vmul.f32 %v739, %v917
      %v930 = vmul.f32 %v739, %v918
      %v931 = vmul.f32 %v739, %v919
      %v932 = vmul.f32 %v740, %v920
      %v933 = vmul.f32 %v740, %v921
      %v934 = vmul.f32 %v740, %v922
      %v935 = vmul.f32 %v740, %v923
      %v936 = vmul.f32 %v741, %v924
      %v937 = vmul.f32 %v741, %v925
      %v938 = vmul.f32 %v741, %v926
      %v939 = vmul.f32 %v741, %v927
      %v940 = vadd.f32 %v928, 0.0
      %v941 = vadd.f32 %v929, 0.0
      %v942 = vadd.f32 %v930, 0.0
      %v943 = vadd.f32 %v931, 0.0
      %v944 = vadd.f32 %v932, 0.0
      %v945 = vadd.f32 %v933, 0.0
      %v946 = vadd.f32 %v934, 0.0
      %v947 = vadd.f32 %v935, 0.0
      %v948 = vadd.f32 %v936, 0.0
      %v949 = vadd.f32 %v937, 0.0
      %v950 = vadd.f32 %v938, 0.0
      %v951 = vadd.f32 %v939, 0.0
      %952 = vrot.lane.b32.xlu0 %v711, 64
      %v953 = vpop.permute.xlu0 %952
      %954 = vrot.lane.b32.xlu0 %v715, 64
      %v955 = vpop.permute.xlu0 %954
      %956 = vrot.lane.b32.xlu0 %v719, 64
      %v957 = vpop.permute.xlu0 %956
      %958 = vrot.lane.b32.xlu0 %v712, 64
      %v959 = vpop.permute.xlu0 %958
      %960 = vrot.lane.b32.xlu0 %v716, 64
      %v961 = vpop.permute.xlu0 %960
      %962 = vrot.lane.b32.xlu0 %v720, 64
      %v963 = vpop.permute.xlu0 %962
      %964 = vrot.lane.b32.xlu0 %v713, 64
      %v965 = vpop.permute.xlu0 %964
      %966 = vrot.lane.b32.xlu0 %v717, 64
      %v967 = vpop.permute.xlu0 %966
      %968 = vrot.lane.b32.xlu0 %v721, 64
      %v969 = vpop.permute.xlu0 %968
      %970 = vrot.lane.b32.xlu0 %v714, 64
      %v971 = vpop.permute.xlu0 %970
      %972 = vrot.lane.b32.xlu0 %v718, 64
      %v973 = vpop.permute.xlu0 %972
      %974 = vrot.lane.b32.xlu0 %v722, 64
      %v975 = vpop.permute.xlu0 %974
      %v976 = vlaneseq
      %v977 = vand.u32 %v976, 127
      %vm978 = vcmp.lt.s32.totalorder %v977, 64
      %v979 = vsel %vm978, %v965, %v971
      %v980 = vsel %vm978, %v967, %v973
      %v981 = vsel %vm978, %v969, %v975
      %v982 = vsel %vm978, %v959, %v965
      %v983 = vsel %vm978, %v961, %v967
      %v984 = vsel %vm978, %v963, %v969
      %v985 = vsel %vm978, %v953, %v959
      %v986 = vsel %vm978, %v955, %v961
      %v987 = vsel %vm978, %v957, %v963
      %v988 = vsel %vm978, %v971, %v953
      %v989 = vsel %vm978, %v973, %v955
      %v990 = vsel %vm978, %v975, %v957
      %v991 = vsub.s32 %v534, 4294967295
      %vm992 = vcmp.ge.s32.totalorder %v991, 0
      %vm993 = vcmp.lt.s32.totalorder %v991, 8
      %vm994 = vmand %vm992, %vm993
      %v995 = vsel %vm994, 1, 0
      %v996 = vcvt.s32.f32 %v995
      %v998 = vlaneseq
      %v999 = vshrl.u32 %v998, 7
      %v1000 = vsub.s32 0, %v999
      %v1001 = vrot.slane %v996, %v1000
      %v1002 = vlaneseq
      %v1003 = vshrl.u32 %v1002, 7
      %v1004 = vsub.s32 1, %v1003
      %v1005 = vrot.slane %v996, %v1004
      %v1006 = vlaneseq
      %v1007 = vshrl.u32 %v1006, 7
      %v1008 = vsub.s32 2, %v1007
      %v1009 = vrot.slane %v996, %v1008
      %v1010 = vlaneseq
      %v1011 = vshrl.u32 %v1010, 7
      %v1012 = vsub.s32 3, %v1011
      %v1013 = vrot.slane %v996, %v1012
      %v1018 = vmul.f32 %v1001, %v985
      %v1019 = vmul.f32 %v1005, %v982
      %v1020 = vmul.f32 %v1009, %v979
      %v1021 = vmul.f32 %v1013, %v988
      %v1022 = vmul.f32 %v1001, %v986
      %v1023 = vmul.f32 %v1005, %v983
      %v1024 = vmul.f32 %v1009, %v980
      %v1025 = vmul.f32 %v1013, %v989
      %v1026 = vmul.f32 %v1001, %v987
      %v1027 = vmul.f32 %v1005, %v984
      %v1028 = vmul.f32 %v1009, %v981
      %v1029 = vmul.f32 %v1013, %v990
      %v1030 = vmul.f32 %v754, %v1018
      %v1031 = vmul.f32 %v754, %v1019
      %v1032 = vmul.f32 %v754, %v1020
      %v1033 = vmul.f32 %v754, %v1021
      %v1034 = vmul.f32 %v755, %v1022
      %v1035 = vmul.f32 %v755, %v1023
      %v1036 = vmul.f32 %v755, %v1024
      %v1037 = vmul.f32 %v755, %v1025
      %v1038 = vmul.f32 %v756, %v1026
      %v1039 = vmul.f32 %v756, %v1027
      %v1040 = vmul.f32 %v756, %v1028
      %v1041 = vmul.f32 %v756, %v1029
      %v1042 = vadd.f32 %v940, %v1030
      %v1043 = vadd.f32 %v941, %v1031
      %v1044 = vadd.f32 %v942, %v1032
      %v1045 = vadd.f32 %v943, %v1033
      %v1046 = vadd.f32 %v944, %v1034
      %v1047 = vadd.f32 %v945, %v1035
      %v1048 = vadd.f32 %v946, %v1036
      %v1049 = vadd.f32 %v947, %v1037
      %v1050 = vadd.f32 %v948, %v1038
      %v1051 = vadd.f32 %v949, %v1039
      %v1052 = vadd.f32 %v950, %v1040
      %v1053 = vadd.f32 %v951, %v1041
      %v1055 = vlaneseq
      %v1056 = vshrl.u32 %v1055, 7
      %v1057 = vsub.s32 0, %v1056
      %v1058 = vrot.slane %v812, %v1057
      %v1059 = vlaneseq
      %v1060 = vshrl.u32 %v1059, 7
      %v1061 = vsub.s32 1, %v1060
      %v1062 = vrot.slane %v812, %v1061
      %v1063 = vlaneseq
      %v1064 = vshrl.u32 %v1063, 7
      %v1065 = vsub.s32 2, %v1064
      %v1066 = vrot.slane %v812, %v1065
      %v1067 = vlaneseq
      %v1068 = vshrl.u32 %v1067, 7
      %v1069 = vsub.s32 3, %v1068
      %v1070 = vrot.slane %v812, %v1069
      %v1075 = vmul.f32 %v1058, %v711
      %v1076 = vmul.f32 %v1062, %v712
      %v1077 = vmul.f32 %v1066, %v713
      %v1078 = vmul.f32 %v1070, %v714
      %v1079 = vmul.f32 %v1058, %v715
      %v1080 = vmul.f32 %v1062, %v716
      %v1081 = vmul.f32 %v1066, %v717
      %v1082 = vmul.f32 %v1070, %v718
      %v1083 = vmul.f32 %v1058, %v719
      %v1084 = vmul.f32 %v1062, %v720
      %v1085 = vmul.f32 %v1066, %v721
      %v1086 = vmul.f32 %v1070, %v722
      %v1087 = vmul.f32 %v769, %v1075
      %v1088 = vmul.f32 %v769, %v1076
      %v1089 = vmul.f32 %v769, %v1077
      %v1090 = vmul.f32 %v769, %v1078
      %v1091 = vmul.f32 %v770, %v1079
      %v1092 = vmul.f32 %v770, %v1080
      %v1093 = vmul.f32 %v770, %v1081
      %v1094 = vmul.f32 %v770, %v1082
      %v1095 = vmul.f32 %v771, %v1083
      %v1096 = vmul.f32 %v771, %v1084
      %v1097 = vmul.f32 %v771, %v1085
      %v1098 = vmul.f32 %v771, %v1086
      %v1099 = vadd.f32 %v1042, %v1087
      %v1100 = vadd.f32 %v1043, %v1088
      %v1101 = vadd.f32 %v1044, %v1089
      %v1102 = vadd.f32 %v1045, %v1090
      %v1103 = vadd.f32 %v1046, %v1091
      %v1104 = vadd.f32 %v1047, %v1092
      %v1105 = vadd.f32 %v1048, %v1093
      %v1106 = vadd.f32 %v1049, %v1094
      %v1107 = vadd.f32 %v1050, %v1095
      %v1108 = vadd.f32 %v1051, %v1096
      %v1109 = vadd.f32 %v1052, %v1097
      %v1110 = vadd.f32 %v1053, %v1098
      %v1111 = vsub.s32 %v534, 1
      %vm1112 = vcmp.ge.s32.totalorder %v1111, 0
      %vm1113 = vcmp.lt.s32.totalorder %v1111, 8
      %vm1114 = vmand %vm1112, %vm1113
      %v1115 = vsel %vm1114, 1, 0
      %v1116 = vcvt.s32.f32 %v1115
      %v1118 = vlaneseq
      %v1119 = vshrl.u32 %v1118, 7
      %v1120 = vsub.s32 0, %v1119
      %v1121 = vrot.slane %v1116, %v1120
      %v1122 = vlaneseq
      %v1123 = vshrl.u32 %v1122, 7
      %v1124 = vsub.s32 1, %v1123
      %v1125 = vrot.slane %v1116, %v1124
      %v1126 = vlaneseq
      %v1127 = vshrl.u32 %v1126, 7
      %v1128 = vsub.s32 2, %v1127
      %v1129 = vrot.slane %v1116, %v1128
      %v1130 = vlaneseq
      %v1131 = vshrl.u32 %v1130, 7
      %v1132 = vsub.s32 3, %v1131
      %v1133 = vrot.slane %v1116, %v1132
      %v1138 = vmul.f32 %v1121, %v988
      %v1139 = vmul.f32 %v1125, %v985
      %v1140 = vmul.f32 %v1129, %v982
      %v1141 = vmul.f32 %v1133, %v979
      %v1142 = vmul.f32 %v1121, %v989
      %v1143 = vmul.f32 %v1125, %v986
      %v1144 = vmul.f32 %v1129, %v983
      %v1145 = vmul.f32 %v1133, %v980
      %v1146 = vmul.f32 %v1121, %v990
      %v1147 = vmul.f32 %v1125, %v987
      %v1148 = vmul.f32 %v1129, %v984
      %v1149 = vmul.f32 %v1133, %v981
      %v1150 = vmul.f32 %v784, %v1138
      %v1151 = vmul.f32 %v784, %v1139
      %v1152 = vmul.f32 %v784, %v1140
      %v1153 = vmul.f32 %v784, %v1141
      %v1154 = vmul.f32 %v785, %v1142
      %v1155 = vmul.f32 %v785, %v1143
      %v1156 = vmul.f32 %v785, %v1144
      %v1157 = vmul.f32 %v785, %v1145
      %v1158 = vmul.f32 %v786, %v1146
      %v1159 = vmul.f32 %v786, %v1147
      %v1160 = vmul.f32 %v786, %v1148
      %v1161 = vmul.f32 %v786, %v1149
      %v1162 = vadd.f32 %v1099, %v1150
      %v1163 = vadd.f32 %v1100, %v1151
      %v1164 = vadd.f32 %v1101, %v1152
      %v1165 = vadd.f32 %v1102, %v1153
      %v1166 = vadd.f32 %v1103, %v1154
      %v1167 = vadd.f32 %v1104, %v1155
      %v1168 = vadd.f32 %v1105, %v1156
      %v1169 = vadd.f32 %v1106, %v1157
      %v1170 = vadd.f32 %v1107, %v1158
      %v1171 = vadd.f32 %v1108, %v1159
      %v1172 = vadd.f32 %v1109, %v1160
      %v1173 = vadd.f32 %v1110, %v1161
      %v1174 = vsub.s32 %v534, 2
      %vm1175 = vcmp.ge.s32.totalorder %v1174, 0
      %vm1176 = vcmp.lt.s32.totalorder %v1174, 8
      %vm1177 = vmand %vm1175, %vm1176
      %v1178 = vsel %vm1177, 1, 0
      %v1179 = vcvt.s32.f32 %v1178
      %v1181 = vlaneseq
      %v1182 = vshrl.u32 %v1181, 7
      %v1183 = vsub.s32 0, %v1182
      %v1184 = vrot.slane %v1179, %v1183
      %v1185 = vlaneseq
      %v1186 = vshrl.u32 %v1185, 7
      %v1187 = vsub.s32 1, %v1186
      %v1188 = vrot.slane %v1179, %v1187
      %v1189 = vlaneseq
      %v1190 = vshrl.u32 %v1189, 7
      %v1191 = vsub.s32 2, %v1190
      %v1192 = vrot.slane %v1179, %v1191
      %v1193 = vlaneseq
      %v1194 = vshrl.u32 %v1193, 7
      %v1195 = vsub.s32 3, %v1194
      %v1196 = vrot.slane %v1179, %v1195
      %v1201 = vmul.f32 %v1184, %v714
      %v1202 = vmul.f32 %v1188, %v711
      %v1203 = vmul.f32 %v1192, %v712
      %v1204 = vmul.f32 %v1196, %v713
      %v1205 = vmul.f32 %v1184, %v718
      %v1206 = vmul.f32 %v1188, %v715
      %v1207 = vmul.f32 %v1192, %v716
      %v1208 = vmul.f32 %v1196, %v717
      %v1209 = vmul.f32 %v1184, %v722
      %v1210 = vmul.f32 %v1188, %v719
      %v1211 = vmul.f32 %v1192, %v720
      %v1212 = vmul.f32 %v1196, %v721
      %v1213 = vmul.f32 %v799, %v1201
      %v1214 = vmul.f32 %v799, %v1202
      %v1215 = vmul.f32 %v799, %v1203
      %v1216 = vmul.f32 %v799, %v1204
      %v1217 = vmul.f32 %v800, %v1205
      %v1218 = vmul.f32 %v800, %v1206
      %v1219 = vmul.f32 %v800, %v1207
      %v1220 = vmul.f32 %v800, %v1208
      %v1221 = vmul.f32 %v801, %v1209
      %v1222 = vmul.f32 %v801, %v1210
      %v1223 = vmul.f32 %v801, %v1211
      %v1224 = vmul.f32 %v801, %v1212
      %v1225 = vadd.f32 %v1162, %v1213
      %v1226 = vadd.f32 %v1163, %v1214
      %v1227 = vadd.f32 %v1164, %v1215
      %v1228 = vadd.f32 %v1165, %v1216
      %v1229 = vadd.f32 %v1166, %v1217
      %v1230 = vadd.f32 %v1167, %v1218
      %v1231 = vadd.f32 %v1168, %v1219
      %v1232 = vadd.f32 %v1169, %v1220
      %v1233 = vadd.f32 %v1170, %v1221
      %v1234 = vadd.f32 %v1171, %v1222
      %v1235 = vadd.f32 %v1172, %v1223
      %v1236 = vadd.f32 %v1173, %v1224
      %v1237 = vld [vmem:[%s6] sm:$0xff]
      %v1238 = vld [vmem:[%s6 + $0x8] sm:$0xff]
      %v1239 = vld [vmem:[%s6 + $0x10] sm:$0xf]
      %v1240 = vld [vmem:[%s7] sm:$0xff]
      %v1241 = vld [vmem:[%s7 + $0x8] sm:$0xff]
      %v1242 = vld [vmem:[%s7 + $0x10] sm:$0xf]
      %1244 = vset.pattern.permute.xlu0 0
      %1245 = vperm.xlu0 %1244, %v1240
      %v1246 = vpop.permute.xlu0 %1245
      %1249 = vset.pattern.permute.xlu0 0
      %1250 = vperm.xlu0 %1249, %v1241
      %v1251 = vpop.permute.xlu0 %1250
      %1254 = vset.pattern.permute.xlu0 0
      %1255 = vperm.xlu0 %1254, %v1242
      %v1256 = vpop.permute.xlu0 %1255
      %vm1258 = vcmask 162816
      %v1260 = vsel %vm1258, %v1237, 0
      %v1263 = vsel %vm1258, %v1238, 0
      %v1266 = vsel %vm1258, %v1239, 0
      %v1269 = vsel %vm538, %v1233, 0
      %v1272 = vsel %vm538, %v1234, 0
      %v1275 = vsel %vm538, %v1235, 0
      %v1278 = vsel %vm538, %v1236, 0
      %1280 = vmatprep.subr.mxu0 %v1226
      %1281 = vmatpush1.msra.mxu0 %v1225
      %1282 = vmatprep.subr.mxu0 %v1230
      %1283 = vmatpush1.msra.mxu0 %v1229
      %1284 = vmatprep.subr.mxu0 %v1272
      %1285 = vmatpush1.msra.mxu0 %v1269
      %1286 = vmatprep.subr.mxu0 0.0
      %1287 = vmatpush1.msra.mxu0 0.0
      %1288 = vmatprep.subr.mxu0 0.0
      %1289 = vmatpush1.msra.mxu0 0.0
      %1290 = vmatprep.subr.mxu0 0.0
      %1291 = vmatpush1.msra.mxu0 0.0
      %1292 = vmatprep.subr.mxu0 0.0
      %1293 = vmatpush1.msra.mxu0 0.0
      %1294 = vmatprep.subr.mxu0 0.0
      %1295 = vmatpush1.msra.mxu0 0.0
      %1296 = vmatprep.subr.mxu0 0.0
      %1297 = vmatpush1.msra.mxu0 0.0
      %1298 = vmatprep.subr.mxu0 0.0
      %1299 = vmatpush1.msra.mxu0 0.0
      %1300 = vmatprep.subr.mxu0 0.0
      %1301 = vmatpush1.msra.mxu0 0.0
      %1302 = vmatprep.subr.mxu0 0.0
      %1303 = vmatpush1.msra.mxu0 0.0
      %1304 = vmatprep.subr.mxu0 0.0
      %1305 = vmatpush1.msra.mxu0 0.0
      %1306 = vmatprep.subr.mxu0 0.0
      %1307 = vmatpush1.msra.mxu0 0.0
      %1308 = vmatprep.subr.mxu0 0.0
      %1309 = vmatpush1.msra.mxu0 0.0
      %1310 = vmatprep.subr.mxu0 0.0
      %1311 = vmatpush1.msra.mxu0 0.0
      %1312 = vmatprep.subr.mxu0 0.0
      %1313 = vmatpush1.msra.mxu0 0.0
      %1314 = vmatprep.subr.mxu0 0.0
      %1315 = vmatpush1.msra.mxu0 0.0
      %1316 = vmatprep.subr.mxu0 0.0
      %1317 = vmatpush1.msra.mxu0 0.0
      %1318 = vmatprep.subr.mxu0 0.0
      %1319 = vmatpush1.msra.mxu0 0.0
      %1320 = vmatprep.subr.mxu0 0.0
      %1321 = vmatpush1.msra.mxu0 0.0
      %1322 = vmatprep.subr.mxu0 0.0
      %1323 = vmatpush1.msra.mxu0 0.0
      %1324 = vmatprep.subr.mxu0 0.0
      %1325 = vmatpush1.msra.mxu0 0.0
      %1326 = vmatprep.subr.mxu0 0.0
      %1327 = vmatpush1.msra.mxu0 0.0
      %1328 = vmatprep.subr.mxu0 0.0
      %1329 = vmatpush1.msra.mxu0 0.0
      %1330 = vmatprep.subr.mxu0 0.0
      %1331 = vmatpush1.msra.mxu0 0.0
      %1332 = vmatprep.subr.mxu0 0.0
      %1333 = vmatpush1.msra.mxu0 0.0
      %1334 = vmatprep.subr.mxu0 0.0
      %1335 = vmatpush1.msra.mxu0 0.0
      %1336 = vmatprep.subr.mxu0 0.0
      %1337 = vmatpush1.msra.mxu0 0.0
      %1338 = vmatprep.subr.mxu0 0.0
      %1339 = vmatpush1.msra.mxu0 0.0
      %1340 = vmatprep.subr.mxu0 0.0
      %1341 = vmatpush1.msra.mxu0 0.0
      %1342 = vmatprep.subr.mxu0 0.0
      %1343 = vmatpush1.msra.mxu0 0.0
      %1344 = vmatprep.mubr.f32.mxu0 0.0
      %1345 = vmatmul.mubr.f32.gmra.mrb[0].mxu0 %v1260
      %v1346 = vpop.f32.mrb[0].mxu0
      %v1347 = vadd.f32 %v1246, %v1346
      %v1348 = vpop.f32.mrb[0].mxu0
      %v1349 = vadd.f32 %v1246, %v1348
      %1350 = vmatprep.mubr.f32.mxu0 0.0
      %1351 = vmatmul.mubr.f32.gmra.mrb[0].mxu0 %v1263
      %v1352 = vpop.f32.mrb[0].mxu0
      %v1353 = vadd.f32 %v1251, %v1352
      %v1354 = vpop.f32.mrb[0].mxu0
      %v1355 = vadd.f32 %v1251, %v1354
      %1356 = vmatprep.mubr.f32.mxu0 0.0
      %1357 = vmatmul.mubr.f32.gmra.mrb[0].mxu0 %v1266
      %v1358 = vpop.f32.mrb[0].mxu0
      %v1359 = vadd.f32 %v1256, %v1358
      %v1360 = vpop.f32.mrb[0].mxu0
      %v1361 = vadd.f32 %v1256, %v1360
      %1362 = vdwg.mxu0
      %1363 = vmatprep.subr.mxu0 %v1228
      %1364 = vmatpush1.msra.mxu0 %v1227
      %1365 = vmatprep.subr.mxu0 %v1232
      %1366 = vmatpush1.msra.mxu0 %v1231
      %1367 = vmatprep.subr.mxu0 %v1278
      %1368 = vmatpush1.msra.mxu0 %v1275
      %1369 = vmatprep.subr.mxu0 0.0
      %1370 = vmatpush1.msra.mxu0 0.0
      %1371 = vmatprep.subr.mxu0 0.0
      %1372 = vmatpush1.msra.mxu0 0.0
      %1373 = vmatprep.subr.mxu0 0.0
      %1374 = vmatpush1.msra.mxu0 0.0
      %1375 = vmatprep.subr.mxu0 0.0
      %1376 = vmatpush1.msra.mxu0 0.0
      %1377 = vmatprep.subr.mxu0 0.0
      %1378 = vmatpush1.msra.mxu0 0.0
      %1379 = vmatprep.subr.mxu0 0.0
      %1380 = vmatpush1.msra.mxu0 0.0
      %1381 = vmatprep.subr.mxu0 0.0
      %1382 = vmatpush1.msra.mxu0 0.0
      %1383 = vmatprep.subr.mxu0 0.0
      %1384 = vmatpush1.msra.mxu0 0.0
      %1385 = vmatprep.subr.mxu0 0.0
      %1386 = vmatpush1.msra.mxu0 0.0
      %1387 = vmatprep.subr.mxu0 0.0
      %1388 = vmatpush1.msra.mxu0 0.0
      %1389 = vmatprep.subr.mxu0 0.0
      %1390 = vmatpush1.msra.mxu0 0.0
      %1391 = vmatprep.subr.mxu0 0.0
      %1392 = vmatpush1.msra.mxu0 0.0
      %1393 = vmatprep.subr.mxu0 0.0
      %1394 = vmatpush1.msra.mxu0 0.0
      %1395 = vmatprep.subr.mxu0 0.0
      %1396 = vmatpush1.msra.mxu0 0.0
      %1397 = vmatprep.subr.mxu0 0.0
      %1398 = vmatpush1.msra.mxu0 0.0
      %1399 = vmatprep.subr.mxu0 0.0
      %1400 = vmatpush1.msra.mxu0 0.0
      %1401 = vmatprep.subr.mxu0 0.0
      %1402 = vmatpush1.msra.mxu0 0.0
      %1403 = vmatprep.subr.mxu0 0.0
      %1404 = vmatpush1.msra.mxu0 0.0
      %1405 = vmatprep.subr.mxu0 0.0
      %1406 = vmatpush1.msra.mxu0 0.0
      %1407 = vmatprep.subr.mxu0 0.0
      %1408 = vmatpush1.msra.mxu0 0.0
      %1409 = vmatprep.subr.mxu0 0.0
      %1410 = vmatpush1.msra.mxu0 0.0
      %1411 = vmatprep.subr.mxu0 0.0
      %1412 = vmatpush1.msra.mxu0 0.0
      %1413 = vmatprep.subr.mxu0 0.0
      %1414 = vmatpush1.msra.mxu0 0.0
      %1415 = vmatprep.subr.mxu0 0.0
      %1416 = vmatpush1.msra.mxu0 0.0
      %1417 = vmatprep.subr.mxu0 0.0
      %1418 = vmatpush1.msra.mxu0 0.0
      %1419 = vmatprep.subr.mxu0 0.0
      %1420 = vmatpush1.msra.mxu0 0.0
      %1421 = vmatprep.subr.mxu0 0.0
      %1422 = vmatpush1.msra.mxu0 0.0
      %1423 = vmatprep.subr.mxu0 0.0
      %1424 = vmatpush1.msra.mxu0 0.0
      %1425 = vmatprep.subr.mxu0 0.0
      %1426 = vmatpush1.msra.mxu0 0.0
      %1427 = vmatprep.mubr.f32.mxu0 0.0
      %1428 = vmatmul.mubr.f32.gmra.mrb[0].mxu0 %v1260
      %v1429 = vpop.f32.mrb[0].mxu0
      %v1430 = vadd.f32 %v1246, %v1429
      %v1431 = vpop.f32.mrb[0].mxu0
      %v1432 = vadd.f32 %v1246, %v1431
      %1433 = vmatprep.mubr.f32.mxu0 0.0
      %1434 = vmatmul.mubr.f32.gmra.mrb[0].mxu0 %v1263
      %v1435 = vpop.f32.mrb[0].mxu0
      %v1436 = vadd.f32 %v1251, %v1435
      %v1437 = vpop.f32.mrb[0].mxu0
      %v1438 = vadd.f32 %v1251, %v1437
      %1439 = vmatprep.mubr.f32.mxu0 0.0
      %1440 = vmatmul.mubr.f32.gmra.mrb[0].mxu0 %v1266
      %v1441 = vpop.f32.mrb[0].mxu0
      %v1442 = vadd.f32 %v1256, %v1441
      %v1443 = vpop.f32.mrb[0].mxu0
      %v1444 = vadd.f32 %v1256, %v1443
      %1445 = vdwg.mxu0
      %v1446 = vld [vmem:[%s8] sm:$0xff]
      %v1447 = vld [vmem:[%s8 + $0x8] sm:$0xff]
      %v1448 = vld [vmem:[%s8 + $0x10] sm:$0xf]
      %1449 = vrot.lane.b32.xlu0 %v1347, 73
      %v1450 = vpop.permute.xlu0 %1449
      %1451 = vrot.lane.b32.xlu0 %v1353, 73
      %v1452 = vpop.permute.xlu0 %1451
      %1453 = vrot.lane.b32.xlu0 %v1359, 73
      %v1454 = vpop.permute.xlu0 %1453
      %1455 = vrot.lane.b32.xlu0 %v1349, 73
      %v1456 = vpop.permute.xlu0 %1455
      %1457 = vrot.lane.b32.xlu0 %v1355, 73
      %v1458 = vpop.permute.xlu0 %1457
      %1459 = vrot.lane.b32.xlu0 %v1361, 73
      %v1460 = vpop.permute.xlu0 %1459
      %1461 = vrot.lane.b32.xlu0 %v1430, 73
      %v1462 = vpop.permute.xlu0 %1461
      %1463 = vrot.lane.b32.xlu0 %v1436, 73
      %v1464 = vpop.permute.xlu0 %1463
      %1465 = vrot.lane.b32.xlu0 %v1442, 73
      %v1466 = vpop.permute.xlu0 %1465
      %1467 = vrot.lane.b32.xlu0 %v1432, 73
      %v1468 = vpop.permute.xlu0 %1467
      %1469 = vrot.lane.b32.xlu0 %v1438, 73
      %v1470 = vpop.permute.xlu0 %1469
      %1471 = vrot.lane.b32.xlu0 %v1444, 73
      %v1472 = vpop.permute.xlu0 %1471
      %vm1473 = vcmp.lt.s32.totalorder %v977, 73
      %v1474 = vsel %vm1473, %v1462, %v1468
      %v1475 = vsel %vm1473, %v1464, %v1470
      %v1476 = vsel %vm1473, %v1466, %v1472
      %v1477 = vsel %vm1473, %v1456, %v1462
      %v1478 = vsel %vm1473, %v1458, %v1464
      %v1479 = vsel %vm1473, %v1460, %v1466
      %v1480 = vsel %vm1473, %v1450, %v1456
      %v1481 = vsel %vm1473, %v1452, %v1458
      %v1482 = vsel %vm1473, %v1454, %v1460
      %v1483 = vsel %vm1473, %v1468, %v1450
      %v1484 = vsel %vm1473, %v1470, %v1452
      %v1485 = vsel %vm1473, %v1472, %v1454
      %1487 = vset.pattern.permute.xlu0 0
      %1488 = vperm.xlu0 %1487, %v1446
      %v1489 = vpop.permute.xlu0 %1488
      %1492 = vset.pattern.permute.xlu0 0
      %1493 = vperm.xlu0 %1492, %v1447
      %v1494 = vpop.permute.xlu0 %1493
      %1497 = vset.pattern.permute.xlu0 0
      %1498 = vperm.xlu0 %1497, %v1448
      %v1499 = vpop.permute.xlu0 %1498
      %v1502 = vlaneseq
      %v1503 = vshrl.u32 %v1502, 7
      %v1504 = vsub.s32 0, %v1503
      %v1505 = vrot.slane %v854, %v1504
      %v1506 = vlaneseq
      %v1507 = vshrl.u32 %v1506, 7
      %v1508 = vsub.s32 1, %v1507
      %v1509 = vrot.slane %v854, %v1508
      %v1510 = vlaneseq
      %v1511 = vshrl.u32 %v1510, 7
      %v1512 = vsub.s32 2, %v1511
      %v1513 = vrot.slane %v854, %v1512
      %v1514 = vlaneseq
      %v1515 = vshrl.u32 %v1514, 7
      %v1516 = vsub.s32 3, %v1515
      %v1517 = vrot.slane %v854, %v1516
      %v1522 = vmul.f32 %v1489, %v1505
      %v1523 = vmul.f32 %v1489, %v1509
      %v1524 = vmul.f32 %v1489, %v1513
      %v1525 = vmul.f32 %v1489, %v1517
      %v1526 = vmul.f32 %v1494, %v1505
      %v1527 = vmul.f32 %v1494, %v1509
      %v1528 = vmul.f32 %v1494, %v1513
      %v1529 = vmul.f32 %v1494, %v1517
      %v1530 = vmul.f32 %v1499, %v1505
      %v1531 = vmul.f32 %v1499, %v1509
      %v1532 = vmul.f32 %v1499, %v1513
      %v1533 = vmul.f32 %v1499, %v1517
      %v1534 = vmul.f32 %v1522, %v1483
      %v1535 = vmul.f32 %v1523, %v1480
      %v1536 = vmul.f32 %v1524, %v1477
      %v1537 = vmul.f32 %v1525, %v1474
      %v1538 = vmul.f32 %v1526, %v1484
      %v1539 = vmul.f32 %v1527, %v1481
      %v1540 = vmul.f32 %v1528, %v1478
      %v1541 = vmul.f32 %v1529, %v1475
      %v1542 = vmul.f32 %v1530, %v1485
      %v1543 = vmul.f32 %v1531, %v1482
      %v1544 = vmul.f32 %v1532, %v1479
      %v1545 = vmul.f32 %v1533, %v1476
      %v1546 = vadd.f32 %v1534, 0.0
      %v1547 = vadd.f32 %v1535, 0.0
      %v1548 = vadd.f32 %v1536, 0.0
      %v1549 = vadd.f32 %v1537, 0.0
      %v1550 = vadd.f32 %v1538, 0.0
      %v1551 = vadd.f32 %v1539, 0.0
      %v1552 = vadd.f32 %v1540, 0.0
      %v1553 = vadd.f32 %v1541, 0.0
      %v1554 = vadd.f32 %v1542, 0.0
      %v1555 = vadd.f32 %v1543, 0.0
      %v1556 = vadd.f32 %v1544, 0.0
      %v1557 = vadd.f32 %v1545, 0.0
      %1558 = vrot.lane.b32.xlu0 %v1347, 72
      %v1559 = vpop.permute.xlu0 %1558
      %1560 = vrot.lane.b32.xlu0 %v1353, 72
      %v1561 = vpop.permute.xlu0 %1560
      %1562 = vrot.lane.b32.xlu0 %v1359, 72
      %v1563 = vpop.permute.xlu0 %1562
      %1564 = vrot.lane.b32.xlu0 %v1349, 72
      %v1565 = vpop.permute.xlu0 %1564
      %1566 = vrot.lane.b32.xlu0 %v1355, 72
      %v1567 = vpop.permute.xlu0 %1566
      %1568 = vrot.lane.b32.xlu0 %v1361, 72
      %v1569 = vpop.permute.xlu0 %1568
      %1570 = vrot.lane.b32.xlu0 %v1430, 72
      %v1571 = vpop.permute.xlu0 %1570
      %1572 = vrot.lane.b32.xlu0 %v1436, 72
      %v1573 = vpop.permute.xlu0 %1572
      %1574 = vrot.lane.b32.xlu0 %v1442, 72
      %v1575 = vpop.permute.xlu0 %1574
      %1576 = vrot.lane.b32.xlu0 %v1432, 72
      %v1577 = vpop.permute.xlu0 %1576
      %1578 = vrot.lane.b32.xlu0 %v1438, 72
      %v1579 = vpop.permute.xlu0 %1578
      %1580 = vrot.lane.b32.xlu0 %v1444, 72
      %v1581 = vpop.permute.xlu0 %1580
      %vm1582 = vcmp.lt.s32.totalorder %v977, 72
      %v1583 = vsel %vm1582, %v1571, %v1577
      %v1584 = vsel %vm1582, %v1573, %v1579
      %v1585 = vsel %vm1582, %v1575, %v1581
      %v1586 = vsel %vm1582, %v1565, %v1571
      %v1587 = vsel %vm1582, %v1567, %v1573
      %v1588 = vsel %vm1582, %v1569, %v1575
      %v1589 = vsel %vm1582, %v1559, %v1565
      %v1590 = vsel %vm1582, %v1561, %v1567
      %v1591 = vsel %vm1582, %v1563, %v1569
      %v1592 = vsel %vm1582, %v1577, %v1559
      %v1593 = vsel %vm1582, %v1579, %v1561
      %v1594 = vsel %vm1582, %v1581, %v1563
      %1595 = vset.pattern.permute.xlu0 1
      %1596 = vperm.xlu0 %1595, %v1446
      %v1597 = vpop.permute.xlu0 %1596
      %1599 = vset.pattern.permute.xlu0 1
      %1600 = vperm.xlu0 %1599, %v1447
      %v1601 = vpop.permute.xlu0 %1600
      %1603 = vset.pattern.permute.xlu0 1
      %1604 = vperm.xlu0 %1603, %v1448
      %v1605 = vpop.permute.xlu0 %1604
      %v1608 = vlaneseq
      %v1609 = vshrl.u32 %v1608, 7
      %v1610 = vsub.s32 0, %v1609
      %v1611 = vrot.slane %v855, %v1610
      %v1612 = vlaneseq
      %v1613 = vshrl.u32 %v1612, 7
      %v1614 = vsub.s32 1, %v1613
      %v1615 = vrot.slane %v855, %v1614
      %v1616 = vlaneseq
      %v1617 = vshrl.u32 %v1616, 7
      %v1618 = vsub.s32 2, %v1617
      %v1619 = vrot.slane %v855, %v1618
      %v1620 = vlaneseq
      %v1621 = vshrl.u32 %v1620, 7
      %v1622 = vsub.s32 3, %v1621
      %v1623 = vrot.slane %v855, %v1622
      %v1628 = vmul.f32 %v1597, %v1611
      %v1629 = vmul.f32 %v1597, %v1615
      %v1630 = vmul.f32 %v1597, %v1619
      %v1631 = vmul.f32 %v1597, %v1623
      %v1632 = vmul.f32 %v1601, %v1611
      %v1633 = vmul.f32 %v1601, %v1615
      %v1634 = vmul.f32 %v1601, %v1619
      %v1635 = vmul.f32 %v1601, %v1623
      %v1636 = vmul.f32 %v1605, %v1611
      %v1637 = vmul.f32 %v1605, %v1615
      %v1638 = vmul.f32 %v1605, %v1619
      %v1639 = vmul.f32 %v1605, %v1623
      %v1640 = vmul.f32 %v1628, %v1592
      %v1641 = vmul.f32 %v1629, %v1589
      %v1642 = vmul.f32 %v1630, %v1586
      %v1643 = vmul.f32 %v1631, %v1583
      %v1644 = vmul.f32 %v1632, %v1593
      %v1645 = vmul.f32 %v1633, %v1590
      %v1646 = vmul.f32 %v1634, %v1587
      %v1647 = vmul.f32 %v1635, %v1584
      %v1648 = vmul.f32 %v1636, %v1594
      %v1649 = vmul.f32 %v1637, %v1591
      %v1650 = vmul.f32 %v1638, %v1588
      %v1651 = vmul.f32 %v1639, %v1585
      %v1652 = vadd.f32 %v1546, %v1640
      %v1653 = vadd.f32 %v1547, %v1641
      %v1654 = vadd.f32 %v1548, %v1642
      %v1655 = vadd.f32 %v1549, %v1643
      %v1656 = vadd.f32 %v1550, %v1644
      %v1657 = vadd.f32 %v1551, %v1645
      %v1658 = vadd.f32 %v1552, %v1646
      %v1659 = vadd.f32 %v1553, %v1647
      %v1660 = vadd.f32 %v1554, %v1648
      %v1661 = vadd.f32 %v1555, %v1649
      %v1662 = vadd.f32 %v1556, %v1650
      %v1663 = vadd.f32 %v1557, %v1651
      %1664 = vrot.lane.b32.xlu0 %v1347, 71
      %v1665 = vpop.permute.xlu0 %1664
      %1666 = vrot.lane.b32.xlu0 %v1353, 71
      %v1667 = vpop.permute.xlu0 %1666
      %1668 = vrot.lane.b32.xlu0 %v1359, 71
      %v1669 = vpop.permute.xlu0 %1668
      %1670 = vrot.lane.b32.xlu0 %v1349, 71
      %v1671 = vpop.permute.xlu0 %1670
      %1672 = vrot.lane.b32.xlu0 %v1355, 71
      %v1673 = vpop.permute.xlu0 %1672
      %1674 = vrot.lane.b32.xlu0 %v1361, 71
      %v1675 = vpop.permute.xlu0 %1674
      %1676 = vrot.lane.b32.xlu0 %v1430, 71
      %v1677 = vpop.permute.xlu0 %1676
      %1678 = vrot.lane.b32.xlu0 %v1436, 71
      %v1679 = vpop.permute.xlu0 %1678
      %1680 = vrot.lane.b32.xlu0 %v1442, 71
      %v1681 = vpop.permute.xlu0 %1680
      %1682 = vrot.lane.b32.xlu0 %v1432, 71
      %v1683 = vpop.permute.xlu0 %1682
      %1684 = vrot.lane.b32.xlu0 %v1438, 71
      %v1685 = vpop.permute.xlu0 %1684
      %1686 = vrot.lane.b32.xlu0 %v1444, 71
      %v1687 = vpop.permute.xlu0 %1686
      %vm1688 = vcmp.lt.s32.totalorder %v977, 71
      %v1689 = vsel %vm1688, %v1677, %v1683
      %v1690 = vsel %vm1688, %v1679, %v1685
      %v1691 = vsel %vm1688, %v1681, %v1687
      %v1692 = vsel %vm1688, %v1671, %v1677
      %v1693 = vsel %vm1688, %v1673, %v1679
      %v1694 = vsel %vm1688, %v1675, %v1681
      %v1695 = vsel %vm1688, %v1665, %v1671
      %v1696 = vsel %vm1688, %v1667, %v1673
      %v1697 = vsel %vm1688, %v1669, %v1675
      %v1698 = vsel %vm1688, %v1683, %v1665
      %v1699 = vsel %vm1688, %v1685, %v1667
      %v1700 = vsel %vm1688, %v1687, %v1669
      %1701 = vset.pattern.permute.xlu0 2
      %1702 = vperm.xlu0 %1701, %v1446
      %v1703 = vpop.permute.xlu0 %1702
      %1705 = vset.pattern.permute.xlu0 2
      %1706 = vperm.xlu0 %1705, %v1447
      %v1707 = vpop.permute.xlu0 %1706
      %1709 = vset.pattern.permute.xlu0 2
      %1710 = vperm.xlu0 %1709, %v1448
      %v1711 = vpop.permute.xlu0 %1710
      %v1714 = vlaneseq
      %v1715 = vshrl.u32 %v1714, 7
      %v1716 = vsub.s32 0, %v1715
      %v1717 = vrot.slane %v856, %v1716
      %v1718 = vlaneseq
      %v1719 = vshrl.u32 %v1718, 7
      %v1720 = vsub.s32 1, %v1719
      %v1721 = vrot.slane %v856, %v1720
      %v1722 = vlaneseq
      %v1723 = vshrl.u32 %v1722, 7
      %v1724 = vsub.s32 2, %v1723
      %v1725 = vrot.slane %v856, %v1724
      %v1726 = vlaneseq
      %v1727 = vshrl.u32 %v1726, 7
      %v1728 = vsub.s32 3, %v1727
      %v1729 = vrot.slane %v856, %v1728
      %v1734 = vmul.f32 %v1703, %v1717
      %v1735 = vmul.f32 %v1703, %v1721
      %v1736 = vmul.f32 %v1703, %v1725
      %v1737 = vmul.f32 %v1703, %v1729
      %v1738 = vmul.f32 %v1707, %v1717
      %v1739 = vmul.f32 %v1707, %v1721
      %v1740 = vmul.f32 %v1707, %v1725
      %v1741 = vmul.f32 %v1707, %v1729
      %v1742 = vmul.f32 %v1711, %v1717
      %v1743 = vmul.f32 %v1711, %v1721
      %v1744 = vmul.f32 %v1711, %v1725
      %v1745 = vmul.f32 %v1711, %v1729
      %v1746 = vmul.f32 %v1734, %v1698
      %v1747 = vmul.f32 %v1735, %v1695
      %v1748 = vmul.f32 %v1736, %v1692
      %v1749 = vmul.f32 %v1737, %v1689
      %v1750 = vmul.f32 %v1738, %v1699
      %v1751 = vmul.f32 %v1739, %v1696
      %v1752 = vmul.f32 %v1740, %v1693
      %v1753 = vmul.f32 %v1741, %v1690
      %v1754 = vmul.f32 %v1742, %v1700
      %v1755 = vmul.f32 %v1743, %v1697
      %v1756 = vmul.f32 %v1744, %v1694
      %v1757 = vmul.f32 %v1745, %v1691
      %v1758 = vadd.f32 %v1652, %v1746
      %v1759 = vadd.f32 %v1653, %v1747
      %v1760 = vadd.f32 %v1654, %v1748
      %v1761 = vadd.f32 %v1655, %v1749
      %v1762 = vadd.f32 %v1656, %v1750
      %v1763 = vadd.f32 %v1657, %v1751
      %v1764 = vadd.f32 %v1658, %v1752
      %v1765 = vadd.f32 %v1659, %v1753
      %v1766 = vadd.f32 %v1660, %v1754
      %v1767 = vadd.f32 %v1661, %v1755
      %v1768 = vadd.f32 %v1662, %v1756
      %v1769 = vadd.f32 %v1663, %v1757
      %1770 = vrot.lane.b32.xlu0 %v1347, 65
      %v1771 = vpop.permute.xlu0 %1770
      %1772 = vrot.lane.b32.xlu0 %v1353, 65
      %v1773 = vpop.permute.xlu0 %1772
      %1774 = vrot.lane.b32.xlu0 %v1359, 65
      %v1775 = vpop.permute.xlu0 %1774
      %1776 = vrot.lane.b32.xlu0 %v1349, 65
      %v1777 = vpop.permute.xlu0 %1776
      %1778 = vrot.lane.b32.xlu0 %v1355, 65
      %v1779 = vpop.permute.xlu0 %1778
      %1780 = vrot.lane.b32.xlu0 %v1361, 65
      %v1781 = vpop.permute.xlu0 %1780
      %1782 = vrot.lane.b32.xlu0 %v1430, 65
      %v1783 = vpop.permute.xlu0 %1782
      %1784 = vrot.lane.b32.xlu0 %v1436, 65
      %v1785 = vpop.permute.xlu0 %1784
      %1786 = vrot.lane.b32.xlu0 %v1442, 65
      %v1787 = vpop.permute.xlu0 %1786
      %1788 = vrot.lane.b32.xlu0 %v1432, 65
      %v1789 = vpop.permute.xlu0 %1788
      %1790 = vrot.lane.b32.xlu0 %v1438, 65
      %v1791 = vpop.permute.xlu0 %1790
      %1792 = vrot.lane.b32.xlu0 %v1444, 65
      %v1793 = vpop.permute.xlu0 %1792
      %vm1794 = vcmp.lt.s32.totalorder %v977, 65
      %v1795 = vsel %vm1794, %v1783, %v1789
      %v1796 = vsel %vm1794, %v1785, %v1791
      %v1797 = vsel %vm1794, %v1787, %v1793
      %v1798 = vsel %vm1794, %v1777, %v1783
      %v1799 = vsel %vm1794, %v1779, %v1785
      %v1800 = vsel %vm1794, %v1781, %v1787
      %v1801 = vsel %vm1794, %v1771, %v1777
      %v1802 = vsel %vm1794, %v1773, %v1779
      %v1803 = vsel %vm1794, %v1775, %v1781
      %v1804 = vsel %vm1794, %v1789, %v1771
      %v1805 = vsel %vm1794, %v1791, %v1773
      %v1806 = vsel %vm1794, %v1793, %v1775
      %1807 = vset.pattern.permute.xlu0 3
      %1808 = vperm.xlu0 %1807, %v1446
      %v1809 = vpop.permute.xlu0 %1808
      %1811 = vset.pattern.permute.xlu0 3
      %1812 = vperm.xlu0 %1811, %v1447
      %v1813 = vpop.permute.xlu0 %1812
      %1815 = vset.pattern.permute.xlu0 3
      %1816 = vperm.xlu0 %1815, %v1448
      %v1817 = vpop.permute.xlu0 %1816
      %v1820 = vlaneseq
      %v1821 = vshrl.u32 %v1820, 7
      %v1822 = vsub.s32 0, %v1821
      %v1823 = vrot.slane %v858, %v1822
      %v1824 = vlaneseq
      %v1825 = vshrl.u32 %v1824, 7
      %v1826 = vsub.s32 1, %v1825
      %v1827 = vrot.slane %v858, %v1826
      %v1828 = vlaneseq
      %v1829 = vshrl.u32 %v1828, 7
      %v1830 = vsub.s32 2, %v1829
      %v1831 = vrot.slane %v858, %v1830
      %v1832 = vlaneseq
      %v1833 = vshrl.u32 %v1832, 7
      %v1834 = vsub.s32 3, %v1833
      %v1835 = vrot.slane %v858, %v1834
      %v1840 = vmul.f32 %v1809, %v1823
      %v1841 = vmul.f32 %v1809, %v1827
      %v1842 = vmul.f32 %v1809, %v1831
      %v1843 = vmul.f32 %v1809, %v1835
      %v1844 = vmul.f32 %v1813, %v1823
      %v1845 = vmul.f32 %v1813, %v1827
      %v1846 = vmul.f32 %v1813, %v1831
      %v1847 = vmul.f32 %v1813, %v1835
      %v1848 = vmul.f32 %v1817, %v1823
      %v1849 = vmul.f32 %v1817, %v1827
      %v1850 = vmul.f32 %v1817, %v1831
      %v1851 = vmul.f32 %v1817, %v1835
      %v1852 = vmul.f32 %v1840, %v1804
      %v1853 = vmul.f32 %v1841, %v1801
      %v1854 = vmul.f32 %v1842, %v1798
      %v1855 = vmul.f32 %v1843, %v1795
      %v1856 = vmul.f32 %v1844, %v1805
      %v1857 = vmul.f32 %v1845, %v1802
      %v1858 = vmul.f32 %v1846, %v1799
      %v1859 = vmul.f32 %v1847, %v1796
      %v1860 = vmul.f32 %v1848, %v1806
      %v1861 = vmul.f32 %v1849, %v1803
      %v1862 = vmul.f32 %v1850, %v1800
      %v1863 = vmul.f32 %v1851, %v1797
      %v1864 = vadd.f32 %v1758, %v1852
      %v1865 = vadd.f32 %v1759, %v1853
      %v1866 = vadd.f32 %v1760, %v1854
      %v1867 = vadd.f32 %v1761, %v1855
      %v1868 = vadd.f32 %v1762, %v1856
      %v1869 = vadd.f32 %v1763, %v1857
      %v1870 = vadd.f32 %v1764, %v1858
      %v1871 = vadd.f32 %v1765, %v1859
      %v1872 = vadd.f32 %v1766, %v1860
      %v1873 = vadd.f32 %v1767, %v1861
      %v1874 = vadd.f32 %v1768, %v1862
      %v1875 = vadd.f32 %v1769, %v1863
      %1876 = vrot.lane.b32.xlu0 %v1347, 64
      %v1877 = vpop.permute.xlu0 %1876
      %1878 = vrot.lane.b32.xlu0 %v1353, 64
      %v1879 = vpop.permute.xlu0 %1878
      %1880 = vrot.lane.b32.xlu0 %v1359, 64
      %v1881 = vpop.permute.xlu0 %1880
      %1882 = vrot.lane.b32.xlu0 %v1349, 64
      %v1883 = vpop.permute.xlu0 %1882
      %1884 = vrot.lane.b32.xlu0 %v1355, 64
      %v1885 = vpop.permute.xlu0 %1884
      %1886 = vrot.lane.b32.xlu0 %v1361, 64
      %v1887 = vpop.permute.xlu0 %1886
      %1888 = vrot.lane.b32.xlu0 %v1430, 64
      %v1889 = vpop.permute.xlu0 %1888
      %1890 = vrot.lane.b32.xlu0 %v1436, 64
      %v1891 = vpop.permute.xlu0 %1890
      %1892 = vrot.lane.b32.xlu0 %v1442, 64
      %v1893 = vpop.permute.xlu0 %1892
      %1894 = vrot.lane.b32.xlu0 %v1432, 64
      %v1895 = vpop.permute.xlu0 %1894
      %1896 = vrot.lane.b32.xlu0 %v1438, 64
      %v1897 = vpop.permute.xlu0 %1896
      %1898 = vrot.lane.b32.xlu0 %v1444, 64
      %v1899 = vpop.permute.xlu0 %1898
      %v1900 = vsel %vm978, %v1889, %v1895
      %v1901 = vsel %vm978, %v1891, %v1897
      %v1902 = vsel %vm978, %v1893, %v1899
      %v1903 = vsel %vm978, %v1883, %v1889
      %v1904 = vsel %vm978, %v1885, %v1891
      %v1905 = vsel %vm978, %v1887, %v1893
      %v1906 = vsel %vm978, %v1877, %v1883
      %v1907 = vsel %vm978, %v1879, %v1885
      %v1908 = vsel %vm978, %v1881, %v1887
      %v1909 = vsel %vm978, %v1895, %v1877
      %v1910 = vsel %vm978, %v1897, %v1879
      %v1911 = vsel %vm978, %v1899, %v1881
      %1912 = vset.pattern.permute.xlu0 4
      %1913 = vperm.xlu0 %1912, %v1446
      %v1914 = vpop.permute.xlu0 %1913
      %1916 = vset.pattern.permute.xlu0 4
      %1917 = vperm.xlu0 %1916, %v1447
      %v1918 = vpop.permute.xlu0 %1917
      %1920 = vset.pattern.permute.xlu0 4
      %1921 = vperm.xlu0 %1920, %v1448
      %v1922 = vpop.permute.xlu0 %1921
      %v1925 = vlaneseq
      %v1926 = vshrl.u32 %v1925, 7
      %v1927 = vsub.s32 0, %v1926
      %v1928 = vrot.slane %v859, %v1927
      %v1929 = vlaneseq
      %v1930 = vshrl.u32 %v1929, 7
      %v1931 = vsub.s32 1, %v1930
      %v1932 = vrot.slane %v859, %v1931
      %v1933 = vlaneseq
      %v1934 = vshrl.u32 %v1933, 7
      %v1935 = vsub.s32 2, %v1934
      %v1936 = vrot.slane %v859, %v1935
      %v1937 = vlaneseq
      %v1938 = vshrl.u32 %v1937, 7
      %v1939 = vsub.s32 3, %v1938
      %v1940 = vrot.slane %v859, %v1939
      %v1945 = vmul.f32 %v1914, %v1928
      %v1946 = vmul.f32 %v1914, %v1932
      %v1947 = vmul.f32 %v1914, %v1936
      %v1948 = vmul.f32 %v1914, %v1940
      %v1949 = vmul.f32 %v1918, %v1928
      %v1950 = vmul.f32 %v1918, %v1932
      %v1951 = vmul.f32 %v1918, %v1936
      %v1952 = vmul.f32 %v1918, %v1940
      %v1953 = vmul.f32 %v1922, %v1928
      %v1954 = vmul.f32 %v1922, %v1932
      %v1955 = vmul.f32 %v1922, %v1936
      %v1956 = vmul.f32 %v1922, %v1940
      %v1957 = vmul.f32 %v1945, %v1909
      %v1958 = vmul.f32 %v1946, %v1906
      %v1959 = vmul.f32 %v1947, %v1903
      %v1960 = vmul.f32 %v1948, %v1900
      %v1961 = vmul.f32 %v1949, %v1910
      %v1962 = vmul.f32 %v1950, %v1907
      %v1963 = vmul.f32 %v1951, %v1904
      %v1964 = vmul.f32 %v1952, %v1901
      %v1965 = vmul.f32 %v1953, %v1911
      %v1966 = vmul.f32 %v1954, %v1908
      %v1967 = vmul.f32 %v1955, %v1905
      %v1968 = vmul.f32 %v1956, %v1902
      %v1969 = vadd.f32 %v1864, %v1957
      %v1970 = vadd.f32 %v1865, %v1958
      %v1971 = vadd.f32 %v1866, %v1959
      %v1972 = vadd.f32 %v1867, %v1960
      %v1973 = vadd.f32 %v1868, %v1961
      %v1974 = vadd.f32 %v1869, %v1962
      %v1975 = vadd.f32 %v1870, %v1963
      %v1976 = vadd.f32 %v1871, %v1964
      %v1977 = vadd.f32 %v1872, %v1965
      %v1978 = vadd.f32 %v1873, %v1966
      %v1979 = vadd.f32 %v1874, %v1967
      %v1980 = vadd.f32 %v1875, %v1968
      %1981 = vrot.lane.b32.xlu0 %v1347, 63
      %v1982 = vpop.permute.xlu0 %1981
      %1983 = vrot.lane.b32.xlu0 %v1353, 63
      %v1984 = vpop.permute.xlu0 %1983
      %1985 = vrot.lane.b32.xlu0 %v1359, 63
      %v1986 = vpop.permute.xlu0 %1985
      %1987 = vrot.lane.b32.xlu0 %v1349, 63
      %v1988 = vpop.permute.xlu0 %1987
      %1989 = vrot.lane.b32.xlu0 %v1355, 63
      %v1990 = vpop.permute.xlu0 %1989
      %1991 = vrot.lane.b32.xlu0 %v1361, 63
      %v1992 = vpop.permute.xlu0 %1991
      %1993 = vrot.lane.b32.xlu0 %v1430, 63
      %v1994 = vpop.permute.xlu0 %1993
      %1995 = vrot.lane.b32.xlu0 %v1436, 63
      %v1996 = vpop.permute.xlu0 %1995
      %1997 = vrot.lane.b32.xlu0 %v1442, 63
      %v1998 = vpop.permute.xlu0 %1997
      %1999 = vrot.lane.b32.xlu0 %v1432, 63
      %v2000 = vpop.permute.xlu0 %1999
      %2001 = vrot.lane.b32.xlu0 %v1438, 63
      %v2002 = vpop.permute.xlu0 %2001
      %2003 = vrot.lane.b32.xlu0 %v1444, 63
      %v2004 = vpop.permute.xlu0 %2003
      %vm2005 = vcmp.lt.s32.totalorder %v977, 63
      %v2006 = vsel %vm2005, %v1994, %v2000
      %v2007 = vsel %vm2005, %v1996, %v2002
      %v2008 = vsel %vm2005, %v1998, %v2004
      %v2009 = vsel %vm2005, %v1988, %v1994
      %v2010 = vsel %vm2005, %v1990, %v1996
      %v2011 = vsel %vm2005, %v1992, %v1998
      %v2012 = vsel %vm2005, %v1982, %v1988
      %v2013 = vsel %vm2005, %v1984, %v1990
      %v2014 = vsel %vm2005, %v1986, %v1992
      %v2015 = vsel %vm2005, %v2000, %v1982
      %v2016 = vsel %vm2005, %v2002, %v1984
      %v2017 = vsel %vm2005, %v2004, %v1986
      %2018 = vset.pattern.permute.xlu0 5
      %2019 = vperm.xlu0 %2018, %v1446
      %v2020 = vpop.permute.xlu0 %2019
      %2022 = vset.pattern.permute.xlu0 5
      %2023 = vperm.xlu0 %2022, %v1447
      %v2024 = vpop.permute.xlu0 %2023
      %2026 = vset.pattern.permute.xlu0 5
      %2027 = vperm.xlu0 %2026, %v1448
      %v2028 = vpop.permute.xlu0 %2027
      %v2031 = vlaneseq
      %v2032 = vshrl.u32 %v2031, 7
      %v2033 = vsub.s32 0, %v2032
      %v2034 = vrot.slane %v860, %v2033
      %v2035 = vlaneseq
      %v2036 = vshrl.u32 %v2035, 7
      %v2037 = vsub.s32 1, %v2036
      %v2038 = vrot.slane %v860, %v2037
      %v2039 = vlaneseq
      %v2040 = vshrl.u32 %v2039, 7
      %v2041 = vsub.s32 2, %v2040
      %v2042 = vrot.slane %v860, %v2041
      %v2043 = vlaneseq
      %v2044 = vshrl.u32 %v2043, 7
      %v2045 = vsub.s32 3, %v2044
      %v2046 = vrot.slane %v860, %v2045
      %v2051 = vmul.f32 %v2020, %v2034
      %v2052 = vmul.f32 %v2020, %v2038
      %v2053 = vmul.f32 %v2020, %v2042
      %v2054 = vmul.f32 %v2020, %v2046
      %v2055 = vmul.f32 %v2024, %v2034
      %v2056 = vmul.f32 %v2024, %v2038
      %v2057 = vmul.f32 %v2024, %v2042
      %v2058 = vmul.f32 %v2024, %v2046
      %v2059 = vmul.f32 %v2028, %v2034
      %v2060 = vmul.f32 %v2028, %v2038
      %v2061 = vmul.f32 %v2028, %v2042
      %v2062 = vmul.f32 %v2028, %v2046
      %v2063 = vmul.f32 %v2051, %v2015
      %v2064 = vmul.f32 %v2052, %v2012
      %v2065 = vmul.f32 %v2053, %v2009
      %v2066 = vmul.f32 %v2054, %v2006
      %v2067 = vmul.f32 %v2055, %v2016
      %v2068 = vmul.f32 %v2056, %v2013
      %v2069 = vmul.f32 %v2057, %v2010
      %v2070 = vmul.f32 %v2058, %v2007
      %v2071 = vmul.f32 %v2059, %v2017
      %v2072 = vmul.f32 %v2060, %v2014
      %v2073 = vmul.f32 %v2061, %v2011
      %v2074 = vmul.f32 %v2062, %v2008
      %v2075 = vadd.f32 %v1969, %v2063
      %v2076 = vadd.f32 %v1970, %v2064
      %v2077 = vadd.f32 %v1971, %v2065
      %v2078 = vadd.f32 %v1972, %v2066
      %v2079 = vadd.f32 %v1973, %v2067
      %v2080 = vadd.f32 %v1974, %v2068
      %v2081 = vadd.f32 %v1975, %v2069
      %v2082 = vadd.f32 %v1976, %v2070
      %v2083 = vadd.f32 %v1977, %v2071
      %v2084 = vadd.f32 %v1978, %v2072
      %v2085 = vadd.f32 %v1979, %v2073
      %v2086 = vadd.f32 %v1980, %v2074
      %2087 = vrot.lane.b32.xlu0 %v1347, 57
      %v2088 = vpop.permute.xlu0 %2087
      %2089 = vrot.lane.b32.xlu0 %v1353, 57
      %v2090 = vpop.permute.xlu0 %2089
      %2091 = vrot.lane.b32.xlu0 %v1359, 57
      %v2092 = vpop.permute.xlu0 %2091
      %2093 = vrot.lane.b32.xlu0 %v1349, 57
      %v2094 = vpop.permute.xlu0 %2093
      %2095 = vrot.lane.b32.xlu0 %v1355, 57
      %v2096 = vpop.permute.xlu0 %2095
      %2097 = vrot.lane.b32.xlu0 %v1361, 57
      %v2098 = vpop.permute.xlu0 %2097
      %2099 = vrot.lane.b32.xlu0 %v1430, 57
      %v2100 = vpop.permute.xlu0 %2099
      %2101 = vrot.lane.b32.xlu0 %v1436, 57
      %v2102 = vpop.permute.xlu0 %2101
      %2103 = vrot.lane.b32.xlu0 %v1442, 57
      %v2104 = vpop.permute.xlu0 %2103
      %2105 = vrot.lane.b32.xlu0 %v1432, 57
      %v2106 = vpop.permute.xlu0 %2105
      %2107 = vrot.lane.b32.xlu0 %v1438, 57
      %v2108 = vpop.permute.xlu0 %2107
      %2109 = vrot.lane.b32.xlu0 %v1444, 57
      %v2110 = vpop.permute.xlu0 %2109
      %vm2111 = vcmp.lt.s32.totalorder %v977, 57
      %v2112 = vsel %vm2111, %v2100, %v2106
      %v2113 = vsel %vm2111, %v2102, %v2108
      %v2114 = vsel %vm2111, %v2104, %v2110
      %v2115 = vsel %vm2111, %v2094, %v2100
      %v2116 = vsel %vm2111, %v2096, %v2102
      %v2117 = vsel %vm2111, %v2098, %v2104
      %v2118 = vsel %vm2111, %v2088, %v2094
      %v2119 = vsel %vm2111, %v2090, %v2096
      %v2120 = vsel %vm2111, %v2092, %v2098
      %v2121 = vsel %vm2111, %v2106, %v2088
      %v2122 = vsel %vm2111, %v2108, %v2090
      %v2123 = vsel %vm2111, %v2110, %v2092
      %2124 = vset.pattern.permute.xlu0 6
      %2125 = vperm.xlu0 %2124, %v1446
      %v2126 = vpop.permute.xlu0 %2125
      %2128 = vset.pattern.permute.xlu0 6
      %2129 = vperm.xlu0 %2128, %v1447
      %v2130 = vpop.permute.xlu0 %2129
      %2132 = vset.pattern.permute.xlu0 6
      %2133 = vperm.xlu0 %2132, %v1448
      %v2134 = vpop.permute.xlu0 %2133
      %v2137 = vlaneseq
      %v2138 = vshrl.u32 %v2137, 7
      %v2139 = vsub.s32 0, %v2138
      %v2140 = vrot.slane %v862, %v2139
      %v2141 = vlaneseq
      %v2142 = vshrl.u32 %v2141, 7
      %v2143 = vsub.s32 1, %v2142
      %v2144 = vrot.slane %v862, %v2143
      %v2145 = vlaneseq
      %v2146 = vshrl.u32 %v2145, 7
      %v2147 = vsub.s32 2, %v2146
      %v2148 = vrot.slane %v862, %v2147
      %v2149 = vlaneseq
      %v2150 = vshrl.u32 %v2149, 7
      %v2151 = vsub.s32 3, %v2150
      %v2152 = vrot.slane %v862, %v2151
      %v2157 = vmul.f32 %v2126, %v2140
      %v2158 = vmul.f32 %v2126, %v2144
      %v2159 = vmul.f32 %v2126, %v2148
      %v2160 = vmul.f32 %v2126, %v2152
      %v2161 = vmul.f32 %v2130, %v2140
      %v2162 = vmul.f32 %v2130, %v2144
      %v2163 = vmul.f32 %v2130, %v2148
      %v2164 = vmul.f32 %v2130, %v2152
      %v2165 = vmul.f32 %v2134, %v2140
      %v2166 = vmul.f32 %v2134, %v2144
      %v2167 = vmul.f32 %v2134, %v2148
      %v2168 = vmul.f32 %v2134, %v2152
      %v2169 = vmul.f32 %v2157, %v2121
      %v2170 = vmul.f32 %v2158, %v2118
      %v2171 = vmul.f32 %v2159, %v2115
      %v2172 = vmul.f32 %v2160, %v2112
      %v2173 = vmul.f32 %v2161, %v2122
      %v2174 = vmul.f32 %v2162, %v2119
      %v2175 = vmul.f32 %v2163, %v2116
      %v2176 = vmul.f32 %v2164, %v2113
      %v2177 = vmul.f32 %v2165, %v2123
      %v2178 = vmul.f32 %v2166, %v2120
      %v2179 = vmul.f32 %v2167, %v2117
      %v2180 = vmul.f32 %v2168, %v2114
      %v2181 = vadd.f32 %v2075, %v2169
      %v2182 = vadd.f32 %v2076, %v2170
      %v2183 = vadd.f32 %v2077, %v2171
      %v2184 = vadd.f32 %v2078, %v2172
      %v2185 = vadd.f32 %v2079, %v2173
      %v2186 = vadd.f32 %v2080, %v2174
      %v2187 = vadd.f32 %v2081, %v2175
      %v2188 = vadd.f32 %v2082, %v2176
      %v2189 = vadd.f32 %v2083, %v2177
      %v2190 = vadd.f32 %v2084, %v2178
      %v2191 = vadd.f32 %v2085, %v2179
      %v2192 = vadd.f32 %v2086, %v2180
      %2193 = vrot.lane.b32.xlu0 %v1347, 56
      %v2194 = vpop.permute.xlu0 %2193
      %2195 = vrot.lane.b32.xlu0 %v1353, 56
      %v2196 = vpop.permute.xlu0 %2195
      %2197 = vrot.lane.b32.xlu0 %v1359, 56
      %v2198 = vpop.permute.xlu0 %2197
      %2199 = vrot.lane.b32.xlu0 %v1349, 56
      %v2200 = vpop.permute.xlu0 %2199
      %2201 = vrot.lane.b32.xlu0 %v1355, 56
      %v2202 = vpop.permute.xlu0 %2201
      %2203 = vrot.lane.b32.xlu0 %v1361, 56
      %v2204 = vpop.permute.xlu0 %2203
      %2205 = vrot.lane.b32.xlu0 %v1430, 56
      %v2206 = vpop.permute.xlu0 %2205
      %2207 = vrot.lane.b32.xlu0 %v1436, 56
      %v2208 = vpop.permute.xlu0 %2207
      %2209 = vrot.lane.b32.xlu0 %v1442, 56
      %v2210 = vpop.permute.xlu0 %2209
      %2211 = vrot.lane.b32.xlu0 %v1432, 56
      %v2212 = vpop.permute.xlu0 %2211
      %2213 = vrot.lane.b32.xlu0 %v1438, 56
      %v2214 = vpop.permute.xlu0 %2213
      %2215 = vrot.lane.b32.xlu0 %v1444, 56
      %v2216 = vpop.permute.xlu0 %2215
      %vm2217 = vcmp.lt.s32.totalorder %v977, 56
      %v2218 = vsel %vm2217, %v2206, %v2212
      %v2219 = vsel %vm2217, %v2208, %v2214
      %v2220 = vsel %vm2217, %v2210, %v2216
      %v2221 = vsel %vm2217, %v2200, %v2206
      %v2222 = vsel %vm2217, %v2202, %v2208
      %v2223 = vsel %vm2217, %v2204, %v2210
      %v2224 = vsel %vm2217, %v2194, %v2200
      %v2225 = vsel %vm2217, %v2196, %v2202
      %v2226 = vsel %vm2217, %v2198, %v2204
      %v2227 = vsel %vm2217, %v2212, %v2194
      %v2228 = vsel %vm2217, %v2214, %v2196
      %v2229 = vsel %vm2217, %v2216, %v2198
      %2230 = vset.pattern.permute.xlu0 7
      %2231 = vperm.xlu0 %2230, %v1446
      %v2232 = vpop.permute.xlu0 %2231
      %2234 = vset.pattern.permute.xlu0 7
      %2235 = vperm.xlu0 %2234, %v1447
      %v2236 = vpop.permute.xlu0 %2235
      %2238 = vset.pattern.permute.xlu0 7
      %2239 = vperm.xlu0 %2238, %v1448
      %v2240 = vpop.permute.xlu0 %2239
      %v2243 = vlaneseq
      %v2244 = vshrl.u32 %v2243, 7
      %v2245 = vsub.s32 0, %v2244
      %v2246 = vrot.slane %v863, %v2245
      %v2247 = vlaneseq
      %v2248 = vshrl.u32 %v2247, 7
      %v2249 = vsub.s32 1, %v2248
      %v2250 = vrot.slane %v863, %v2249
      %v2251 = vlaneseq
      %v2252 = vshrl.u32 %v2251, 7
      %v2253 = vsub.s32 2, %v2252
      %v2254 = vrot.slane %v863, %v2253
      %v2255 = vlaneseq
      %v2256 = vshrl.u32 %v2255, 7
      %v2257 = vsub.s32 3, %v2256
      %v2258 = vrot.slane %v863, %v2257
      %v2263 = vmul.f32 %v2232, %v2246
      %v2264 = vmul.f32 %v2232, %v2250
      %v2265 = vmul.f32 %v2232, %v2254
      %v2266 = vmul.f32 %v2232, %v2258
      %v2267 = vmul.f32 %v2236, %v2246
      %v2268 = vmul.f32 %v2236, %v2250
      %v2269 = vmul.f32 %v2236, %v2254
      %v2270 = vmul.f32 %v2236, %v2258
      %v2271 = vmul.f32 %v2240, %v2246
      %v2272 = vmul.f32 %v2240, %v2250
      %v2273 = vmul.f32 %v2240, %v2254
      %v2274 = vmul.f32 %v2240, %v2258
      %v2275 = vmul.f32 %v2263, %v2227
      %v2276 = vmul.f32 %v2264, %v2224
      %v2277 = vmul.f32 %v2265, %v2221
      %v2278 = vmul.f32 %v2266, %v2218
      %v2279 = vmul.f32 %v2267, %v2228
      %v2280 = vmul.f32 %v2268, %v2225
      %v2281 = vmul.f32 %v2269, %v2222
      %v2282 = vmul.f32 %v2270, %v2219
      %v2283 = vmul.f32 %v2271, %v2229
      %v2284 = vmul.f32 %v2272, %v2226
      %v2285 = vmul.f32 %v2273, %v2223
      %v2286 = vmul.f32 %v2274, %v2220
      %v2287 = vadd.f32 %v2181, %v2275
      %v2288 = vadd.f32 %v2182, %v2276
      %v2289 = vadd.f32 %v2183, %v2277
      %v2290 = vadd.f32 %v2184, %v2278
      %v2291 = vadd.f32 %v2185, %v2279
      %v2292 = vadd.f32 %v2186, %v2280
      %v2293 = vadd.f32 %v2187, %v2281
      %v2294 = vadd.f32 %v2188, %v2282
      %v2295 = vadd.f32 %v2189, %v2283
      %v2296 = vadd.f32 %v2190, %v2284
      %v2297 = vadd.f32 %v2191, %v2285
      %v2298 = vadd.f32 %v2192, %v2286
      %2299 = vrot.lane.b32.xlu0 %v1347, 55
      %v2300 = vpop.permute.xlu0 %2299
      %2301 = vrot.lane.b32.xlu0 %v1353, 55
      %v2302 = vpop.permute.xlu0 %2301
      %2303 = vrot.lane.b32.xlu0 %v1359, 55
      %v2304 = vpop.permute.xlu0 %2303
      %2305 = vrot.lane.b32.xlu0 %v1349, 55
      %v2306 = vpop.permute.xlu0 %2305
      %2307 = vrot.lane.b32.xlu0 %v1355, 55
      %v2308 = vpop.permute.xlu0 %2307
      %2309 = vrot.lane.b32.xlu0 %v1361, 55
      %v2310 = vpop.permute.xlu0 %2309
      %2311 = vrot.lane.b32.xlu0 %v1430, 55
      %v2312 = vpop.permute.xlu0 %2311
      %2313 = vrot.lane.b32.xlu0 %v1436, 55
      %v2314 = vpop.permute.xlu0 %2313
      %2315 = vrot.lane.b32.xlu0 %v1442, 55
      %v2316 = vpop.permute.xlu0 %2315
      %2317 = vrot.lane.b32.xlu0 %v1432, 55
      %v2318 = vpop.permute.xlu0 %2317
      %2319 = vrot.lane.b32.xlu0 %v1438, 55
      %v2320 = vpop.permute.xlu0 %2319
      %2321 = vrot.lane.b32.xlu0 %v1444, 55
      %v2322 = vpop.permute.xlu0 %2321
      %vm2323 = vcmp.lt.s32.totalorder %v977, 55
      %v2324 = vsel %vm2323, %v2312, %v2318
      %v2325 = vsel %vm2323, %v2314, %v2320
      %v2326 = vsel %vm2323, %v2316, %v2322
      %v2327 = vsel %vm2323, %v2306, %v2312
      %v2328 = vsel %vm2323, %v2308, %v2314
      %v2329 = vsel %vm2323, %v2310, %v2316
      %v2330 = vsel %vm2323, %v2300, %v2306
      %v2331 = vsel %vm2323, %v2302, %v2308
      %v2332 = vsel %vm2323, %v2304, %v2310
      %v2333 = vsel %vm2323, %v2318, %v2300
      %v2334 = vsel %vm2323, %v2320, %v2302
      %v2335 = vsel %vm2323, %v2322, %v2304
      %2336 = vset.pattern.permute.xlu0 8
      %2337 = vperm.xlu0 %2336, %v1446
      %v2338 = vpop.permute.xlu0 %2337
      %2340 = vset.pattern.permute.xlu0 8
      %2341 = vperm.xlu0 %2340, %v1447
      %v2342 = vpop.permute.xlu0 %2341
      %2344 = vset.pattern.permute.xlu0 8
      %2345 = vperm.xlu0 %2344, %v1448
      %v2346 = vpop.permute.xlu0 %2345
      %v2349 = vlaneseq
      %v2350 = vshrl.u32 %v2349, 7
      %v2351 = vsub.s32 0, %v2350
      %v2352 = vrot.slane %v864, %v2351
      %v2353 = vlaneseq
      %v2354 = vshrl.u32 %v2353, 7
      %v2355 = vsub.s32 1, %v2354
      %v2356 = vrot.slane %v864, %v2355
      %v2357 = vlaneseq
      %v2358 = vshrl.u32 %v2357, 7
      %v2359 = vsub.s32 2, %v2358
      %v2360 = vrot.slane %v864, %v2359
      %v2361 = vlaneseq
      %v2362 = vshrl.u32 %v2361, 7
      %v2363 = vsub.s32 3, %v2362
      %v2364 = vrot.slane %v864, %v2363
      %v2369 = vmul.f32 %v2338, %v2352
      %v2370 = vmul.f32 %v2338, %v2356
      %v2371 = vmul.f32 %v2338, %v2360
      %v2372 = vmul.f32 %v2338, %v2364
      %v2373 = vmul.f32 %v2342, %v2352
      %v2374 = vmul.f32 %v2342, %v2356
      %v2375 = vmul.f32 %v2342, %v2360
      %v2376 = vmul.f32 %v2342, %v2364
      %v2377 = vmul.f32 %v2346, %v2352
      %v2378 = vmul.f32 %v2346, %v2356
      %v2379 = vmul.f32 %v2346, %v2360
      %v2380 = vmul.f32 %v2346, %v2364
      %v2381 = vmul.f32 %v2369, %v2333
      %v2382 = vmul.f32 %v2370, %v2330
      %v2383 = vmul.f32 %v2371, %v2327
      %v2384 = vmul.f32 %v2372, %v2324
      %v2385 = vmul.f32 %v2373, %v2334
      %v2386 = vmul.f32 %v2374, %v2331
      %v2387 = vmul.f32 %v2375, %v2328
      %v2388 = vmul.f32 %v2376, %v2325
      %v2389 = vmul.f32 %v2377, %v2335
      %v2390 = vmul.f32 %v2378, %v2332
      %v2391 = vmul.f32 %v2379, %v2329
      %v2392 = vmul.f32 %v2380, %v2326
      %v2393 = vadd.f32 %v2287, %v2381
      %v2394 = vadd.f32 %v2288, %v2382
      %v2395 = vadd.f32 %v2289, %v2383
      %v2396 = vadd.f32 %v2290, %v2384
      %v2397 = vadd.f32 %v2291, %v2385
      %v2398 = vadd.f32 %v2292, %v2386
      %v2399 = vadd.f32 %v2293, %v2387
      %v2400 = vadd.f32 %v2294, %v2388
      %v2401 = vadd.f32 %v2295, %v2389
      %v2402 = vadd.f32 %v2296, %v2390
      %v2403 = vadd.f32 %v2297, %v2391
      %v2404 = vadd.f32 %v2298, %v2392
      %2405 = vrot.lane.b32.xlu0 %v1347, 9
      %v2406 = vpop.permute.xlu0 %2405
      %2407 = vrot.lane.b32.xlu0 %v1353, 9
      %v2408 = vpop.permute.xlu0 %2407
      %2409 = vrot.lane.b32.xlu0 %v1359, 9
      %v2410 = vpop.permute.xlu0 %2409
      %2411 = vrot.lane.b32.xlu0 %v1349, 9
      %v2412 = vpop.permute.xlu0 %2411
      %2413 = vrot.lane.b32.xlu0 %v1355, 9
      %v2414 = vpop.permute.xlu0 %2413
      %2415 = vrot.lane.b32.xlu0 %v1361, 9
      %v2416 = vpop.permute.xlu0 %2415
      %2417 = vrot.lane.b32.xlu0 %v1430, 9
      %v2418 = vpop.permute.xlu0 %2417
      %2419 = vrot.lane.b32.xlu0 %v1436, 9
      %v2420 = vpop.permute.xlu0 %2419
      %2421 = vrot.lane.b32.xlu0 %v1442, 9
      %v2422 = vpop.permute.xlu0 %2421
      %2423 = vrot.lane.b32.xlu0 %v1432, 9
      %v2424 = vpop.permute.xlu0 %2423
      %2425 = vrot.lane.b32.xlu0 %v1438, 9
      %v2426 = vpop.permute.xlu0 %2425
      %2427 = vrot.lane.b32.xlu0 %v1444, 9
      %v2428 = vpop.permute.xlu0 %2427
      %vm2429 = vcmp.lt.s32.totalorder %v977, 9
      %v2430 = vsel %vm2429, %v2418, %v2424
      %v2431 = vsel %vm2429, %v2420, %v2426
      %v2432 = vsel %vm2429, %v2422, %v2428
      %v2433 = vsel %vm2429, %v2412, %v2418
      %v2434 = vsel %vm2429, %v2414, %v2420
      %v2435 = vsel %vm2429, %v2416, %v2422
      %v2436 = vsel %vm2429, %v2406, %v2412
      %v2437 = vsel %vm2429, %v2408, %v2414
      %v2438 = vsel %vm2429, %v2410, %v2416
      %v2439 = vsel %vm2429, %v2424, %v2406
      %v2440 = vsel %vm2429, %v2426, %v2408
      %v2441 = vsel %vm2429, %v2428, %v2410
      %2442 = vset.pattern.permute.xlu0 9
      %2443 = vperm.xlu0 %2442, %v1446
      %v2444 = vpop.permute.xlu0 %2443
      %2446 = vset.pattern.permute.xlu0 9
      %2447 = vperm.xlu0 %2446, %v1447
      %v2448 = vpop.permute.xlu0 %2447
      %2450 = vset.pattern.permute.xlu0 9
      %2451 = vperm.xlu0 %2450, %v1448
      %v2452 = vpop.permute.xlu0 %2451
      %v2455 = vlaneseq
      %v2456 = vshrl.u32 %v2455, 7
      %v2457 = vsub.s32 0, %v2456
      %v2458 = vrot.slane %v866, %v2457
      %v2459 = vlaneseq
      %v2460 = vshrl.u32 %v2459, 7
      %v2461 = vsub.s32 1, %v2460
      %v2462 = vrot.slane %v866, %v2461
      %v2463 = vlaneseq
      %v2464 = vshrl.u32 %v2463, 7
      %v2465 = vsub.s32 2, %v2464
      %v2466 = vrot.slane %v866, %v2465
      %v2467 = vlaneseq
      %v2468 = vshrl.u32 %v2467, 7
      %v2469 = vsub.s32 3, %v2468
      %v2470 = vrot.slane %v866, %v2469
      %v2475 = vmul.f32 %v2444, %v2458
      %v2476 = vmul.f32 %v2444, %v2462
      %v2477 = vmul.f32 %v2444, %v2466
      %v2478 = vmul.f32 %v2444, %v2470
      %v2479 = vmul.f32 %v2448, %v2458
      %v2480 = vmul.f32 %v2448, %v2462
      %v2481 = vmul.f32 %v2448, %v2466
      %v2482 = vmul.f32 %v2448, %v2470
      %v2483 = vmul.f32 %v2452, %v2458
      %v2484 = vmul.f32 %v2452, %v2462
      %v2485 = vmul.f32 %v2452, %v2466
      %v2486 = vmul.f32 %v2452, %v2470
      %v2487 = vmul.f32 %v2475, %v2439
      %v2488 = vmul.f32 %v2476, %v2436
      %v2489 = vmul.f32 %v2477, %v2433
      %v2490 = vmul.f32 %v2478, %v2430
      %v2491 = vmul.f32 %v2479, %v2440
      %v2492 = vmul.f32 %v2480, %v2437
      %v2493 = vmul.f32 %v2481, %v2434
      %v2494 = vmul.f32 %v2482, %v2431
      %v2495 = vmul.f32 %v2483, %v2441
      %v2496 = vmul.f32 %v2484, %v2438
      %v2497 = vmul.f32 %v2485, %v2435
      %v2498 = vmul.f32 %v2486, %v2432
      %v2499 = vadd.f32 %v2393, %v2487
      %v2500 = vadd.f32 %v2394, %v2488
      %v2501 = vadd.f32 %v2395, %v2489
      %v2502 = vadd.f32 %v2396, %v2490
      %v2503 = vadd.f32 %v2397, %v2491
      %v2504 = vadd.f32 %v2398, %v2492
      %v2505 = vadd.f32 %v2399, %v2493
      %v2506 = vadd.f32 %v2400, %v2494
      %v2507 = vadd.f32 %v2401, %v2495
      %v2508 = vadd.f32 %v2402, %v2496
      %v2509 = vadd.f32 %v2403, %v2497
      %v2510 = vadd.f32 %v2404, %v2498
      %2511 = vrot.lane.b32.xlu0 %v1347, 8
      %v2512 = vpop.permute.xlu0 %2511
      %2513 = vrot.lane.b32.xlu0 %v1353, 8
      %v2514 = vpop.permute.xlu0 %2513
      %2515 = vrot.lane.b32.xlu0 %v1359, 8
      %v2516 = vpop.permute.xlu0 %2515
      %2517 = vrot.lane.b32.xlu0 %v1349, 8
      %v2518 = vpop.permute.xlu0 %2517
      %2519 = vrot.lane.b32.xlu0 %v1355, 8
      %v2520 = vpop.permute.xlu0 %2519
      %2521 = vrot.lane.b32.xlu0 %v1361, 8
      %v2522 = vpop.permute.xlu0 %2521
      %2523 = vrot.lane.b32.xlu0 %v1430, 8
      %v2524 = vpop.permute.xlu0 %2523
      %2525 = vrot.lane.b32.xlu0 %v1436, 8
      %v2526 = vpop.permute.xlu0 %2525
      %2527 = vrot.lane.b32.xlu0 %v1442, 8
      %v2528 = vpop.permute.xlu0 %2527
      %2529 = vrot.lane.b32.xlu0 %v1432, 8
      %v2530 = vpop.permute.xlu0 %2529
      %2531 = vrot.lane.b32.xlu0 %v1438, 8
      %v2532 = vpop.permute.xlu0 %2531
      %2533 = vrot.lane.b32.xlu0 %v1444, 8
      %v2534 = vpop.permute.xlu0 %2533
      %vm2535 = vcmp.lt.s32.totalorder %v977, 8
      %v2536 = vsel %vm2535, %v2524, %v2530
      %v2537 = vsel %vm2535, %v2526, %v2532
      %v2538 = vsel %vm2535, %v2528, %v2534
      %v2539 = vsel %vm2535, %v2518, %v2524
      %v2540 = vsel %vm2535, %v2520, %v2526
      %v2541 = vsel %vm2535, %v2522, %v2528
      %v2542 = vsel %vm2535, %v2512, %v2518
      %v2543 = vsel %vm2535, %v2514, %v2520
      %v2544 = vsel %vm2535, %v2516, %v2522
      %v2545 = vsel %vm2535, %v2530, %v2512
      %v2546 = vsel %vm2535, %v2532, %v2514
      %v2547 = vsel %vm2535, %v2534, %v2516
      %2548 = vset.pattern.permute.xlu0 10
      %2549 = vperm.xlu0 %2548, %v1446
      %v2550 = vpop.permute.xlu0 %2549
      %2552 = vset.pattern.permute.xlu0 10
      %2553 = vperm.xlu0 %2552, %v1447
      %v2554 = vpop.permute.xlu0 %2553
      %2556 = vset.pattern.permute.xlu0 10
      %2557 = vperm.xlu0 %2556, %v1448
      %v2558 = vpop.permute.xlu0 %2557
      %v2561 = vlaneseq
      %v2562 = vshrl.u32 %v2561, 7
      %v2563 = vsub.s32 0, %v2562
      %v2564 = vrot.slane %v867, %v2563
      %v2565 = vlaneseq
      %v2566 = vshrl.u32 %v2565, 7
      %v2567 = vsub.s32 1, %v2566
      %v2568 = vrot.slane %v867, %v2567
      %v2569 = vlaneseq
      %v2570 = vshrl.u32 %v2569, 7
      %v2571 = vsub.s32 2, %v2570
      %v2572 = vrot.slane %v867, %v2571
      %v2573 = vlaneseq
      %v2574 = vshrl.u32 %v2573, 7
      %v2575 = vsub.s32 3, %v2574
      %v2576 = vrot.slane %v867, %v2575
      %v2581 = vmul.f32 %v2550, %v2564
      %v2582 = vmul.f32 %v2550, %v2568
      %v2583 = vmul.f32 %v2550, %v2572
      %v2584 = vmul.f32 %v2550, %v2576
      %v2585 = vmul.f32 %v2554, %v2564
      %v2586 = vmul.f32 %v2554, %v2568
      %v2587 = vmul.f32 %v2554, %v2572
      %v2588 = vmul.f32 %v2554, %v2576
      %v2589 = vmul.f32 %v2558, %v2564
      %v2590 = vmul.f32 %v2558, %v2568
      %v2591 = vmul.f32 %v2558, %v2572
      %v2592 = vmul.f32 %v2558, %v2576
      %v2593 = vmul.f32 %v2581, %v2545
      %v2594 = vmul.f32 %v2582, %v2542
      %v2595 = vmul.f32 %v2583, %v2539
      %v2596 = vmul.f32 %v2584, %v2536
      %v2597 = vmul.f32 %v2585, %v2546
      %v2598 = vmul.f32 %v2586, %v2543
      %v2599 = vmul.f32 %v2587, %v2540
      %v2600 = vmul.f32 %v2588, %v2537
      %v2601 = vmul.f32 %v2589, %v2547
      %v2602 = vmul.f32 %v2590, %v2544
      %v2603 = vmul.f32 %v2591, %v2541
      %v2604 = vmul.f32 %v2592, %v2538
      %v2605 = vadd.f32 %v2499, %v2593
      %v2606 = vadd.f32 %v2500, %v2594
      %v2607 = vadd.f32 %v2501, %v2595
      %v2608 = vadd.f32 %v2502, %v2596
      %v2609 = vadd.f32 %v2503, %v2597
      %v2610 = vadd.f32 %v2504, %v2598
      %v2611 = vadd.f32 %v2505, %v2599
      %v2612 = vadd.f32 %v2506, %v2600
      %v2613 = vadd.f32 %v2507, %v2601
      %v2614 = vadd.f32 %v2508, %v2602
      %v2615 = vadd.f32 %v2509, %v2603
      %v2616 = vadd.f32 %v2510, %v2604
      %2617 = vrot.lane.b32.xlu0 %v1347, 7
      %v2618 = vpop.permute.xlu0 %2617
      %2619 = vrot.lane.b32.xlu0 %v1353, 7
      %v2620 = vpop.permute.xlu0 %2619
      %2621 = vrot.lane.b32.xlu0 %v1359, 7
      %v2622 = vpop.permute.xlu0 %2621
      %2623 = vrot.lane.b32.xlu0 %v1349, 7
      %v2624 = vpop.permute.xlu0 %2623
      %2625 = vrot.lane.b32.xlu0 %v1355, 7
      %v2626 = vpop.permute.xlu0 %2625
      %2627 = vrot.lane.b32.xlu0 %v1361, 7
      %v2628 = vpop.permute.xlu0 %2627
      %2629 = vrot.lane.b32.xlu0 %v1430, 7
      %v2630 = vpop.permute.xlu0 %2629
      %2631 = vrot.lane.b32.xlu0 %v1436, 7
      %v2632 = vpop.permute.xlu0 %2631
      %2633 = vrot.lane.b32.xlu0 %v1442, 7
      %v2634 = vpop.permute.xlu0 %2633
      %2635 = vrot.lane.b32.xlu0 %v1432, 7
      %v2636 = vpop.permute.xlu0 %2635
      %2637 = vrot.lane.b32.xlu0 %v1438, 7
      %v2638 = vpop.permute.xlu0 %2637
      %2639 = vrot.lane.b32.xlu0 %v1444, 7
      %v2640 = vpop.permute.xlu0 %2639
      %vm2641 = vcmp.lt.s32.totalorder %v977, 7
      %v2642 = vsel %vm2641, %v2630, %v2636
      %v2643 = vsel %vm2641, %v2632, %v2638
      %v2644 = vsel %vm2641, %v2634, %v2640
      %v2645 = vsel %vm2641, %v2624, %v2630
      %v2646 = vsel %vm2641, %v2626, %v2632
      %v2647 = vsel %vm2641, %v2628, %v2634
      %v2648 = vsel %vm2641, %v2618, %v2624
      %v2649 = vsel %vm2641, %v2620, %v2626
      %v2650 = vsel %vm2641, %v2622, %v2628
      %v2651 = vsel %vm2641, %v2636, %v2618
      %v2652 = vsel %vm2641, %v2638, %v2620
      %v2653 = vsel %vm2641, %v2640, %v2622
      %2654 = vset.pattern.permute.xlu0 11
      %2655 = vperm.xlu0 %2654, %v1446
      %v2656 = vpop.permute.xlu0 %2655
      %2658 = vset.pattern.permute.xlu0 11
      %2659 = vperm.xlu0 %2658, %v1447
      %v2660 = vpop.permute.xlu0 %2659
      %2662 = vset.pattern.permute.xlu0 11
      %2663 = vperm.xlu0 %2662, %v1448
      %v2664 = vpop.permute.xlu0 %2663
      %v2667 = vlaneseq
      %v2668 = vshrl.u32 %v2667, 7
      %v2669 = vsub.s32 0, %v2668
      %v2670 = vrot.slane %v868, %v2669
      %v2671 = vlaneseq
      %v2672 = vshrl.u32 %v2671, 7
      %v2673 = vsub.s32 1, %v2672
      %v2674 = vrot.slane %v868, %v2673
      %v2675 = vlaneseq
      %v2676 = vshrl.u32 %v2675, 7
      %v2677 = vsub.s32 2, %v2676
      %v2678 = vrot.slane %v868, %v2677
      %v2679 = vlaneseq
      %v2680 = vshrl.u32 %v2679, 7
      %v2681 = vsub.s32 3, %v2680
      %v2682 = vrot.slane %v868, %v2681
      %v2687 = vmul.f32 %v2656, %v2670
      %v2688 = vmul.f32 %v2656, %v2674
      %v2689 = vmul.f32 %v2656, %v2678
      %v2690 = vmul.f32 %v2656, %v2682
      %v2691 = vmul.f32 %v2660, %v2670
      %v2692 = vmul.f32 %v2660, %v2674
      %v2693 = vmul.f32 %v2660, %v2678
      %v2694 = vmul.f32 %v2660, %v2682
      %v2695 = vmul.f32 %v2664, %v2670
      %v2696 = vmul.f32 %v2664, %v2674
      %v2697 = vmul.f32 %v2664, %v2678
      %v2698 = vmul.f32 %v2664, %v2682
      %v2699 = vmul.f32 %v2687, %v2651
      %v2700 = vmul.f32 %v2688, %v2648
      %v2701 = vmul.f32 %v2689, %v2645
      %v2702 = vmul.f32 %v2690, %v2642
      %v2703 = vmul.f32 %v2691, %v2652
      %v2704 = vmul.f32 %v2692, %v2649
      %v2705 = vmul.f32 %v2693, %v2646
      %v2706 = vmul.f32 %v2694, %v2643
      %v2707 = vmul.f32 %v2695, %v2653
      %v2708 = vmul.f32 %v2696, %v2650
      %v2709 = vmul.f32 %v2697, %v2647
      %v2710 = vmul.f32 %v2698, %v2644
      %v2711 = vadd.f32 %v2605, %v2699
      %v2712 = vadd.f32 %v2606, %v2700
      %v2713 = vadd.f32 %v2607, %v2701
      %v2714 = vadd.f32 %v2608, %v2702
      %v2715 = vadd.f32 %v2609, %v2703
      %v2716 = vadd.f32 %v2610, %v2704
      %v2717 = vadd.f32 %v2611, %v2705
      %v2718 = vadd.f32 %v2612, %v2706
      %v2719 = vadd.f32 %v2613, %v2707
      %v2720 = vadd.f32 %v2614, %v2708
      %v2721 = vadd.f32 %v2615, %v2709
      %v2722 = vadd.f32 %v2616, %v2710
      %2723 = vrot.lane.b32.xlu0 %v1347, 1
      %v2724 = vpop.permute.xlu0 %2723
      %2725 = vrot.lane.b32.xlu0 %v1353, 1
      %v2726 = vpop.permute.xlu0 %2725
      %2727 = vrot.lane.b32.xlu0 %v1359, 1
      %v2728 = vpop.permute.xlu0 %2727
      %2729 = vrot.lane.b32.xlu0 %v1349, 1
      %v2730 = vpop.permute.xlu0 %2729
      %2731 = vrot.lane.b32.xlu0 %v1355, 1
      %v2732 = vpop.permute.xlu0 %2731
      %2733 = vrot.lane.b32.xlu0 %v1361, 1
      %v2734 = vpop.permute.xlu0 %2733
      %2735 = vrot.lane.b32.xlu0 %v1430, 1
      %v2736 = vpop.permute.xlu0 %2735
      %2737 = vrot.lane.b32.xlu0 %v1436, 1
      %v2738 = vpop.permute.xlu0 %2737
      %2739 = vrot.lane.b32.xlu0 %v1442, 1
      %v2740 = vpop.permute.xlu0 %2739
      %2741 = vrot.lane.b32.xlu0 %v1432, 1
      %v2742 = vpop.permute.xlu0 %2741
      %2743 = vrot.lane.b32.xlu0 %v1438, 1
      %v2744 = vpop.permute.xlu0 %2743
      %2745 = vrot.lane.b32.xlu0 %v1444, 1
      %v2746 = vpop.permute.xlu0 %2745
      %vm2747 = vcmp.lt.s32.totalorder %v977, 1
      %v2748 = vsel %vm2747, %v2736, %v2742
      %v2749 = vsel %vm2747, %v2738, %v2744
      %v2750 = vsel %vm2747, %v2740, %v2746
      %v2751 = vsel %vm2747, %v2730, %v2736
      %v2752 = vsel %vm2747, %v2732, %v2738
      %v2753 = vsel %vm2747, %v2734, %v2740
      %v2754 = vsel %vm2747, %v2724, %v2730
      %v2755 = vsel %vm2747, %v2726, %v2732
      %v2756 = vsel %vm2747, %v2728, %v2734
      %v2757 = vsel %vm2747, %v2742, %v2724
      %v2758 = vsel %vm2747, %v2744, %v2726
      %v2759 = vsel %vm2747, %v2746, %v2728
      %2760 = vset.pattern.permute.xlu0 12
      %2761 = vperm.xlu0 %2760, %v1446
      %v2762 = vpop.permute.xlu0 %2761
      %2764 = vset.pattern.permute.xlu0 12
      %2765 = vperm.xlu0 %2764, %v1447
      %v2766 = vpop.permute.xlu0 %2765
      %2768 = vset.pattern.permute.xlu0 12
      %2769 = vperm.xlu0 %2768, %v1448
      %v2770 = vpop.permute.xlu0 %2769
      %v2773 = vlaneseq
      %v2774 = vshrl.u32 %v2773, 7
      %v2775 = vsub.s32 0, %v2774
      %v2776 = vrot.slane %v870, %v2775
      %v2777 = vlaneseq
      %v2778 = vshrl.u32 %v2777, 7
      %v2779 = vsub.s32 1, %v2778
      %v2780 = vrot.slane %v870, %v2779
      %v2781 = vlaneseq
      %v2782 = vshrl.u32 %v2781, 7
      %v2783 = vsub.s32 2, %v2782
      %v2784 = vrot.slane %v870, %v2783
      %v2785 = vlaneseq
      %v2786 = vshrl.u32 %v2785, 7
      %v2787 = vsub.s32 3, %v2786
      %v2788 = vrot.slane %v870, %v2787
      %v2793 = vmul.f32 %v2762, %v2776
      %v2794 = vmul.f32 %v2762, %v2780
      %v2795 = vmul.f32 %v2762, %v2784
      %v2796 = vmul.f32 %v2762, %v2788
      %v2797 = vmul.f32 %v2766, %v2776
      %v2798 = vmul.f32 %v2766, %v2780
      %v2799 = vmul.f32 %v2766, %v2784
      %v2800 = vmul.f32 %v2766, %v2788
      %v2801 = vmul.f32 %v2770, %v2776
      %v2802 = vmul.f32 %v2770, %v2780
      %v2803 = vmul.f32 %v2770, %v2784
      %v2804 = vmul.f32 %v2770, %v2788
      %v2805 = vmul.f32 %v2793, %v2757
      %v2806 = vmul.f32 %v2794, %v2754
      %v2807 = vmul.f32 %v2795, %v2751
      %v2808 = vmul.f32 %v2796, %v2748
      %v2809 = vmul.f32 %v2797, %v2758
      %v2810 = vmul.f32 %v2798, %v2755
      %v2811 = vmul.f32 %v2799, %v2752
      %v2812 = vmul.f32 %v2800, %v2749
      %v2813 = vmul.f32 %v2801, %v2759
      %v2814 = vmul.f32 %v2802, %v2756
      %v2815 = vmul.f32 %v2803, %v2753
      %v2816 = vmul.f32 %v2804, %v2750
      %v2817 = vadd.f32 %v2711, %v2805
      %v2818 = vadd.f32 %v2712, %v2806
      %v2819 = vadd.f32 %v2713, %v2807
      %v2820 = vadd.f32 %v2714, %v2808
      %v2821 = vadd.f32 %v2715, %v2809
      %v2822 = vadd.f32 %v2716, %v2810
      %v2823 = vadd.f32 %v2717, %v2811
      %v2824 = vadd.f32 %v2718, %v2812
      %v2825 = vadd.f32 %v2719, %v2813
      %v2826 = vadd.f32 %v2720, %v2814
      %v2827 = vadd.f32 %v2721, %v2815
      %v2828 = vadd.f32 %v2722, %v2816
      %2829 = vset.pattern.permute.xlu0 13
      %2830 = vperm.xlu0 %2829, %v1446
      %v2831 = vpop.permute.xlu0 %2830
      %2833 = vset.pattern.permute.xlu0 13
      %2834 = vperm.xlu0 %2833, %v1447
      %v2835 = vpop.permute.xlu0 %2834
      %2837 = vset.pattern.permute.xlu0 13
      %2838 = vperm.xlu0 %2837, %v1448
      %v2839 = vpop.permute.xlu0 %2838
      %v2842 = vlaneseq
      %v2843 = vshrl.u32 %v2842, 7
      %v2844 = vsub.s32 0, %v2843
      %v2845 = vrot.slane %v871, %v2844
      %v2846 = vlaneseq
      %v2847 = vshrl.u32 %v2846, 7
      %v2848 = vsub.s32 1, %v2847
      %v2849 = vrot.slane %v871, %v2848
      %v2850 = vlaneseq
      %v2851 = vshrl.u32 %v2850, 7
      %v2852 = vsub.s32 2, %v2851
      %v2853 = vrot.slane %v871, %v2852
      %v2854 = vlaneseq
      %v2855 = vshrl.u32 %v2854, 7
      %v2856 = vsub.s32 3, %v2855
      %v2857 = vrot.slane %v871, %v2856
      %v2862 = vmul.f32 %v2831, %v2845
      %v2863 = vmul.f32 %v2831, %v2849
      %v2864 = vmul.f32 %v2831, %v2853
      %v2865 = vmul.f32 %v2831, %v2857
      %v2866 = vmul.f32 %v2835, %v2845
      %v2867 = vmul.f32 %v2835, %v2849
      %v2868 = vmul.f32 %v2835, %v2853
      %v2869 = vmul.f32 %v2835, %v2857
      %v2870 = vmul.f32 %v2839, %v2845
      %v2871 = vmul.f32 %v2839, %v2849
      %v2872 = vmul.f32 %v2839, %v2853
      %v2873 = vmul.f32 %v2839, %v2857
      %v2874 = vmul.f32 %v2862, %v1347
      %v2875 = vmul.f32 %v2863, %v1349
      %v2876 = vmul.f32 %v2864, %v1430
      %v2877 = vmul.f32 %v2865, %v1432
      %v2878 = vmul.f32 %v2866, %v1353
      %v2879 = vmul.f32 %v2867, %v1355
      %v2880 = vmul.f32 %v2868, %v1436
      %v2881 = vmul.f32 %v2869, %v1438
      %v2882 = vmul.f32 %v2870, %v1359
      %v2883 = vmul.f32 %v2871, %v1361
      %v2884 = vmul.f32 %v2872, %v1442
      %v2885 = vmul.f32 %v2873, %v1444
      %v2886 = vadd.f32 %v2817, %v2874
      %v2887 = vadd.f32 %v2818, %v2875
      %v2888 = vadd.f32 %v2819, %v2876
      %v2889 = vadd.f32 %v2820, %v2877
      %v2890 = vadd.f32 %v2821, %v2878
      %v2891 = vadd.f32 %v2822, %v2879
      %v2892 = vadd.f32 %v2823, %v2880
      %v2893 = vadd.f32 %v2824, %v2881
      %v2894 = vadd.f32 %v2825, %v2882
      %v2895 = vadd.f32 %v2826, %v2883
      %v2896 = vadd.f32 %v2827, %v2884
      %v2897 = vadd.f32 %v2828, %v2885
      %2898 = vrot.lane.b32.xlu0 %v1347, 127
      %v2899 = vpop.permute.xlu0 %2898
      %2900 = vrot.lane.b32.xlu0 %v1353, 127
      %v2901 = vpop.permute.xlu0 %2900
      %2902 = vrot.lane.b32.xlu0 %v1359, 127
      %v2903 = vpop.permute.xlu0 %2902
      %2904 = vrot.lane.b32.xlu0 %v1349, 127
      %v2905 = vpop.permute.xlu0 %2904
      %2906 = vrot.lane.b32.xlu0 %v1355, 127
      %v2907 = vpop.permute.xlu0 %2906
      %2908 = vrot.lane.b32.xlu0 %v1361, 127
      %v2909 = vpop.permute.xlu0 %2908
      %2910 = vrot.lane.b32.xlu0 %v1430, 127
      %v2911 = vpop.permute.xlu0 %2910
      %2912 = vrot.lane.b32.xlu0 %v1436, 127
      %v2913 = vpop.permute.xlu0 %2912
      %2914 = vrot.lane.b32.xlu0 %v1442, 127
      %v2915 = vpop.permute.xlu0 %2914
      %2916 = vrot.lane.b32.xlu0 %v1432, 127
      %v2917 = vpop.permute.xlu0 %2916
      %2918 = vrot.lane.b32.xlu0 %v1438, 127
      %v2919 = vpop.permute.xlu0 %2918
      %2920 = vrot.lane.b32.xlu0 %v1444, 127
      %v2921 = vpop.permute.xlu0 %2920
      %vm2922 = vcmp.lt.s32.totalorder %v977, 127
      %v2923 = vsel %vm2922, %v2911, %v2917
      %v2924 = vsel %vm2922, %v2913, %v2919
      %v2925 = vsel %vm2922, %v2915, %v2921
      %v2926 = vsel %vm2922, %v2905, %v2911
      %v2927 = vsel %vm2922, %v2907, %v2913
      %v2928 = vsel %vm2922, %v2909, %v2915
      %v2929 = vsel %vm2922, %v2899, %v2905
      %v2930 = vsel %vm2922, %v2901, %v2907
      %v2931 = vsel %vm2922, %v2903, %v2909
      %v2932 = vsel %vm2922, %v2917, %v2899
      %v2933 = vsel %vm2922, %v2919, %v2901
      %v2934 = vsel %vm2922, %v2921, %v2903
      %2935 = vset.pattern.permute.xlu0 14
      %2936 = vperm.xlu0 %2935, %v1446
      %v2937 = vpop.permute.xlu0 %2936
      %2939 = vset.pattern.permute.xlu0 14
      %2940 = vperm.xlu0 %2939, %v1447
      %v2941 = vpop.permute.xlu0 %2940
      %2943 = vset.pattern.permute.xlu0 14
      %2944 = vperm.xlu0 %2943, %v1448
      %v2945 = vpop.permute.xlu0 %2944
      %v2948 = vlaneseq
      %v2949 = vshrl.u32 %v2948, 7
      %v2950 = vsub.s32 0, %v2949
      %v2951 = vrot.slane %v872, %v2950
      %v2952 = vlaneseq
      %v2953 = vshrl.u32 %v2952, 7
      %v2954 = vsub.s32 1, %v2953
      %v2955 = vrot.slane %v872, %v2954
      %v2956 = vlaneseq
      %v2957 = vshrl.u32 %v2956, 7
      %v2958 = vsub.s32 2, %v2957
      %v2959 = vrot.slane %v872, %v2958
      %v2960 = vlaneseq
      %v2961 = vshrl.u32 %v2960, 7
      %v2962 = vsub.s32 3, %v2961
      %v2963 = vrot.slane %v872, %v2962
      %v2968 = vmul.f32 %v2937, %v2951
      %v2969 = vmul.f32 %v2937, %v2955
      %v2970 = vmul.f32 %v2937, %v2959
      %v2971 = vmul.f32 %v2937, %v2963
      %v2972 = vmul.f32 %v2941, %v2951
      %v2973 = vmul.f32 %v2941, %v2955
      %v2974 = vmul.f32 %v2941, %v2959
      %v2975 = vmul.f32 %v2941, %v2963
      %v2976 = vmul.f32 %v2945, %v2951
      %v2977 = vmul.f32 %v2945, %v2955
      %v2978 = vmul.f32 %v2945, %v2959
      %v2979 = vmul.f32 %v2945, %v2963
      %v2980 = vmul.f32 %v2968, %v2929
      %v2981 = vmul.f32 %v2969, %v2926
      %v2982 = vmul.f32 %v2970, %v2923
      %v2983 = vmul.f32 %v2971, %v2932
      %v2984 = vmul.f32 %v2972, %v2930
      %v2985 = vmul.f32 %v2973, %v2927
      %v2986 = vmul.f32 %v2974, %v2924
      %v2987 = vmul.f32 %v2975, %v2933
      %v2988 = vmul.f32 %v2976, %v2931
      %v2989 = vmul.f32 %v2977, %v2928
      %v2990 = vmul.f32 %v2978, %v2925
      %v2991 = vmul.f32 %v2979, %v2934
      %v2992 = vadd.f32 %v2886, %v2980
      %v2993 = vadd.f32 %v2887, %v2981
      %v2994 = vadd.f32 %v2888, %v2982
      %v2995 = vadd.f32 %v2889, %v2983
      %v2996 = vadd.f32 %v2890, %v2984
      %v2997 = vadd.f32 %v2891, %v2985
      %v2998 = vadd.f32 %v2892, %v2986
      %v2999 = vadd.f32 %v2893, %v2987
      %v3000 = vadd.f32 %v2894, %v2988
      %v3001 = vadd.f32 %v2895, %v2989
      %v3002 = vadd.f32 %v2896, %v2990
      %v3003 = vadd.f32 %v2897, %v2991
      %3004 = vrot.lane.b32.xlu0 %v1347, 121
      %v3005 = vpop.permute.xlu0 %3004
      %3006 = vrot.lane.b32.xlu0 %v1353, 121
      %v3007 = vpop.permute.xlu0 %3006
      %3008 = vrot.lane.b32.xlu0 %v1359, 121
      %v3009 = vpop.permute.xlu0 %3008
      %3010 = vrot.lane.b32.xlu0 %v1349, 121
      %v3011 = vpop.permute.xlu0 %3010
      %3012 = vrot.lane.b32.xlu0 %v1355, 121
      %v3013 = vpop.permute.xlu0 %3012
      %3014 = vrot.lane.b32.xlu0 %v1361, 121
      %v3015 = vpop.permute.xlu0 %3014
      %3016 = vrot.lane.b32.xlu0 %v1430, 121
      %v3017 = vpop.permute.xlu0 %3016
      %3018 = vrot.lane.b32.xlu0 %v1436, 121
      %v3019 = vpop.permute.xlu0 %3018
      %3020 = vrot.lane.b32.xlu0 %v1442, 121
      %v3021 = vpop.permute.xlu0 %3020
      %3022 = vrot.lane.b32.xlu0 %v1432, 121
      %v3023 = vpop.permute.xlu0 %3022
      %3024 = vrot.lane.b32.xlu0 %v1438, 121
      %v3025 = vpop.permute.xlu0 %3024
      %3026 = vrot.lane.b32.xlu0 %v1444, 121
      %v3027 = vpop.permute.xlu0 %3026
      %vm3028 = vcmp.lt.s32.totalorder %v977, 121
      %v3029 = vsel %vm3028, %v3017, %v3023
      %v3030 = vsel %vm3028, %v3019, %v3025
      %v3031 = vsel %vm3028, %v3021, %v3027
      %v3032 = vsel %vm3028, %v3011, %v3017
      %v3033 = vsel %vm3028, %v3013, %v3019
      %v3034 = vsel %vm3028, %v3015, %v3021
      %v3035 = vsel %vm3028, %v3005, %v3011
      %v3036 = vsel %vm3028, %v3007, %v3013
      %v3037 = vsel %vm3028, %v3009, %v3015
      %v3038 = vsel %vm3028, %v3023, %v3005
      %v3039 = vsel %vm3028, %v3025, %v3007
      %v3040 = vsel %vm3028, %v3027, %v3009
      %3041 = vset.pattern.permute.xlu0 15
      %3042 = vperm.xlu0 %3041, %v1446
      %v3043 = vpop.permute.xlu0 %3042
      %3045 = vset.pattern.permute.xlu0 15
      %3046 = vperm.xlu0 %3045, %v1447
      %v3047 = vpop.permute.xlu0 %3046
      %3049 = vset.pattern.permute.xlu0 15
      %3050 = vperm.xlu0 %3049, %v1448
      %v3051 = vpop.permute.xlu0 %3050
      %v3054 = vlaneseq
      %v3055 = vshrl.u32 %v3054, 7
      %v3056 = vsub.s32 0, %v3055
      %v3057 = vrot.slane %v874, %v3056
      %v3058 = vlaneseq
      %v3059 = vshrl.u32 %v3058, 7
      %v3060 = vsub.s32 1, %v3059
      %v3061 = vrot.slane %v874, %v3060
      %v3062 = vlaneseq
      %v3063 = vshrl.u32 %v3062, 7
      %v3064 = vsub.s32 2, %v3063
      %v3065 = vrot.slane %v874, %v3064
      %v3066 = vlaneseq
      %v3067 = vshrl.u32 %v3066, 7
      %v3068 = vsub.s32 3, %v3067
      %v3069 = vrot.slane %v874, %v3068
      %v3074 = vmul.f32 %v3043, %v3057
      %v3075 = vmul.f32 %v3043, %v3061
      %v3076 = vmul.f32 %v3043, %v3065
      %v3077 = vmul.f32 %v3043, %v3069
      %v3078 = vmul.f32 %v3047, %v3057
      %v3079 = vmul.f32 %v3047, %v3061
      %v3080 = vmul.f32 %v3047, %v3065
      %v3081 = vmul.f32 %v3047, %v3069
      %v3082 = vmul.f32 %v3051, %v3057
      %v3083 = vmul.f32 %v3051, %v3061
      %v3084 = vmul.f32 %v3051, %v3065
      %v3085 = vmul.f32 %v3051, %v3069
      %v3086 = vmul.f32 %v3074, %v3035
      %v3087 = vmul.f32 %v3075, %v3032
      %v3088 = vmul.f32 %v3076, %v3029
      %v3089 = vmul.f32 %v3077, %v3038
      %v3090 = vmul.f32 %v3078, %v3036
      %v3091 = vmul.f32 %v3079, %v3033
      %v3092 = vmul.f32 %v3080, %v3030
      %v3093 = vmul.f32 %v3081, %v3039
      %v3094 = vmul.f32 %v3082, %v3037
      %v3095 = vmul.f32 %v3083, %v3034
      %v3096 = vmul.f32 %v3084, %v3031
      %v3097 = vmul.f32 %v3085, %v3040
      %v3098 = vadd.f32 %v2992, %v3086
      %v3099 = vadd.f32 %v2993, %v3087
      %v3100 = vadd.f32 %v2994, %v3088
      %v3101 = vadd.f32 %v2995, %v3089
      %v3102 = vadd.f32 %v2996, %v3090
      %v3103 = vadd.f32 %v2997, %v3091
      %v3104 = vadd.f32 %v2998, %v3092
      %v3105 = vadd.f32 %v2999, %v3093
      %v3106 = vadd.f32 %v3000, %v3094
      %v3107 = vadd.f32 %v3001, %v3095
      %v3108 = vadd.f32 %v3002, %v3096
      %v3109 = vadd.f32 %v3003, %v3097
      %3110 = vrot.lane.b32.xlu0 %v1347, 120
      %v3111 = vpop.permute.xlu0 %3110
      %3112 = vrot.lane.b32.xlu0 %v1353, 120
      %v3113 = vpop.permute.xlu0 %3112
      %3114 = vrot.lane.b32.xlu0 %v1359, 120
      %v3115 = vpop.permute.xlu0 %3114
      %3116 = vrot.lane.b32.xlu0 %v1349, 120
      %v3117 = vpop.permute.xlu0 %3116
      %3118 = vrot.lane.b32.xlu0 %v1355, 120
      %v3119 = vpop.permute.xlu0 %3118
      %3120 = vrot.lane.b32.xlu0 %v1361, 120
      %v3121 = vpop.permute.xlu0 %3120
      %3122 = vrot.lane.b32.xlu0 %v1430, 120
      %v3123 = vpop.permute.xlu0 %3122
      %3124 = vrot.lane.b32.xlu0 %v1436, 120
      %v3125 = vpop.permute.xlu0 %3124
      %3126 = vrot.lane.b32.xlu0 %v1442, 120
      %v3127 = vpop.permute.xlu0 %3126
      %3128 = vrot.lane.b32.xlu0 %v1432, 120
      %v3129 = vpop.permute.xlu0 %3128
      %3130 = vrot.lane.b32.xlu0 %v1438, 120
      %v3131 = vpop.permute.xlu0 %3130
      %3132 = vrot.lane.b32.xlu0 %v1444, 120
      %v3133 = vpop.permute.xlu0 %3132
      %vm3134 = vcmp.lt.s32.totalorder %v977, 120
      %v3135 = vsel %vm3134, %v3123, %v3129
      %v3136 = vsel %vm3134, %v3125, %v3131
      %v3137 = vsel %vm3134, %v3127, %v3133
      %v3138 = vsel %vm3134, %v3117, %v3123
      %v3139 = vsel %vm3134, %v3119, %v3125
      %v3140 = vsel %vm3134, %v3121, %v3127
      %v3141 = vsel %vm3134, %v3111, %v3117
      %v3142 = vsel %vm3134, %v3113, %v3119
      %v3143 = vsel %vm3134, %v3115, %v3121
      %v3144 = vsel %vm3134, %v3129, %v3111
      %v3145 = vsel %vm3134, %v3131, %v3113
      %v3146 = vsel %vm3134, %v3133, %v3115
      %3147 = vset.pattern.permute.xlu0 16
      %3148 = vperm.xlu0 %3147, %v1446
      %v3149 = vpop.permute.xlu0 %3148
      %3151 = vset.pattern.permute.xlu0 16
      %3152 = vperm.xlu0 %3151, %v1447
      %v3153 = vpop.permute.xlu0 %3152
      %3155 = vset.pattern.permute.xlu0 16
      %3156 = vperm.xlu0 %3155, %v1448
      %v3157 = vpop.permute.xlu0 %3156
      %v3160 = vlaneseq
      %v3161 = vshrl.u32 %v3160, 7
      %v3162 = vsub.s32 0, %v3161
      %v3163 = vrot.slane %v875, %v3162
      %v3164 = vlaneseq
      %v3165 = vshrl.u32 %v3164, 7
      %v3166 = vsub.s32 1, %v3165
      %v3167 = vrot.slane %v875, %v3166
      %v3168 = vlaneseq
      %v3169 = vshrl.u32 %v3168, 7
      %v3170 = vsub.s32 2, %v3169
      %v3171 = vrot.slane %v875, %v3170
      %v3172 = vlaneseq
      %v3173 = vshrl.u32 %v3172, 7
      %v3174 = vsub.s32 3, %v3173
      %v3175 = vrot.slane %v875, %v3174
      %v3180 = vmul.f32 %v3149, %v3163
      %v3181 = vmul.f32 %v3149, %v3167
      %v3182 = vmul.f32 %v3149, %v3171
      %v3183 = vmul.f32 %v3149, %v3175
      %v3184 = vmul.f32 %v3153, %v3163
      %v3185 = vmul.f32 %v3153, %v3167
      %v3186 = vmul.f32 %v3153, %v3171
      %v3187 = vmul.f32 %v3153, %v3175
      %v3188 = vmul.f32 %v3157, %v3163
      %v3189 = vmul.f32 %v3157, %v3167
      %v3190 = vmul.f32 %v3157, %v3171
      %v3191 = vmul.f32 %v3157, %v3175
      %v3192 = vmul.f32 %v3180, %v3141
      %v3193 = vmul.f32 %v3181, %v3138
      %v3194 = vmul.f32 %v3182, %v3135
      %v3195 = vmul.f32 %v3183, %v3144
      %v3196 = vmul.f32 %v3184, %v3142
      %v3197 = vmul.f32 %v3185, %v3139
      %v3198 = vmul.f32 %v3186, %v3136
      %v3199 = vmul.f32 %v3187, %v3145
      %v3200 = vmul.f32 %v3188, %v3143
      %v3201 = vmul.f32 %v3189, %v3140
      %v3202 = vmul.f32 %v3190, %v3137
      %v3203 = vmul.f32 %v3191, %v3146
      %v3204 = vadd.f32 %v3098, %v3192
      %v3205 = vadd.f32 %v3099, %v3193
      %v3206 = vadd.f32 %v3100, %v3194
      %v3207 = vadd.f32 %v3101, %v3195
      %v3208 = vadd.f32 %v3102, %v3196
      %v3209 = vadd.f32 %v3103, %v3197
      %v3210 = vadd.f32 %v3104, %v3198
      %v3211 = vadd.f32 %v3105, %v3199
      %v3212 = vadd.f32 %v3106, %v3200
      %v3213 = vadd.f32 %v3107, %v3201
      %v3214 = vadd.f32 %v3108, %v3202
      %v3215 = vadd.f32 %v3109, %v3203
      %3216 = vrot.lane.b32.xlu0 %v1347, 119
      %v3217 = vpop.permute.xlu0 %3216
      %3218 = vrot.lane.b32.xlu0 %v1353, 119
      %v3219 = vpop.permute.xlu0 %3218
      %3220 = vrot.lane.b32.xlu0 %v1359, 119
      %v3221 = vpop.permute.xlu0 %3220
      %3222 = vrot.lane.b32.xlu0 %v1349, 119
      %v3223 = vpop.permute.xlu0 %3222
      %3224 = vrot.lane.b32.xlu0 %v1355, 119
      %v3225 = vpop.permute.xlu0 %3224
      %3226 = vrot.lane.b32.xlu0 %v1361, 119
      %v3227 = vpop.permute.xlu0 %3226
      %3228 = vrot.lane.b32.xlu0 %v1430, 119
      %v3229 = vpop.permute.xlu0 %3228
      %3230 = vrot.lane.b32.xlu0 %v1436, 119
      %v3231 = vpop.permute.xlu0 %3230
      %3232 = vrot.lane.b32.xlu0 %v1442, 119
      %v3233 = vpop.permute.xlu0 %3232
      %3234 = vrot.lane.b32.xlu0 %v1432, 119
      %v3235 = vpop.permute.xlu0 %3234
      %3236 = vrot.lane.b32.xlu0 %v1438, 119
      %v3237 = vpop.permute.xlu0 %3236
      %3238 = vrot.lane.b32.xlu0 %v1444, 119
      %v3239 = vpop.permute.xlu0 %3238
      %vm3240 = vcmp.lt.s32.totalorder %v977, 119
      %v3241 = vsel %vm3240, %v3229, %v3235
      %v3242 = vsel %vm3240, %v3231, %v3237
      %v3243 = vsel %vm3240, %v3233, %v3239
      %v3244 = vsel %vm3240, %v3223, %v3229
      %v3245 = vsel %vm3240, %v3225, %v3231
      %v3246 = vsel %vm3240, %v3227, %v3233
      %v3247 = vsel %vm3240, %v3217, %v3223
      %v3248 = vsel %vm3240, %v3219, %v3225
      %v3249 = vsel %vm3240, %v3221, %v3227
      %v3250 = vsel %vm3240, %v3235, %v3217
      %v3251 = vsel %vm3240, %v3237, %v3219
      %v3252 = vsel %vm3240, %v3239, %v3221
      %3253 = vset.pattern.permute.xlu0 17
      %3254 = vperm.xlu0 %3253, %v1446
      %v3255 = vpop.permute.xlu0 %3254
      %3257 = vset.pattern.permute.xlu0 17
      %3258 = vperm.xlu0 %3257, %v1447
      %v3259 = vpop.permute.xlu0 %3258
      %3261 = vset.pattern.permute.xlu0 17
      %3262 = vperm.xlu0 %3261, %v1448
      %v3263 = vpop.permute.xlu0 %3262
      %v3266 = vlaneseq
      %v3267 = vshrl.u32 %v3266, 7
      %v3268 = vsub.s32 0, %v3267
      %v3269 = vrot.slane %v876, %v3268
      %v3270 = vlaneseq
      %v3271 = vshrl.u32 %v3270, 7
      %v3272 = vsub.s32 1, %v3271
      %v3273 = vrot.slane %v876, %v3272
      %v3274 = vlaneseq
      %v3275 = vshrl.u32 %v3274, 7
      %v3276 = vsub.s32 2, %v3275
      %v3277 = vrot.slane %v876, %v3276
      %v3278 = vlaneseq
      %v3279 = vshrl.u32 %v3278, 7
      %v3280 = vsub.s32 3, %v3279
      %v3281 = vrot.slane %v876, %v3280
      %v3286 = vmul.f32 %v3255, %v3269
      %v3287 = vmul.f32 %v3255, %v3273
      %v3288 = vmul.f32 %v3255, %v3277
      %v3289 = vmul.f32 %v3255, %v3281
      %v3290 = vmul.f32 %v3259, %v3269
      %v3291 = vmul.f32 %v3259, %v3273
      %v3292 = vmul.f32 %v3259, %v3277
      %v3293 = vmul.f32 %v3259, %v3281
      %v3294 = vmul.f32 %v3263, %v3269
      %v3295 = vmul.f32 %v3263, %v3273
      %v3296 = vmul.f32 %v3263, %v3277
      %v3297 = vmul.f32 %v3263, %v3281
      %v3298 = vmul.f32 %v3286, %v3247
      %v3299 = vmul.f32 %v3287, %v3244
      %v3300 = vmul.f32 %v3288, %v3241
      %v3301 = vmul.f32 %v3289, %v3250
      %v3302 = vmul.f32 %v3290, %v3248
      %v3303 = vmul.f32 %v3291, %v3245
      %v3304 = vmul.f32 %v3292, %v3242
      %v3305 = vmul.f32 %v3293, %v3251
      %v3306 = vmul.f32 %v3294, %v3249
      %v3307 = vmul.f32 %v3295, %v3246
      %v3308 = vmul.f32 %v3296, %v3243
      %v3309 = vmul.f32 %v3297, %v3252
      %v3310 = vadd.f32 %v3204, %v3298
      %v3311 = vadd.f32 %v3205, %v3299
      %v3312 = vadd.f32 %v3206, %v3300
      %v3313 = vadd.f32 %v3207, %v3301
      %v3314 = vadd.f32 %v3208, %v3302
      %v3315 = vadd.f32 %v3209, %v3303
      %v3316 = vadd.f32 %v3210, %v3304
      %v3317 = vadd.f32 %v3211, %v3305
      %v3318 = vadd.f32 %v3212, %v3306
      %v3319 = vadd.f32 %v3213, %v3307
      %v3320 = vadd.f32 %v3214, %v3308
      %v3321 = vadd.f32 %v3215, %v3309
      %3322 = vset.pattern.permute.xlu0 18
      %3323 = vperm.xlu0 %3322, %v1446
      %v3324 = vpop.permute.xlu0 %3323
      %3326 = vset.pattern.permute.xlu0 18
      %3327 = vperm.xlu0 %3326, %v1447
      %v3328 = vpop.permute.xlu0 %3327
      %3330 = vset.pattern.permute.xlu0 18
      %3331 = vperm.xlu0 %3330, %v1448
      %v3332 = vpop.permute.xlu0 %3331
      %v3335 = vlaneseq
      %v3336 = vshrl.u32 %v3335, 7
      %v3337 = vsub.s32 0, %v3336
      %v3338 = vrot.slane %v878, %v3337
      %v3339 = vlaneseq
      %v3340 = vshrl.u32 %v3339, 7
      %v3341 = vsub.s32 1, %v3340
      %v3342 = vrot.slane %v878, %v3341
      %v3343 = vlaneseq
      %v3344 = vshrl.u32 %v3343, 7
      %v3345 = vsub.s32 2, %v3344
      %v3346 = vrot.slane %v878, %v3345
      %v3347 = vlaneseq
      %v3348 = vshrl.u32 %v3347, 7
      %v3349 = vsub.s32 3, %v3348
      %v3350 = vrot.slane %v878, %v3349
      %v3355 = vmul.f32 %v3324, %v3338
      %v3356 = vmul.f32 %v3324, %v3342
      %v3357 = vmul.f32 %v3324, %v3346
      %v3358 = vmul.f32 %v3324, %v3350
      %v3359 = vmul.f32 %v3328, %v3338
      %v3360 = vmul.f32 %v3328, %v3342
      %v3361 = vmul.f32 %v3328, %v3346
      %v3362 = vmul.f32 %v3328, %v3350
      %v3363 = vmul.f32 %v3332, %v3338
      %v3364 = vmul.f32 %v3332, %v3342
      %v3365 = vmul.f32 %v3332, %v3346
      %v3366 = vmul.f32 %v3332, %v3350
      %v3367 = vmul.f32 %v3355, %v1480
      %v3368 = vmul.f32 %v3356, %v1477
      %v3369 = vmul.f32 %v3357, %v1474
      %v3370 = vmul.f32 %v3358, %v1483
      %v3371 = vmul.f32 %v3359, %v1481
      %v3372 = vmul.f32 %v3360, %v1478
      %v3373 = vmul.f32 %v3361, %v1475
      %v3374 = vmul.f32 %v3362, %v1484
      %v3375 = vmul.f32 %v3363, %v1482
      %v3376 = vmul.f32 %v3364, %v1479
      %v3377 = vmul.f32 %v3365, %v1476
      %v3378 = vmul.f32 %v3366, %v1485
      %v3379 = vadd.f32 %v3310, %v3367
      %v3380 = vadd.f32 %v3311, %v3368
      %v3381 = vadd.f32 %v3312, %v3369
      %v3382 = vadd.f32 %v3313, %v3370
      %v3383 = vadd.f32 %v3314, %v3371
      %v3384 = vadd.f32 %v3315, %v3372
      %v3385 = vadd.f32 %v3316, %v3373
      %v3386 = vadd.f32 %v3317, %v3374
      %v3387 = vadd.f32 %v3318, %v3375
      %v3388 = vadd.f32 %v3319, %v3376
      %v3389 = vadd.f32 %v3320, %v3377
      %v3390 = vadd.f32 %v3321, %v3378
      %3391 = vset.pattern.permute.xlu0 19
      %3392 = vperm.xlu0 %3391, %v1446
      %v3393 = vpop.permute.xlu0 %3392
      %3395 = vset.pattern.permute.xlu0 19
      %3396 = vperm.xlu0 %3395, %v1447
      %v3397 = vpop.permute.xlu0 %3396
      %3399 = vset.pattern.permute.xlu0 19
      %3400 = vperm.xlu0 %3399, %v1448
      %v3401 = vpop.permute.xlu0 %3400
      %v3404 = vlaneseq
      %v3405 = vshrl.u32 %v3404, 7
      %v3406 = vsub.s32 0, %v3405
      %v3407 = vrot.slane %v879, %v3406
      %v3408 = vlaneseq
      %v3409 = vshrl.u32 %v3408, 7
      %v3410 = vsub.s32 1, %v3409
      %v3411 = vrot.slane %v879, %v3410
      %v3412 = vlaneseq
      %v3413 = vshrl.u32 %v3412, 7
      %v3414 = vsub.s32 2, %v3413
      %v3415 = vrot.slane %v879, %v3414
      %v3416 = vlaneseq
      %v3417 = vshrl.u32 %v3416, 7
      %v3418 = vsub.s32 3, %v3417
      %v3419 = vrot.slane %v879, %v3418
      %v3424 = vmul.f32 %v3393, %v3407
      %v3425 = vmul.f32 %v3393, %v3411
      %v3426 = vmul.f32 %v3393, %v3415
      %v3427 = vmul.f32 %v3393, %v3419
      %v3428 = vmul.f32 %v3397, %v3407
      %v3429 = vmul.f32 %v3397, %v3411
      %v3430 = vmul.f32 %v3397, %v3415
      %v3431 = vmul.f32 %v3397, %v3419
      %v3432 = vmul.f32 %v3401, %v3407
      %v3433 = vmul.f32 %v3401, %v3411
      %v3434 = vmul.f32 %v3401, %v3415
      %v3435 = vmul.f32 %v3401, %v3419
      %v3436 = vmul.f32 %v3424, %v1589
      %v3437 = vmul.f32 %v3425, %v1586
      %v3438 = vmul.f32 %v3426, %v1583
      %v3439 = vmul.f32 %v3427, %v1592
      %v3440 = vmul.f32 %v3428, %v1590
      %v3441 = vmul.f32 %v3429, %v1587
      %v3442 = vmul.f32 %v3430, %v1584
      %v3443 = vmul.f32 %v3431, %v1593
      %v3444 = vmul.f32 %v3432, %v1591
      %v3445 = vmul.f32 %v3433, %v1588
      %v3446 = vmul.f32 %v3434, %v1585
      %v3447 = vmul.f32 %v3435, %v1594
      %v3448 = vadd.f32 %v3379, %v3436
      %v3449 = vadd.f32 %v3380, %v3437
      %v3450 = vadd.f32 %v3381, %v3438
      %v3451 = vadd.f32 %v3382, %v3439
      %v3452 = vadd.f32 %v3383, %v3440
      %v3453 = vadd.f32 %v3384, %v3441
      %v3454 = vadd.f32 %v3385, %v3442
      %v3455 = vadd.f32 %v3386, %v3443
      %v3456 = vadd.f32 %v3387, %v3444
      %v3457 = vadd.f32 %v3388, %v3445
      %v3458 = vadd.f32 %v3389, %v3446
      %v3459 = vadd.f32 %v3390, %v3447
      %3460 = vset.pattern.permute.xlu0 20
      %3461 = vperm.xlu0 %3460, %v1446
      %v3462 = vpop.permute.xlu0 %3461
      %3464 = vset.pattern.permute.xlu0 20
      %3465 = vperm.xlu0 %3464, %v1447
      %v3466 = vpop.permute.xlu0 %3465
      %3468 = vset.pattern.permute.xlu0 20
      %3469 = vperm.xlu0 %3468, %v1448
      %v3470 = vpop.permute.xlu0 %3469
      %v3473 = vlaneseq
      %v3474 = vshrl.u32 %v3473, 7
      %v3475 = vsub.s32 0, %v3474
      %v3476 = vrot.slane %v880, %v3475
      %v3477 = vlaneseq
      %v3478 = vshrl.u32 %v3477, 7
      %v3479 = vsub.s32 1, %v3478
      %v3480 = vrot.slane %v880, %v3479
      %v3481 = vlaneseq
      %v3482 = vshrl.u32 %v3481, 7
      %v3483 = vsub.s32 2, %v3482
      %v3484 = vrot.slane %v880, %v3483
      %v3485 = vlaneseq
      %v3486 = vshrl.u32 %v3485, 7
      %v3487 = vsub.s32 3, %v3486
      %v3488 = vrot.slane %v880, %v3487
      %v3493 = vmul.f32 %v3462, %v3476
      %v3494 = vmul.f32 %v3462, %v3480
      %v3495 = vmul.f32 %v3462, %v3484
      %v3496 = vmul.f32 %v3462, %v3488
      %v3497 = vmul.f32 %v3466, %v3476
      %v3498 = vmul.f32 %v3466, %v3480
      %v3499 = vmul.f32 %v3466, %v3484
      %v3500 = vmul.f32 %v3466, %v3488
      %v3501 = vmul.f32 %v3470, %v3476
      %v3502 = vmul.f32 %v3470, %v3480
      %v3503 = vmul.f32 %v3470, %v3484
      %v3504 = vmul.f32 %v3470, %v3488
      %v3505 = vmul.f32 %v3493, %v1695
      %v3506 = vmul.f32 %v3494, %v1692
      %v3507 = vmul.f32 %v3495, %v1689
      %v3508 = vmul.f32 %v3496, %v1698
      %v3509 = vmul.f32 %v3497, %v1696
      %v3510 = vmul.f32 %v3498, %v1693
      %v3511 = vmul.f32 %v3499, %v1690
      %v3512 = vmul.f32 %v3500, %v1699
      %v3513 = vmul.f32 %v3501, %v1697
      %v3514 = vmul.f32 %v3502, %v1694
      %v3515 = vmul.f32 %v3503, %v1691
      %v3516 = vmul.f32 %v3504, %v1700
      %v3517 = vadd.f32 %v3448, %v3505
      %v3518 = vadd.f32 %v3449, %v3506
      %v3519 = vadd.f32 %v3450, %v3507
      %v3520 = vadd.f32 %v3451, %v3508
      %v3521 = vadd.f32 %v3452, %v3509
      %v3522 = vadd.f32 %v3453, %v3510
      %v3523 = vadd.f32 %v3454, %v3511
      %v3524 = vadd.f32 %v3455, %v3512
      %v3525 = vadd.f32 %v3456, %v3513
      %v3526 = vadd.f32 %v3457, %v3514
      %v3527 = vadd.f32 %v3458, %v3515
      %v3528 = vadd.f32 %v3459, %v3516
      %3529 = vset.pattern.permute.xlu0 21
      %3530 = vperm.xlu0 %3529, %v1446
      %v3531 = vpop.permute.xlu0 %3530
      %3533 = vset.pattern.permute.xlu0 21
      %3534 = vperm.xlu0 %3533, %v1447
      %v3535 = vpop.permute.xlu0 %3534
      %3537 = vset.pattern.permute.xlu0 21
      %3538 = vperm.xlu0 %3537, %v1448
      %v3539 = vpop.permute.xlu0 %3538
      %v3542 = vlaneseq
      %v3543 = vshrl.u32 %v3542, 7
      %v3544 = vsub.s32 0, %v3543
      %v3545 = vrot.slane %v882, %v3544
      %v3546 = vlaneseq
      %v3547 = vshrl.u32 %v3546, 7
      %v3548 = vsub.s32 1, %v3547
      %v3549 = vrot.slane %v882, %v3548
      %v3550 = vlaneseq
      %v3551 = vshrl.u32 %v3550, 7
      %v3552 = vsub.s32 2, %v3551
      %v3553 = vrot.slane %v882, %v3552
      %v3554 = vlaneseq
      %v3555 = vshrl.u32 %v3554, 7
      %v3556 = vsub.s32 3, %v3555
      %v3557 = vrot.slane %v882, %v3556
      %v3562 = vmul.f32 %v3531, %v3545
      %v3563 = vmul.f32 %v3531, %v3549
      %v3564 = vmul.f32 %v3531, %v3553
      %v3565 = vmul.f32 %v3531, %v3557
      %v3566 = vmul.f32 %v3535, %v3545
      %v3567 = vmul.f32 %v3535, %v3549
      %v3568 = vmul.f32 %v3535, %v3553
      %v3569 = vmul.f32 %v3535, %v3557
      %v3570 = vmul.f32 %v3539, %v3545
      %v3571 = vmul.f32 %v3539, %v3549
      %v3572 = vmul.f32 %v3539, %v3553
      %v3573 = vmul.f32 %v3539, %v3557
      %v3574 = vmul.f32 %v3562, %v1801
      %v3575 = vmul.f32 %v3563, %v1798
      %v3576 = vmul.f32 %v3564, %v1795
      %v3577 = vmul.f32 %v3565, %v1804
      %v3578 = vmul.f32 %v3566, %v1802
      %v3579 = vmul.f32 %v3567, %v1799
      %v3580 = vmul.f32 %v3568, %v1796
      %v3581 = vmul.f32 %v3569, %v1805
      %v3582 = vmul.f32 %v3570, %v1803
      %v3583 = vmul.f32 %v3571, %v1800
      %v3584 = vmul.f32 %v3572, %v1797
      %v3585 = vmul.f32 %v3573, %v1806
      %v3586 = vadd.f32 %v3517, %v3574
      %v3587 = vadd.f32 %v3518, %v3575
      %v3588 = vadd.f32 %v3519, %v3576
      %v3589 = vadd.f32 %v3520, %v3577
      %v3590 = vadd.f32 %v3521, %v3578
      %v3591 = vadd.f32 %v3522, %v3579
      %v3592 = vadd.f32 %v3523, %v3580
      %v3593 = vadd.f32 %v3524, %v3581
      %v3594 = vadd.f32 %v3525, %v3582
      %v3595 = vadd.f32 %v3526, %v3583
      %v3596 = vadd.f32 %v3527, %v3584
      %v3597 = vadd.f32 %v3528, %v3585
      %3598 = vset.pattern.permute.xlu0 22
      %3599 = vperm.xlu0 %3598, %v1446
      %v3600 = vpop.permute.xlu0 %3599
      %3602 = vset.pattern.permute.xlu0 22
      %3603 = vperm.xlu0 %3602, %v1447
      %v3604 = vpop.permute.xlu0 %3603
      %3606 = vset.pattern.permute.xlu0 22
      %3607 = vperm.xlu0 %3606, %v1448
      %v3608 = vpop.permute.xlu0 %3607
      %v3611 = vlaneseq
      %v3612 = vshrl.u32 %v3611, 7
      %v3613 = vsub.s32 0, %v3612
      %v3614 = vrot.slane %v883, %v3613
      %v3615 = vlaneseq
      %v3616 = vshrl.u32 %v3615, 7
      %v3617 = vsub.s32 1, %v3616
      %v3618 = vrot.slane %v883, %v3617
      %v3619 = vlaneseq
      %v3620 = vshrl.u32 %v3619, 7
      %v3621 = vsub.s32 2, %v3620
      %v3622 = vrot.slane %v883, %v3621
      %v3623 = vlaneseq
      %v3624 = vshrl.u32 %v3623, 7
      %v3625 = vsub.s32 3, %v3624
      %v3626 = vrot.slane %v883, %v3625
      %v3631 = vmul.f32 %v3600, %v3614
      %v3632 = vmul.f32 %v3600, %v3618
      %v3633 = vmul.f32 %v3600, %v3622
      %v3634 = vmul.f32 %v3600, %v3626
      %v3635 = vmul.f32 %v3604, %v3614
      %v3636 = vmul.f32 %v3604, %v3618
      %v3637 = vmul.f32 %v3604, %v3622
      %v3638 = vmul.f32 %v3604, %v3626
      %v3639 = vmul.f32 %v3608, %v3614
      %v3640 = vmul.f32 %v3608, %v3618
      %v3641 = vmul.f32 %v3608, %v3622
      %v3642 = vmul.f32 %v3608, %v3626
      %v3643 = vmul.f32 %v3631, %v1906
      %v3644 = vmul.f32 %v3632, %v1903
      %v3645 = vmul.f32 %v3633, %v1900
      %v3646 = vmul.f32 %v3634, %v1909
      %v3647 = vmul.f32 %v3635, %v1907
      %v3648 = vmul.f32 %v3636, %v1904
      %v3649 = vmul.f32 %v3637, %v1901
      %v3650 = vmul.f32 %v3638, %v1910
      %v3651 = vmul.f32 %v3639, %v1908
      %v3652 = vmul.f32 %v3640, %v1905
      %v3653 = vmul.f32 %v3641, %v1902
      %v3654 = vmul.f32 %v3642, %v1911
      %v3655 = vadd.f32 %v3586, %v3643
      %v3656 = vadd.f32 %v3587, %v3644
      %v3657 = vadd.f32 %v3588, %v3645
      %v3658 = vadd.f32 %v3589, %v3646
      %v3659 = vadd.f32 %v3590, %v3647
      %v3660 = vadd.f32 %v3591, %v3648
      %v3661 = vadd.f32 %v3592, %v3649
      %v3662 = vadd.f32 %v3593, %v3650
      %v3663 = vadd.f32 %v3594, %v3651
      %v3664 = vadd.f32 %v3595, %v3652
      %v3665 = vadd.f32 %v3596, %v3653
      %v3666 = vadd.f32 %v3597, %v3654
      %3667 = vset.pattern.permute.xlu0 23
      %3668 = vperm.xlu0 %3667, %v1446
      %v3669 = vpop.permute.xlu0 %3668
      %3671 = vset.pattern.permute.xlu0 23
      %3672 = vperm.xlu0 %3671, %v1447
      %v3673 = vpop.permute.xlu0 %3672
      %3675 = vset.pattern.permute.xlu0 23
      %3676 = vperm.xlu0 %3675, %v1448
      %v3677 = vpop.permute.xlu0 %3676
      %v3680 = vlaneseq
      %v3681 = vshrl.u32 %v3680, 7
      %v3682 = vsub.s32 0, %v3681
      %v3683 = vrot.slane %v884, %v3682
      %v3684 = vlaneseq
      %v3685 = vshrl.u32 %v3684, 7
      %v3686 = vsub.s32 1, %v3685
      %v3687 = vrot.slane %v884, %v3686
      %v3688 = vlaneseq
      %v3689 = vshrl.u32 %v3688, 7
      %v3690 = vsub.s32 2, %v3689
      %v3691 = vrot.slane %v884, %v3690
      %v3692 = vlaneseq
      %v3693 = vshrl.u32 %v3692, 7
      %v3694 = vsub.s32 3, %v3693
      %v3695 = vrot.slane %v884, %v3694
      %v3700 = vmul.f32 %v3669, %v3683
      %v3701 = vmul.f32 %v3669, %v3687
      %v3702 = vmul.f32 %v3669, %v3691
      %v3703 = vmul.f32 %v3669, %v3695
      %v3704 = vmul.f32 %v3673, %v3683
      %v3705 = vmul.f32 %v3673, %v3687
      %v3706 = vmul.f32 %v3673, %v3691
      %v3707 = vmul.f32 %v3673, %v3695
      %v3708 = vmul.f32 %v3677, %v3683
      %v3709 = vmul.f32 %v3677, %v3687
      %v3710 = vmul.f32 %v3677, %v3691
      %v3711 = vmul.f32 %v3677, %v3695
      %v3712 = vmul.f32 %v3700, %v2012
      %v3713 = vmul.f32 %v3701, %v2009
      %v3714 = vmul.f32 %v3702, %v2006
      %v3715 = vmul.f32 %v3703, %v2015
      %v3716 = vmul.f32 %v3704, %v2013
      %v3717 = vmul.f32 %v3705, %v2010
      %v3718 = vmul.f32 %v3706, %v2007
      %v3719 = vmul.f32 %v3707, %v2016
      %v3720 = vmul.f32 %v3708, %v2014
      %v3721 = vmul.f32 %v3709, %v2011
      %v3722 = vmul.f32 %v3710, %v2008
      %v3723 = vmul.f32 %v3711, %v2017
      %v3724 = vadd.f32 %v3655, %v3712
      %v3725 = vadd.f32 %v3656, %v3713
      %v3726 = vadd.f32 %v3657, %v3714
      %v3727 = vadd.f32 %v3658, %v3715
      %v3728 = vadd.f32 %v3659, %v3716
      %v3729 = vadd.f32 %v3660, %v3717
      %v3730 = vadd.f32 %v3661, %v3718
      %v3731 = vadd.f32 %v3662, %v3719
      %v3732 = vadd.f32 %v3663, %v3720
      %v3733 = vadd.f32 %v3664, %v3721
      %v3734 = vadd.f32 %v3665, %v3722
      %v3735 = vadd.f32 %v3666, %v3723
      %3736 = vset.pattern.permute.xlu0 24
      %3737 = vperm.xlu0 %3736, %v1446
      %v3738 = vpop.permute.xlu0 %3737
      %3740 = vset.pattern.permute.xlu0 24
      %3741 = vperm.xlu0 %3740, %v1447
      %v3742 = vpop.permute.xlu0 %3741
      %3744 = vset.pattern.permute.xlu0 24
      %3745 = vperm.xlu0 %3744, %v1448
      %v3746 = vpop.permute.xlu0 %3745
      %v3749 = vlaneseq
      %v3750 = vshrl.u32 %v3749, 7
      %v3751 = vsub.s32 0, %v3750
      %v3752 = vrot.slane %v886, %v3751
      %v3753 = vlaneseq
      %v3754 = vshrl.u32 %v3753, 7
      %v3755 = vsub.s32 1, %v3754
      %v3756 = vrot.slane %v886, %v3755
      %v3757 = vlaneseq
      %v3758 = vshrl.u32 %v3757, 7
      %v3759 = vsub.s32 2, %v3758
      %v3760 = vrot.slane %v886, %v3759
      %v3761 = vlaneseq
      %v3762 = vshrl.u32 %v3761, 7
      %v3763 = vsub.s32 3, %v3762
      %v3764 = vrot.slane %v886, %v3763
      %v3769 = vmul.f32 %v3738, %v3752
      %v3770 = vmul.f32 %v3738, %v3756
      %v3771 = vmul.f32 %v3738, %v3760
      %v3772 = vmul.f32 %v3738, %v3764
      %v3773 = vmul.f32 %v3742, %v3752
      %v3774 = vmul.f32 %v3742, %v3756
      %v3775 = vmul.f32 %v3742, %v3760
      %v3776 = vmul.f32 %v3742, %v3764
      %v3777 = vmul.f32 %v3746, %v3752
      %v3778 = vmul.f32 %v3746, %v3756
      %v3779 = vmul.f32 %v3746, %v3760
      %v3780 = vmul.f32 %v3746, %v3764
      %v3781 = vmul.f32 %v3769, %v2118
      %v3782 = vmul.f32 %v3770, %v2115
      %v3783 = vmul.f32 %v3771, %v2112
      %v3784 = vmul.f32 %v3772, %v2121
      %v3785 = vmul.f32 %v3773, %v2119
      %v3786 = vmul.f32 %v3774, %v2116
      %v3787 = vmul.f32 %v3775, %v2113
      %v3788 = vmul.f32 %v3776, %v2122
      %v3789 = vmul.f32 %v3777, %v2120
      %v3790 = vmul.f32 %v3778, %v2117
      %v3791 = vmul.f32 %v3779, %v2114
      %v3792 = vmul.f32 %v3780, %v2123
      %v3793 = vadd.f32 %v3724, %v3781
      %v3794 = vadd.f32 %v3725, %v3782
      %v3795 = vadd.f32 %v3726, %v3783
      %v3796 = vadd.f32 %v3727, %v3784
      %v3797 = vadd.f32 %v3728, %v3785
      %v3798 = vadd.f32 %v3729, %v3786
      %v3799 = vadd.f32 %v3730, %v3787
      %v3800 = vadd.f32 %v3731, %v3788
      %v3801 = vadd.f32 %v3732, %v3789
      %v3802 = vadd.f32 %v3733, %v3790
      %v3803 = vadd.f32 %v3734, %v3791
      %v3804 = vadd.f32 %v3735, %v3792
      %3805 = vset.pattern.permute.xlu0 25
      %3806 = vperm.xlu0 %3805, %v1446
      %v3807 = vpop.permute.xlu0 %3806
      %3809 = vset.pattern.permute.xlu0 25
      %3810 = vperm.xlu0 %3809, %v1447
      %v3811 = vpop.permute.xlu0 %3810
      %3813 = vset.pattern.permute.xlu0 25
      %3814 = vperm.xlu0 %3813, %v1448
      %v3815 = vpop.permute.xlu0 %3814
      %v3818 = vlaneseq
      %v3819 = vshrl.u32 %v3818, 7
      %v3820 = vsub.s32 0, %v3819
      %v3821 = vrot.slane %v887, %v3820
      %v3822 = vlaneseq
      %v3823 = vshrl.u32 %v3822, 7
      %v3824 = vsub.s32 1, %v3823
      %v3825 = vrot.slane %v887, %v3824
      %v3826 = vlaneseq
      %v3827 = vshrl.u32 %v3826, 7
      %v3828 = vsub.s32 2, %v3827
      %v3829 = vrot.slane %v887, %v3828
      %v3830 = vlaneseq
      %v3831 = vshrl.u32 %v3830, 7
      %v3832 = vsub.s32 3, %v3831
      %v3833 = vrot.slane %v887, %v3832
      %v3838 = vmul.f32 %v3807, %v3821
      %v3839 = vmul.f32 %v3807, %v3825
      %v3840 = vmul.f32 %v3807, %v3829
      %v3841 = vmul.f32 %v3807, %v3833
      %v3842 = vmul.f32 %v3811, %v3821
      %v3843 = vmul.f32 %v3811, %v3825
      %v3844 = vmul.f32 %v3811, %v3829
      %v3845 = vmul.f32 %v3811, %v3833
      %v3846 = vmul.f32 %v3815, %v3821
      %v3847 = vmul.f32 %v3815, %v3825
      %v3848 = vmul.f32 %v3815, %v3829
      %v3849 = vmul.f32 %v3815, %v3833
      %v3850 = vmul.f32 %v3838, %v2224
      %v3851 = vmul.f32 %v3839, %v2221
      %v3852 = vmul.f32 %v3840, %v2218
      %v3853 = vmul.f32 %v3841, %v2227
      %v3854 = vmul.f32 %v3842, %v2225
      %v3855 = vmul.f32 %v3843, %v2222
      %v3856 = vmul.f32 %v3844, %v2219
      %v3857 = vmul.f32 %v3845, %v2228
      %v3858 = vmul.f32 %v3846, %v2226
      %v3859 = vmul.f32 %v3847, %v2223
      %v3860 = vmul.f32 %v3848, %v2220
      %v3861 = vmul.f32 %v3849, %v2229
      %v3862 = vadd.f32 %v3793, %v3850
      %v3863 = vadd.f32 %v3794, %v3851
      %v3864 = vadd.f32 %v3795, %v3852
      %v3865 = vadd.f32 %v3796, %v3853
      %v3866 = vadd.f32 %v3797, %v3854
      %v3867 = vadd.f32 %v3798, %v3855
      %v3868 = vadd.f32 %v3799, %v3856
      %v3869 = vadd.f32 %v3800, %v3857
      %v3870 = vadd.f32 %v3801, %v3858
      %v3871 = vadd.f32 %v3802, %v3859
      %v3872 = vadd.f32 %v3803, %v3860
      %v3873 = vadd.f32 %v3804, %v3861
      %3874 = vset.pattern.permute.xlu0 26
      %3875 = vperm.xlu0 %3874, %v1446
      %v3876 = vpop.permute.xlu0 %3875
      %3878 = vset.pattern.permute.xlu0 26
      %3879 = vperm.xlu0 %3878, %v1447
      %v3880 = vpop.permute.xlu0 %3879
      %3882 = vset.pattern.permute.xlu0 26
      %3883 = vperm.xlu0 %3882, %v1448
      %v3884 = vpop.permute.xlu0 %3883
      %v3887 = vlaneseq
      %v3888 = vshrl.u32 %v3887, 7
      %v3889 = vsub.s32 0, %v3888
      %v3890 = vrot.slane %v888, %v3889
      %v3891 = vlaneseq
      %v3892 = vshrl.u32 %v3891, 7
      %v3893 = vsub.s32 1, %v3892
      %v3894 = vrot.slane %v888, %v3893
      %v3895 = vlaneseq
      %v3896 = vshrl.u32 %v3895, 7
      %v3897 = vsub.s32 2, %v3896
      %v3898 = vrot.slane %v888, %v3897
      %v3899 = vlaneseq
      %v3900 = vshrl.u32 %v3899, 7
      %v3901 = vsub.s32 3, %v3900
      %v3902 = vrot.slane %v888, %v3901
      %v3907 = vmul.f32 %v3876, %v3890
      %v3908 = vmul.f32 %v3876, %v3894
      %v3909 = vmul.f32 %v3876, %v3898
      %v3910 = vmul.f32 %v3876, %v3902
      %v3911 = vmul.f32 %v3880, %v3890
      %v3912 = vmul.f32 %v3880, %v3894
      %v3913 = vmul.f32 %v3880, %v3898
      %v3914 = vmul.f32 %v3880, %v3902
      %v3915 = vmul.f32 %v3884, %v3890
      %v3916 = vmul.f32 %v3884, %v3894
      %v3917 = vmul.f32 %v3884, %v3898
      %v3918 = vmul.f32 %v3884, %v3902
      %v3919 = vmul.f32 %v3907, %v2330
      %v3920 = vmul.f32 %v3908, %v2327
      %v3921 = vmul.f32 %v3909, %v2324
      %v3922 = vmul.f32 %v3910, %v2333
      %v3923 = vmul.f32 %v3911, %v2331
      %v3924 = vmul.f32 %v3912, %v2328
      %v3925 = vmul.f32 %v3913, %v2325
      %v3926 = vmul.f32 %v3914, %v2334
      %v3927 = vmul.f32 %v3915, %v2332
      %v3928 = vmul.f32 %v3916, %v2329
      %v3929 = vmul.f32 %v3917, %v2326
      %v3930 = vmul.f32 %v3918, %v2335
      %v3931 = vadd.f32 %v3862, %v3919
      %v3932 = vadd.f32 %v3863, %v3920
      %v3933 = vadd.f32 %v3864, %v3921
      %v3934 = vadd.f32 %v3865, %v3922
      %v3935 = vadd.f32 %v3866, %v3923
      %v3936 = vadd.f32 %v3867, %v3924
      %v3937 = vadd.f32 %v3868, %v3925
      %v3938 = vadd.f32 %v3869, %v3926
      %v3939 = vadd.f32 %v3870, %v3927
      %v3940 = vadd.f32 %v3871, %v3928
      %v3941 = vadd.f32 %v3872, %v3929
      %v3942 = vadd.f32 %v3873, %v3930
      %v3943 = vld [vmem:[%s9] sm:$0xff]
      %v3944 = vld [vmem:[%s9 + $0x8] sm:$0xff]
      %v3945 = vld [vmem:[%s9 + $0x10] sm:$0xf]
      %3947 = vset.pattern.permute.xlu0 0
      %3948 = vperm.xlu0 %3947, %v3943
      %v3949 = vpop.permute.xlu0 %3948
      %3952 = vset.pattern.permute.xlu0 0
      %3953 = vperm.xlu0 %3952, %v3944
      %v3954 = vpop.permute.xlu0 %3953
      %3957 = vset.pattern.permute.xlu0 0
      %3958 = vperm.xlu0 %3957, %v3945
      %v3959 = vpop.permute.xlu0 %3958
      %v3961 = vadd.f32 %v3931, %v3949
      %v3962 = vadd.f32 %v3932, %v3949
      %v3963 = vadd.f32 %v3933, %v3949
      %v3964 = vadd.f32 %v3934, %v3949
      %v3965 = vadd.f32 %v3935, %v3954
      %v3966 = vadd.f32 %v3936, %v3954
      %v3967 = vadd.f32 %v3937, %v3954
      %v3968 = vadd.f32 %v3938, %v3954
      %v3969 = vadd.f32 %v3939, %v3959
      %v3970 = vadd.f32 %v3940, %v3959
      %v3971 = vadd.f32 %v3941, %v3959
      %v3972 = vadd.f32 %v3942, %v3959
      %v3973 = vmul.f32 %v3961, 0.5
      %v3974 = vmul.f32 %v3962, 0.5
      %v3975 = vmul.f32 %v3963, 0.5
      %v3976 = vmul.f32 %v3964, 0.5
      %v3977 = vmul.f32 %v3965, 0.5
      %v3978 = vmul.f32 %v3966, 0.5
      %v3979 = vmul.f32 %v3967, 0.5
      %v3980 = vmul.f32 %v3968, 0.5
      %v3981 = vmul.f32 %v3969, 0.5
      %v3982 = vmul.f32 %v3970, 0.5
      %v3983 = vmul.f32 %v3971, 0.5
      %v3984 = vmul.f32 %v3972, 0.5
      %v3985 = vmul.f32 %v3961, 0.70710677
      %v3986 = vmul.f32 %v3962, 0.70710677
      %v3987 = vmul.f32 %v3963, 0.70710677
      %v3988 = vmul.f32 %v3964, 0.70710677
      %v3989 = vmul.f32 %v3965, 0.70710677
      %v3990 = vmul.f32 %v3966, 0.70710677
      %v3991 = vmul.f32 %v3967, 0.70710677
      %v3992 = vmul.f32 %v3968, 0.70710677
      %v3993 = vmul.f32 %v3969, 0.70710677
      %v3994 = vmul.f32 %v3970, 0.70710677
      %v3995 = vmul.f32 %v3971, 0.70710677
      %v3996 = vmul.f32 %v3972, 0.70710677
      %v3997 = verf.f32.pop %v3985
      %v3998 = verf.f32.pop %v3986
      %v3999 = verf.f32.pop %v3987
      %v4000 = verf.f32.pop %v3988
      %v4001 = verf.f32.pop %v3989
      %v4002 = verf.f32.pop %v3990
      %v4003 = verf.f32.pop %v3991
      %v4004 = verf.f32.pop %v3992
      %v4005 = verf.f32.pop %v3993
      %v4006 = verf.f32.pop %v3994
      %v4007 = verf.f32.pop %v3995
      %v4008 = verf.f32.pop %v3996
      %v4009 = vadd.f32 %v3997, 1.0
      %v4010 = vadd.f32 %v3998, 1.0
      %v4011 = vadd.f32 %v3999, 1.0
      %v4012 = vadd.f32 %v4000, 1.0
      %v4013 = vadd.f32 %v4001, 1.0
      %v4014 = vadd.f32 %v4002, 1.0
      %v4015 = vadd.f32 %v4003, 1.0
      %v4016 = vadd.f32 %v4004, 1.0
      %v4017 = vadd.f32 %v4005, 1.0
      %v4018 = vadd.f32 %v4006, 1.0
      %v4019 = vadd.f32 %v4007, 1.0
      %v4020 = vadd.f32 %v4008, 1.0
      %v4021 = vmul.f32 %v3973, %v4009
      %v4022 = vmul.f32 %v3974, %v4010
      %v4023 = vmul.f32 %v3975, %v4011
      %v4024 = vmul.f32 %v3976, %v4012
      %v4025 = vmul.f32 %v3977, %v4013
      %v4026 = vmul.f32 %v3978, %v4014
      %v4027 = vmul.f32 %v3979, %v4015
      %v4028 = vmul.f32 %v3980, %v4016
      %v4029 = vmul.f32 %v3981, %v4017
      %v4030 = vmul.f32 %v3982, %v4018
      %v4031 = vmul.f32 %v3983, %v4019
      %v4032 = vmul.f32 %v3984, %v4020
      %4033 = vrot.lane.b32.xlu0 %v4021, 112
      %v4034 = vpop.permute.xlu0 %4033
      %4035 = vrot.lane.b32.xlu0 %v4025, 112
      %v4036 = vpop.permute.xlu0 %4035
      %4037 = vrot.lane.b32.xlu0 %v4029, 112
      %v4038 = vpop.permute.xlu0 %4037
      %4039 = vrot.lane.b32.xlu0 %v4022, 112
      %v4040 = vpop.permute.xlu0 %4039
      %4041 = vrot.lane.b32.xlu0 %v4026, 112
      %v4042 = vpop.permute.xlu0 %4041
      %4043 = vrot.lane.b32.xlu0 %v4030, 112
      %v4044 = vpop.permute.xlu0 %4043
      %4045 = vrot.lane.b32.xlu0 %v4023, 112
      %v4046 = vpop.permute.xlu0 %4045
      %4047 = vrot.lane.b32.xlu0 %v4027, 112
      %v4048 = vpop.permute.xlu0 %4047
      %4049 = vrot.lane.b32.xlu0 %v4031, 112
      %v4050 = vpop.permute.xlu0 %4049
      %4051 = vrot.lane.b32.xlu0 %v4024, 112
      %v4052 = vpop.permute.xlu0 %4051
      %4053 = vrot.lane.b32.xlu0 %v4028, 112
      %v4054 = vpop.permute.xlu0 %4053
      %4055 = vrot.lane.b32.xlu0 %v4032, 112
      %v4056 = vpop.permute.xlu0 %4055
      %vm4057 = vcmp.lt.s32.totalorder %v977, 112
      %v4058 = vsel %vm4057, %v4046, %v4052
      %v4059 = vsel %vm4057, %v4048, %v4054
      %v4060 = vsel %vm4057, %v4050, %v4056
      %v4061 = vsel %vm4057, %v4040, %v4046
      %v4062 = vsel %vm4057, %v4042, %v4048
      %v4063 = vsel %vm4057, %v4044, %v4050
      %v4064 = vsel %vm4057, %v4034, %v4040
      %v4065 = vsel %vm4057, %v4036, %v4042
      %v4066 = vsel %vm4057, %v4038, %v4044
      %v4067 = vsel %vm4057, %v4052, %v4034
      %v4068 = vsel %vm4057, %v4054, %v4036
      %v4069 = vsel %vm4057, %v4056, %v4038
      %v4070 = vsub.s32 %v535, 4294967294
      %vm4071 = vcmp.ge.s32.totalorder %v4070, 0
      %vm4072 = vcmp.lt.s32.totalorder %v4070, 8
      %vm4073 = vmand %vm4071, %vm4072
      %v4074 = vsel %vm4073, 1, 0
      %v4075 = vcvt.s32.f32 %v4074
      %v4077 = vlaneseq
      %v4078 = vshrl.u32 %v4077, 7
      %v4079 = vsub.s32 0, %v4078
      %v4080 = vrot.slane %v4075, %v4079
      %v4081 = vlaneseq
      %v4082 = vshrl.u32 %v4081, 7
      %v4083 = vsub.s32 1, %v4082
      %v4084 = vrot.slane %v4075, %v4083
      %v4085 = vlaneseq
      %v4086 = vshrl.u32 %v4085, 7
      %v4087 = vsub.s32 2, %v4086
      %v4088 = vrot.slane %v4075, %v4087
      %v4089 = vlaneseq
      %v4090 = vshrl.u32 %v4089, 7
      %v4091 = vsub.s32 3, %v4090
      %v4092 = vrot.slane %v4075, %v4091
      %v4097 = vmul.f32 %v4080, %v4064
      %v4098 = vmul.f32 %v4084, %v4061
      %v4099 = vmul.f32 %v4088, %v4058
      %v4100 = vmul.f32 %v4092, %v4067
      %v4101 = vmul.f32 %v4080, %v4065
      %v4102 = vmul.f32 %v4084, %v4062
      %v4103 = vmul.f32 %v4088, %v4059
      %v4104 = vmul.f32 %v4092, %v4068
      %v4105 = vmul.f32 %v4080, %v4066
      %v4106 = vmul.f32 %v4084, %v4063
      %v4107 = vmul.f32 %v4088, %v4060
      %v4108 = vmul.f32 %v4092, %v4069
      %v4109 = vmul.f32 %v739, %v4097
      %v4110 = vmul.f32 %v739, %v4098
      %v4111 = vmul.f32 %v739, %v4099
      %v4112 = vmul.f32 %v739, %v4100
      %v4113 = vmul.f32 %v740, %v4101
      %v4114 = vmul.f32 %v740, %v4102
      %v4115 = vmul.f32 %v740, %v4103
      %v4116 = vmul.f32 %v740, %v4104
      %v4117 = vmul.f32 %v741, %v4105
      %v4118 = vmul.f32 %v741, %v4106
      %v4119 = vmul.f32 %v741, %v4107
      %v4120 = vmul.f32 %v741, %v4108
      %v4121 = vadd.f32 %v4109, 0.0
      %v4122 = vadd.f32 %v4110, 0.0
      %v4123 = vadd.f32 %v4111, 0.0
      %v4124 = vadd.f32 %v4112, 0.0
      %v4125 = vadd.f32 %v4113, 0.0
      %v4126 = vadd.f32 %v4114, 0.0
      %v4127 = vadd.f32 %v4115, 0.0
      %v4128 = vadd.f32 %v4116, 0.0
      %v4129 = vadd.f32 %v4117, 0.0
      %v4130 = vadd.f32 %v4118, 0.0
      %v4131 = vadd.f32 %v4119, 0.0
      %v4132 = vadd.f32 %v4120, 0.0
      %4133 = vrot.lane.b32.xlu0 %v4021, 120
      %v4134 = vpop.permute.xlu0 %4133
      %4135 = vrot.lane.b32.xlu0 %v4025, 120
      %v4136 = vpop.permute.xlu0 %4135
      %4137 = vrot.lane.b32.xlu0 %v4029, 120
      %v4138 = vpop.permute.xlu0 %4137
      %4139 = vrot.lane.b32.xlu0 %v4022, 120
      %v4140 = vpop.permute.xlu0 %4139
      %4141 = vrot.lane.b32.xlu0 %v4026, 120
      %v4142 = vpop.permute.xlu0 %4141
      %4143 = vrot.lane.b32.xlu0 %v4030, 120
      %v4144 = vpop.permute.xlu0 %4143
      %4145 = vrot.lane.b32.xlu0 %v4023, 120
      %v4146 = vpop.permute.xlu0 %4145
      %4147 = vrot.lane.b32.xlu0 %v4027, 120
      %v4148 = vpop.permute.xlu0 %4147
      %4149 = vrot.lane.b32.xlu0 %v4031, 120
      %v4150 = vpop.permute.xlu0 %4149
      %4151 = vrot.lane.b32.xlu0 %v4024, 120
      %v4152 = vpop.permute.xlu0 %4151
      %4153 = vrot.lane.b32.xlu0 %v4028, 120
      %v4154 = vpop.permute.xlu0 %4153
      %4155 = vrot.lane.b32.xlu0 %v4032, 120
      %v4156 = vpop.permute.xlu0 %4155
      %v4157 = vsel %vm3134, %v4146, %v4152
      %v4158 = vsel %vm3134, %v4148, %v4154
      %v4159 = vsel %vm3134, %v4150, %v4156
      %v4160 = vsel %vm3134, %v4140, %v4146
      %v4161 = vsel %vm3134, %v4142, %v4148
      %v4162 = vsel %vm3134, %v4144, %v4150
      %v4163 = vsel %vm3134, %v4134, %v4140
      %v4164 = vsel %vm3134, %v4136, %v4142
      %v4165 = vsel %vm3134, %v4138, %v4144
      %v4166 = vsel %vm3134, %v4152, %v4134
      %v4167 = vsel %vm3134, %v4154, %v4136
      %v4168 = vsel %vm3134, %v4156, %v4138
      %v4169 = vsub.s32 %v535, 4294967295
      %vm4170 = vcmp.ge.s32.totalorder %v4169, 0
      %vm4171 = vcmp.lt.s32.totalorder %v4169, 8
      %vm4172 = vmand %vm4170, %vm4171
      %v4173 = vsel %vm4172, 1, 0
      %v4174 = vcvt.s32.f32 %v4173
      %v4176 = vlaneseq
      %v4177 = vshrl.u32 %v4176, 7
      %v4178 = vsub.s32 0, %v4177
      %v4179 = vrot.slane %v4174, %v4178
      %v4180 = vlaneseq
      %v4181 = vshrl.u32 %v4180, 7
      %v4182 = vsub.s32 1, %v4181
      %v4183 = vrot.slane %v4174, %v4182
      %v4184 = vlaneseq
      %v4185 = vshrl.u32 %v4184, 7
      %v4186 = vsub.s32 2, %v4185
      %v4187 = vrot.slane %v4174, %v4186
      %v4188 = vlaneseq
      %v4189 = vshrl.u32 %v4188, 7
      %v4190 = vsub.s32 3, %v4189
      %v4191 = vrot.slane %v4174, %v4190
      %v4196 = vmul.f32 %v4179, %v4163
      %v4197 = vmul.f32 %v4183, %v4160
      %v4198 = vmul.f32 %v4187, %v4157
      %v4199 = vmul.f32 %v4191, %v4166
      %v4200 = vmul.f32 %v4179, %v4164
      %v4201 = vmul.f32 %v4183, %v4161
      %v4202 = vmul.f32 %v4187, %v4158
      %v4203 = vmul.f32 %v4191, %v4167
      %v4204 = vmul.f32 %v4179, %v4165
      %v4205 = vmul.f32 %v4183, %v4162
      %v4206 = vmul.f32 %v4187, %v4159
      %v4207 = vmul.f32 %v4191, %v4168
      %v4208 = vmul.f32 %v754, %v4196
      %v4209 = vmul.f32 %v754, %v4197
      %v4210 = vmul.f32 %v754, %v4198
      %v4211 = vmul.f32 %v754, %v4199
      %v4212 = vmul.f32 %v755, %v4200
      %v4213 = vmul.f32 %v755, %v4201
      %v4214 = vmul.f32 %v755, %v4202
      %v4215 = vmul.f32 %v755, %v4203
      %v4216 = vmul.f32 %v756, %v4204
      %v4217 = vmul.f32 %v756, %v4205
      %v4218 = vmul.f32 %v756, %v4206
      %v4219 = vmul.f32 %v756, %v4207
      %v4220 = vadd.f32 %v4121, %v4208
      %v4221 = vadd.f32 %v4122, %v4209
      %v4222 = vadd.f32 %v4123, %v4210
      %v4223 = vadd.f32 %v4124, %v4211
      %v4224 = vadd.f32 %v4125, %v4212
      %v4225 = vadd.f32 %v4126, %v4213
      %v4226 = vadd.f32 %v4127, %v4214
      %v4227 = vadd.f32 %v4128, %v4215
      %v4228 = vadd.f32 %v4129, %v4216
      %v4229 = vadd.f32 %v4130, %v4217
      %v4230 = vadd.f32 %v4131, %v4218
      %v4231 = vadd.f32 %v4132, %v4219
      %v4233 = vlaneseq
      %v4234 = vshrl.u32 %v4233, 7
      %v4235 = vsub.s32 0, %v4234
      %v4236 = vrot.slane %v829, %v4235
      %v4237 = vlaneseq
      %v4238 = vshrl.u32 %v4237, 7
      %v4239 = vsub.s32 1, %v4238
      %v4240 = vrot.slane %v829, %v4239
      %v4241 = vlaneseq
      %v4242 = vshrl.u32 %v4241, 7
      %v4243 = vsub.s32 2, %v4242
      %v4244 = vrot.slane %v829, %v4243
      %v4245 = vlaneseq
      %v4246 = vshrl.u32 %v4245, 7
      %v4247 = vsub.s32 3, %v4246
      %v4248 = vrot.slane %v829, %v4247
      %v4253 = vmul.f32 %v4236, %v4021
      %v4254 = vmul.f32 %v4240, %v4022
      %v4255 = vmul.f32 %v4244, %v4023
      %v4256 = vmul.f32 %v4248, %v4024
      %v4257 = vmul.f32 %v4236, %v4025
      %v4258 = vmul.f32 %v4240, %v4026
      %v4259 = vmul.f32 %v4244, %v4027
      %v4260 = vmul.f32 %v4248, %v4028
      %v4261 = vmul.f32 %v4236, %v4029
      %v4262 = vmul.f32 %v4240, %v4030
      %v4263 = vmul.f32 %v4244, %v4031
      %v4264 = vmul.f32 %v4248, %v4032
      %v4265 = vmul.f32 %v769, %v4253
      %v4266 = vmul.f32 %v769, %v4254
      %v4267 = vmul.f32 %v769, %v4255
      %v4268 = vmul.f32 %v769, %v4256
      %v4269 = vmul.f32 %v770, %v4257
      %v4270 = vmul.f32 %v770, %v4258
      %v4271 = vmul.f32 %v770, %v4259
      %v4272 = vmul.f32 %v770, %v4260
      %v4273 = vmul.f32 %v771, %v4261
      %v4274 = vmul.f32 %v771, %v4262
      %v4275 = vmul.f32 %v771, %v4263
      %v4276 = vmul.f32 %v771, %v4264
      %v4277 = vadd.f32 %v4220, %v4265
      %v4278 = vadd.f32 %v4221, %v4266
      %v4279 = vadd.f32 %v4222, %v4267
      %v4280 = vadd.f32 %v4223, %v4268
      %v4281 = vadd.f32 %v4224, %v4269
      %v4282 = vadd.f32 %v4225, %v4270
      %v4283 = vadd.f32 %v4226, %v4271
      %v4284 = vadd.f32 %v4227, %v4272
      %v4285 = vadd.f32 %v4228, %v4273
      %v4286 = vadd.f32 %v4229, %v4274
      %v4287 = vadd.f32 %v4230, %v4275
      %v4288 = vadd.f32 %v4231, %v4276
      %4289 = vrot.lane.b32.xlu0 %v4021, 8
      %v4290 = vpop.permute.xlu0 %4289
      %4291 = vrot.lane.b32.xlu0 %v4025, 8
      %v4292 = vpop.permute.xlu0 %4291
      %4293 = vrot.lane.b32.xlu0 %v4029, 8
      %v4294 = vpop.permute.xlu0 %4293
      %4295 = vrot.lane.b32.xlu0 %v4022, 8
      %v4296 = vpop.permute.xlu0 %4295
      %4297 = vrot.lane.b32.xlu0 %v4026, 8
      %v4298 = vpop.permute.xlu0 %4297
      %4299 = vrot.lane.b32.xlu0 %v4030, 8
      %v4300 = vpop.permute.xlu0 %4299
      %4301 = vrot.lane.b32.xlu0 %v4023, 8
      %v4302 = vpop.permute.xlu0 %4301
      %4303 = vrot.lane.b32.xlu0 %v4027, 8
      %v4304 = vpop.permute.xlu0 %4303
      %4305 = vrot.lane.b32.xlu0 %v4031, 8
      %v4306 = vpop.permute.xlu0 %4305
      %4307 = vrot.lane.b32.xlu0 %v4024, 8
      %v4308 = vpop.permute.xlu0 %4307
      %4309 = vrot.lane.b32.xlu0 %v4028, 8
      %v4310 = vpop.permute.xlu0 %4309
      %4311 = vrot.lane.b32.xlu0 %v4032, 8
      %v4312 = vpop.permute.xlu0 %4311
      %v4313 = vsel %vm2535, %v4302, %v4308
      %v4314 = vsel %vm2535, %v4304, %v4310
      %v4315 = vsel %vm2535, %v4306, %v4312
      %v4316 = vsel %vm2535, %v4296, %v4302
      %v4317 = vsel %vm2535, %v4298, %v4304
      %v4318 = vsel %vm2535, %v4300, %v4306
      %v4319 = vsel %vm2535, %v4290, %v4296
      %v4320 = vsel %vm2535, %v4292, %v4298
      %v4321 = vsel %vm2535, %v4294, %v4300
      %v4322 = vsel %vm2535, %v4308, %v4290
      %v4323 = vsel %vm2535, %v4310, %v4292
      %v4324 = vsel %vm2535, %v4312, %v4294
      %v4325 = vsub.s32 %v535, 1
      %vm4326 = vcmp.ge.s32.totalorder %v4325, 0
      %vm4327 = vcmp.lt.s32.totalorder %v4325, 8
      %vm4328 = vmand %vm4326, %vm4327
      %v4329 = vsel %vm4328, 1, 0
      %v4330 = vcvt.s32.f32 %v4329
      %v4332 = vlaneseq
      %v4333 = vshrl.u32 %v4332, 7
      %v4334 = vsub.s32 0, %v4333
      %v4335 = vrot.slane %v4330, %v4334
      %v4336 = vlaneseq
      %v4337 = vshrl.u32 %v4336, 7
      %v4338 = vsub.s32 1, %v4337
      %v4339 = vrot.slane %v4330, %v4338
      %v4340 = vlaneseq
      %v4341 = vshrl.u32 %v4340, 7
      %v4342 = vsub.s32 2, %v4341
      %v4343 = vrot.slane %v4330, %v4342
      %v4344 = vlaneseq
      %v4345 = vshrl.u32 %v4344, 7
      %v4346 = vsub.s32 3, %v4345
      %v4347 = vrot.slane %v4330, %v4346
      %v4352 = vmul.f32 %v4335, %v4322
      %v4353 = vmul.f32 %v4339, %v4319
      %v4354 = vmul.f32 %v4343, %v4316
      %v4355 = vmul.f32 %v4347, %v4313
      %v4356 = vmul.f32 %v4335, %v4323
      %v4357 = vmul.f32 %v4339, %v4320
      %v4358 = vmul.f32 %v4343, %v4317
      %v4359 = vmul.f32 %v4347, %v4314
      %v4360 = vmul.f32 %v4335, %v4324
      %v4361 = vmul.f32 %v4339, %v4321
      %v4362 = vmul.f32 %v4343, %v4318
      %v4363 = vmul.f32 %v4347, %v4315
      %v4364 = vmul.f32 %v784, %v4352
      %v4365 = vmul.f32 %v784, %v4353
      %v4366 = vmul.f32 %v784, %v4354
      %v4367 = vmul.f32 %v784, %v4355
      %v4368 = vmul.f32 %v785, %v4356
      %v4369 = vmul.f32 %v785, %v4357
      %v4370 = vmul.f32 %v785, %v4358
      %v4371 = vmul.f32 %v785, %v4359
      %v4372 = vmul.f32 %v786, %v4360
      %v4373 = vmul.f32 %v786, %v4361
      %v4374 = vmul.f32 %v786, %v4362
      %v4375 = vmul.f32 %v786, %v4363
      %v4376 = vadd.f32 %v4277, %v4364
      %v4377 = vadd.f32 %v4278, %v4365
      %v4378 = vadd.f32 %v4279, %v4366
      %v4379 = vadd.f32 %v4280, %v4367
      %v4380 = vadd.f32 %v4281, %v4368
      %v4381 = vadd.f32 %v4282, %v4369
      %v4382 = vadd.f32 %v4283, %v4370
      %v4383 = vadd.f32 %v4284, %v4371
      %v4384 = vadd.f32 %v4285, %v4372
      %v4385 = vadd.f32 %v4286, %v4373
      %v4386 = vadd.f32 %v4287, %v4374
      %v4387 = vadd.f32 %v4288, %v4375
      %4388 = vrot.lane.b32.xlu0 %v4021, 16
      %v4389 = vpop.permute.xlu0 %4388
      %4390 = vrot.lane.b32.xlu0 %v4025, 16
      %v4391 = vpop.permute.xlu0 %4390
      %4392 = vrot.lane.b32.xlu0 %v4029, 16
      %v4393 = vpop.permute.xlu0 %4392
      %4394 = vrot.lane.b32.xlu0 %v4022, 16
      %v4395 = vpop.permute.xlu0 %4394
      %4396 = vrot.lane.b32.xlu0 %v4026, 16
      %v4397 = vpop.permute.xlu0 %4396
      %4398 = vrot.lane.b32.xlu0 %v4030, 16
      %v4399 = vpop.permute.xlu0 %4398
      %4400 = vrot.lane.b32.xlu0 %v4023, 16
      %v4401 = vpop.permute.xlu0 %4400
      %4402 = vrot.lane.b32.xlu0 %v4027, 16
      %v4403 = vpop.permute.xlu0 %4402
      %4404 = vrot.lane.b32.xlu0 %v4031, 16
      %v4405 = vpop.permute.xlu0 %4404
      %4406 = vrot.lane.b32.xlu0 %v4024, 16
      %v4407 = vpop.permute.xlu0 %4406
      %4408 = vrot.lane.b32.xlu0 %v4028, 16
      %v4409 = vpop.permute.xlu0 %4408
      %4410 = vrot.lane.b32.xlu0 %v4032, 16
      %v4411 = vpop.permute.xlu0 %4410
      %vm4412 = vcmp.lt.s32.totalorder %v977, 16
      %v4413 = vsel %vm4412, %v4401, %v4407
      %v4414 = vsel %vm4412, %v4403, %v4409
      %v4415 = vsel %vm4412, %v4405, %v4411
      %v4416 = vsel %vm4412, %v4395, %v4401
      %v4417 = vsel %vm4412, %v4397, %v4403
      %v4418 = vsel %vm4412, %v4399, %v4405
      %v4419 = vsel %vm4412, %v4389, %v4395
      %v4420 = vsel %vm4412, %v4391, %v4397
      %v4421 = vsel %vm4412, %v4393, %v4399
      %v4422 = vsel %vm4412, %v4407, %v4389
      %v4423 = vsel %vm4412, %v4409, %v4391
      %v4424 = vsel %vm4412, %v4411, %v4393
      %v4425 = vsub.s32 %v535, 2
      %vm4426 = vcmp.ge.s32.totalorder %v4425, 0
      %vm4427 = vcmp.lt.s32.totalorder %v4425, 8
      %vm4428 = vmand %vm4426, %vm4427
      %v4429 = vsel %vm4428, 1, 0
      %v4430 = vcvt.s32.f32 %v4429
      %v4432 = vlaneseq
      %v4433 = vshrl.u32 %v4432, 7
      %v4434 = vsub.s32 0, %v4433
      %v4435 = vrot.slane %v4430, %v4434
      %v4436 = vlaneseq
      %v4437 = vshrl.u32 %v4436, 7
      %v4438 = vsub.s32 1, %v4437
      %v4439 = vrot.slane %v4430, %v4438
      %v4440 = vlaneseq
      %v4441 = vshrl.u32 %v4440, 7
      %v4442 = vsub.s32 2, %v4441
      %v4443 = vrot.slane %v4430, %v4442
      %v4444 = vlaneseq
      %v4445 = vshrl.u32 %v4444, 7
      %v4446 = vsub.s32 3, %v4445
      %v4447 = vrot.slane %v4430, %v4446
      %v4452 = vmul.f32 %v4435, %v4422
      %v4453 = vmul.f32 %v4439, %v4419
      %v4454 = vmul.f32 %v4443, %v4416
      %v4455 = vmul.f32 %v4447, %v4413
      %v4456 = vmul.f32 %v4435, %v4423
      %v4457 = vmul.f32 %v4439, %v4420
      %v4458 = vmul.f32 %v4443, %v4417
      %v4459 = vmul.f32 %v4447, %v4414
      %v4460 = vmul.f32 %v4435, %v4424
      %v4461 = vmul.f32 %v4439, %v4421
      %v4462 = vmul.f32 %v4443, %v4418
      %v4463 = vmul.f32 %v4447, %v4415
      %v4464 = vmul.f32 %v799, %v4452
      %v4465 = vmul.f32 %v799, %v4453
      %v4466 = vmul.f32 %v799, %v4454
      %v4467 = vmul.f32 %v799, %v4455
      %v4468 = vmul.f32 %v800, %v4456
      %v4469 = vmul.f32 %v800, %v4457
      %v4470 = vmul.f32 %v800, %v4458
      %v4471 = vmul.f32 %v800, %v4459
      %v4472 = vmul.f32 %v801, %v4460
      %v4473 = vmul.f32 %v801, %v4461
      %v4474 = vmul.f32 %v801, %v4462
      %v4475 = vmul.f32 %v801, %v4463
      %v4476 = vadd.f32 %v4376, %v4464
      %v4477 = vadd.f32 %v4377, %v4465
      %v4478 = vadd.f32 %v4378, %v4466
      %v4479 = vadd.f32 %v4379, %v4467
      %v4480 = vadd.f32 %v4380, %v4468
      %v4481 = vadd.f32 %v4381, %v4469
      %v4482 = vadd.f32 %v4382, %v4470
      %v4483 = vadd.f32 %v4383, %v4471
      %v4484 = vadd.f32 %v4384, %v4472
      %v4485 = vadd.f32 %v4385, %v4473
      %v4486 = vadd.f32 %v4386, %v4474
      %v4487 = vadd.f32 %v4387, %v4475
      %v4488 = vld [vmem:[%s10] sm:$0xff]
      %v4489 = vld [vmem:[%s10 + $0x8] sm:$0xff]
      %v4490 = vld [vmem:[%s10 + $0x10] sm:$0xf]
      %v4491 = vld [vmem:[%s11] sm:$0xff]
      %v4492 = vld [vmem:[%s11 + $0x8] sm:$0xff]
      %v4493 = vld [vmem:[%s11 + $0x10] sm:$0xf]
      %4495 = vset.pattern.permute.xlu0 0
      %4496 = vperm.xlu0 %4495, %v4491
      %v4497 = vpop.permute.xlu0 %4496
      %4500 = vset.pattern.permute.xlu0 0
      %4501 = vperm.xlu0 %4500, %v4492
      %v4502 = vpop.permute.xlu0 %4501
      %4505 = vset.pattern.permute.xlu0 0
      %4506 = vperm.xlu0 %4505, %v4493
      %v4507 = vpop.permute.xlu0 %4506
      %v4510 = vsel %vm1258, %v4488, 0
      %v4513 = vsel %vm1258, %v4489, 0
      %v4516 = vsel %vm1258, %v4490, 0
      %v4519 = vsel %vm538, %v4484, 0
      %v4522 = vsel %vm538, %v4485, 0
      %v4525 = vsel %vm538, %v4486, 0
      %v4528 = vsel %vm538, %v4487, 0
      %4530 = vmatprep.subr.mxu0 %v4477
      %4531 = vmatpush1.msra.mxu0 %v4476
      %4532 = vmatprep.subr.mxu0 %v4481
      %4533 = vmatpush1.msra.mxu0 %v4480
      %4534 = vmatprep.subr.mxu0 %v4522
      %4535 = vmatpush1.msra.mxu0 %v4519
      %4536 = vmatprep.subr.mxu0 0.0
      %4537 = vmatpush1.msra.mxu0 0.0
      %4538 = vmatprep.subr.mxu0 0.0
      %4539 = vmatpush1.msra.mxu0 0.0
      %4540 = vmatprep.subr.mxu0 0.0
      %4541 = vmatpush1.msra.mxu0 0.0
      %4542 = vmatprep.subr.mxu0 0.0
      %4543 = vmatpush1.msra.mxu0 0.0
      %4544 = vmatprep.subr.mxu0 0.0
      %4545 = vmatpush1.msra.mxu0 0.0
      %4546 = vmatprep.subr.mxu0 0.0
      %4547 = vmatpush1.msra.mxu0 0.0
      %4548 = vmatprep.subr.mxu0 0.0
      %4549 = vmatpush1.msra.mxu0 0.0
      %4550 = vmatprep.subr.mxu0 0.0
      %4551 = vmatpush1.msra.mxu0 0.0
      %4552 = vmatprep.subr.mxu0 0.0
      %4553 = vmatpush1.msra.mxu0 0.0
      %4554 = vmatprep.subr.mxu0 0.0
      %4555 = vmatpush1.msra.mxu0 0.0
      %4556 = vmatprep.subr.mxu0 0.0
      %4557 = vmatpush1.msra.mxu0 0.0
      %4558 = vmatprep.subr.mxu0 0.0
      %4559 = vmatpush1.msra.mxu0 0.0
      %4560 = vmatprep.subr.mxu0 0.0
      %4561 = vmatpush1.msra.mxu0 0.0
      %4562 = vmatprep.subr.mxu0 0.0
      %4563 = vmatpush1.msra.mxu0 0.0
      %4564 = vmatprep.subr.mxu0 0.0
      %4565 = vmatpush1.msra.mxu0 0.0
      %4566 = vmatprep.subr.mxu0 0.0
      %4567 = vmatpush1.msra.mxu0 0.0
      %4568 = vmatprep.subr.mxu0 0.0
      %4569 = vmatpush1.msra.mxu0 0.0
      %4570 = vmatprep.subr.mxu0 0.0
      %4571 = vmatpush1.msra.mxu0 0.0
      %4572 = vmatprep.subr.mxu0 0.0
      %4573 = vmatpush1.msra.mxu0 0.0
      %4574 = vmatprep.subr.mxu0 0.0
      %4575 = vmatpush1.msra.mxu0 0.0
      %4576 = vmatprep.subr.mxu0 0.0
      %4577 = vmatpush1.msra.mxu0 0.0
      %4578 = vmatprep.subr.mxu0 0.0
      %4579 = vmatpush1.msra.mxu0 0.0
      %4580 = vmatprep.subr.mxu0 0.0
      %4581 = vmatpush1.msra.mxu0 0.0
      %4582 = vmatprep.subr.mxu0 0.0
      %4583 = vmatpush1.msra.mxu0 0.0
      %4584 = vmatprep.subr.mxu0 0.0
      %4585 = vmatpush1.msra.mxu0 0.0
      %4586 = vmatprep.subr.mxu0 0.0
      %4587 = vmatpush1.msra.mxu0 0.0
      %4588 = vmatprep.subr.mxu0 0.0
      %4589 = vmatpush1.msra.mxu0 0.0
      %4590 = vmatprep.subr.mxu0 0.0
      %4591 = vmatpush1.msra.mxu0 0.0
      %4592 = vmatprep.subr.mxu0 0.0
      %4593 = vmatpush1.msra.mxu0 0.0
      %4594 = vmatprep.mubr.f32.mxu0 0.0
      %4595 = vmatmul.mubr.f32.gmra.mrb[0].mxu0 %v4510
      %v4596 = vpop.f32.mrb[0].mxu0
      %v4597 = vadd.f32 %v4497, %v4596
      %v4598 = vpop.f32.mrb[0].mxu0
      %v4599 = vadd.f32 %v4497, %v4598
      %4600 = vmatprep.mubr.f32.mxu0 0.0
      %4601 = vmatmul.mubr.f32.gmra.mrb[0].mxu0 %v4513
      %v4602 = vpop.f32.mrb[0].mxu0
      %v4603 = vadd.f32 %v4502, %v4602
      %v4604 = vpop.f32.mrb[0].mxu0
      %v4605 = vadd.f32 %v4502, %v4604
      %4606 = vmatprep.mubr.f32.mxu0 0.0
      %4607 = vmatmul.mubr.f32.gmra.mrb[0].mxu0 %v4516
      %v4608 = vpop.f32.mrb[0].mxu0
      %v4609 = vadd.f32 %v4507, %v4608
      %v4610 = vpop.f32.mrb[0].mxu0
      %v4611 = vadd.f32 %v4507, %v4610
      %4612 = vdwg.mxu0
      %4613 = vmatprep.subr.mxu0 %v4479
      %4614 = vmatpush1.msra.mxu0 %v4478
      %4615 = vmatprep.subr.mxu0 %v4483
      %4616 = vmatpush1.msra.mxu0 %v4482
      %4617 = vmatprep.subr.mxu0 %v4528
      %4618 = vmatpush1.msra.mxu0 %v4525
      %4619 = vmatprep.subr.mxu0 0.0
      %4620 = vmatpush1.msra.mxu0 0.0
      %4621 = vmatprep.subr.mxu0 0.0
      %4622 = vmatpush1.msra.mxu0 0.0
      %4623 = vmatprep.subr.mxu0 0.0
      %4624 = vmatpush1.msra.mxu0 0.0
      %4625 = vmatprep.subr.mxu0 0.0
      %4626 = vmatpush1.msra.mxu0 0.0
      %4627 = vmatprep.subr.mxu0 0.0
      %4628 = vmatpush1.msra.mxu0 0.0
      %4629 = vmatprep.subr.mxu0 0.0
      %4630 = vmatpush1.msra.mxu0 0.0
      %4631 = vmatprep.subr.mxu0 0.0
      %4632 = vmatpush1.msra.mxu0 0.0
      %4633 = vmatprep.subr.mxu0 0.0
      %4634 = vmatpush1.msra.mxu0 0.0
      %4635 = vmatprep.subr.mxu0 0.0
      %4636 = vmatpush1.msra.mxu0 0.0
      %4637 = vmatprep.subr.mxu0 0.0
      %4638 = vmatpush1.msra.mxu0 0.0
      %4639 = vmatprep.subr.mxu0 0.0
      %4640 = vmatpush1.msra.mxu0 0.0
      %4641 = vmatprep.subr.mxu0 0.0
      %4642 = vmatpush1.msra.mxu0 0.0
      %4643 = vmatprep.subr.mxu0 0.0
      %4644 = vmatpush1.msra.mxu0 0.0
      %4645 = vmatprep.subr.mxu0 0.0
      %4646 = vmatpush1.msra.mxu0 0.0
      %4647 = vmatprep.subr.mxu0 0.0
      %4648 = vmatpush1.msra.mxu0 0.0
      %4649 = vmatprep.subr.mxu0 0.0
      %4650 = vmatpush1.msra.mxu0 0.0
      %4651 = vmatprep.subr.mxu0 0.0
      %4652 = vmatpush1.msra.mxu0 0.0
      %4653 = vmatprep.subr.mxu0 0.0
      %4654 = vmatpush1.msra.mxu0 0.0
      %4655 = vmatprep.subr.mxu0 0.0
      %4656 = vmatpush1.msra.mxu0 0.0
      %4657 = vmatprep.subr.mxu0 0.0
      %4658 = vmatpush1.msra.mxu0 0.0
      %4659 = vmatprep.subr.mxu0 0.0
      %4660 = vmatpush1.msra.mxu0 0.0
      %4661 = vmatprep.subr.mxu0 0.0
      %4662 = vmatpush1.msra.mxu0 0.0
      %4663 = vmatprep.subr.mxu0 0.0
      %4664 = vmatpush1.msra.mxu0 0.0
      %4665 = vmatprep.subr.mxu0 0.0
      %4666 = vmatpush1.msra.mxu0 0.0
      %4667 = vmatprep.subr.mxu0 0.0
      %4668 = vmatpush1.msra.mxu0 0.0
      %4669 = vmatprep.subr.mxu0 0.0
      %4670 = vmatpush1.msra.mxu0 0.0
      %4671 = vmatprep.subr.mxu0 0.0
      %4672 = vmatpush1.msra.mxu0 0.0
      %4673 = vmatprep.subr.mxu0 0.0
      %4674 = vmatpush1.msra.mxu0 0.0
      %4675 = vmatprep.subr.mxu0 0.0
      %4676 = vmatpush1.msra.mxu0 0.0
      %4677 = vmatprep.mubr.f32.mxu0 0.0
      %4678 = vmatmul.mubr.f32.gmra.mrb[0].mxu0 %v4510
      %v4679 = vpop.f32.mrb[0].mxu0
      %v4680 = vadd.f32 %v4497, %v4679
      %v4681 = vpop.f32.mrb[0].mxu0
      %v4682 = vadd.f32 %v4497, %v4681
      %4683 = vmatprep.mubr.f32.mxu0 0.0
      %4684 = vmatmul.mubr.f32.gmra.mrb[0].mxu0 %v4513
      %v4685 = vpop.f32.mrb[0].mxu0
      %v4686 = vadd.f32 %v4502, %v4685
      %v4687 = vpop.f32.mrb[0].mxu0
      %v4688 = vadd.f32 %v4502, %v4687
      %4689 = vmatprep.mubr.f32.mxu0 0.0
      %4690 = vmatmul.mubr.f32.gmra.mrb[0].mxu0 %v4516
      %v4691 = vpop.f32.mrb[0].mxu0
      %v4692 = vadd.f32 %v4507, %v4691
      %v4693 = vpop.f32.mrb[0].mxu0
      %v4694 = vadd.f32 %v4507, %v4693
      %4695 = vdwg.mxu0
      %v4696 = vld [vmem:[%s12] sm:$0xff]
      %v4697 = vld [vmem:[%s12 + $0x8] sm:$0xff]
      %v4698 = vld [vmem:[%s12 + $0x10] sm:$0xf]
      %4699 = vrot.lane.b32.xlu0 %v4597, 73
      %v4700 = vpop.permute.xlu0 %4699
      %4701 = vrot.lane.b32.xlu0 %v4603, 73
      %v4702 = vpop.permute.xlu0 %4701
      %4703 = vrot.lane.b32.xlu0 %v4609, 73
      %v4704 = vpop.permute.xlu0 %4703
      %4705 = vrot.lane.b32.xlu0 %v4599, 73
      %v4706 = vpop.permute.xlu0 %4705
      %4707 = vrot.lane.b32.xlu0 %v4605, 73
      %v4708 = vpop.permute.xlu0 %4707
      %4709 = vrot.lane.b32.xlu0 %v4611, 73
      %v4710 = vpop.permute.xlu0 %4709
      %4711 = vrot.lane.b32.xlu0 %v4680, 73
      %v4712 = vpop.permute.xlu0 %4711
      %4713 = vrot.lane.b32.xlu0 %v4686, 73
      %v4714 = vpop.permute.xlu0 %4713
      %4715 = vrot.lane.b32.xlu0 %v4692, 73
      %v4716 = vpop.permute.xlu0 %4715
      %4717 = vrot.lane.b32.xlu0 %v4682, 73
      %v4718 = vpop.permute.xlu0 %4717
      %4719 = vrot.lane.b32.xlu0 %v4688, 73
      %v4720 = vpop.permute.xlu0 %4719
      %4721 = vrot.lane.b32.xlu0 %v4694, 73
      %v4722 = vpop.permute.xlu0 %4721
      %v4723 = vsel %vm1473, %v4712, %v4718
      %v4724 = vsel %vm1473, %v4714, %v4720
      %v4725 = vsel %vm1473, %v4716, %v4722
      %v4726 = vsel %vm1473, %v4706, %v4712
      %v4727 = vsel %vm1473, %v4708, %v4714
      %v4728 = vsel %vm1473, %v4710, %v4716
      %v4729 = vsel %vm1473, %v4700, %v4706
      %v4730 = vsel %vm1473, %v4702, %v4708
      %v4731 = vsel %vm1473, %v4704, %v4710
      %v4732 = vsel %vm1473, %v4718, %v4700
      %v4733 = vsel %vm1473, %v4720, %v4702
      %v4734 = vsel %vm1473, %v4722, %v4704
      %4736 = vset.pattern.permute.xlu0 0
      %4737 = vperm.xlu0 %4736, %v4696
      %v4738 = vpop.permute.xlu0 %4737
      %4741 = vset.pattern.permute.xlu0 0
      %4742 = vperm.xlu0 %4741, %v4697
      %v4743 = vpop.permute.xlu0 %4742
      %4746 = vset.pattern.permute.xlu0 0
      %4747 = vperm.xlu0 %4746, %v4698
      %v4748 = vpop.permute.xlu0 %4747
      %v4750 = vmul.f32 %v4738, %v1505
      %v4751 = vmul.f32 %v4738, %v1509
      %v4752 = vmul.f32 %v4738, %v1513
      %v4753 = vmul.f32 %v4738, %v1517
      %v4754 = vmul.f32 %v4743, %v1505
      %v4755 = vmul.f32 %v4743, %v1509
      %v4756 = vmul.f32 %v4743, %v1513
      %v4757 = vmul.f32 %v4743, %v1517
      %v4758 = vmul.f32 %v4748, %v1505
      %v4759 = vmul.f32 %v4748, %v1509
      %v4760 = vmul.f32 %v4748, %v1513
      %v4761 = vmul.f32 %v4748, %v1517
      %v4762 = vmul.f32 %v4750, %v4732
      %v4763 = vmul.f32 %v4751, %v4729
      %v4764 = vmul.f32 %v4752, %v4726
      %v4765 = vmul.f32 %v4753, %v4723
      %v4766 = vmul.f32 %v4754, %v4733
      %v4767 = vmul.f32 %v4755, %v4730
      %v4768 = vmul.f32 %v4756, %v4727
      %v4769 = vmul.f32 %v4757, %v4724
      %v4770 = vmul.f32 %v4758, %v4734
      %v4771 = vmul.f32 %v4759, %v4731
      %v4772 = vmul.f32 %v4760, %v4728
      %v4773 = vmul.f32 %v4761, %v4725
      %v4774 = vadd.f32 %v4762, 0.0
      %v4775 = vadd.f32 %v4763, 0.0
      %v4776 = vadd.f32 %v4764, 0.0
      %v4777 = vadd.f32 %v4765, 0.0
      %v4778 = vadd.f32 %v4766, 0.0
      %v4779 = vadd.f32 %v4767, 0.0
      %v4780 = vadd.f32 %v4768, 0.0
      %v4781 = vadd.f32 %v4769, 0.0
      %v4782 = vadd.f32 %v4770, 0.0
      %v4783 = vadd.f32 %v4771, 0.0
      %v4784 = vadd.f32 %v4772, 0.0
      %v4785 = vadd.f32 %v4773, 0.0
      %4786 = vrot.lane.b32.xlu0 %v4597, 72
      %v4787 = vpop.permute.xlu0 %4786
      %4788 = vrot.lane.b32.xlu0 %v4603, 72
      %v4789 = vpop.permute.xlu0 %4788
      %4790 = vrot.lane.b32.xlu0 %v4609, 72
      %v4791 = vpop.permute.xlu0 %4790
      %4792 = vrot.lane.b32.xlu0 %v4599, 72
      %v4793 = vpop.permute.xlu0 %4792
      %4794 = vrot.lane.b32.xlu0 %v4605, 72
      %v4795 = vpop.permute.xlu0 %4794
      %4796 = vrot.lane.b32.xlu0 %v4611, 72
      %v4797 = vpop.permute.xlu0 %4796
      %4798 = vrot.lane.b32.xlu0 %v4680, 72
      %v4799 = vpop.permute.xlu0 %4798
      %4800 = vrot.lane.b32.xlu0 %v4686, 72
      %v4801 = vpop.permute.xlu0 %4800
      %4802 = vrot.lane.b32.xlu0 %v4692, 72
      %v4803 = vpop.permute.xlu0 %4802
      %4804 = vrot.lane.b32.xlu0 %v4682, 72
      %v4805 = vpop.permute.xlu0 %4804
      %4806 = vrot.lane.b32.xlu0 %v4688, 72
      %v4807 = vpop.permute.xlu0 %4806
      %4808 = vrot.lane.b32.xlu0 %v4694, 72
      %v4809 = vpop.permute.xlu0 %4808
      %v4810 = vsel %vm1582, %v4799, %v4805
      %v4811 = vsel %vm1582, %v4801, %v4807
      %v4812 = vsel %vm1582, %v4803, %v4809
      %v4813 = vsel %vm1582, %v4793, %v4799
      %v4814 = vsel %vm1582, %v4795, %v4801
      %v4815 = vsel %vm1582, %v4797, %v4803
      %v4816 = vsel %vm1582, %v4787, %v4793
      %v4817 = vsel %vm1582, %v4789, %v4795
      %v4818 = vsel %vm1582, %v4791, %v4797
      %v4819 = vsel %vm1582, %v4805, %v4787
      %v4820 = vsel %vm1582, %v4807, %v4789
      %v4821 = vsel %vm1582, %v4809, %v4791
      %4822 = vset.pattern.permute.xlu0 1
      %4823 = vperm.xlu0 %4822, %v4696
      %v4824 = vpop.permute.xlu0 %4823
      %4826 = vset.pattern.permute.xlu0 1
      %4827 = vperm.xlu0 %4826, %v4697
      %v4828 = vpop.permute.xlu0 %4827
      %4830 = vset.pattern.permute.xlu0 1
      %4831 = vperm.xlu0 %4830, %v4698
      %v4832 = vpop.permute.xlu0 %4831
      %v4834 = vmul.f32 %v4824, %v1611
      %v4835 = vmul.f32 %v4824, %v1615
      %v4836 = vmul.f32 %v4824, %v1619
      %v4837 = vmul.f32 %v4824, %v1623
      %v4838 = vmul.f32 %v4828, %v1611
      %v4839 = vmul.f32 %v4828, %v1615
      %v4840 = vmul.f32 %v4828, %v1619
      %v4841 = vmul.f32 %v4828, %v1623
      %v4842 = vmul.f32 %v4832, %v1611
      %v4843 = vmul.f32 %v4832, %v1615
      %v4844 = vmul.f32 %v4832, %v1619
      %v4845 = vmul.f32 %v4832, %v1623
      %v4846 = vmul.f32 %v4834, %v4819
      %v4847 = vmul.f32 %v4835, %v4816
      %v4848 = vmul.f32 %v4836, %v4813
      %v4849 = vmul.f32 %v4837, %v4810
      %v4850 = vmul.f32 %v4838, %v4820
      %v4851 = vmul.f32 %v4839, %v4817
      %v4852 = vmul.f32 %v4840, %v4814
      %v4853 = vmul.f32 %v4841, %v4811
      %v4854 = vmul.f32 %v4842, %v4821
      %v4855 = vmul.f32 %v4843, %v4818
      %v4856 = vmul.f32 %v4844, %v4815
      %v4857 = vmul.f32 %v4845, %v4812
      %v4858 = vadd.f32 %v4774, %v4846
      %v4859 = vadd.f32 %v4775, %v4847
      %v4860 = vadd.f32 %v4776, %v4848
      %v4861 = vadd.f32 %v4777, %v4849
      %v4862 = vadd.f32 %v4778, %v4850
      %v4863 = vadd.f32 %v4779, %v4851
      %v4864 = vadd.f32 %v4780, %v4852
      %v4865 = vadd.f32 %v4781, %v4853
      %v4866 = vadd.f32 %v4782, %v4854
      %v4867 = vadd.f32 %v4783, %v4855
      %v4868 = vadd.f32 %v4784, %v4856
      %v4869 = vadd.f32 %v4785, %v4857
      %4870 = vrot.lane.b32.xlu0 %v4597, 71
      %v4871 = vpop.permute.xlu0 %4870
      %4872 = vrot.lane.b32.xlu0 %v4603, 71
      %v4873 = vpop.permute.xlu0 %4872
      %4874 = vrot.lane.b32.xlu0 %v4609, 71
      %v4875 = vpop.permute.xlu0 %4874
      %4876 = vrot.lane.b32.xlu0 %v4599, 71
      %v4877 = vpop.permute.xlu0 %4876
      %4878 = vrot.lane.b32.xlu0 %v4605, 71
      %v4879 = vpop.permute.xlu0 %4878
      %4880 = vrot.lane.b32.xlu0 %v4611, 71
      %v4881 = vpop.permute.xlu0 %4880
      %4882 = vrot.lane.b32.xlu0 %v4680, 71
      %v4883 = vpop.permute.xlu0 %4882
      %4884 = vrot.lane.b32.xlu0 %v4686, 71
      %v4885 = vpop.permute.xlu0 %4884
      %4886 = vrot.lane.b32.xlu0 %v4692, 71
      %v4887 = vpop.permute.xlu0 %4886
      %4888 = vrot.lane.b32.xlu0 %v4682, 71
      %v4889 = vpop.permute.xlu0 %4888
      %4890 = vrot.lane.b32.xlu0 %v4688, 71
      %v4891 = vpop.permute.xlu0 %4890
      %4892 = vrot.lane.b32.xlu0 %v4694, 71
      %v4893 = vpop.permute.xlu0 %4892
      %v4894 = vsel %vm1688, %v4883, %v4889
      %v4895 = vsel %vm1688, %v4885, %v4891
      %v4896 = vsel %vm1688, %v4887, %v4893
      %v4897 = vsel %vm1688, %v4877, %v4883
      %v4898 = vsel %vm1688, %v4879, %v4885
      %v4899 = vsel %vm1688, %v4881, %v4887
      %v4900 = vsel %vm1688, %v4871, %v4877
      %v4901 = vsel %vm1688, %v4873, %v4879
      %v4902 = vsel %vm1688, %v4875, %v4881
      %v4903 = vsel %vm1688, %v4889, %v4871
      %v4904 = vsel %vm1688, %v4891, %v4873
      %v4905 = vsel %vm1688, %v4893, %v4875
      %4906 = vset.pattern.permute.xlu0 2
      %4907 = vperm.xlu0 %4906, %v4696
      %v4908 = vpop.permute.xlu0 %4907
      %4910 = vset.pattern.permute.xlu0 2
      %4911 = vperm.xlu0 %4910, %v4697
      %v4912 = vpop.permute.xlu0 %4911
      %4914 = vset.pattern.permute.xlu0 2
      %4915 = vperm.xlu0 %4914, %v4698
      %v4916 = vpop.permute.xlu0 %4915
      %v4918 = vmul.f32 %v4908, %v1717
      %v4919 = vmul.f32 %v4908, %v1721
      %v4920 = vmul.f32 %v4908, %v1725
      %v4921 = vmul.f32 %v4908, %v1729
      %v4922 = vmul.f32 %v4912, %v1717
      %v4923 = vmul.f32 %v4912, %v1721
      %v4924 = vmul.f32 %v4912, %v1725
      %v4925 = vmul.f32 %v4912, %v1729
      %v4926 = vmul.f32 %v4916, %v1717
      %v4927 = vmul.f32 %v4916, %v1721
      %v4928 = vmul.f32 %v4916, %v1725
      %v4929 = vmul.f32 %v4916, %v1729
      %v4930 = vmul.f32 %v4918, %v4903
      %v4931 = vmul.f32 %v4919, %v4900
      %v4932 = vmul.f32 %v4920, %v4897
      %v4933 = vmul.f32 %v4921, %v4894
      %v4934 = vmul.f32 %v4922, %v4904
      %v4935 = vmul.f32 %v4923, %v4901
      %v4936 = vmul.f32 %v4924, %v4898
      %v4937 = vmul.f32 %v4925, %v4895
      %v4938 = vmul.f32 %v4926, %v4905
      %v4939 = vmul.f32 %v4927, %v4902
      %v4940 = vmul.f32 %v4928, %v4899
      %v4941 = vmul.f32 %v4929, %v4896
      %v4942 = vadd.f32 %v4858, %v4930
      %v4943 = vadd.f32 %v4859, %v4931
      %v4944 = vadd.f32 %v4860, %v4932
      %v4945 = vadd.f32 %v4861, %v4933
      %v4946 = vadd.f32 %v4862, %v4934
      %v4947 = vadd.f32 %v4863, %v4935
      %v4948 = vadd.f32 %v4864, %v4936
      %v4949 = vadd.f32 %v4865, %v4937
      %v4950 = vadd.f32 %v4866, %v4938
      %v4951 = vadd.f32 %v4867, %v4939
      %v4952 = vadd.f32 %v4868, %v4940
      %v4953 = vadd.f32 %v4869, %v4941
      %4954 = vrot.lane.b32.xlu0 %v4597, 65
      %v4955 = vpop.permute.xlu0 %4954
      %4956 = vrot.lane.b32.xlu0 %v4603, 65
      %v4957 = vpop.permute.xlu0 %4956
      %4958 = vrot.lane.b32.xlu0 %v4609, 65
      %v4959 = vpop.permute.xlu0 %4958
      %4960 = vrot.lane.b32.xlu0 %v4599, 65
      %v4961 = vpop.permute.xlu0 %4960
      %4962 = vrot.lane.b32.xlu0 %v4605, 65
      %v4963 = vpop.permute.xlu0 %4962
      %4964 = vrot.lane.b32.xlu0 %v4611, 65
      %v4965 = vpop.permute.xlu0 %4964
      %4966 = vrot.lane.b32.xlu0 %v4680, 65
      %v4967 = vpop.permute.xlu0 %4966
      %4968 = vrot.lane.b32.xlu0 %v4686, 65
      %v4969 = vpop.permute.xlu0 %4968
      %4970 = vrot.lane.b32.xlu0 %v4692, 65
      %v4971 = vpop.permute.xlu0 %4970
      %4972 = vrot.lane.b32.xlu0 %v4682, 65
      %v4973 = vpop.permute.xlu0 %4972
      %4974 = vrot.lane.b32.xlu0 %v4688, 65
      %v4975 = vpop.permute.xlu0 %4974
      %4976 = vrot.lane.b32.xlu0 %v4694, 65
      %v4977 = vpop.permute.xlu0 %4976
      %v4978 = vsel %vm1794, %v4967, %v4973
      %v4979 = vsel %vm1794, %v4969, %v4975
      %v4980 = vsel %vm1794, %v4971, %v4977
      %v4981 = vsel %vm1794, %v4961, %v4967
      %v4982 = vsel %vm1794, %v4963, %v4969
      %v4983 = vsel %vm1794, %v4965, %v4971
      %v4984 = vsel %vm1794, %v4955, %v4961
      %v4985 = vsel %vm1794, %v4957, %v4963
      %v4986 = vsel %vm1794, %v4959, %v4965
      %v4987 = vsel %vm1794, %v4973, %v4955
      %v4988 = vsel %vm1794, %v4975, %v4957
      %v4989 = vsel %vm1794, %v4977, %v4959
      %4990 = vset.pattern.permute.xlu0 3
      %4991 = vperm.xlu0 %4990, %v4696
      %v4992 = vpop.permute.xlu0 %4991
      %4994 = vset.pattern.permute.xlu0 3
      %4995 = vperm.xlu0 %4994, %v4697
      %v4996 = vpop.permute.xlu0 %4995
      %4998 = vset.pattern.permute.xlu0 3
      %4999 = vperm.xlu0 %4998, %v4698
      %v5000 = vpop.permute.xlu0 %4999
      %v5002 = vmul.f32 %v4992, %v1823
      %v5003 = vmul.f32 %v4992, %v1827
      %v5004 = vmul.f32 %v4992, %v1831
      %v5005 = vmul.f32 %v4992, %v1835
      %v5006 = vmul.f32 %v4996, %v1823
      %v5007 = vmul.f32 %v4996, %v1827
      %v5008 = vmul.f32 %v4996, %v1831
      %v5009 = vmul.f32 %v4996, %v1835
      %v5010 = vmul.f32 %v5000, %v1823
      %v5011 = vmul.f32 %v5000, %v1827
      %v5012 = vmul.f32 %v5000, %v1831
      %v5013 = vmul.f32 %v5000, %v1835
      %v5014 = vmul.f32 %v5002, %v4987
      %v5015 = vmul.f32 %v5003, %v4984
      %v5016 = vmul.f32 %v5004, %v4981
      %v5017 = vmul.f32 %v5005, %v4978
      %v5018 = vmul.f32 %v5006, %v4988
      %v5019 = vmul.f32 %v5007, %v4985
      %v5020 = vmul.f32 %v5008, %v4982
      %v5021 = vmul.f32 %v5009, %v4979
      %v5022 = vmul.f32 %v5010, %v4989
      %v5023 = vmul.f32 %v5011, %v4986
      %v5024 = vmul.f32 %v5012, %v4983
      %v5025 = vmul.f32 %v5013, %v4980
      %v5026 = vadd.f32 %v4942, %v5014
      %v5027 = vadd.f32 %v4943, %v5015
      %v5028 = vadd.f32 %v4944, %v5016
      %v5029 = vadd.f32 %v4945, %v5017
      %v5030 = vadd.f32 %v4946, %v5018
      %v5031 = vadd.f32 %v4947, %v5019
      %v5032 = vadd.f32 %v4948, %v5020
      %v5033 = vadd.f32 %v4949, %v5021
      %v5034 = vadd.f32 %v4950, %v5022
      %v5035 = vadd.f32 %v4951, %v5023
      %v5036 = vadd.f32 %v4952, %v5024
      %v5037 = vadd.f32 %v4953, %v5025
      %5038 = vrot.lane.b32.xlu0 %v4597, 64
      %v5039 = vpop.permute.xlu0 %5038
      %5040 = vrot.lane.b32.xlu0 %v4603, 64
      %v5041 = vpop.permute.xlu0 %5040
      %5042 = vrot.lane.b32.xlu0 %v4609, 64
      %v5043 = vpop.permute.xlu0 %5042
      %5044 = vrot.lane.b32.xlu0 %v4599, 64
      %v5045 = vpop.permute.xlu0 %5044
      %5046 = vrot.lane.b32.xlu0 %v4605, 64
      %v5047 = vpop.permute.xlu0 %5046
      %5048 = vrot.lane.b32.xlu0 %v4611, 64
      %v5049 = vpop.permute.xlu0 %5048
      %5050 = vrot.lane.b32.xlu0 %v4680, 64
      %v5051 = vpop.permute.xlu0 %5050
      %5052 = vrot.lane.b32.xlu0 %v4686, 64
      %v5053 = vpop.permute.xlu0 %5052
      %5054 = vrot.lane.b32.xlu0 %v4692, 64
      %v5055 = vpop.permute.xlu0 %5054
      %5056 = vrot.lane.b32.xlu0 %v4682, 64
      %v5057 = vpop.permute.xlu0 %5056
      %5058 = vrot.lane.b32.xlu0 %v4688, 64
      %v5059 = vpop.permute.xlu0 %5058
      %5060 = vrot.lane.b32.xlu0 %v4694, 64
      %v5061 = vpop.permute.xlu0 %5060
      %v5062 = vsel %vm978, %v5051, %v5057
      %v5063 = vsel %vm978, %v5053, %v5059
      %v5064 = vsel %vm978, %v5055, %v5061
      %v5065 = vsel %vm978, %v5045, %v5051
      %v5066 = vsel %vm978, %v5047, %v5053
      %v5067 = vsel %vm978, %v5049, %v5055
      %v5068 = vsel %vm978, %v5039, %v5045
      %v5069 = vsel %vm978, %v5041, %v5047
      %v5070 = vsel %vm978, %v5043, %v5049
      %v5071 = vsel %vm978, %v5057, %v5039
      %v5072 = vsel %vm978, %v5059, %v5041
      %v5073 = vsel %vm978, %v5061, %v5043
      %5074 = vset.pattern.permute.xlu0 4
      %5075 = vperm.xlu0 %5074, %v4696
      %v5076 = vpop.permute.xlu0 %5075
      %5078 = vset.pattern.permute.xlu0 4
      %5079 = vperm.xlu0 %5078, %v4697
      %v5080 = vpop.permute.xlu0 %5079
      %5082 = vset.pattern.permute.xlu0 4
      %5083 = vperm.xlu0 %5082, %v4698
      %v5084 = vpop.permute.xlu0 %5083
      %v5086 = vmul.f32 %v5076, %v1928
      %v5087 = vmul.f32 %v5076, %v1932
      %v5088 = vmul.f32 %v5076, %v1936
      %v5089 = vmul.f32 %v5076, %v1940
      %v5090 = vmul.f32 %v5080, %v1928
      %v5091 = vmul.f32 %v5080, %v1932
      %v5092 = vmul.f32 %v5080, %v1936
      %v5093 = vmul.f32 %v5080, %v1940
      %v5094 = vmul.f32 %v5084, %v1928
      %v5095 = vmul.f32 %v5084, %v1932
      %v5096 = vmul.f32 %v5084, %v1936
      %v5097 = vmul.f32 %v5084, %v1940
      %v5098 = vmul.f32 %v5086, %v5071
      %v5099 = vmul.f32 %v5087, %v5068
      %v5100 = vmul.f32 %v5088, %v5065
      %v5101 = vmul.f32 %v5089, %v5062
      %v5102 = vmul.f32 %v5090, %v5072
      %v5103 = vmul.f32 %v5091, %v5069
      %v5104 = vmul.f32 %v5092, %v5066
      %v5105 = vmul.f32 %v5093, %v5063
      %v5106 = vmul.f32 %v5094, %v5073
      %v5107 = vmul.f32 %v5095, %v5070
      %v5108 = vmul.f32 %v5096, %v5067
      %v5109 = vmul.f32 %v5097, %v5064
      %v5110 = vadd.f32 %v5026, %v5098
      %v5111 = vadd.f32 %v5027, %v5099
      %v5112 = vadd.f32 %v5028, %v5100
      %v5113 = vadd.f32 %v5029, %v5101
      %v5114 = vadd.f32 %v5030, %v5102
      %v5115 = vadd.f32 %v5031, %v5103
      %v5116 = vadd.f32 %v5032, %v5104
      %v5117 = vadd.f32 %v5033, %v5105
      %v5118 = vadd.f32 %v5034, %v5106
      %v5119 = vadd.f32 %v5035, %v5107
      %v5120 = vadd.f32 %v5036, %v5108
      %v5121 = vadd.f32 %v5037, %v5109
      %5122 = vrot.lane.b32.xlu0 %v4597, 63
      %v5123 = vpop.permute.xlu0 %5122
      %5124 = vrot.lane.b32.xlu0 %v4603, 63
      %v5125 = vpop.permute.xlu0 %5124
      %5126 = vrot.lane.b32.xlu0 %v4609, 63
      %v5127 = vpop.permute.xlu0 %5126
      %5128 = vrot.lane.b32.xlu0 %v4599, 63
      %v5129 = vpop.permute.xlu0 %5128
      %5130 = vrot.lane.b32.xlu0 %v4605, 63
      %v5131 = vpop.permute.xlu0 %5130
      %5132 = vrot.lane.b32.xlu0 %v4611, 63
      %v5133 = vpop.permute.xlu0 %5132
      %5134 = vrot.lane.b32.xlu0 %v4680, 63
      %v5135 = vpop.permute.xlu0 %5134
      %5136 = vrot.lane.b32.xlu0 %v4686, 63
      %v5137 = vpop.permute.xlu0 %5136
      %5138 = vrot.lane.b32.xlu0 %v4692, 63
      %v5139 = vpop.permute.xlu0 %5138
      %5140 = vrot.lane.b32.xlu0 %v4682, 63
      %v5141 = vpop.permute.xlu0 %5140
      %5142 = vrot.lane.b32.xlu0 %v4688, 63
      %v5143 = vpop.permute.xlu0 %5142
      %5144 = vrot.lane.b32.xlu0 %v4694, 63
      %v5145 = vpop.permute.xlu0 %5144
      %v5146 = vsel %vm2005, %v5135, %v5141
      %v5147 = vsel %vm2005, %v5137, %v5143
      %v5148 = vsel %vm2005, %v5139, %v5145
      %v5149 = vsel %vm2005, %v5129, %v5135
      %v5150 = vsel %vm2005, %v5131, %v5137
      %v5151 = vsel %vm2005, %v5133, %v5139
      %v5152 = vsel %vm2005, %v5123, %v5129
      %v5153 = vsel %vm2005, %v5125, %v5131
      %v5154 = vsel %vm2005, %v5127, %v5133
      %v5155 = vsel %vm2005, %v5141, %v5123
      %v5156 = vsel %vm2005, %v5143, %v5125
      %v5157 = vsel %vm2005, %v5145, %v5127
      %5158 = vset.pattern.permute.xlu0 5
      %5159 = vperm.xlu0 %5158, %v4696
      %v5160 = vpop.permute.xlu0 %5159
      %5162 = vset.pattern.permute.xlu0 5
      %5163 = vperm.xlu0 %5162, %v4697
      %v5164 = vpop.permute.xlu0 %5163
      %5166 = vset.pattern.permute.xlu0 5
      %5167 = vperm.xlu0 %5166, %v4698
      %v5168 = vpop.permute.xlu0 %5167
      %v5170 = vmul.f32 %v5160, %v2034
      %v5171 = vmul.f32 %v5160, %v2038
      %v5172 = vmul.f32 %v5160, %v2042
      %v5173 = vmul.f32 %v5160, %v2046
      %v5174 = vmul.f32 %v5164, %v2034
      %v5175 = vmul.f32 %v5164, %v2038
      %v5176 = vmul.f32 %v5164, %v2042
      %v5177 = vmul.f32 %v5164, %v2046
      %v5178 = vmul.f32 %v5168, %v2034
      %v5179 = vmul.f32 %v5168, %v2038
      %v5180 = vmul.f32 %v5168, %v2042
      %v5181 = vmul.f32 %v5168, %v2046
      %v5182 = vmul.f32 %v5170, %v5155
      %v5183 = vmul.f32 %v5171, %v5152
      %v5184 = vmul.f32 %v5172, %v5149
      %v5185 = vmul.f32 %v5173, %v5146
      %v5186 = vmul.f32 %v5174, %v5156
      %v5187 = vmul.f32 %v5175, %v5153
      %v5188 = vmul.f32 %v5176, %v5150
      %v5189 = vmul.f32 %v5177, %v5147
      %v5190 = vmul.f32 %v5178, %v5157
      %v5191 = vmul.f32 %v5179, %v5154
      %v5192 = vmul.f32 %v5180, %v5151
      %v5193 = vmul.f32 %v5181, %v5148
      %v5194 = vadd.f32 %v5110, %v5182
      %v5195 = vadd.f32 %v5111, %v5183
      %v5196 = vadd.f32 %v5112, %v5184
      %v5197 = vadd.f32 %v5113, %v5185
      %v5198 = vadd.f32 %v5114, %v5186
      %v5199 = vadd.f32 %v5115, %v5187
      %v5200 = vadd.f32 %v5116, %v5188
      %v5201 = vadd.f32 %v5117, %v5189
      %v5202 = vadd.f32 %v5118, %v5190
      %v5203 = vadd.f32 %v5119, %v5191
      %v5204 = vadd.f32 %v5120, %v5192
      %v5205 = vadd.f32 %v5121, %v5193
      %5206 = vrot.lane.b32.xlu0 %v4597, 57
      %v5207 = vpop.permute.xlu0 %5206
      %5208 = vrot.lane.b32.xlu0 %v4603, 57
      %v5209 = vpop.permute.xlu0 %5208
      %5210 = vrot.lane.b32.xlu0 %v4609, 57
      %v5211 = vpop.permute.xlu0 %5210
      %5212 = vrot.lane.b32.xlu0 %v4599, 57
      %v5213 = vpop.permute.xlu0 %5212
      %5214 = vrot.lane.b32.xlu0 %v4605, 57
      %v5215 = vpop.permute.xlu0 %5214
      %5216 = vrot.lane.b32.xlu0 %v4611, 57
      %v5217 = vpop.permute.xlu0 %5216
      %5218 = vrot.lane.b32.xlu0 %v4680, 57
      %v5219 = vpop.permute.xlu0 %5218
      %5220 = vrot.lane.b32.xlu0 %v4686, 57
      %v5221 = vpop.permute.xlu0 %5220
      %5222 = vrot.lane.b32.xlu0 %v4692, 57
      %v5223 = vpop.permute.xlu0 %5222
      %5224 = vrot.lane.b32.xlu0 %v4682, 57
      %v5225 = vpop.permute.xlu0 %5224
      %5226 = vrot.lane.b32.xlu0 %v4688, 57
      %v5227 = vpop.permute.xlu0 %5226
      %5228 = vrot.lane.b32.xlu0 %v4694, 57
      %v5229 = vpop.permute.xlu0 %5228
      %v5230 = vsel %vm2111, %v5219, %v5225
      %v5231 = vsel %vm2111, %v5221, %v5227
      %v5232 = vsel %vm2111, %v5223, %v5229
      %v5233 = vsel %vm2111, %v5213, %v5219
      %v5234 = vsel %vm2111, %v5215, %v5221
      %v5235 = vsel %vm2111, %v5217, %v5223
      %v5236 = vsel %vm2111, %v5207, %v5213
      %v5237 = vsel %vm2111, %v5209, %v5215
      %v5238 = vsel %vm2111, %v5211, %v5217
      %v5239 = vsel %vm2111, %v5225, %v5207
      %v5240 = vsel %vm2111, %v5227, %v5209
      %v5241 = vsel %vm2111, %v5229, %v5211
      %5242 = vset.pattern.permute.xlu0 6
      %5243 = vperm.xlu0 %5242, %v4696
      %v5244 = vpop.permute.xlu0 %5243
      %5246 = vset.pattern.permute.xlu0 6
      %5247 = vperm.xlu0 %5246, %v4697
      %v5248 = vpop.permute.xlu0 %5247
      %5250 = vset.pattern.permute.xlu0 6
      %5251 = vperm.xlu0 %5250, %v4698
      %v5252 = vpop.permute.xlu0 %5251
      %v5254 = vmul.f32 %v5244, %v2140
      %v5255 = vmul.f32 %v5244, %v2144
      %v5256 = vmul.f32 %v5244, %v2148
      %v5257 = vmul.f32 %v5244, %v2152
      %v5258 = vmul.f32 %v5248, %v2140
      %v5259 = vmul.f32 %v5248, %v2144
      %v5260 = vmul.f32 %v5248, %v2148
      %v5261 = vmul.f32 %v5248, %v2152
      %v5262 = vmul.f32 %v5252, %v2140
      %v5263 = vmul.f32 %v5252, %v2144
      %v5264 = vmul.f32 %v5252, %v2148
      %v5265 = vmul.f32 %v5252, %v2152
      %v5266 = vmul.f32 %v5254, %v5239
      %v5267 = vmul.f32 %v5255, %v5236
      %v5268 = vmul.f32 %v5256, %v5233
      %v5269 = vmul.f32 %v5257, %v5230
      %v5270 = vmul.f32 %v5258, %v5240
      %v5271 = vmul.f32 %v5259, %v5237
      %v5272 = vmul.f32 %v5260, %v5234
      %v5273 = vmul.f32 %v5261, %v5231
      %v5274 = vmul.f32 %v5262, %v5241
      %v5275 = vmul.f32 %v5263, %v5238
      %v5276 = vmul.f32 %v5264, %v5235
      %v5277 = vmul.f32 %v5265, %v5232
      %v5278 = vadd.f32 %v5194, %v5266
      %v5279 = vadd.f32 %v5195, %v5267
      %v5280 = vadd.f32 %v5196, %v5268
      %v5281 = vadd.f32 %v5197, %v5269
      %v5282 = vadd.f32 %v5198, %v5270
      %v5283 = vadd.f32 %v5199, %v5271
      %v5284 = vadd.f32 %v5200, %v5272
      %v5285 = vadd.f32 %v5201, %v5273
      %v5286 = vadd.f32 %v5202, %v5274
      %v5287 = vadd.f32 %v5203, %v5275
      %v5288 = vadd.f32 %v5204, %v5276
      %v5289 = vadd.f32 %v5205, %v5277
      %5290 = vrot.lane.b32.xlu0 %v4597, 56
      %v5291 = vpop.permute.xlu0 %5290
      %5292 = vrot.lane.b32.xlu0 %v4603, 56
      %v5293 = vpop.permute.xlu0 %5292
      %5294 = vrot.lane.b32.xlu0 %v4609, 56
      %v5295 = vpop.permute.xlu0 %5294
      %5296 = vrot.lane.b32.xlu0 %v4599, 56
      %v5297 = vpop.permute.xlu0 %5296
      %5298 = vrot.lane.b32.xlu0 %v4605, 56
      %v5299 = vpop.permute.xlu0 %5298
      %5300 = vrot.lane.b32.xlu0 %v4611, 56
      %v5301 = vpop.permute.xlu0 %5300
      %5302 = vrot.lane.b32.xlu0 %v4680, 56
      %v5303 = vpop.permute.xlu0 %5302
      %5304 = vrot.lane.b32.xlu0 %v4686, 56
      %v5305 = vpop.permute.xlu0 %5304
      %5306 = vrot.lane.b32.xlu0 %v4692, 56
      %v5307 = vpop.permute.xlu0 %5306
      %5308 = vrot.lane.b32.xlu0 %v4682, 56
      %v5309 = vpop.permute.xlu0 %5308
      %5310 = vrot.lane.b32.xlu0 %v4688, 56
      %v5311 = vpop.permute.xlu0 %5310
      %5312 = vrot.lane.b32.xlu0 %v4694, 56
      %v5313 = vpop.permute.xlu0 %5312
      %v5314 = vsel %vm2217, %v5303, %v5309
      %v5315 = vsel %vm2217, %v5305, %v5311
      %v5316 = vsel %vm2217, %v5307, %v5313
      %v5317 = vsel %vm2217, %v5297, %v5303
      %v5318 = vsel %vm2217, %v5299, %v5305
      %v5319 = vsel %vm2217, %v5301, %v5307
      %v5320 = vsel %vm2217, %v5291, %v5297
      %v5321 = vsel %vm2217, %v5293, %v5299
      %v5322 = vsel %vm2217, %v5295, %v5301
      %v5323 = vsel %vm2217, %v5309, %v5291
      %v5324 = vsel %vm2217, %v5311, %v5293
      %v5325 = vsel %vm2217, %v5313, %v5295
      %5326 = vset.pattern.permute.xlu0 7
      %5327 = vperm.xlu0 %5326, %v4696
      %v5328 = vpop.permute.xlu0 %5327
      %5330 = vset.pattern.permute.xlu0 7
      %5331 = vperm.xlu0 %5330, %v4697
      %v5332 = vpop.permute.xlu0 %5331
      %5334 = vset.pattern.permute.xlu0 7
      %5335 = vperm.xlu0 %5334, %v4698
      %v5336 = vpop.permute.xlu0 %5335
      %v5338 = vmul.f32 %v5328, %v2246
      %v5339 = vmul.f32 %v5328, %v2250
      %v5340 = vmul.f32 %v5328, %v2254
      %v5341 = vmul.f32 %v5328, %v2258
      %v5342 = vmul.f32 %v5332, %v2246
      %v5343 = vmul.f32 %v5332, %v2250
      %v5344 = vmul.f32 %v5332, %v2254
      %v5345 = vmul.f32 %v5332, %v2258
      %v5346 = vmul.f32 %v5336, %v2246
      %v5347 = vmul.f32 %v5336, %v2250
      %v5348 = vmul.f32 %v5336, %v2254
      %v5349 = vmul.f32 %v5336, %v2258
      %v5350 = vmul.f32 %v5338, %v5323
      %v5351 = vmul.f32 %v5339, %v5320
      %v5352 = vmul.f32 %v5340, %v5317
      %v5353 = vmul.f32 %v5341, %v5314
      %v5354 = vmul.f32 %v5342, %v5324
      %v5355 = vmul.f32 %v5343, %v5321
      %v5356 = vmul.f32 %v5344, %v5318
      %v5357 = vmul.f32 %v5345, %v5315
      %v5358 = vmul.f32 %v5346, %v5325
      %v5359 = vmul.f32 %v5347, %v5322
      %v5360 = vmul.f32 %v5348, %v5319
      %v5361 = vmul.f32 %v5349, %v5316
      %v5362 = vadd.f32 %v5278, %v5350
      %v5363 = vadd.f32 %v5279, %v5351
      %v5364 = vadd.f32 %v5280, %v5352
      %v5365 = vadd.f32 %v5281, %v5353
      %v5366 = vadd.f32 %v5282, %v5354
      %v5367 = vadd.f32 %v5283, %v5355
      %v5368 = vadd.f32 %v5284, %v5356
      %v5369 = vadd.f32 %v5285, %v5357
      %v5370 = vadd.f32 %v5286, %v5358
      %v5371 = vadd.f32 %v5287, %v5359
      %v5372 = vadd.f32 %v5288, %v5360
      %v5373 = vadd.f32 %v5289, %v5361
      %5374 = vrot.lane.b32.xlu0 %v4597, 55
      %v5375 = vpop.permute.xlu0 %5374
      %5376 = vrot.lane.b32.xlu0 %v4603, 55
      %v5377 = vpop.permute.xlu0 %5376
      %5378 = vrot.lane.b32.xlu0 %v4609, 55
      %v5379 = vpop.permute.xlu0 %5378
      %5380 = vrot.lane.b32.xlu0 %v4599, 55
      %v5381 = vpop.permute.xlu0 %5380
      %5382 = vrot.lane.b32.xlu0 %v4605, 55
      %v5383 = vpop.permute.xlu0 %5382
      %5384 = vrot.lane.b32.xlu0 %v4611, 55
      %v5385 = vpop.permute.xlu0 %5384
      %5386 = vrot.lane.b32.xlu0 %v4680, 55
      %v5387 = vpop.permute.xlu0 %5386
      %5388 = vrot.lane.b32.xlu0 %v4686, 55
      %v5389 = vpop.permute.xlu0 %5388
      %5390 = vrot.lane.b32.xlu0 %v4692, 55
      %v5391 = vpop.permute.xlu0 %5390
      %5392 = vrot.lane.b32.xlu0 %v4682, 55
      %v5393 = vpop.permute.xlu0 %5392
      %5394 = vrot.lane.b32.xlu0 %v4688, 55
      %v5395 = vpop.permute.xlu0 %5394
      %5396 = vrot.lane.b32.xlu0 %v4694, 55
      %v5397 = vpop.permute.xlu0 %5396
      %v5398 = vsel %vm2323, %v5387, %v5393
      %v5399 = vsel %vm2323, %v5389, %v5395
      %v5400 = vsel %vm2323, %v5391, %v5397
      %v5401 = vsel %vm2323, %v5381, %v5387
      %v5402 = vsel %vm2323, %v5383, %v5389
      %v5403 = vsel %vm2323, %v5385, %v5391
      %v5404 = vsel %vm2323, %v5375, %v5381
      %v5405 = vsel %vm2323, %v5377, %v5383
      %v5406 = vsel %vm2323, %v5379, %v5385
      %v5407 = vsel %vm2323, %v5393, %v5375
      %v5408 = vsel %vm2323, %v5395, %v5377
      %v5409 = vsel %vm2323, %v5397, %v5379
      %5410 = vset.pattern.permute.xlu0 8
      %5411 = vperm.xlu0 %5410, %v4696
      %v5412 = vpop.permute.xlu0 %5411
      %5414 = vset.pattern.permute.xlu0 8
      %5415 = vperm.xlu0 %5414, %v4697
      %v5416 = vpop.permute.xlu0 %5415
      %5418 = vset.pattern.permute.xlu0 8
      %5419 = vperm.xlu0 %5418, %v4698
      %v5420 = vpop.permute.xlu0 %5419
      %v5422 = vmul.f32 %v5412, %v2352
      %v5423 = vmul.f32 %v5412, %v2356
      %v5424 = vmul.f32 %v5412, %v2360
      %v5425 = vmul.f32 %v5412, %v2364
      %v5426 = vmul.f32 %v5416, %v2352
      %v5427 = vmul.f32 %v5416, %v2356
      %v5428 = vmul.f32 %v5416, %v2360
      %v5429 = vmul.f32 %v5416, %v2364
      %v5430 = vmul.f32 %v5420, %v2352
      %v5431 = vmul.f32 %v5420, %v2356
      %v5432 = vmul.f32 %v5420, %v2360
      %v5433 = vmul.f32 %v5420, %v2364
      %v5434 = vmul.f32 %v5422, %v5407
      %v5435 = vmul.f32 %v5423, %v5404
      %v5436 = vmul.f32 %v5424, %v5401
      %v5437 = vmul.f32 %v5425, %v5398
      %v5438 = vmul.f32 %v5426, %v5408
      %v5439 = vmul.f32 %v5427, %v5405
      %v5440 = vmul.f32 %v5428, %v5402
      %v5441 = vmul.f32 %v5429, %v5399
      %v5442 = vmul.f32 %v5430, %v5409
      %v5443 = vmul.f32 %v5431, %v5406
      %v5444 = vmul.f32 %v5432, %v5403
      %v5445 = vmul.f32 %v5433, %v5400
      %v5446 = vadd.f32 %v5362, %v5434
      %v5447 = vadd.f32 %v5363, %v5435
      %v5448 = vadd.f32 %v5364, %v5436
      %v5449 = vadd.f32 %v5365, %v5437
      %v5450 = vadd.f32 %v5366, %v5438
      %v5451 = vadd.f32 %v5367, %v5439
      %v5452 = vadd.f32 %v5368, %v5440
      %v5453 = vadd.f32 %v5369, %v5441
      %v5454 = vadd.f32 %v5370, %v5442
      %v5455 = vadd.f32 %v5371, %v5443
      %v5456 = vadd.f32 %v5372, %v5444
      %v5457 = vadd.f32 %v5373, %v5445
      %5458 = vrot.lane.b32.xlu0 %v4597, 9
      %v5459 = vpop.permute.xlu0 %5458
      %5460 = vrot.lane.b32.xlu0 %v4603, 9
      %v5461 = vpop.permute.xlu0 %5460
      %5462 = vrot.lane.b32.xlu0 %v4609, 9
      %v5463 = vpop.permute.xlu0 %5462
      %5464 = vrot.lane.b32.xlu0 %v4599, 9
      %v5465 = vpop.permute.xlu0 %5464
      %5466 = vrot.lane.b32.xlu0 %v4605, 9
      %v5467 = vpop.permute.xlu0 %5466
      %5468 = vrot.lane.b32.xlu0 %v4611, 9
      %v5469 = vpop.permute.xlu0 %5468
      %5470 = vrot.lane.b32.xlu0 %v4680, 9
      %v5471 = vpop.permute.xlu0 %5470
      %5472 = vrot.lane.b32.xlu0 %v4686, 9
      %v5473 = vpop.permute.xlu0 %5472
      %5474 = vrot.lane.b32.xlu0 %v4692, 9
      %v5475 = vpop.permute.xlu0 %5474
      %5476 = vrot.lane.b32.xlu0 %v4682, 9
      %v5477 = vpop.permute.xlu0 %5476
      %5478 = vrot.lane.b32.xlu0 %v4688, 9
      %v5479 = vpop.permute.xlu0 %5478
      %5480 = vrot.lane.b32.xlu0 %v4694, 9
      %v5481 = vpop.permute.xlu0 %5480
      %v5482 = vsel %vm2429, %v5471, %v5477
      %v5483 = vsel %vm2429, %v5473, %v5479
      %v5484 = vsel %vm2429, %v5475, %v5481
      %v5485 = vsel %vm2429, %v5465, %v5471
      %v5486 = vsel %vm2429, %v5467, %v5473
      %v5487 = vsel %vm2429, %v5469, %v5475
      %v5488 = vsel %vm2429, %v5459, %v5465
      %v5489 = vsel %vm2429, %v5461, %v5467
      %v5490 = vsel %vm2429, %v5463, %v5469
      %v5491 = vsel %vm2429, %v5477, %v5459
      %v5492 = vsel %vm2429, %v5479, %v5461
      %v5493 = vsel %vm2429, %v5481, %v5463
      %5494 = vset.pattern.permute.xlu0 9
      %5495 = vperm.xlu0 %5494, %v4696
      %v5496 = vpop.permute.xlu0 %5495
      %5498 = vset.pattern.permute.xlu0 9
      %5499 = vperm.xlu0 %5498, %v4697
      %v5500 = vpop.permute.xlu0 %5499
      %5502 = vset.pattern.permute.xlu0 9
      %5503 = vperm.xlu0 %5502, %v4698
      %v5504 = vpop.permute.xlu0 %5503
      %v5506 = vmul.f32 %v5496, %v2458
      %v5507 = vmul.f32 %v5496, %v2462
      %v5508 = vmul.f32 %v5496, %v2466
      %v5509 = vmul.f32 %v5496, %v2470
      %v5510 = vmul.f32 %v5500, %v2458
      %v5511 = vmul.f32 %v5500, %v2462
      %v5512 = vmul.f32 %v5500, %v2466
      %v5513 = vmul.f32 %v5500, %v2470
      %v5514 = vmul.f32 %v5504, %v2458
      %v5515 = vmul.f32 %v5504, %v2462
      %v5516 = vmul.f32 %v5504, %v2466
      %v5517 = vmul.f32 %v5504, %v2470
      %v5518 = vmul.f32 %v5506, %v5491
      %v5519 = vmul.f32 %v5507, %v5488
      %v5520 = vmul.f32 %v5508, %v5485
      %v5521 = vmul.f32 %v5509, %v5482
      %v5522 = vmul.f32 %v5510, %v5492
      %v5523 = vmul.f32 %v5511, %v5489
      %v5524 = vmul.f32 %v5512, %v5486
      %v5525 = vmul.f32 %v5513, %v5483
      %v5526 = vmul.f32 %v5514, %v5493
      %v5527 = vmul.f32 %v5515, %v5490
      %v5528 = vmul.f32 %v5516, %v5487
      %v5529 = vmul.f32 %v5517, %v5484
      %v5530 = vadd.f32 %v5446, %v5518
      %v5531 = vadd.f32 %v5447, %v5519
      %v5532 = vadd.f32 %v5448, %v5520
      %v5533 = vadd.f32 %v5449, %v5521
      %v5534 = vadd.f32 %v5450, %v5522
      %v5535 = vadd.f32 %v5451, %v5523
      %v5536 = vadd.f32 %v5452, %v5524
      %v5537 = vadd.f32 %v5453, %v5525
      %v5538 = vadd.f32 %v5454, %v5526
      %v5539 = vadd.f32 %v5455, %v5527
      %v5540 = vadd.f32 %v5456, %v5528
      %v5541 = vadd.f32 %v5457, %v5529
      %5542 = vrot.lane.b32.xlu0 %v4597, 8
      %v5543 = vpop.permute.xlu0 %5542
      %5544 = vrot.lane.b32.xlu0 %v4603, 8
      %v5545 = vpop.permute.xlu0 %5544
      %5546 = vrot.lane.b32.xlu0 %v4609, 8
      %v5547 = vpop.permute.xlu0 %5546
      %5548 = vrot.lane.b32.xlu0 %v4599, 8
      %v5549 = vpop.permute.xlu0 %5548
      %5550 = vrot.lane.b32.xlu0 %v4605, 8
      %v5551 = vpop.permute.xlu0 %5550
      %5552 = vrot.lane.b32.xlu0 %v4611, 8
      %v5553 = vpop.permute.xlu0 %5552
      %5554 = vrot.lane.b32.xlu0 %v4680, 8
      %v5555 = vpop.permute.xlu0 %5554
      %5556 = vrot.lane.b32.xlu0 %v4686, 8
      %v5557 = vpop.permute.xlu0 %5556
      %5558 = vrot.lane.b32.xlu0 %v4692, 8
      %v5559 = vpop.permute.xlu0 %5558
      %5560 = vrot.lane.b32.xlu0 %v4682, 8
      %v5561 = vpop.permute.xlu0 %5560
      %5562 = vrot.lane.b32.xlu0 %v4688, 8
      %v5563 = vpop.permute.xlu0 %5562
      %5564 = vrot.lane.b32.xlu0 %v4694, 8
      %v5565 = vpop.permute.xlu0 %5564
      %v5566 = vsel %vm2535, %v5555, %v5561
      %v5567 = vsel %vm2535, %v5557, %v5563
      %v5568 = vsel %vm2535, %v5559, %v5565
      %v5569 = vsel %vm2535, %v5549, %v5555
      %v5570 = vsel %vm2535, %v5551, %v5557
      %v5571 = vsel %vm2535, %v5553, %v5559
      %v5572 = vsel %vm2535, %v5543, %v5549
      %v5573 = vsel %vm2535, %v5545, %v5551
      %v5574 = vsel %vm2535, %v5547, %v5553
      %v5575 = vsel %vm2535, %v5561, %v5543
      %v5576 = vsel %vm2535, %v5563, %v5545
      %v5577 = vsel %vm2535, %v5565, %v5547
      %5578 = vset.pattern.permute.xlu0 10
      %5579 = vperm.xlu0 %5578, %v4696
      %v5580 = vpop.permute.xlu0 %5579
      %5582 = vset.pattern.permute.xlu0 10
      %5583 = vperm.xlu0 %5582, %v4697
      %v5584 = vpop.permute.xlu0 %5583
      %5586 = vset.pattern.permute.xlu0 10
      %5587 = vperm.xlu0 %5586, %v4698
      %v5588 = vpop.permute.xlu0 %5587
      %v5590 = vmul.f32 %v5580, %v2564
      %v5591 = vmul.f32 %v5580, %v2568
      %v5592 = vmul.f32 %v5580, %v2572
      %v5593 = vmul.f32 %v5580, %v2576
      %v5594 = vmul.f32 %v5584, %v2564
      %v5595 = vmul.f32 %v5584, %v2568
      %v5596 = vmul.f32 %v5584, %v2572
      %v5597 = vmul.f32 %v5584, %v2576
      %v5598 = vmul.f32 %v5588, %v2564
      %v5599 = vmul.f32 %v5588, %v2568
      %v5600 = vmul.f32 %v5588, %v2572
      %v5601 = vmul.f32 %v5588, %v2576
      %v5602 = vmul.f32 %v5590, %v5575
      %v5603 = vmul.f32 %v5591, %v5572
      %v5604 = vmul.f32 %v5592, %v5569
      %v5605 = vmul.f32 %v5593, %v5566
      %v5606 = vmul.f32 %v5594, %v5576
      %v5607 = vmul.f32 %v5595, %v5573
      %v5608 = vmul.f32 %v5596, %v5570
      %v5609 = vmul.f32 %v5597, %v5567
      %v5610 = vmul.f32 %v5598, %v5577
      %v5611 = vmul.f32 %v5599, %v5574
      %v5612 = vmul.f32 %v5600, %v5571
      %v5613 = vmul.f32 %v5601, %v5568
      %v5614 = vadd.f32 %v5530, %v5602
      %v5615 = vadd.f32 %v5531, %v5603
      %v5616 = vadd.f32 %v5532, %v5604
      %v5617 = vadd.f32 %v5533, %v5605
      %v5618 = vadd.f32 %v5534, %v5606
      %v5619 = vadd.f32 %v5535, %v5607
      %v5620 = vadd.f32 %v5536, %v5608
      %v5621 = vadd.f32 %v5537, %v5609
      %v5622 = vadd.f32 %v5538, %v5610
      %v5623 = vadd.f32 %v5539, %v5611
      %v5624 = vadd.f32 %v5540, %v5612
      %v5625 = vadd.f32 %v5541, %v5613
      %5626 = vrot.lane.b32.xlu0 %v4597, 7
      %v5627 = vpop.permute.xlu0 %5626
      %5628 = vrot.lane.b32.xlu0 %v4603, 7
      %v5629 = vpop.permute.xlu0 %5628
      %5630 = vrot.lane.b32.xlu0 %v4609, 7
      %v5631 = vpop.permute.xlu0 %5630
      %5632 = vrot.lane.b32.xlu0 %v4599, 7
      %v5633 = vpop.permute.xlu0 %5632
      %5634 = vrot.lane.b32.xlu0 %v4605, 7
      %v5635 = vpop.permute.xlu0 %5634
      %5636 = vrot.lane.b32.xlu0 %v4611, 7
      %v5637 = vpop.permute.xlu0 %5636
      %5638 = vrot.lane.b32.xlu0 %v4680, 7
      %v5639 = vpop.permute.xlu0 %5638
      %5640 = vrot.lane.b32.xlu0 %v4686, 7
      %v5641 = vpop.permute.xlu0 %5640
      %5642 = vrot.lane.b32.xlu0 %v4692, 7
      %v5643 = vpop.permute.xlu0 %5642
      %5644 = vrot.lane.b32.xlu0 %v4682, 7
      %v5645 = vpop.permute.xlu0 %5644
      %5646 = vrot.lane.b32.xlu0 %v4688, 7
      %v5647 = vpop.permute.xlu0 %5646
      %5648 = vrot.lane.b32.xlu0 %v4694, 7
      %v5649 = vpop.permute.xlu0 %5648
      %v5650 = vsel %vm2641, %v5639, %v5645
      %v5651 = vsel %vm2641, %v5641, %v5647
      %v5652 = vsel %vm2641, %v5643, %v5649
      %v5653 = vsel %vm2641, %v5633, %v5639
      %v5654 = vsel %vm2641, %v5635, %v5641
      %v5655 = vsel %vm2641, %v5637, %v5643
      %v5656 = vsel %vm2641, %v5627, %v5633
      %v5657 = vsel %vm2641, %v5629, %v5635
      %v5658 = vsel %vm2641, %v5631, %v5637
      %v5659 = vsel %vm2641, %v5645, %v5627
      %v5660 = vsel %vm2641, %v5647, %v5629
      %v5661 = vsel %vm2641, %v5649, %v5631
      %5662 = vset.pattern.permute.xlu0 11
      %5663 = vperm.xlu0 %5662, %v4696
      %v5664 = vpop.permute.xlu0 %5663
      %5666 = vset.pattern.permute.xlu0 11
      %5667 = vperm.xlu0 %5666, %v4697
      %v5668 = vpop.permute.xlu0 %5667
      %5670 = vset.pattern.permute.xlu0 11
      %5671 = vperm.xlu0 %5670, %v4698
      %v5672 = vpop.permute.xlu0 %5671
      %v5674 = vmul.f32 %v5664, %v2670
      %v5675 = vmul.f32 %v5664, %v2674
      %v5676 = vmul.f32 %v5664, %v2678
      %v5677 = vmul.f32 %v5664, %v2682
      %v5678 = vmul.f32 %v5668, %v2670
      %v5679 = vmul.f32 %v5668, %v2674
      %v5680 = vmul.f32 %v5668, %v2678
      %v5681 = vmul.f32 %v5668, %v2682
      %v5682 = vmul.f32 %v5672, %v2670
      %v5683 = vmul.f32 %v5672, %v2674
      %v5684 = vmul.f32 %v5672, %v2678
      %v5685 = vmul.f32 %v5672, %v2682
      %v5686 = vmul.f32 %v5674, %v5659
      %v5687 = vmul.f32 %v5675, %v5656
      %v5688 = vmul.f32 %v5676, %v5653
      %v5689 = vmul.f32 %v5677, %v5650
      %v5690 = vmul.f32 %v5678, %v5660
      %v5691 = vmul.f32 %v5679, %v5657
      %v5692 = vmul.f32 %v5680, %v5654
      %v5693 = vmul.f32 %v5681, %v5651
      %v5694 = vmul.f32 %v5682, %v5661
      %v5695 = vmul.f32 %v5683, %v5658
      %v5696 = vmul.f32 %v5684, %v5655
      %v5697 = vmul.f32 %v5685, %v5652
      %v5698 = vadd.f32 %v5614, %v5686
      %v5699 = vadd.f32 %v5615, %v5687
      %v5700 = vadd.f32 %v5616, %v5688
      %v5701 = vadd.f32 %v5617, %v5689
      %v5702 = vadd.f32 %v5618, %v5690
      %v5703 = vadd.f32 %v5619, %v5691
      %v5704 = vadd.f32 %v5620, %v5692
      %v5705 = vadd.f32 %v5621, %v5693
      %v5706 = vadd.f32 %v5622, %v5694
      %v5707 = vadd.f32 %v5623, %v5695
      %v5708 = vadd.f32 %v5624, %v5696
      %v5709 = vadd.f32 %v5625, %v5697
      %5710 = vrot.lane.b32.xlu0 %v4597, 1
      %v5711 = vpop.permute.xlu0 %5710
      %5712 = vrot.lane.b32.xlu0 %v4603, 1
      %v5713 = vpop.permute.xlu0 %5712
      %5714 = vrot.lane.b32.xlu0 %v4609, 1
      %v5715 = vpop.permute.xlu0 %5714
      %5716 = vrot.lane.b32.xlu0 %v4599, 1
      %v5717 = vpop.permute.xlu0 %5716
      %5718 = vrot.lane.b32.xlu0 %v4605, 1
      %v5719 = vpop.permute.xlu0 %5718
      %5720 = vrot.lane.b32.xlu0 %v4611, 1
      %v5721 = vpop.permute.xlu0 %5720
      %5722 = vrot.lane.b32.xlu0 %v4680, 1
      %v5723 = vpop.permute.xlu0 %5722
      %5724 = vrot.lane.b32.xlu0 %v4686, 1
      %v5725 = vpop.permute.xlu0 %5724
      %5726 = vrot.lane.b32.xlu0 %v4692, 1
      %v5727 = vpop.permute.xlu0 %5726
      %5728 = vrot.lane.b32.xlu0 %v4682, 1
      %v5729 = vpop.permute.xlu0 %5728
      %5730 = vrot.lane.b32.xlu0 %v4688, 1
      %v5731 = vpop.permute.xlu0 %5730
      %5732 = vrot.lane.b32.xlu0 %v4694, 1
      %v5733 = vpop.permute.xlu0 %5732
      %v5734 = vsel %vm2747, %v5723, %v5729
      %v5735 = vsel %vm2747, %v5725, %v5731
      %v5736 = vsel %vm2747, %v5727, %v5733
      %v5737 = vsel %vm2747, %v5717, %v5723
      %v5738 = vsel %vm2747, %v5719, %v5725
      %v5739 = vsel %vm2747, %v5721, %v5727
      %v5740 = vsel %vm2747, %v5711, %v5717
      %v5741 = vsel %vm2747, %v5713, %v5719
      %v5742 = vsel %vm2747, %v5715, %v5721
      %v5743 = vsel %vm2747, %v5729, %v5711
      %v5744 = vsel %vm2747, %v5731, %v5713
      %v5745 = vsel %vm2747, %v5733, %v5715
      %5746 = vset.pattern.permute.xlu0 12
      %5747 = vperm.xlu0 %5746, %v4696
      %v5748 = vpop.permute.xlu0 %5747
      %5750 = vset.pattern.permute.xlu0 12
      %5751 = vperm.xlu0 %5750, %v4697
      %v5752 = vpop.permute.xlu0 %5751
      %5754 = vset.pattern.permute.xlu0 12
      %5755 = vperm.xlu0 %5754, %v4698
      %v5756 = vpop.permute.xlu0 %5755
      %v5758 = vmul.f32 %v5748, %v2776
      %v5759 = vmul.f32 %v5748, %v2780
      %v5760 = vmul.f32 %v5748, %v2784
      %v5761 = vmul.f32 %v5748, %v2788
      %v5762 = vmul.f32 %v5752, %v2776
      %v5763 = vmul.f32 %v5752, %v2780
      %v5764 = vmul.f32 %v5752, %v2784
      %v5765 = vmul.f32 %v5752, %v2788
      %v5766 = vmul.f32 %v5756, %v2776
      %v5767 = vmul.f32 %v5756, %v2780
      %v5768 = vmul.f32 %v5756, %v2784
      %v5769 = vmul.f32 %v5756, %v2788
      %v5770 = vmul.f32 %v5758, %v5743
      %v5771 = vmul.f32 %v5759, %v5740
      %v5772 = vmul.f32 %v5760, %v5737
      %v5773 = vmul.f32 %v5761, %v5734
      %v5774 = vmul.f32 %v5762, %v5744
      %v5775 = vmul.f32 %v5763, %v5741
      %v5776 = vmul.f32 %v5764, %v5738
      %v5777 = vmul.f32 %v5765, %v5735
      %v5778 = vmul.f32 %v5766, %v5745
      %v5779 = vmul.f32 %v5767, %v5742
      %v5780 = vmul.f32 %v5768, %v5739
      %v5781 = vmul.f32 %v5769, %v5736
      %v5782 = vadd.f32 %v5698, %v5770
      %v5783 = vadd.f32 %v5699, %v5771
      %v5784 = vadd.f32 %v5700, %v5772
      %v5785 = vadd.f32 %v5701, %v5773
      %v5786 = vadd.f32 %v5702, %v5774
      %v5787 = vadd.f32 %v5703, %v5775
      %v5788 = vadd.f32 %v5704, %v5776
      %v5789 = vadd.f32 %v5705, %v5777
      %v5790 = vadd.f32 %v5706, %v5778
      %v5791 = vadd.f32 %v5707, %v5779
      %v5792 = vadd.f32 %v5708, %v5780
      %v5793 = vadd.f32 %v5709, %v5781
      %5794 = vset.pattern.permute.xlu0 13
      %5795 = vperm.xlu0 %5794, %v4696
      %v5796 = vpop.permute.xlu0 %5795
      %5798 = vset.pattern.permute.xlu0 13
      %5799 = vperm.xlu0 %5798, %v4697
      %v5800 = vpop.permute.xlu0 %5799
      %5802 = vset.pattern.permute.xlu0 13
      %5803 = vperm.xlu0 %5802, %v4698
      %v5804 = vpop.permute.xlu0 %5803
      %v5806 = vmul.f32 %v5796, %v2845
      %v5807 = vmul.f32 %v5796, %v2849
      %v5808 = vmul.f32 %v5796, %v2853
      %v5809 = vmul.f32 %v5796, %v2857
      %v5810 = vmul.f32 %v5800, %v2845
      %v5811 = vmul.f32 %v5800, %v2849
      %v5812 = vmul.f32 %v5800, %v2853
      %v5813 = vmul.f32 %v5800, %v2857
      %v5814 = vmul.f32 %v5804, %v2845
      %v5815 = vmul.f32 %v5804, %v2849
      %v5816 = vmul.f32 %v5804, %v2853
      %v5817 = vmul.f32 %v5804, %v2857
      %v5818 = vmul.f32 %v5806, %v4597
      %v5819 = vmul.f32 %v5807, %v4599
      %v5820 = vmul.f32 %v5808, %v4680
      %v5821 = vmul.f32 %v5809, %v4682
      %v5822 = vmul.f32 %v5810, %v4603
      %v5823 = vmul.f32 %v5811, %v4605
      %v5824 = vmul.f32 %v5812, %v4686
      %v5825 = vmul.f32 %v5813, %v4688
      %v5826 = vmul.f32 %v5814, %v4609
      %v5827 = vmul.f32 %v5815, %v4611
      %v5828 = vmul.f32 %v5816, %v4692
      %v5829 = vmul.f32 %v5817, %v4694
      %v5830 = vadd.f32 %v5782, %v5818
      %v5831 = vadd.f32 %v5783, %v5819
      %v5832 = vadd.f32 %v5784, %v5820
      %v5833 = vadd.f32 %v5785, %v5821
      %v5834 = vadd.f32 %v5786, %v5822
      %v5835 = vadd.f32 %v5787, %v5823
      %v5836 = vadd.f32 %v5788, %v5824
      %v5837 = vadd.f32 %v5789, %v5825
      %v5838 = vadd.f32 %v5790, %v5826
      %v5839 = vadd.f32 %v5791, %v5827
      %v5840 = vadd.f32 %v5792, %v5828
      %v5841 = vadd.f32 %v5793, %v5829
      %5842 = vrot.lane.b32.xlu0 %v4597, 127
      %v5843 = vpop.permute.xlu0 %5842
      %5844 = vrot.lane.b32.xlu0 %v4603, 127
      %v5845 = vpop.permute.xlu0 %5844
      %5846 = vrot.lane.b32.xlu0 %v4609, 127
      %v5847 = vpop.permute.xlu0 %5846
      %5848 = vrot.lane.b32.xlu0 %v4599, 127
      %v5849 = vpop.permute.xlu0 %5848
      %5850 = vrot.lane.b32.xlu0 %v4605, 127
      %v5851 = vpop.permute.xlu0 %5850
      %5852 = vrot.lane.b32.xlu0 %v4611, 127
      %v5853 = vpop.permute.xlu0 %5852
      %5854 = vrot.lane.b32.xlu0 %v4680, 127
      %v5855 = vpop.permute.xlu0 %5854
      %5856 = vrot.lane.b32.xlu0 %v4686, 127
      %v5857 = vpop.permute.xlu0 %5856
      %5858 = vrot.lane.b32.xlu0 %v4692, 127
      %v5859 = vpop.permute.xlu0 %5858
      %5860 = vrot.lane.b32.xlu0 %v4682, 127
      %v5861 = vpop.permute.xlu0 %5860
      %5862 = vrot.lane.b32.xlu0 %v4688, 127
      %v5863 = vpop.permute.xlu0 %5862
      %5864 = vrot.lane.b32.xlu0 %v4694, 127
      %v5865 = vpop.permute.xlu0 %5864
      %v5866 = vsel %vm2922, %v5855, %v5861
      %v5867 = vsel %vm2922, %v5857, %v5863
      %v5868 = vsel %vm2922, %v5859, %v5865
      %v5869 = vsel %vm2922, %v5849, %v5855
      %v5870 = vsel %vm2922, %v5851, %v5857
      %v5871 = vsel %vm2922, %v5853, %v5859
      %v5872 = vsel %vm2922, %v5843, %v5849
      %v5873 = vsel %vm2922, %v5845, %v5851
      %v5874 = vsel %vm2922, %v5847, %v5853
      %v5875 = vsel %vm2922, %v5861, %v5843
      %v5876 = vsel %vm2922, %v5863, %v5845
      %v5877 = vsel %vm2922, %v5865, %v5847
      %5878 = vset.pattern.permute.xlu0 14
      %5879 = vperm.xlu0 %5878, %v4696
      %v5880 = vpop.permute.xlu0 %5879
      %5882 = vset.pattern.permute.xlu0 14
      %5883 = vperm.xlu0 %5882, %v4697
      %v5884 = vpop.permute.xlu0 %5883
      %5886 = vset.pattern.permute.xlu0 14
      %5887 = vperm.xlu0 %5886, %v4698
      %v5888 = vpop.permute.xlu0 %5887
      %v5890 = vmul.f32 %v5880, %v2951
      %v5891 = vmul.f32 %v5880, %v2955
      %v5892 = vmul.f32 %v5880, %v2959
      %v5893 = vmul.f32 %v5880, %v2963
      %v5894 = vmul.f32 %v5884, %v2951
      %v5895 = vmul.f32 %v5884, %v2955
      %v5896 = vmul.f32 %v5884, %v2959
      %v5897 = vmul.f32 %v5884, %v2963
      %v5898 = vmul.f32 %v5888, %v2951
      %v5899 = vmul.f32 %v5888, %v2955
      %v5900 = vmul.f32 %v5888, %v2959
      %v5901 = vmul.f32 %v5888, %v2963
      %v5902 = vmul.f32 %v5890, %v5872
      %v5903 = vmul.f32 %v5891, %v5869
      %v5904 = vmul.f32 %v5892, %v5866
      %v5905 = vmul.f32 %v5893, %v5875
      %v5906 = vmul.f32 %v5894, %v5873
      %v5907 = vmul.f32 %v5895, %v5870
      %v5908 = vmul.f32 %v5896, %v5867
      %v5909 = vmul.f32 %v5897, %v5876
      %v5910 = vmul.f32 %v5898, %v5874
      %v5911 = vmul.f32 %v5899, %v5871
      %v5912 = vmul.f32 %v5900, %v5868
      %v5913 = vmul.f32 %v5901, %v5877
      %v5914 = vadd.f32 %v5830, %v5902
      %v5915 = vadd.f32 %v5831, %v5903
      %v5916 = vadd.f32 %v5832, %v5904
      %v5917 = vadd.f32 %v5833, %v5905
      %v5918 = vadd.f32 %v5834, %v5906
      %v5919 = vadd.f32 %v5835, %v5907
      %v5920 = vadd.f32 %v5836, %v5908
      %v5921 = vadd.f32 %v5837, %v5909
      %v5922 = vadd.f32 %v5838, %v5910
      %v5923 = vadd.f32 %v5839, %v5911
      %v5924 = vadd.f32 %v5840, %v5912
      %v5925 = vadd.f32 %v5841, %v5913
      %5926 = vrot.lane.b32.xlu0 %v4597, 121
      %v5927 = vpop.permute.xlu0 %5926
      %5928 = vrot.lane.b32.xlu0 %v4603, 121
      %v5929 = vpop.permute.xlu0 %5928
      %5930 = vrot.lane.b32.xlu0 %v4609, 121
      %v5931 = vpop.permute.xlu0 %5930
      %5932 = vrot.lane.b32.xlu0 %v4599, 121
      %v5933 = vpop.permute.xlu0 %5932
      %5934 = vrot.lane.b32.xlu0 %v4605, 121
      %v5935 = vpop.permute.xlu0 %5934
      %5936 = vrot.lane.b32.xlu0 %v4611, 121
      %v5937 = vpop.permute.xlu0 %5936
      %5938 = vrot.lane.b32.xlu0 %v4680, 121
      %v5939 = vpop.permute.xlu0 %5938
      %5940 = vrot.lane.b32.xlu0 %v4686, 121
      %v5941 = vpop.permute.xlu0 %5940
      %5942 = vrot.lane.b32.xlu0 %v4692, 121
      %v5943 = vpop.permute.xlu0 %5942
      %5944 = vrot.lane.b32.xlu0 %v4682, 121
      %v5945 = vpop.permute.xlu0 %5944
      %5946 = vrot.lane.b32.xlu0 %v4688, 121
      %v5947 = vpop.permute.xlu0 %5946
      %5948 = vrot.lane.b32.xlu0 %v4694, 121
      %v5949 = vpop.permute.xlu0 %5948
      %v5950 = vsel %vm3028, %v5939, %v5945
      %v5951 = vsel %vm3028, %v5941, %v5947
      %v5952 = vsel %vm3028, %v5943, %v5949
      %v5953 = vsel %vm3028, %v5933, %v5939
      %v5954 = vsel %vm3028, %v5935, %v5941
      %v5955 = vsel %vm3028, %v5937, %v5943
      %v5956 = vsel %vm3028, %v5927, %v5933
      %v5957 = vsel %vm3028, %v5929, %v5935
      %v5958 = vsel %vm3028, %v5931, %v5937
      %v5959 = vsel %vm3028, %v5945, %v5927
      %v5960 = vsel %vm3028, %v5947, %v5929
      %v5961 = vsel %vm3028, %v5949, %v5931
      %5962 = vset.pattern.permute.xlu0 15
      %5963 = vperm.xlu0 %5962, %v4696
      %v5964 = vpop.permute.xlu0 %5963
      %5966 = vset.pattern.permute.xlu0 15
      %5967 = vperm.xlu0 %5966, %v4697
      %v5968 = vpop.permute.xlu0 %5967
      %5970 = vset.pattern.permute.xlu0 15
      %5971 = vperm.xlu0 %5970, %v4698
      %v5972 = vpop.permute.xlu0 %5971
      %v5974 = vmul.f32 %v5964, %v3057
      %v5975 = vmul.f32 %v5964, %v3061
      %v5976 = vmul.f32 %v5964, %v3065
      %v5977 = vmul.f32 %v5964, %v3069
      %v5978 = vmul.f32 %v5968, %v3057
      %v5979 = vmul.f32 %v5968, %v3061
      %v5980 = vmul.f32 %v5968, %v3065
      %v5981 = vmul.f32 %v5968, %v3069
      %v5982 = vmul.f32 %v5972, %v3057
      %v5983 = vmul.f32 %v5972, %v3061
      %v5984 = vmul.f32 %v5972, %v3065
      %v5985 = vmul.f32 %v5972, %v3069
      %v5986 = vmul.f32 %v5974, %v5956
      %v5987 = vmul.f32 %v5975, %v5953
      %v5988 = vmul.f32 %v5976, %v5950
      %v5989 = vmul.f32 %v5977, %v5959
      %v5990 = vmul.f32 %v5978, %v5957
      %v5991 = vmul.f32 %v5979, %v5954
      %v5992 = vmul.f32 %v5980, %v5951
      %v5993 = vmul.f32 %v5981, %v5960
      %v5994 = vmul.f32 %v5982, %v5958
      %v5995 = vmul.f32 %v5983, %v5955
      %v5996 = vmul.f32 %v5984, %v5952
      %v5997 = vmul.f32 %v5985, %v5961
      %v5998 = vadd.f32 %v5914, %v5986
      %v5999 = vadd.f32 %v5915, %v5987
      %v6000 = vadd.f32 %v5916, %v5988
      %v6001 = vadd.f32 %v5917, %v5989
      %v6002 = vadd.f32 %v5918, %v5990
      %v6003 = vadd.f32 %v5919, %v5991
      %v6004 = vadd.f32 %v5920, %v5992
      %v6005 = vadd.f32 %v5921, %v5993
      %v6006 = vadd.f32 %v5922, %v5994
      %v6007 = vadd.f32 %v5923, %v5995
      %v6008 = vadd.f32 %v5924, %v5996
      %v6009 = vadd.f32 %v5925, %v5997
      %6010 = vrot.lane.b32.xlu0 %v4597, 120
      %v6011 = vpop.permute.xlu0 %6010
      %6012 = vrot.lane.b32.xlu0 %v4603, 120
      %v6013 = vpop.permute.xlu0 %6012
      %6014 = vrot.lane.b32.xlu0 %v4609, 120
      %v6015 = vpop.permute.xlu0 %6014
      %6016 = vrot.lane.b32.xlu0 %v4599, 120
      %v6017 = vpop.permute.xlu0 %6016
      %6018 = vrot.lane.b32.xlu0 %v4605, 120
      %v6019 = vpop.permute.xlu0 %6018
      %6020 = vrot.lane.b32.xlu0 %v4611, 120
      %v6021 = vpop.permute.xlu0 %6020
      %6022 = vrot.lane.b32.xlu0 %v4680, 120
      %v6023 = vpop.permute.xlu0 %6022
      %6024 = vrot.lane.b32.xlu0 %v4686, 120
      %v6025 = vpop.permute.xlu0 %6024
      %6026 = vrot.lane.b32.xlu0 %v4692, 120
      %v6027 = vpop.permute.xlu0 %6026
      %6028 = vrot.lane.b32.xlu0 %v4682, 120
      %v6029 = vpop.permute.xlu0 %6028
      %6030 = vrot.lane.b32.xlu0 %v4688, 120
      %v6031 = vpop.permute.xlu0 %6030
      %6032 = vrot.lane.b32.xlu0 %v4694, 120
      %v6033 = vpop.permute.xlu0 %6032
      %v6034 = vsel %vm3134, %v6023, %v6029
      %v6035 = vsel %vm3134, %v6025, %v6031
      %v6036 = vsel %vm3134, %v6027, %v6033
      %v6037 = vsel %vm3134, %v6017, %v6023
      %v6038 = vsel %vm3134, %v6019, %v6025
      %v6039 = vsel %vm3134, %v6021, %v6027
      %v6040 = vsel %vm3134, %v6011, %v6017
      %v6041 = vsel %vm3134, %v6013, %v6019
      %v6042 = vsel %vm3134, %v6015, %v6021
      %v6043 = vsel %vm3134, %v6029, %v6011
      %v6044 = vsel %vm3134, %v6031, %v6013
      %v6045 = vsel %vm3134, %v6033, %v6015
      %6046 = vset.pattern.permute.xlu0 16
      %6047 = vperm.xlu0 %6046, %v4696
      %v6048 = vpop.permute.xlu0 %6047
      %6050 = vset.pattern.permute.xlu0 16
      %6051 = vperm.xlu0 %6050, %v4697
      %v6052 = vpop.permute.xlu0 %6051
      %6054 = vset.pattern.permute.xlu0 16
      %6055 = vperm.xlu0 %6054, %v4698
      %v6056 = vpop.permute.xlu0 %6055
      %v6058 = vmul.f32 %v6048, %v3163
      %v6059 = vmul.f32 %v6048, %v3167
      %v6060 = vmul.f32 %v6048, %v3171
      %v6061 = vmul.f32 %v6048, %v3175
      %v6062 = vmul.f32 %v6052, %v3163
      %v6063 = vmul.f32 %v6052, %v3167
      %v6064 = vmul.f32 %v6052, %v3171
      %v6065 = vmul.f32 %v6052, %v3175
      %v6066 = vmul.f32 %v6056, %v3163
      %v6067 = vmul.f32 %v6056, %v3167
      %v6068 = vmul.f32 %v6056, %v3171
      %v6069 = vmul.f32 %v6056, %v3175
      %v6070 = vmul.f32 %v6058, %v6040
      %v6071 = vmul.f32 %v6059, %v6037
      %v6072 = vmul.f32 %v6060, %v6034
      %v6073 = vmul.f32 %v6061, %v6043
      %v6074 = vmul.f32 %v6062, %v6041
      %v6075 = vmul.f32 %v6063, %v6038
      %v6076 = vmul.f32 %v6064, %v6035
      %v6077 = vmul.f32 %v6065, %v6044
      %v6078 = vmul.f32 %v6066, %v6042
      %v6079 = vmul.f32 %v6067, %v6039
      %v6080 = vmul.f32 %v6068, %v6036
      %v6081 = vmul.f32 %v6069, %v6045
      %v6082 = vadd.f32 %v5998, %v6070
      %v6083 = vadd.f32 %v5999, %v6071
      %v6084 = vadd.f32 %v6000, %v6072
      %v6085 = vadd.f32 %v6001, %v6073
      %v6086 = vadd.f32 %v6002, %v6074
      %v6087 = vadd.f32 %v6003, %v6075
      %v6088 = vadd.f32 %v6004, %v6076
      %v6089 = vadd.f32 %v6005, %v6077
      %v6090 = vadd.f32 %v6006, %v6078
      %v6091 = vadd.f32 %v6007, %v6079
      %v6092 = vadd.f32 %v6008, %v6080
      %v6093 = vadd.f32 %v6009, %v6081
      %6094 = vrot.lane.b32.xlu0 %v4597, 119
      %v6095 = vpop.permute.xlu0 %6094
      %6096 = vrot.lane.b32.xlu0 %v4603, 119
      %v6097 = vpop.permute.xlu0 %6096
      %6098 = vrot.lane.b32.xlu0 %v4609, 119
      %v6099 = vpop.permute.xlu0 %6098
      %6100 = vrot.lane.b32.xlu0 %v4599, 119
      %v6101 = vpop.permute.xlu0 %6100
      %6102 = vrot.lane.b32.xlu0 %v4605, 119
      %v6103 = vpop.permute.xlu0 %6102
      %6104 = vrot.lane.b32.xlu0 %v4611, 119
      %v6105 = vpop.permute.xlu0 %6104
      %6106 = vrot.lane.b32.xlu0 %v4680, 119
      %v6107 = vpop.permute.xlu0 %6106
      %6108 = vrot.lane.b32.xlu0 %v4686, 119
      %v6109 = vpop.permute.xlu0 %6108
      %6110 = vrot.lane.b32.xlu0 %v4692, 119
      %v6111 = vpop.permute.xlu0 %6110
      %6112 = vrot.lane.b32.xlu0 %v4682, 119
      %v6113 = vpop.permute.xlu0 %6112
      %6114 = vrot.lane.b32.xlu0 %v4688, 119
      %v6115 = vpop.permute.xlu0 %6114
      %6116 = vrot.lane.b32.xlu0 %v4694, 119
      %v6117 = vpop.permute.xlu0 %6116
      %v6118 = vsel %vm3240, %v6107, %v6113
      %v6119 = vsel %vm3240, %v6109, %v6115
      %v6120 = vsel %vm3240, %v6111, %v6117
      %v6121 = vsel %vm3240, %v6101, %v6107
      %v6122 = vsel %vm3240, %v6103, %v6109
      %v6123 = vsel %vm3240, %v6105, %v6111
      %v6124 = vsel %vm3240, %v6095, %v6101
      %v6125 = vsel %vm3240, %v6097, %v6103
      %v6126 = vsel %vm3240, %v6099, %v6105
      %v6127 = vsel %vm3240, %v6113, %v6095
      %v6128 = vsel %vm3240, %v6115, %v6097
      %v6129 = vsel %vm3240, %v6117, %v6099
      %6130 = vset.pattern.permute.xlu0 17
      %6131 = vperm.xlu0 %6130, %v4696
      %v6132 = vpop.permute.xlu0 %6131
      %6134 = vset.pattern.permute.xlu0 17
      %6135 = vperm.xlu0 %6134, %v4697
      %v6136 = vpop.permute.xlu0 %6135
      %6138 = vset.pattern.permute.xlu0 17
      %6139 = vperm.xlu0 %6138, %v4698
      %v6140 = vpop.permute.xlu0 %6139
      %v6142 = vmul.f32 %v6132, %v3269
      %v6143 = vmul.f32 %v6132, %v3273
      %v6144 = vmul.f32 %v6132, %v3277
      %v6145 = vmul.f32 %v6132, %v3281
      %v6146 = vmul.f32 %v6136, %v3269
      %v6147 = vmul.f32 %v6136, %v3273
      %v6148 = vmul.f32 %v6136, %v3277
      %v6149 = vmul.f32 %v6136, %v3281
      %v6150 = vmul.f32 %v6140, %v3269
      %v6151 = vmul.f32 %v6140, %v3273
      %v6152 = vmul.f32 %v6140, %v3277
      %v6153 = vmul.f32 %v6140, %v3281
      %v6154 = vmul.f32 %v6142, %v6124
      %v6155 = vmul.f32 %v6143, %v6121
      %v6156 = vmul.f32 %v6144, %v6118
      %v6157 = vmul.f32 %v6145, %v6127
      %v6158 = vmul.f32 %v6146, %v6125
      %v6159 = vmul.f32 %v6147, %v6122
      %v6160 = vmul.f32 %v6148, %v6119
      %v6161 = vmul.f32 %v6149, %v6128
      %v6162 = vmul.f32 %v6150, %v6126
      %v6163 = vmul.f32 %v6151, %v6123
      %v6164 = vmul.f32 %v6152, %v6120
      %v6165 = vmul.f32 %v6153, %v6129
      %v6166 = vadd.f32 %v6082, %v6154
      %v6167 = vadd.f32 %v6083, %v6155
      %v6168 = vadd.f32 %v6084, %v6156
      %v6169 = vadd.f32 %v6085, %v6157
      %v6170 = vadd.f32 %v6086, %v6158
      %v6171 = vadd.f32 %v6087, %v6159
      %v6172 = vadd.f32 %v6088, %v6160
      %v6173 = vadd.f32 %v6089, %v6161
      %v6174 = vadd.f32 %v6090, %v6162
      %v6175 = vadd.f32 %v6091, %v6163
      %v6176 = vadd.f32 %v6092, %v6164
      %v6177 = vadd.f32 %v6093, %v6165
      %6178 = vset.pattern.permute.xlu0 18
      %6179 = vperm.xlu0 %6178, %v4696
      %v6180 = vpop.permute.xlu0 %6179
      %6182 = vset.pattern.permute.xlu0 18
      %6183 = vperm.xlu0 %6182, %v4697
      %v6184 = vpop.permute.xlu0 %6183
      %6186 = vset.pattern.permute.xlu0 18
      %6187 = vperm.xlu0 %6186, %v4698
      %v6188 = vpop.permute.xlu0 %6187
      %v6190 = vmul.f32 %v6180, %v3338
      %v6191 = vmul.f32 %v6180, %v3342
      %v6192 = vmul.f32 %v6180, %v3346
      %v6193 = vmul.f32 %v6180, %v3350
      %v6194 = vmul.f32 %v6184, %v3338
      %v6195 = vmul.f32 %v6184, %v3342
      %v6196 = vmul.f32 %v6184, %v3346
      %v6197 = vmul.f32 %v6184, %v3350
      %v6198 = vmul.f32 %v6188, %v3338
      %v6199 = vmul.f32 %v6188, %v3342
      %v6200 = vmul.f32 %v6188, %v3346
      %v6201 = vmul.f32 %v6188, %v3350
      %v6202 = vmul.f32 %v6190, %v4729
      %v6203 = vmul.f32 %v6191, %v4726
      %v6204 = vmul.f32 %v6192, %v4723
      %v6205 = vmul.f32 %v6193, %v4732
      %v6206 = vmul.f32 %v6194, %v4730
      %v6207 = vmul.f32 %v6195, %v4727
      %v6208 = vmul.f32 %v6196, %v4724
      %v6209 = vmul.f32 %v6197, %v4733
      %v6210 = vmul.f32 %v6198, %v4731
      %v6211 = vmul.f32 %v6199, %v4728
      %v6212 = vmul.f32 %v6200, %v4725
      %v6213 = vmul.f32 %v6201, %v4734
      %v6214 = vadd.f32 %v6166, %v6202
      %v6215 = vadd.f32 %v6167, %v6203
      %v6216 = vadd.f32 %v6168, %v6204
      %v6217 = vadd.f32 %v6169, %v6205
      %v6218 = vadd.f32 %v6170, %v6206
      %v6219 = vadd.f32 %v6171, %v6207
      %v6220 = vadd.f32 %v6172, %v6208
      %v6221 = vadd.f32 %v6173, %v6209
      %v6222 = vadd.f32 %v6174, %v6210
      %v6223 = vadd.f32 %v6175, %v6211
      %v6224 = vadd.f32 %v6176, %v6212
      %v6225 = vadd.f32 %v6177, %v6213
      %6226 = vset.pattern.permute.xlu0 19
      %6227 = vperm.xlu0 %6226, %v4696
      %v6228 = vpop.permute.xlu0 %6227
      %6230 = vset.pattern.permute.xlu0 19
      %6231 = vperm.xlu0 %6230, %v4697
      %v6232 = vpop.permute.xlu0 %6231
      %6234 = vset.pattern.permute.xlu0 19
      %6235 = vperm.xlu0 %6234, %v4698
      %v6236 = vpop.permute.xlu0 %6235
      %v6238 = vmul.f32 %v6228, %v3407
      %v6239 = vmul.f32 %v6228, %v3411
      %v6240 = vmul.f32 %v6228, %v3415
      %v6241 = vmul.f32 %v6228, %v3419
      %v6242 = vmul.f32 %v6232, %v3407
      %v6243 = vmul.f32 %v6232, %v3411
      %v6244 = vmul.f32 %v6232, %v3415
      %v6245 = vmul.f32 %v6232, %v3419
      %v6246 = vmul.f32 %v6236, %v3407
      %v6247 = vmul.f32 %v6236, %v3411
      %v6248 = vmul.f32 %v6236, %v3415
      %v6249 = vmul.f32 %v6236, %v3419
      %v6250 = vmul.f32 %v6238, %v4816
      %v6251 = vmul.f32 %v6239, %v4813
      %v6252 = vmul.f32 %v6240, %v4810
      %v6253 = vmul.f32 %v6241, %v4819
      %v6254 = vmul.f32 %v6242, %v4817
      %v6255 = vmul.f32 %v6243, %v4814
      %v6256 = vmul.f32 %v6244, %v4811
      %v6257 = vmul.f32 %v6245, %v4820
      %v6258 = vmul.f32 %v6246, %v4818
      %v6259 = vmul.f32 %v6247, %v4815
      %v6260 = vmul.f32 %v6248, %v4812
      %v6261 = vmul.f32 %v6249, %v4821
      %v6262 = vadd.f32 %v6214, %v6250
      %v6263 = vadd.f32 %v6215, %v6251
      %v6264 = vadd.f32 %v6216, %v6252
      %v6265 = vadd.f32 %v6217, %v6253
      %v6266 = vadd.f32 %v6218, %v6254
      %v6267 = vadd.f32 %v6219, %v6255
      %v6268 = vadd.f32 %v6220, %v6256
      %v6269 = vadd.f32 %v6221, %v6257
      %v6270 = vadd.f32 %v6222, %v6258
      %v6271 = vadd.f32 %v6223, %v6259
      %v6272 = vadd.f32 %v6224, %v6260
      %v6273 = vadd.f32 %v6225, %v6261
      %6274 = vset.pattern.permute.xlu0 20
      %6275 = vperm.xlu0 %6274, %v4696
      %v6276 = vpop.permute.xlu0 %6275
      %6278 = vset.pattern.permute.xlu0 20
      %6279 = vperm.xlu0 %6278, %v4697
      %v6280 = vpop.permute.xlu0 %6279
      %6282 = vset.pattern.permute.xlu0 20
      %6283 = vperm.xlu0 %6282, %v4698
      %v6284 = vpop.permute.xlu0 %6283
      %v6286 = vmul.f32 %v6276, %v3476
      %v6287 = vmul.f32 %v6276, %v3480
      %v6288 = vmul.f32 %v6276, %v3484
      %v6289 = vmul.f32 %v6276, %v3488
      %v6290 = vmul.f32 %v6280, %v3476
      %v6291 = vmul.f32 %v6280, %v3480
      %v6292 = vmul.f32 %v6280, %v3484
      %v6293 = vmul.f32 %v6280, %v3488
      %v6294 = vmul.f32 %v6284, %v3476
      %v6295 = vmul.f32 %v6284, %v3480
      %v6296 = vmul.f32 %v6284, %v3484
      %v6297 = vmul.f32 %v6284, %v3488
      %v6298 = vmul.f32 %v6286, %v4900
      %v6299 = vmul.f32 %v6287, %v4897
      %v6300 = vmul.f32 %v6288, %v4894
      %v6301 = vmul.f32 %v6289, %v4903
      %v6302 = vmul.f32 %v6290, %v4901
      %v6303 = vmul.f32 %v6291, %v4898
      %v6304 = vmul.f32 %v6292, %v4895
      %v6305 = vmul.f32 %v6293, %v4904
      %v6306 = vmul.f32 %v6294, %v4902
      %v6307 = vmul.f32 %v6295, %v4899
      %v6308 = vmul.f32 %v6296, %v4896
      %v6309 = vmul.f32 %v6297, %v4905
      %v6310 = vadd.f32 %v6262, %v6298
      %v6311 = vadd.f32 %v6263, %v6299
      %v6312 = vadd.f32 %v6264, %v6300
      %v6313 = vadd.f32 %v6265, %v6301
      %v6314 = vadd.f32 %v6266, %v6302
      %v6315 = vadd.f32 %v6267, %v6303
      %v6316 = vadd.f32 %v6268, %v6304
      %v6317 = vadd.f32 %v6269, %v6305
      %v6318 = vadd.f32 %v6270, %v6306
      %v6319 = vadd.f32 %v6271, %v6307
      %v6320 = vadd.f32 %v6272, %v6308
      %v6321 = vadd.f32 %v6273, %v6309
      %6322 = vset.pattern.permute.xlu0 21
      %6323 = vperm.xlu0 %6322, %v4696
      %v6324 = vpop.permute.xlu0 %6323
      %6326 = vset.pattern.permute.xlu0 21
      %6327 = vperm.xlu0 %6326, %v4697
      %v6328 = vpop.permute.xlu0 %6327
      %6330 = vset.pattern.permute.xlu0 21
      %6331 = vperm.xlu0 %6330, %v4698
      %v6332 = vpop.permute.xlu0 %6331
      %v6334 = vmul.f32 %v6324, %v3545
      %v6335 = vmul.f32 %v6324, %v3549
      %v6336 = vmul.f32 %v6324, %v3553
      %v6337 = vmul.f32 %v6324, %v3557
      %v6338 = vmul.f32 %v6328, %v3545
      %v6339 = vmul.f32 %v6328, %v3549
      %v6340 = vmul.f32 %v6328, %v3553
      %v6341 = vmul.f32 %v6328, %v3557
      %v6342 = vmul.f32 %v6332, %v3545
      %v6343 = vmul.f32 %v6332, %v3549
      %v6344 = vmul.f32 %v6332, %v3553
      %v6345 = vmul.f32 %v6332, %v3557
      %v6346 = vmul.f32 %v6334, %v4984
      %v6347 = vmul.f32 %v6335, %v4981
      %v6348 = vmul.f32 %v6336, %v4978
      %v6349 = vmul.f32 %v6337, %v4987
      %v6350 = vmul.f32 %v6338, %v4985
      %v6351 = vmul.f32 %v6339, %v4982
      %v6352 = vmul.f32 %v6340, %v4979
      %v6353 = vmul.f32 %v6341, %v4988
      %v6354 = vmul.f32 %v6342, %v4986
      %v6355 = vmul.f32 %v6343, %v4983
      %v6356 = vmul.f32 %v6344, %v4980
      %v6357 = vmul.f32 %v6345, %v4989
      %v6358 = vadd.f32 %v6310, %v6346
      %v6359 = vadd.f32 %v6311, %v6347
      %v6360 = vadd.f32 %v6312, %v6348
      %v6361 = vadd.f32 %v6313, %v6349
      %v6362 = vadd.f32 %v6314, %v6350
      %v6363 = vadd.f32 %v6315, %v6351
      %v6364 = vadd.f32 %v6316, %v6352
      %v6365 = vadd.f32 %v6317, %v6353
      %v6366 = vadd.f32 %v6318, %v6354
      %v6367 = vadd.f32 %v6319, %v6355
      %v6368 = vadd.f32 %v6320, %v6356
      %v6369 = vadd.f32 %v6321, %v6357
      %6370 = vset.pattern.permute.xlu0 22
      %6371 = vperm.xlu0 %6370, %v4696
      %v6372 = vpop.permute.xlu0 %6371
      %6374 = vset.pattern.permute.xlu0 22
      %6375 = vperm.xlu0 %6374, %v4697
      %v6376 = vpop.permute.xlu0 %6375
      %6378 = vset.pattern.permute.xlu0 22
      %6379 = vperm.xlu0 %6378, %v4698
      %v6380 = vpop.permute.xlu0 %6379
      %v6382 = vmul.f32 %v6372, %v3614
      %v6383 = vmul.f32 %v6372, %v3618
      %v6384 = vmul.f32 %v6372, %v3622
      %v6385 = vmul.f32 %v6372, %v3626
      %v6386 = vmul.f32 %v6376, %v3614
      %v6387 = vmul.f32 %v6376, %v3618
      %v6388 = vmul.f32 %v6376, %v3622
      %v6389 = vmul.f32 %v6376, %v3626
      %v6390 = vmul.f32 %v6380, %v3614
      %v6391 = vmul.f32 %v6380, %v3618
      %v6392 = vmul.f32 %v6380, %v3622
      %v6393 = vmul.f32 %v6380, %v3626
      %v6394 = vmul.f32 %v6382, %v5068
      %v6395 = vmul.f32 %v6383, %v5065
      %v6396 = vmul.f32 %v6384, %v5062
      %v6397 = vmul.f32 %v6385, %v5071
      %v6398 = vmul.f32 %v6386, %v5069
      %v6399 = vmul.f32 %v6387, %v5066
      %v6400 = vmul.f32 %v6388, %v5063
      %v6401 = vmul.f32 %v6389, %v5072
      %v6402 = vmul.f32 %v6390, %v5070
      %v6403 = vmul.f32 %v6391, %v5067
      %v6404 = vmul.f32 %v6392, %v5064
      %v6405 = vmul.f32 %v6393, %v5073
      %v6406 = vadd.f32 %v6358, %v6394
      %v6407 = vadd.f32 %v6359, %v6395
      %v6408 = vadd.f32 %v6360, %v6396
      %v6409 = vadd.f32 %v6361, %v6397
      %v6410 = vadd.f32 %v6362, %v6398
      %v6411 = vadd.f32 %v6363, %v6399
      %v6412 = vadd.f32 %v6364, %v6400
      %v6413 = vadd.f32 %v6365, %v6401
      %v6414 = vadd.f32 %v6366, %v6402
      %v6415 = vadd.f32 %v6367, %v6403
      %v6416 = vadd.f32 %v6368, %v6404
      %v6417 = vadd.f32 %v6369, %v6405
      %6418 = vset.pattern.permute.xlu0 23
      %6419 = vperm.xlu0 %6418, %v4696
      %v6420 = vpop.permute.xlu0 %6419
      %6422 = vset.pattern.permute.xlu0 23
      %6423 = vperm.xlu0 %6422, %v4697
      %v6424 = vpop.permute.xlu0 %6423
      %6426 = vset.pattern.permute.xlu0 23
      %6427 = vperm.xlu0 %6426, %v4698
      %v6428 = vpop.permute.xlu0 %6427
      %v6430 = vmul.f32 %v6420, %v3683
      %v6431 = vmul.f32 %v6420, %v3687
      %v6432 = vmul.f32 %v6420, %v3691
      %v6433 = vmul.f32 %v6420, %v3695
      %v6434 = vmul.f32 %v6424, %v3683
      %v6435 = vmul.f32 %v6424, %v3687
      %v6436 = vmul.f32 %v6424, %v3691
      %v6437 = vmul.f32 %v6424, %v3695
      %v6438 = vmul.f32 %v6428, %v3683
      %v6439 = vmul.f32 %v6428, %v3687
      %v6440 = vmul.f32 %v6428, %v3691
      %v6441 = vmul.f32 %v6428, %v3695
      %v6442 = vmul.f32 %v6430, %v5152
      %v6443 = vmul.f32 %v6431, %v5149
      %v6444 = vmul.f32 %v6432, %v5146
      %v6445 = vmul.f32 %v6433, %v5155
      %v6446 = vmul.f32 %v6434, %v5153
      %v6447 = vmul.f32 %v6435, %v5150
      %v6448 = vmul.f32 %v6436, %v5147
      %v6449 = vmul.f32 %v6437, %v5156
      %v6450 = vmul.f32 %v6438, %v5154
      %v6451 = vmul.f32 %v6439, %v5151
      %v6452 = vmul.f32 %v6440, %v5148
      %v6453 = vmul.f32 %v6441, %v5157
      %v6454 = vadd.f32 %v6406, %v6442
      %v6455 = vadd.f32 %v6407, %v6443
      %v6456 = vadd.f32 %v6408, %v6444
      %v6457 = vadd.f32 %v6409, %v6445
      %v6458 = vadd.f32 %v6410, %v6446
      %v6459 = vadd.f32 %v6411, %v6447
      %v6460 = vadd.f32 %v6412, %v6448
      %v6461 = vadd.f32 %v6413, %v6449
      %v6462 = vadd.f32 %v6414, %v6450
      %v6463 = vadd.f32 %v6415, %v6451
      %v6464 = vadd.f32 %v6416, %v6452
      %v6465 = vadd.f32 %v6417, %v6453
      %6466 = vset.pattern.permute.xlu0 24
      %6467 = vperm.xlu0 %6466, %v4696
      %v6468 = vpop.permute.xlu0 %6467
      %6470 = vset.pattern.permute.xlu0 24
      %6471 = vperm.xlu0 %6470, %v4697
      %v6472 = vpop.permute.xlu0 %6471
      %6474 = vset.pattern.permute.xlu0 24
      %6475 = vperm.xlu0 %6474, %v4698
      %v6476 = vpop.permute.xlu0 %6475
      %v6478 = vmul.f32 %v6468, %v3752
      %v6479 = vmul.f32 %v6468, %v3756
      %v6480 = vmul.f32 %v6468, %v3760
      %v6481 = vmul.f32 %v6468, %v3764
      %v6482 = vmul.f32 %v6472, %v3752
      %v6483 = vmul.f32 %v6472, %v3756
      %v6484 = vmul.f32 %v6472, %v3760
      %v6485 = vmul.f32 %v6472, %v3764
      %v6486 = vmul.f32 %v6476, %v3752
      %v6487 = vmul.f32 %v6476, %v3756
      %v6488 = vmul.f32 %v6476, %v3760
      %v6489 = vmul.f32 %v6476, %v3764
      %v6490 = vmul.f32 %v6478, %v5236
      %v6491 = vmul.f32 %v6479, %v5233
      %v6492 = vmul.f32 %v6480, %v5230
      %v6493 = vmul.f32 %v6481, %v5239
      %v6494 = vmul.f32 %v6482, %v5237
      %v6495 = vmul.f32 %v6483, %v5234
      %v6496 = vmul.f32 %v6484, %v5231
      %v6497 = vmul.f32 %v6485, %v5240
      %v6498 = vmul.f32 %v6486, %v5238
      %v6499 = vmul.f32 %v6487, %v5235
      %v6500 = vmul.f32 %v6488, %v5232
      %v6501 = vmul.f32 %v6489, %v5241
      %v6502 = vadd.f32 %v6454, %v6490
      %v6503 = vadd.f32 %v6455, %v6491
      %v6504 = vadd.f32 %v6456, %v6492
      %v6505 = vadd.f32 %v6457, %v6493
      %v6506 = vadd.f32 %v6458, %v6494
      %v6507 = vadd.f32 %v6459, %v6495
      %v6508 = vadd.f32 %v6460, %v6496
      %v6509 = vadd.f32 %v6461, %v6497
      %v6510 = vadd.f32 %v6462, %v6498
      %v6511 = vadd.f32 %v6463, %v6499
      %v6512 = vadd.f32 %v6464, %v6500
      %v6513 = vadd.f32 %v6465, %v6501
      %6514 = vset.pattern.permute.xlu0 25
      %6515 = vperm.xlu0 %6514, %v4696
      %v6516 = vpop.permute.xlu0 %6515
      %6518 = vset.pattern.permute.xlu0 25
      %6519 = vperm.xlu0 %6518, %v4697
      %v6520 = vpop.permute.xlu0 %6519
      %6522 = vset.pattern.permute.xlu0 25
      %6523 = vperm.xlu0 %6522, %v4698
      %v6524 = vpop.permute.xlu0 %6523
      %v6526 = vmul.f32 %v6516, %v3821
      %v6527 = vmul.f32 %v6516, %v3825
      %v6528 = vmul.f32 %v6516, %v3829
      %v6529 = vmul.f32 %v6516, %v3833
      %v6530 = vmul.f32 %v6520, %v3821
      %v6531 = vmul.f32 %v6520, %v3825
      %v6532 = vmul.f32 %v6520, %v3829
      %v6533 = vmul.f32 %v6520, %v3833
      %v6534 = vmul.f32 %v6524, %v3821
      %v6535 = vmul.f32 %v6524, %v3825
      %v6536 = vmul.f32 %v6524, %v3829
      %v6537 = vmul.f32 %v6524, %v3833
      %v6538 = vmul.f32 %v6526, %v5320
      %v6539 = vmul.f32 %v6527, %v5317
      %v6540 = vmul.f32 %v6528, %v5314
      %v6541 = vmul.f32 %v6529, %v5323
      %v6542 = vmul.f32 %v6530, %v5321
      %v6543 = vmul.f32 %v6531, %v5318
      %v6544 = vmul.f32 %v6532, %v5315
      %v6545 = vmul.f32 %v6533, %v5324
      %v6546 = vmul.f32 %v6534, %v5322
      %v6547 = vmul.f32 %v6535, %v5319
      %v6548 = vmul.f32 %v6536, %v5316
      %v6549 = vmul.f32 %v6537, %v5325
      %v6550 = vadd.f32 %v6502, %v6538
      %v6551 = vadd.f32 %v6503, %v6539
      %v6552 = vadd.f32 %v6504, %v6540
      %v6553 = vadd.f32 %v6505, %v6541
      %v6554 = vadd.f32 %v6506, %v6542
      %v6555 = vadd.f32 %v6507, %v6543
      %v6556 = vadd.f32 %v6508, %v6544
      %v6557 = vadd.f32 %v6509, %v6545
      %v6558 = vadd.f32 %v6510, %v6546
      %v6559 = vadd.f32 %v6511, %v6547
      %v6560 = vadd.f32 %v6512, %v6548
      %v6561 = vadd.f32 %v6513, %v6549
      %6562 = vset.pattern.permute.xlu0 26
      %6563 = vperm.xlu0 %6562, %v4696
      %v6564 = vpop.permute.xlu0 %6563
      %6566 = vset.pattern.permute.xlu0 26
      %6567 = vperm.xlu0 %6566, %v4697
      %v6568 = vpop.permute.xlu0 %6567
      %6570 = vset.pattern.permute.xlu0 26
      %6571 = vperm.xlu0 %6570, %v4698
      %v6572 = vpop.permute.xlu0 %6571
      %v6574 = vmul.f32 %v6564, %v3890
      %v6575 = vmul.f32 %v6564, %v3894
      %v6576 = vmul.f32 %v6564, %v3898
      %v6577 = vmul.f32 %v6564, %v3902
      %v6578 = vmul.f32 %v6568, %v3890
      %v6579 = vmul.f32 %v6568, %v3894
      %v6580 = vmul.f32 %v6568, %v3898
      %v6581 = vmul.f32 %v6568, %v3902
      %v6582 = vmul.f32 %v6572, %v3890
      %v6583 = vmul.f32 %v6572, %v3894
      %v6584 = vmul.f32 %v6572, %v3898
      %v6585 = vmul.f32 %v6572, %v3902
      %v6586 = vmul.f32 %v6574, %v5404
      %v6587 = vmul.f32 %v6575, %v5401
      %v6588 = vmul.f32 %v6576, %v5398
      %v6589 = vmul.f32 %v6577, %v5407
      %v6590 = vmul.f32 %v6578, %v5405
      %v6591 = vmul.f32 %v6579, %v5402
      %v6592 = vmul.f32 %v6580, %v5399
      %v6593 = vmul.f32 %v6581, %v5408
      %v6594 = vmul.f32 %v6582, %v5406
      %v6595 = vmul.f32 %v6583, %v5403
      %v6596 = vmul.f32 %v6584, %v5400
      %v6597 = vmul.f32 %v6585, %v5409
      %v6598 = vadd.f32 %v6550, %v6586
      %v6599 = vadd.f32 %v6551, %v6587
      %v6600 = vadd.f32 %v6552, %v6588
      %v6601 = vadd.f32 %v6553, %v6589
      %v6602 = vadd.f32 %v6554, %v6590
      %v6603 = vadd.f32 %v6555, %v6591
      %v6604 = vadd.f32 %v6556, %v6592
      %v6605 = vadd.f32 %v6557, %v6593
      %v6606 = vadd.f32 %v6558, %v6594
      %v6607 = vadd.f32 %v6559, %v6595
      %v6608 = vadd.f32 %v6560, %v6596
      %v6609 = vadd.f32 %v6561, %v6597
      %v6610 = vld [vmem:[%s13] sm:$0xff]
      %v6611 = vld [vmem:[%s13 + $0x8] sm:$0xff]
      %v6612 = vld [vmem:[%s13 + $0x10] sm:$0xf]
      %6614 = vset.pattern.permute.xlu0 0
      %6615 = vperm.xlu0 %6614, %v6610
      %v6616 = vpop.permute.xlu0 %6615
      %6619 = vset.pattern.permute.xlu0 0
      %6620 = vperm.xlu0 %6619, %v6611
      %v6621 = vpop.permute.xlu0 %6620
      %6624 = vset.pattern.permute.xlu0 0
      %6625 = vperm.xlu0 %6624, %v6612
      %v6626 = vpop.permute.xlu0 %6625
      %v6628 = vadd.f32 %v6598, %v6616
      %v6629 = vadd.f32 %v6599, %v6616
      %v6630 = vadd.f32 %v6600, %v6616
      %v6631 = vadd.f32 %v6601, %v6616
      %v6632 = vadd.f32 %v6602, %v6621
      %v6633 = vadd.f32 %v6603, %v6621
      %v6634 = vadd.f32 %v6604, %v6621
      %v6635 = vadd.f32 %v6605, %v6621
      %v6636 = vadd.f32 %v6606, %v6626
      %v6637 = vadd.f32 %v6607, %v6626
      %v6638 = vadd.f32 %v6608, %v6626
      %v6639 = vadd.f32 %v6609, %v6626
      %v6640 = vmul.f32 %v6628, 0.5
      %v6641 = vmul.f32 %v6629, 0.5
      %v6642 = vmul.f32 %v6630, 0.5
      %v6643 = vmul.f32 %v6631, 0.5
      %v6644 = vmul.f32 %v6632, 0.5
      %v6645 = vmul.f32 %v6633, 0.5
      %v6646 = vmul.f32 %v6634, 0.5
      %v6647 = vmul.f32 %v6635, 0.5
      %v6648 = vmul.f32 %v6636, 0.5
      %v6649 = vmul.f32 %v6637, 0.5
      %v6650 = vmul.f32 %v6638, 0.5
      %v6651 = vmul.f32 %v6639, 0.5
      %v6652 = vmul.f32 %v6628, 0.70710677
      %v6653 = vmul.f32 %v6629, 0.70710677
      %v6654 = vmul.f32 %v6630, 0.70710677
      %v6655 = vmul.f32 %v6631, 0.70710677
      %v6656 = vmul.f32 %v6632, 0.70710677
      %v6657 = vmul.f32 %v6633, 0.70710677
      %v6658 = vmul.f32 %v6634, 0.70710677
      %v6659 = vmul.f32 %v6635, 0.70710677
      %v6660 = vmul.f32 %v6636, 0.70710677
      %v6661 = vmul.f32 %v6637, 0.70710677
      %v6662 = vmul.f32 %v6638, 0.70710677
      %v6663 = vmul.f32 %v6639, 0.70710677
      %v6664 = verf.f32.pop %v6652
      %v6665 = verf.f32.pop %v6653
      %v6666 = verf.f32.pop %v6654
      %v6667 = verf.f32.pop %v6655
      %v6668 = verf.f32.pop %v6656
      %v6669 = verf.f32.pop %v6657
      %v6670 = verf.f32.pop %v6658
      %v6671 = verf.f32.pop %v6659
      %v6672 = verf.f32.pop %v6660
      %v6673 = verf.f32.pop %v6661
      %v6674 = verf.f32.pop %v6662
      %v6675 = verf.f32.pop %v6663
      %v6676 = vadd.f32 %v6664, 1.0
      %v6677 = vadd.f32 %v6665, 1.0
      %v6678 = vadd.f32 %v6666, 1.0
      %v6679 = vadd.f32 %v6667, 1.0
      %v6680 = vadd.f32 %v6668, 1.0
      %v6681 = vadd.f32 %v6669, 1.0
      %v6682 = vadd.f32 %v6670, 1.0
      %v6683 = vadd.f32 %v6671, 1.0
      %v6684 = vadd.f32 %v6672, 1.0
      %v6685 = vadd.f32 %v6673, 1.0
      %v6686 = vadd.f32 %v6674, 1.0
      %v6687 = vadd.f32 %v6675, 1.0
      %v6688 = vmul.f32 %v6640, %v6676
      %v6689 = vmul.f32 %v6641, %v6677
      %v6690 = vmul.f32 %v6642, %v6678
      %v6691 = vmul.f32 %v6643, %v6679
      %v6692 = vmul.f32 %v6644, %v6680
      %v6693 = vmul.f32 %v6645, %v6681
      %v6694 = vmul.f32 %v6646, %v6682
      %v6695 = vmul.f32 %v6647, %v6683
      %v6696 = vmul.f32 %v6648, %v6684
      %v6697 = vmul.f32 %v6649, %v6685
      %v6698 = vmul.f32 %v6650, %v6686
      %v6699 = vmul.f32 %v6651, %v6687
      %6700 = vrot.lane.b32.xlu0 %v6688, 126
      %v6701 = vpop.permute.xlu0 %6700
      %6702 = vrot.lane.b32.xlu0 %v6692, 126
      %v6703 = vpop.permute.xlu0 %6702
      %6704 = vrot.lane.b32.xlu0 %v6696, 126
      %v6705 = vpop.permute.xlu0 %6704
      %6706 = vrot.lane.b32.xlu0 %v6689, 126
      %v6707 = vpop.permute.xlu0 %6706
      %6708 = vrot.lane.b32.xlu0 %v6693, 126
      %v6709 = vpop.permute.xlu0 %6708
      %6710 = vrot.lane.b32.xlu0 %v6697, 126
      %v6711 = vpop.permute.xlu0 %6710
      %6712 = vrot.lane.b32.xlu0 %v6690, 126
      %v6713 = vpop.permute.xlu0 %6712
      %6714 = vrot.lane.b32.xlu0 %v6694, 126
      %v6715 = vpop.permute.xlu0 %6714
      %6716 = vrot.lane.b32.xlu0 %v6698, 126
      %v6717 = vpop.permute.xlu0 %6716
      %6718 = vrot.lane.b32.xlu0 %v6691, 126
      %v6719 = vpop.permute.xlu0 %6718
      %6720 = vrot.lane.b32.xlu0 %v6695, 126
      %v6721 = vpop.permute.xlu0 %6720
      %6722 = vrot.lane.b32.xlu0 %v6699, 126
      %v6723 = vpop.permute.xlu0 %6722
      %vm6724 = vcmp.lt.s32.totalorder %v977, 126
      %v6725 = vsel %vm6724, %v6713, %v6719
      %v6726 = vsel %vm6724, %v6715, %v6721
      %v6727 = vsel %vm6724, %v6717, %v6723
      %v6728 = vsel %vm6724, %v6707, %v6713
      %v6729 = vsel %vm6724, %v6709, %v6715
      %v6730 = vsel %vm6724, %v6711, %v6717
      %v6731 = vsel %vm6724, %v6701, %v6707
      %v6732 = vsel %vm6724, %v6703, %v6709
      %v6733 = vsel %vm6724, %v6705, %v6711
      %v6734 = vsel %vm6724, %v6719, %v6701
      %v6735 = vsel %vm6724, %v6721, %v6703
      %v6736 = vsel %vm6724, %v6723, %v6705
      %v6737 = vsub.s32 %v536, 4294967294
      %vm6738 = vcmp.ge.s32.totalorder %v6737, 0
      %vm6739 = vcmp.lt.s32.totalorder %v6737, 8
      %vm6740 = vmand %vm6738, %vm6739
      %v6741 = vsel %vm6740, 1, 0
      %v6742 = vcvt.s32.f32 %v6741
      %v6744 = vlaneseq
      %v6745 = vshrl.u32 %v6744, 7
      %v6746 = vsub.s32 0, %v6745
      %v6747 = vrot.slane %v6742, %v6746
      %v6748 = vlaneseq
      %v6749 = vshrl.u32 %v6748, 7
      %v6750 = vsub.s32 1, %v6749
      %v6751 = vrot.slane %v6742, %v6750
      %v6752 = vlaneseq
      %v6753 = vshrl.u32 %v6752, 7
      %v6754 = vsub.s32 2, %v6753
      %v6755 = vrot.slane %v6742, %v6754
      %v6756 = vlaneseq
      %v6757 = vshrl.u32 %v6756, 7
      %v6758 = vsub.s32 3, %v6757
      %v6759 = vrot.slane %v6742, %v6758
      %v6764 = vmul.f32 %v6747, %v6731
      %v6765 = vmul.f32 %v6751, %v6728
      %v6766 = vmul.f32 %v6755, %v6725
      %v6767 = vmul.f32 %v6759, %v6734
      %v6768 = vmul.f32 %v6747, %v6732
      %v6769 = vmul.f32 %v6751, %v6729
      %v6770 = vmul.f32 %v6755, %v6726
      %v6771 = vmul.f32 %v6759, %v6735
      %v6772 = vmul.f32 %v6747, %v6733
      %v6773 = vmul.f32 %v6751, %v6730
      %v6774 = vmul.f32 %v6755, %v6727
      %v6775 = vmul.f32 %v6759, %v6736
      %v6776 = vmul.f32 %v739, %v6764
      %v6777 = vmul.f32 %v739, %v6765
      %v6778 = vmul.f32 %v739, %v6766
      %v6779 = vmul.f32 %v739, %v6767
      %v6780 = vmul.f32 %v740, %v6768
      %v6781 = vmul.f32 %v740, %v6769
      %v6782 = vmul.f32 %v740, %v6770
      %v6783 = vmul.f32 %v740, %v6771
      %v6784 = vmul.f32 %v741, %v6772
      %v6785 = vmul.f32 %v741, %v6773
      %v6786 = vmul.f32 %v741, %v6774
      %v6787 = vmul.f32 %v741, %v6775
      %v6788 = vadd.f32 %v6776, 0.0
      %v6789 = vadd.f32 %v6777, 0.0
      %v6790 = vadd.f32 %v6778, 0.0
      %v6791 = vadd.f32 %v6779, 0.0
      %v6792 = vadd.f32 %v6780, 0.0
      %v6793 = vadd.f32 %v6781, 0.0
      %v6794 = vadd.f32 %v6782, 0.0
      %v6795 = vadd.f32 %v6783, 0.0
      %v6796 = vadd.f32 %v6784, 0.0
      %v6797 = vadd.f32 %v6785, 0.0
      %v6798 = vadd.f32 %v6786, 0.0
      %v6799 = vadd.f32 %v6787, 0.0
      %6800 = vrot.lane.b32.xlu0 %v6688, 127
      %v6801 = vpop.permute.xlu0 %6800
      %6802 = vrot.lane.b32.xlu0 %v6692, 127
      %v6803 = vpop.permute.xlu0 %6802
      %6804 = vrot.lane.b32.xlu0 %v6696, 127
      %v6805 = vpop.permute.xlu0 %6804
      %6806 = vrot.lane.b32.xlu0 %v6689, 127
      %v6807 = vpop.permute.xlu0 %6806
      %6808 = vrot.lane.b32.xlu0 %v6693, 127
      %v6809 = vpop.permute.xlu0 %6808
      %6810 = vrot.lane.b32.xlu0 %v6697, 127
      %v6811 = vpop.permute.xlu0 %6810
      %6812 = vrot.lane.b32.xlu0 %v6690, 127
      %v6813 = vpop.permute.xlu0 %6812
      %6814 = vrot.lane.b32.xlu0 %v6694, 127
      %v6815 = vpop.permute.xlu0 %6814
      %6816 = vrot.lane.b32.xlu0 %v6698, 127
      %v6817 = vpop.permute.xlu0 %6816
      %6818 = vrot.lane.b32.xlu0 %v6691, 127
      %v6819 = vpop.permute.xlu0 %6818
      %6820 = vrot.lane.b32.xlu0 %v6695, 127
      %v6821 = vpop.permute.xlu0 %6820
      %6822 = vrot.lane.b32.xlu0 %v6699, 127
      %v6823 = vpop.permute.xlu0 %6822
      %v6824 = vsel %vm2922, %v6813, %v6819
      %v6825 = vsel %vm2922, %v6815, %v6821
      %v6826 = vsel %vm2922, %v6817, %v6823
      %v6827 = vsel %vm2922, %v6807, %v6813
      %v6828 = vsel %vm2922, %v6809, %v6815
      %v6829 = vsel %vm2922, %v6811, %v6817
      %v6830 = vsel %vm2922, %v6801, %v6807
      %v6831 = vsel %vm2922, %v6803, %v6809
      %v6832 = vsel %vm2922, %v6805, %v6811
      %v6833 = vsel %vm2922, %v6819, %v6801
      %v6834 = vsel %vm2922, %v6821, %v6803
      %v6835 = vsel %vm2922, %v6823, %v6805
      %v6836 = vsub.s32 %v536, 4294967295
      %vm6837 = vcmp.ge.s32.totalorder %v6836, 0
      %vm6838 = vcmp.lt.s32.totalorder %v6836, 8
      %vm6839 = vmand %vm6837, %vm6838
      %v6840 = vsel %vm6839, 1, 0
      %v6841 = vcvt.s32.f32 %v6840
      %v6843 = vlaneseq
      %v6844 = vshrl.u32 %v6843, 7
      %v6845 = vsub.s32 0, %v6844
      %v6846 = vrot.slane %v6841, %v6845
      %v6847 = vlaneseq
      %v6848 = vshrl.u32 %v6847, 7
      %v6849 = vsub.s32 1, %v6848
      %v6850 = vrot.slane %v6841, %v6849
      %v6851 = vlaneseq
      %v6852 = vshrl.u32 %v6851, 7
      %v6853 = vsub.s32 2, %v6852
      %v6854 = vrot.slane %v6841, %v6853
      %v6855 = vlaneseq
      %v6856 = vshrl.u32 %v6855, 7
      %v6857 = vsub.s32 3, %v6856
      %v6858 = vrot.slane %v6841, %v6857
      %v6863 = vmul.f32 %v6846, %v6830
      %v6864 = vmul.f32 %v6850, %v6827
      %v6865 = vmul.f32 %v6854, %v6824
      %v6866 = vmul.f32 %v6858, %v6833
      %v6867 = vmul.f32 %v6846, %v6831
      %v6868 = vmul.f32 %v6850, %v6828
      %v6869 = vmul.f32 %v6854, %v6825
      %v6870 = vmul.f32 %v6858, %v6834
      %v6871 = vmul.f32 %v6846, %v6832
      %v6872 = vmul.f32 %v6850, %v6829
      %v6873 = vmul.f32 %v6854, %v6826
      %v6874 = vmul.f32 %v6858, %v6835
      %v6875 = vmul.f32 %v754, %v6863
      %v6876 = vmul.f32 %v754, %v6864
      %v6877 = vmul.f32 %v754, %v6865
      %v6878 = vmul.f32 %v754, %v6866
      %v6879 = vmul.f32 %v755, %v6867
      %v6880 = vmul.f32 %v755, %v6868
      %v6881 = vmul.f32 %v755, %v6869
      %v6882 = vmul.f32 %v755, %v6870
      %v6883 = vmul.f32 %v756, %v6871
      %v6884 = vmul.f32 %v756, %v6872
      %v6885 = vmul.f32 %v756, %v6873
      %v6886 = vmul.f32 %v756, %v6874
      %v6887 = vadd.f32 %v6788, %v6875
      %v6888 = vadd.f32 %v6789, %v6876
      %v6889 = vadd.f32 %v6790, %v6877
      %v6890 = vadd.f32 %v6791, %v6878
      %v6891 = vadd.f32 %v6792, %v6879
      %v6892 = vadd.f32 %v6793, %v6880
      %v6893 = vadd.f32 %v6794, %v6881
      %v6894 = vadd.f32 %v6795, %v6882
      %v6895 = vadd.f32 %v6796, %v6883
      %v6896 = vadd.f32 %v6797, %v6884
      %v6897 = vadd.f32 %v6798, %v6885
      %v6898 = vadd.f32 %v6799, %v6886
      %v6900 = vlaneseq
      %v6901 = vshrl.u32 %v6900, 7
      %v6902 = vsub.s32 0, %v6901
      %v6903 = vrot.slane %v846, %v6902
      %v6904 = vlaneseq
      %v6905 = vshrl.u32 %v6904, 7
      %v6906 = vsub.s32 1, %v6905
      %v6907 = vrot.slane %v846, %v6906
      %v6908 = vlaneseq
      %v6909 = vshrl.u32 %v6908, 7
      %v6910 = vsub.s32 2, %v6909
      %v6911 = vrot.slane %v846, %v6910
      %v6912 = vlaneseq
      %v6913 = vshrl.u32 %v6912, 7
      %v6914 = vsub.s32 3, %v6913
      %v6915 = vrot.slane %v846, %v6914
      %v6920 = vmul.f32 %v6903, %v6688
      %v6921 = vmul.f32 %v6907, %v6689
      %v6922 = vmul.f32 %v6911, %v6690
      %v6923 = vmul.f32 %v6915, %v6691
      %v6924 = vmul.f32 %v6903, %v6692
      %v6925 = vmul.f32 %v6907, %v6693
      %v6926 = vmul.f32 %v6911, %v6694
      %v6927 = vmul.f32 %v6915, %v6695
      %v6928 = vmul.f32 %v6903, %v6696
      %v6929 = vmul.f32 %v6907, %v6697
      %v6930 = vmul.f32 %v6911, %v6698
      %v6931 = vmul.f32 %v6915, %v6699
      %v6932 = vmul.f32 %v769, %v6920
      %v6933 = vmul.f32 %v769, %v6921
      %v6934 = vmul.f32 %v769, %v6922
      %v6935 = vmul.f32 %v769, %v6923
      %v6936 = vmul.f32 %v770, %v6924
      %v6937 = vmul.f32 %v770, %v6925
      %v6938 = vmul.f32 %v770, %v6926
      %v6939 = vmul.f32 %v770, %v6927
      %v6940 = vmul.f32 %v771, %v6928
      %v6941 = vmul.f32 %v771, %v6929
      %v6942 = vmul.f32 %v771, %v6930
      %v6943 = vmul.f32 %v771, %v6931
      %v6944 = vadd.f32 %v6887, %v6932
      %v6945 = vadd.f32 %v6888, %v6933
      %v6946 = vadd.f32 %v6889, %v6934
      %v6947 = vadd.f32 %v6890, %v6935
      %v6948 = vadd.f32 %v6891, %v6936
      %v6949 = vadd.f32 %v6892, %v6937
      %v6950 = vadd.f32 %v6893, %v6938
      %v6951 = vadd.f32 %v6894, %v6939
      %v6952 = vadd.f32 %v6895, %v6940
      %v6953 = vadd.f32 %v6896, %v6941
      %v6954 = vadd.f32 %v6897, %v6942
      %v6955 = vadd.f32 %v6898, %v6943
      %6956 = vrot.lane.b32.xlu0 %v6688, 1
      %v6957 = vpop.permute.xlu0 %6956
      %6958 = vrot.lane.b32.xlu0 %v6692, 1
      %v6959 = vpop.permute.xlu0 %6958
      %6960 = vrot.lane.b32.xlu0 %v6696, 1
      %v6961 = vpop.permute.xlu0 %6960
      %6962 = vrot.lane.b32.xlu0 %v6689, 1
      %v6963 = vpop.permute.xlu0 %6962
      %6964 = vrot.lane.b32.xlu0 %v6693, 1
      %v6965 = vpop.permute.xlu0 %6964
      %6966 = vrot.lane.b32.xlu0 %v6697, 1
      %v6967 = vpop.permute.xlu0 %6966
      %6968 = vrot.lane.b32.xlu0 %v6690, 1
      %v6969 = vpop.permute.xlu0 %6968
      %6970 = vrot.lane.b32.xlu0 %v6694, 1
      %v6971 = vpop.permute.xlu0 %6970
      %6972 = vrot.lane.b32.xlu0 %v6698, 1
      %v6973 = vpop.permute.xlu0 %6972
      %6974 = vrot.lane.b32.xlu0 %v6691, 1
      %v6975 = vpop.permute.xlu0 %6974
      %6976 = vrot.lane.b32.xlu0 %v6695, 1
      %v6977 = vpop.permute.xlu0 %6976
      %6978 = vrot.lane.b32.xlu0 %v6699, 1
      %v6979 = vpop.permute.xlu0 %6978
      %v6980 = vsel %vm2747, %v6969, %v6975
      %v6981 = vsel %vm2747, %v6971, %v6977
      %v6982 = vsel %vm2747, %v6973, %v6979
      %v6983 = vsel %vm2747, %v6963, %v6969
      %v6984 = vsel %vm2747, %v6965, %v6971
      %v6985 = vsel %vm2747, %v6967, %v6973
      %v6986 = vsel %vm2747, %v6957, %v6963
      %v6987 = vsel %vm2747, %v6959, %v6965
      %v6988 = vsel %vm2747, %v6961, %v6967
      %v6989 = vsel %vm2747, %v6975, %v6957
      %v6990 = vsel %vm2747, %v6977, %v6959
      %v6991 = vsel %vm2747, %v6979, %v6961
      %v6992 = vsub.s32 %v536, 1
      %vm6993 = vcmp.ge.s32.totalorder %v6992, 0
      %vm6994 = vcmp.lt.s32.totalorder %v6992, 8
      %vm6995 = vmand %vm6993, %vm6994
      %v6996 = vsel %vm6995, 1, 0
      %v6997 = vcvt.s32.f32 %v6996
      %v6999 = vlaneseq
      %v7000 = vshrl.u32 %v6999, 7
      %v7001 = vsub.s32 0, %v7000
      %v7002 = vrot.slane %v6997, %v7001
      %v7003 = vlaneseq
      %v7004 = vshrl.u32 %v7003, 7
      %v7005 = vsub.s32 1, %v7004
      %v7006 = vrot.slane %v6997, %v7005
      %v7007 = vlaneseq
      %v7008 = vshrl.u32 %v7007, 7
      %v7009 = vsub.s32 2, %v7008
      %v7010 = vrot.slane %v6997, %v7009
      %v7011 = vlaneseq
      %v7012 = vshrl.u32 %v7011, 7
      %v7013 = vsub.s32 3, %v7012
      %v7014 = vrot.slane %v6997, %v7013
      %v7019 = vmul.f32 %v7002, %v6989
      %v7020 = vmul.f32 %v7006, %v6986
      %v7021 = vmul.f32 %v7010, %v6983
      %v7022 = vmul.f32 %v7014, %v6980
      %v7023 = vmul.f32 %v7002, %v6990
      %v7024 = vmul.f32 %v7006, %v6987
      %v7025 = vmul.f32 %v7010, %v6984
      %v7026 = vmul.f32 %v7014, %v6981
      %v7027 = vmul.f32 %v7002, %v6991
      %v7028 = vmul.f32 %v7006, %v6988
      %v7029 = vmul.f32 %v7010, %v6985
      %v7030 = vmul.f32 %v7014, %v6982
      %v7031 = vmul.f32 %v784, %v7019
      %v7032 = vmul.f32 %v784, %v7020
      %v7033 = vmul.f32 %v784, %v7021
      %v7034 = vmul.f32 %v784, %v7022
      %v7035 = vmul.f32 %v785, %v7023
      %v7036 = vmul.f32 %v785, %v7024
      %v7037 = vmul.f32 %v785, %v7025
      %v7038 = vmul.f32 %v785, %v7026
      %v7039 = vmul.f32 %v786, %v7027
      %v7040 = vmul.f32 %v786, %v7028
      %v7041 = vmul.f32 %v786, %v7029
      %v7042 = vmul.f32 %v786, %v7030
      %v7043 = vadd.f32 %v6944, %v7031
      %v7044 = vadd.f32 %v6945, %v7032
      %v7045 = vadd.f32 %v6946, %v7033
      %v7046 = vadd.f32 %v6947, %v7034
      %v7047 = vadd.f32 %v6948, %v7035
      %v7048 = vadd.f32 %v6949, %v7036
      %v7049 = vadd.f32 %v6950, %v7037
      %v7050 = vadd.f32 %v6951, %v7038
      %v7051 = vadd.f32 %v6952, %v7039
      %v7052 = vadd.f32 %v6953, %v7040
      %v7053 = vadd.f32 %v6954, %v7041
      %v7054 = vadd.f32 %v6955, %v7042
      %7055 = vrot.lane.b32.xlu0 %v6688, 2
      %v7056 = vpop.permute.xlu0 %7055
      %7057 = vrot.lane.b32.xlu0 %v6692, 2
      %v7058 = vpop.permute.xlu0 %7057
      %7059 = vrot.lane.b32.xlu0 %v6696, 2
      %v7060 = vpop.permute.xlu0 %7059
      %7061 = vrot.lane.b32.xlu0 %v6689, 2
      %v7062 = vpop.permute.xlu0 %7061
      %7063 = vrot.lane.b32.xlu0 %v6693, 2
      %v7064 = vpop.permute.xlu0 %7063
      %7065 = vrot.lane.b32.xlu0 %v6697, 2
      %v7066 = vpop.permute.xlu0 %7065
      %7067 = vrot.lane.b32.xlu0 %v6690, 2
      %v7068 = vpop.permute.xlu0 %7067
      %7069 = vrot.lane.b32.xlu0 %v6694, 2
      %v7070 = vpop.permute.xlu0 %7069
      %7071 = vrot.lane.b32.xlu0 %v6698, 2
      %v7072 = vpop.permute.xlu0 %7071
      %7073 = vrot.lane.b32.xlu0 %v6691, 2
      %v7074 = vpop.permute.xlu0 %7073
      %7075 = vrot.lane.b32.xlu0 %v6695, 2
      %v7076 = vpop.permute.xlu0 %7075
      %7077 = vrot.lane.b32.xlu0 %v6699, 2
      %v7078 = vpop.permute.xlu0 %7077
      %vm7079 = vcmp.lt.s32.totalorder %v977, 2
      %v7080 = vsel %vm7079, %v7068, %v7074
      %v7081 = vsel %vm7079, %v7070, %v7076
      %v7082 = vsel %vm7079, %v7072, %v7078
      %v7083 = vsel %vm7079, %v7062, %v7068
      %v7084 = vsel %vm7079, %v7064, %v7070
      %v7085 = vsel %vm7079, %v7066, %v7072
      %v7086 = vsel %vm7079, %v7056, %v7062
      %v7087 = vsel %vm7079, %v7058, %v7064
      %v7088 = vsel %vm7079, %v7060, %v7066
      %v7089 = vsel %vm7079, %v7074, %v7056
      %v7090 = vsel %vm7079, %v7076, %v7058
      %v7091 = vsel %vm7079, %v7078, %v7060
      %v7092 = vsub.s32 %v536, 2
      %vm7093 = vcmp.ge.s32.totalorder %v7092, 0
      %vm7094 = vcmp.lt.s32.totalorder %v7092, 8
      %vm7095 = vmand %vm7093, %vm7094
      %v7096 = vsel %vm7095, 1, 0
      %v7097 = vcvt.s32.f32 %v7096
      %v7099 = vlaneseq
      %v7100 = vshrl.u32 %v7099, 7
      %v7101 = vsub.s32 0, %v7100
      %v7102 = vrot.slane %v7097, %v7101
      %v7103 = vlaneseq
      %v7104 = vshrl.u32 %v7103, 7
      %v7105 = vsub.s32 1, %v7104
      %v7106 = vrot.slane %v7097, %v7105
      %v7107 = vlaneseq
      %v7108 = vshrl.u32 %v7107, 7
      %v7109 = vsub.s32 2, %v7108
      %v7110 = vrot.slane %v7097, %v7109
      %v7111 = vlaneseq
      %v7112 = vshrl.u32 %v7111, 7
      %v7113 = vsub.s32 3, %v7112
      %v7114 = vrot.slane %v7097, %v7113
      %v7119 = vmul.f32 %v7102, %v7089
      %v7120 = vmul.f32 %v7106, %v7086
      %v7121 = vmul.f32 %v7110, %v7083
      %v7122 = vmul.f32 %v7114, %v7080
      %v7123 = vmul.f32 %v7102, %v7090
      %v7124 = vmul.f32 %v7106, %v7087
      %v7125 = vmul.f32 %v7110, %v7084
      %v7126 = vmul.f32 %v7114, %v7081
      %v7127 = vmul.f32 %v7102, %v7091
      %v7128 = vmul.f32 %v7106, %v7088
      %v7129 = vmul.f32 %v7110, %v7085
      %v7130 = vmul.f32 %v7114, %v7082
      %v7131 = vmul.f32 %v799, %v7119
      %v7132 = vmul.f32 %v799, %v7120
      %v7133 = vmul.f32 %v799, %v7121
      %v7134 = vmul.f32 %v799, %v7122
      %v7135 = vmul.f32 %v800, %v7123
      %v7136 = vmul.f32 %v800, %v7124
      %v7137 = vmul.f32 %v800, %v7125
      %v7138 = vmul.f32 %v800, %v7126
      %v7139 = vmul.f32 %v801, %v7127
      %v7140 = vmul.f32 %v801, %v7128
      %v7141 = vmul.f32 %v801, %v7129
      %v7142 = vmul.f32 %v801, %v7130
      %v7143 = vadd.f32 %v7043, %v7131
      %v7144 = vadd.f32 %v7044, %v7132
      %v7145 = vadd.f32 %v7045, %v7133
      %v7146 = vadd.f32 %v7046, %v7134
      %v7147 = vadd.f32 %v7047, %v7135
      %v7148 = vadd.f32 %v7048, %v7136
      %v7149 = vadd.f32 %v7049, %v7137
      %v7150 = vadd.f32 %v7050, %v7138
      %v7151 = vadd.f32 %v7051, %v7139
      %v7152 = vadd.f32 %v7052, %v7140
      %v7153 = vadd.f32 %v7053, %v7141
      %v7154 = vadd.f32 %v7054, %v7142
      %v7155 = vld [vmem:[%s14] sm:$0xff]
      %v7156 = vld [vmem:[%s14 + $0x8] sm:$0xff]
      %v7157 = vld [vmem:[%s14 + $0x10] sm:$0xf]
      %v7158 = vld [vmem:[%s15] sm:$0xff]
      %v7159 = vld [vmem:[%s15 + $0x8] sm:$0xff]
      %v7160 = vld [vmem:[%s15 + $0x10] sm:$0xf]
      %7162 = vset.pattern.permute.xlu0 0
      %7163 = vperm.xlu0 %7162, %v7158
      %v7164 = vpop.permute.xlu0 %7163
      %7167 = vset.pattern.permute.xlu0 0
      %7168 = vperm.xlu0 %7167, %v7159
      %v7169 = vpop.permute.xlu0 %7168
      %7172 = vset.pattern.permute.xlu0 0
      %7173 = vperm.xlu0 %7172, %v7160
      %v7174 = vpop.permute.xlu0 %7173
      %v7177 = vsel %vm1258, %v7155, 0
      %v7180 = vsel %vm1258, %v7156, 0
      %v7183 = vsel %vm1258, %v7157, 0
      %v7186 = vsel %vm538, %v7151, 0
      %v7189 = vsel %vm538, %v7152, 0
      %v7192 = vsel %vm538, %v7153, 0
      %v7195 = vsel %vm538, %v7154, 0
      %7197 = vmatprep.subr.mxu0 %v7144
      %7198 = vmatpush1.msra.mxu0 %v7143
      %7199 = vmatprep.subr.mxu0 %v7148
      %7200 = vmatpush1.msra.mxu0 %v7147
      %7201 = vmatprep.subr.mxu0 %v7189
      %7202 = vmatpush1.msra.mxu0 %v7186
      %7203 = vmatprep.subr.mxu0 0.0
      %7204 = vmatpush1.msra.mxu0 0.0
      %7205 = vmatprep.subr.mxu0 0.0
      %7206 = vmatpush1.msra.mxu0 0.0
      %7207 = vmatprep.subr.mxu0 0.0
      %7208 = vmatpush1.msra.mxu0 0.0
      %7209 = vmatprep.subr.mxu0 0.0
      %7210 = vmatpush1.msra.mxu0 0.0
      %7211 = vmatprep.subr.mxu0 0.0
      %7212 = vmatpush1.msra.mxu0 0.0
      %7213 = vmatprep.subr.mxu0 0.0
      %7214 = vmatpush1.msra.mxu0 0.0
      %7215 = vmatprep.subr.mxu0 0.0
      %7216 = vmatpush1.msra.mxu0 0.0
      %7217 = vmatprep.subr.mxu0 0.0
      %7218 = vmatpush1.msra.mxu0 0.0
      %7219 = vmatprep.subr.mxu0 0.0
      %7220 = vmatpush1.msra.mxu0 0.0
      %7221 = vmatprep.subr.mxu0 0.0
      %7222 = vmatpush1.msra.mxu0 0.0
      %7223 = vmatprep.subr.mxu0 0.0
      %7224 = vmatpush1.msra.mxu0 0.0
      %7225 = vmatprep.subr.mxu0 0.0
      %7226 = vmatpush1.msra.mxu0 0.0
      %7227 = vmatprep.subr.mxu0 0.0
      %7228 = vmatpush1.msra.mxu0 0.0
      %7229 = vmatprep.subr.mxu0 0.0
      %7230 = vmatpush1.msra.mxu0 0.0
      %7231 = vmatprep.subr.mxu0 0.0
      %7232 = vmatpush1.msra.mxu0 0.0
      %7233 = vmatprep.subr.mxu0 0.0
      %7234 = vmatpush1.msra.mxu0 0.0
      %7235 = vmatprep.subr.mxu0 0.0
      %7236 = vmatpush1.msra.mxu0 0.0
      %7237 = vmatprep.subr.mxu0 0.0
      %7238 = vmatpush1.msra.mxu0 0.0
      %7239 = vmatprep.subr.mxu0 0.0
      %7240 = vmatpush1.msra.mxu0 0.0
      %7241 = vmatprep.subr.mxu0 0.0
      %7242 = vmatpush1.msra.mxu0 0.0
      %7243 = vmatprep.subr.mxu0 0.0
      %7244 = vmatpush1.msra.mxu0 0.0
      %7245 = vmatprep.subr.mxu0 0.0
      %7246 = vmatpush1.msra.mxu0 0.0
      %7247 = vmatprep.subr.mxu0 0.0
      %7248 = vmatpush1.msra.mxu0 0.0
      %7249 = vmatprep.subr.mxu0 0.0
      %7250 = vmatpush1.msra.mxu0 0.0
      %7251 = vmatprep.subr.mxu0 0.0
      %7252 = vmatpush1.msra.mxu0 0.0
      %7253 = vmatprep.subr.mxu0 0.0
      %7254 = vmatpush1.msra.mxu0 0.0
      %7255 = vmatprep.subr.mxu0 0.0
      %7256 = vmatpush1.msra.mxu0 0.0
      %7257 = vmatprep.subr.mxu0 0.0
      %7258 = vmatpush1.msra.mxu0 0.0
      %7259 = vmatprep.subr.mxu0 0.0
      %7260 = vmatpush1.msra.mxu0 0.0
      %7261 = vmatprep.mubr.f32.mxu0 0.0
      %7262 = vmatmul.mubr.f32.gmra.mrb[0].mxu0 %v7177
      %v7263 = vpop.f32.mrb[0].mxu0
      %v7264 = vadd.f32 %v7164, %v7263
      %v7265 = vpop.f32.mrb[0].mxu0
      %v7266 = vadd.f32 %v7164, %v7265
      %7267 = vmatprep.mubr.f32.mxu0 0.0
      %7268 = vmatmul.mubr.f32.gmra.mrb[0].mxu0 %v7180
      %v7269 = vpop.f32.mrb[0].mxu0
      %v7270 = vadd.f32 %v7169, %v7269
      %v7271 = vpop.f32.mrb[0].mxu0
      %v7272 = vadd.f32 %v7169, %v7271
      %7273 = vmatprep.mubr.f32.mxu0 0.0
      %7274 = vmatmul.mubr.f32.gmra.mrb[0].mxu0 %v7183
      %v7275 = vpop.f32.mrb[0].mxu0
      %v7276 = vadd.f32 %v7174, %v7275
      %v7277 = vpop.f32.mrb[0].mxu0
      %v7278 = vadd.f32 %v7174, %v7277
      %7279 = vdwg.mxu0
      %7280 = vmatprep.subr.mxu0 %v7146
      %7281 = vmatpush1.msra.mxu0 %v7145
      %7282 = vmatprep.subr.mxu0 %v7150
      %7283 = vmatpush1.msra.mxu0 %v7149
      %7284 = vmatprep.subr.mxu0 %v7195
      %7285 = vmatpush1.msra.mxu0 %v7192
      %7286 = vmatprep.subr.mxu0 0.0
      %7287 = vmatpush1.msra.mxu0 0.0
      %7288 = vmatprep.subr.mxu0 0.0
      %7289 = vmatpush1.msra.mxu0 0.0
      %7290 = vmatprep.subr.mxu0 0.0
      %7291 = vmatpush1.msra.mxu0 0.0
      %7292 = vmatprep.subr.mxu0 0.0
      %7293 = vmatpush1.msra.mxu0 0.0
      %7294 = vmatprep.subr.mxu0 0.0
      %7295 = vmatpush1.msra.mxu0 0.0
      %7296 = vmatprep.subr.mxu0 0.0
      %7297 = vmatpush1.msra.mxu0 0.0
      %7298 = vmatprep.subr.mxu0 0.0
      %7299 = vmatpush1.msra.mxu0 0.0
      %7300 = vmatprep.subr.mxu0 0.0
      %7301 = vmatpush1.msra.mxu0 0.0
      %7302 = vmatprep.subr.mxu0 0.0
      %7303 = vmatpush1.msra.mxu0 0.0
      %7304 = vmatprep.subr.mxu0 0.0
      %7305 = vmatpush1.msra.mxu0 0.0
      %7306 = vmatprep.subr.mxu0 0.0
      %7307 = vmatpush1.msra.mxu0 0.0
      %7308 = vmatprep.subr.mxu0 0.0
      %7309 = vmatpush1.msra.mxu0 0.0
      %7310 = vmatprep.subr.mxu0 0.0
      %7311 = vmatpush1.msra.mxu0 0.0
      %7312 = vmatprep.subr.mxu0 0.0
      %7313 = vmatpush1.msra.mxu0 0.0
      %7314 = vmatprep.subr.mxu0 0.0
      %7315 = vmatpush1.msra.mxu0 0.0
      %7316 = vmatprep.subr.mxu0 0.0
      %7317 = vmatpush1.msra.mxu0 0.0
      %7318 = vmatprep.subr.mxu0 0.0
      %7319 = vmatpush1.msra.mxu0 0.0
      %7320 = vmatprep.subr.mxu0 0.0
      %7321 = vmatpush1.msra.mxu0 0.0
      %7322 = vmatprep.subr.mxu0 0.0
      %7323 = vmatpush1.msra.mxu0 0.0
      %7324 = vmatprep.subr.mxu0 0.0
      %7325 = vmatpush1.msra.mxu0 0.0
      %7326 = vmatprep.subr.mxu0 0.0
      %7327 = vmatpush1.msra.mxu0 0.0
      %7328 = vmatprep.subr.mxu0 0.0
      %7329 = vmatpush1.msra.mxu0 0.0
      %7330 = vmatprep.subr.mxu0 0.0
      %7331 = vmatpush1.msra.mxu0 0.0
      %7332 = vmatprep.subr.mxu0 0.0
      %7333 = vmatpush1.msra.mxu0 0.0
      %7334 = vmatprep.subr.mxu0 0.0
      %7335 = vmatpush1.msra.mxu0 0.0
      %7336 = vmatprep.subr.mxu0 0.0
      %7337 = vmatpush1.msra.mxu0 0.0
      %7338 = vmatprep.subr.mxu0 0.0
      %7339 = vmatpush1.msra.mxu0 0.0
      %7340 = vmatprep.subr.mxu0 0.0
      %7341 = vmatpush1.msra.mxu0 0.0
      %7342 = vmatprep.subr.mxu0 0.0
      %7343 = vmatpush1.msra.mxu0 0.0
      %7344 = vmatprep.mubr.f32.mxu0 0.0
      %7345 = vmatmul.mubr.f32.gmra.mrb[0].mxu0 %v7177
      %v7346 = vpop.f32.mrb[0].mxu0
      %v7347 = vadd.f32 %v7164, %v7346
      %v7348 = vpop.f32.mrb[0].mxu0
      %v7349 = vadd.f32 %v7164, %v7348
      %7350 = vmatprep.mubr.f32.mxu0 0.0
      %7351 = vmatmul.mubr.f32.gmra.mrb[0].mxu0 %v7180
      %v7352 = vpop.f32.mrb[0].mxu0
      %v7353 = vadd.f32 %v7169, %v7352
      %v7354 = vpop.f32.mrb[0].mxu0
      %v7355 = vadd.f32 %v7169, %v7354
      %7356 = vmatprep.mubr.f32.mxu0 0.0
      %7357 = vmatmul.mubr.f32.gmra.mrb[0].mxu0 %v7183
      %v7358 = vpop.f32.mrb[0].mxu0
      %v7359 = vadd.f32 %v7174, %v7358
      %v7360 = vpop.f32.mrb[0].mxu0
      %v7361 = vadd.f32 %v7174, %v7360
      %7362 = vdwg.mxu0
      %v7363 = vadd.f32 %v522, %v7264
      %v7364 = vadd.f32 %v523, %v7266
      %v7365 = vadd.f32 %v524, %v7347
      %v7366 = vadd.f32 %v525, %v7349
      %v7367 = vadd.f32 %v526, %v7270
      %v7368 = vadd.f32 %v527, %v7272
      %v7369 = vadd.f32 %v528, %v7353
      %v7370 = vadd.f32 %v529, %v7355
      %v7371 = vadd.f32 %v530, %v7276
      %v7372 = vadd.f32 %v531, %v7278
      %v7373 = vadd.f32 %v532, %v7359
      %v7374 = vadd.f32 %v533, %v7361
      %7375 = vst [vmem:[%s521] sm:$0xff] %v7363
      %7376 = vst [vmem:[%s521 + $0x8] sm:$0xff] %v7364
      %7377 = vst [vmem:[%s521 + $0x10] sm:$0xff] %v7365
      %7378 = vst [vmem:[%s521 + $0x18] sm:$0xff] %v7366
      %7379 = vst [vmem:[%s521 + $0x20] sm:$0xff] %v7367
      %7380 = vst [vmem:[%s521 + $0x28] sm:$0xff] %v7368
      %7381 = vst [vmem:[%s521 + $0x30] sm:$0xff] %v7369
      %7382 = vst [vmem:[%s521 + $0x38] sm:$0xff] %v7370
      %7383 = vst [vmem:[%s521 + $0x40] sm:$0xf] %v7371
      %7384 = vst [vmem:[%s521 + $0x48] sm:$0xf] %v7372
      %7385 = vst [vmem:[%s521 + $0x50] sm:$0xf] %v7373
      %7386 = vst [vmem:[%s521 + $0x58] sm:$0xf] %v7374
      %p7387 = scmp.lt.s32.totalorder %s27, 1
      %s7388 = scalar_select %p7387, %s27, 1
      %s7389 = smul.addr %s7388, 12
      %s7390 = smul.addr %s7389, 8
      %s7391 = scalar_lea.vmem %s16, %s7390
      // Predicated region
      $region85: #{_lambda_.1} parent=83 // pred_check
        %p7392 = pneg %p386
      $region86: #{_lambda_.1} parent=83 // pred_check_branch
        %7394 = sbr.rel (%p7392) target = $region88
      $region87: #{_lambda_.1} parent=83 // pred_region
        _
      $region88: #{_lambda_.1} parent=83 // pred_fallthru
        _
    $region84: #{_lambda_.1} parent=5 // pred_fallthru
      _
    %p7395 = scmp.le.s32.totalorder 2, %s22
    // Predicated region
    $region89: #{_lambda_.1} parent=5 // pred_check
      %p7396 = pneg %p7395
    $region90: #{_lambda_.1} parent=5 // pred_check_branch
      %7398 = sbr.rel (%p7396) target = $region92
    $region91: #{_lambda_.1} parent=5 // pred_region
      %s7399 = ssub.s32 %s22, 2
      // Predicated region
      $region93: #{_lambda_.1} parent=91 // pred_check
        %p7400 = pneg %p392
      $region94: #{_lambda_.1} parent=91 // pred_check_branch
        %7402 = sbr.rel (%p7400) target = $region96
      $region95: #{_lambda_.1} parent=91 // pred_region
        %p7403 = scmp.lt.s32.totalorder %s28, 1
        %s7404 = scalar_select %p7403, %s28, 1
        %s7405 = smul.addr %s7404, 12
        %s7406 = smul.addr %s7405, 8
        %s7407 = scalar_lea.vmem %s16, %s7406
      $region96: #{_lambda_.1} parent=91 // pred_fallthru
        _
    $region92: #{_lambda_.1} parent=5 // pred_fallthru
      _
  $region6: #{_lambda_.1} parent=0 // loop_footer
    %s26 = sadd.s32 1, %s22
  $region7: #{_lambda_.1} parent=0 // loop_footer_branch
    %21 = sbr.rel target = $region3
  $region8: #{_lambda_.1} parent=0 // loop_exit
    _

</llo_original>
